<compile_context>
chip_gen: v5e
topology: v5e:2x2
jax: 0.10.0
libtpu: 0.0.40
codegen_flags: <defaults>
</compile_context>

<pallas_src>
import jax
import jax.numpy as jnp
from jax import lax
from jax.experimental import pallas as pl
from jax.experimental.pallas import tpu as pltpu


# ----------------------------------------------------------------------------
# Pallas kernels
# ----------------------------------------------------------------------------
def _cnn_kernel(x_ref, w1_ref, b1_ref, w2_ref, b2_ref, o_ref,
                xpad_ref, col1_ref, hpad_ref, col2_ref):
    # x_ref : (1, H, W, Cin) f32      one image (NHWC)
    # w1_ref: (9*Cin, C1)    bf16     conv1 weights, taps packed along K
    # w2_ref: (9*C1, C2)     bf16     conv2 weights
    # b*_ref: (1, C*)        f32
    # o_ref : (1, H*W, C2)   f32      NHWC-flat features for this image
    # scratch: xpad (H+2,W+2,Cin) f32, col1 (H*W,9*Cin) bf16,
    #          hpad (H+2,W+2,C1) f32, col2 (H*W,9*C1) bf16
    _, H, W, Cin = x_ref.shape
    C1 = w1_ref.shape[1]

    # ---- layer 1: 3x3 conv (pad=1) + ReLU as a single im2col GEMM ----
    xpad_ref[...] = jnp.zeros(xpad_ref.shape, xpad_ref.dtype)
    xpad_ref[1:H + 1, 1:W + 1, :] = x_ref[0]
    for kh in range(3):
        for kw in range(3):
            t = kh * 3 + kw
            win = xpad_ref[kh:kh + H, kw:kw + W, :]            # (H, W, Cin)
            col1_ref[:, t * Cin:(t + 1) * Cin] = (
                win.reshape(H * W, Cin).astype(col1_ref.dtype))
    h1 = jnp.dot(col1_ref[...], w1_ref[...],                   # (H*W, C1) f32
                 preferred_element_type=jnp.float32)
    h1 = jnp.maximum(h1 + b1_ref[...], 0.0)

    # ---- layer 2: 3x3 conv (pad=1) + ReLU, intermediate stays in VMEM ----
    hpad_ref[...] = jnp.zeros(hpad_ref.shape, hpad_ref.dtype)
    hpad_ref[1:H + 1, 1:W + 1, :] = h1.reshape(H, W, C1)
    for kh in range(3):
        for kw in range(3):
            t = kh * 3 + kw
            win = hpad_ref[kh:kh + H, kw:kw + W, :]            # (H, W, C1)
            col2_ref[:, t * C1:(t + 1) * C1] = (
                win.reshape(H * W, C1).astype(col2_ref.dtype))
    h2 = jnp.dot(col2_ref[...], w2_ref[...],                   # (H*W, C2) f32
                 preferred_element_type=jnp.float32)
    h2 = jnp.maximum(h2 + b2_ref[...], 0.0)

    o_ref[0] = h2.astype(o_ref.dtype)


def _classifier_kernel(x_ref, w1_ref, b1_ref, w2_ref, b2_ref, w3_ref, b3_ref,
                       o_ref, acc_ref):
    # K-tiled fused MLP: Dropout(id) -> Linear -> ReLU -> Dropout(id)
    #                    -> Linear -> ReLU -> Linear
    # grid axis 0 tiles the first contraction (feature) dimension; w1 tiles
    # are streamed and accumulated into a resident f32 VMEM accumulator.
    k = pl.program_id(0)

    @pl.when(k == 0)
    def _():
        acc_ref[...] = jnp.zeros(acc_ref.shape, acc_ref.dtype)

    acc_ref[...] += jnp.dot(x_ref[...].astype(jnp.bfloat16), w1_ref[...],
                            preferred_element_type=jnp.float32)

    @pl.when(k == pl.num_programs(0) - 1)
    def _():
        h = jnp.maximum(acc_ref[...] + b1_ref[...], 0.0)
        h = jnp.dot(h.astype(jnp.bfloat16), w2_ref[...],
                    preferred_element_type=jnp.float32)
        h = jnp.maximum(h + b2_ref[...], 0.0)
        o = jnp.dot(h.astype(jnp.bfloat16), w3_ref[...],
                    preferred_element_type=jnp.float32) + b3_ref[...]
        o_ref[...] = o.astype(o_ref.dtype)


# ----------------------------------------------------------------------------
# Wrappers (pallas_call plumbing)
# ----------------------------------------------------------------------------
def cnn_features(x_nhwc, p):
    """Fused 2-layer conv3x3+ReLU stack; returns NHWC-flat features (B, H*W*C2)."""
    B, H, W, Cin = x_nhwc.shape
    C1 = p["w1g"].shape[1]
    C2 = p["w2g"].shape[1]
    out = pl.pallas_call(
        _cnn_kernel,
        out_shape=jax.ShapeDtypeStruct((B, H * W, C2), jnp.float32),
        grid=(B,),
        in_specs=[
            pl.BlockSpec((1, H, W, Cin), lambda b: (b, 0, 0, 0)),
            pl.BlockSpec((9 * Cin, C1), lambda b: (0, 0)),
            pl.BlockSpec((1, C1), lambda b: (0, 0)),
            pl.BlockSpec((9 * C1, C2), lambda b: (0, 0)),
            pl.BlockSpec((1, C2), lambda b: (0, 0)),
        ],
        out_specs=pl.BlockSpec((1, H * W, C2), lambda b: (b, 0, 0)),
        scratch_shapes=[
            pltpu.VMEM((H + 2, W + 2, Cin), jnp.float32),
            pltpu.VMEM((H * W, 9 * Cin), jnp.bfloat16),
            pltpu.VMEM((H + 2, W + 2, C1), jnp.float32),
            pltpu.VMEM((H * W, 9 * C1), jnp.bfloat16),
        ],
        compiler_params=pltpu.CompilerParams(
            dimension_semantics=("parallel",)),   # batch across TCs on v7x
    )(x_nhwc, p["w1g"], p["b1"], p["w2g"], p["b2"])
    # Row-major reshape == NHWC flatten order; no data movement.
    return out.reshape(B, H * W * C2)


def classifier(feats, p, *, tk=512):
    B, F = feats.shape
    H1 = p["w1"].shape[1]
    H2 = p["w2"].shape[1]
    NC = p["w3"].shape[1]
    tk = min(tk, F)
    assert F % tk == 0
    kt = F // tk
    return pl.pallas_call(
        _classifier_kernel,
        out_shape=jax.ShapeDtypeStruct((B, NC), jnp.float32),
        grid=(kt,),
        in_specs=[
            pl.BlockSpec((B, tk), lambda k: (0, k)),
            pl.BlockSpec((tk, H1), lambda k: (k, 0)),
            pl.BlockSpec((1, H1), lambda k: (0, 0)),
            pl.BlockSpec((H1, H2), lambda k: (0, 0)),
            pl.BlockSpec((1, H2), lambda k: (0, 0)),
            pl.BlockSpec((H2, NC), lambda k: (0, 0)),
            pl.BlockSpec((1, NC), lambda k: (0, 0)),
        ],
        out_specs=pl.BlockSpec((B, NC), lambda k: (0, 0)),
        scratch_shapes=[pltpu.VMEM((B, H1), jnp.float32)],
        compiler_params=pltpu.CompilerParams(
            dimension_semantics=("arbitrary",)),  # K is a reduction axis
    )(feats, p["w1"], p["b1"], p["w2"], p["b2"], p["w3"], p["b3"])


@jax.jit
def single_res_cnn_forward(x_nchw, kparams):
    # x = self.CNN(x): kernels run in NHWC (channels on the lane dim).
    x_nhwc = jnp.transpose(x_nchw, (0, 2, 3, 1))
    feats = cnn_features(x_nhwc, kparams["cnn"])
    # x.reshape(B, -1) + classifier: w1 rows were permuted offline so the MLP
    # consumes the NHWC-flat features directly (no NCHW transpose/concat here).
    return classifier(feats, kparams["classifier"])


# ----------------------------------------------------------------------------
# Parameter packing for the kernels (one-time, host side)
# ----------------------------------------------------------------------------
def prepare_kernel_params(params, *, c2=16, hw=16):
    cnn = params["cnn"]
    cls = params["classifier"]

    def pack_conv(w):  # (3,3,Cin,Cout) -> (9*Cin, Cout) bf16, tap-major rows
        kh, kw, cin, cout = w.shape
        return w.reshape(kh * kw * cin, cout).astype(jnp.bfloat16)

    # Permute w1 rows: NHWC-flat feature index -> NCHW-flat (torch) index.
    perm = jnp.transpose(jnp.arange(c2 * hw * hw).reshape(c2, hw, hw),
                         (1, 2, 0)).reshape(-1)
    return {
        "cnn": {
            "w1g": pack_conv(cnn["w1"]), "b1": cnn["b1"].astype(jnp.float32),
            "w2g": pack_conv(cnn["w2"]), "b2": cnn["b2"].astype(jnp.float32),
        },
        "classifier": {
            "w1": cls["w1"][perm, :].astype(jnp.bfloat16), "b1": cls["b1"],
            "w2": cls["w2"].astype(jnp.bfloat16), "b2": cls["b2"],
            "w3": cls["w3"].astype(jnp.bfloat16), "b3": cls["b3"],
        },
    }


# ----------------------------------------------------------------------------
# Pure-JAX reference (correctness check only; same bf16 operand quantization)
# ----------------------------------------------------------------------------
def _conv_ref(x_nhwc, w, b):
    y = lax.conv_general_dilated(
        x_nhwc.astype(jnp.bfloat16), w.astype(jnp.bfloat16),
        window_strides=(1, 1), padding=((1, 1), (1, 1)),
        dimension_numbers=("NHWC", "HWIO", "NHWC"),
        preferred_element_type=jnp.float32)
    return jnp.maximum(y + b.reshape(1, 1, 1, -1), 0.0)


def _lin_ref(x, w, b):
    return jnp.dot(x.astype(jnp.bfloat16), w.astype(jnp.bfloat16),
                   preferred_element_type=jnp.float32) + b


def reference_forward(x_nchw, params):
    x = jnp.transpose(x_nchw, (0, 2, 3, 1))
    p = params["cnn"]
    h = _conv_ref(x, p["w1"], p["b1"])
    h = _conv_ref(h, p["w2"], p["b2"])            # (B, H, W, C2)
    h = jnp.transpose(h, (0, 3, 1, 2))            # NCHW, like torch CNN output
    feats = h.reshape(h.shape[0], -1)             # torch x.reshape(B, -1)
    c = params["classifier"]
    z = jnp.maximum(_lin_ref(feats, c["w1"], c["b1"]), 0.0)  # Dropout = id (eval)
    z = jnp.maximum(_lin_ref(z, c["w2"], c["b2"]), 0.0)      # Dropout = id (eval)
    return _lin_ref(z, c["w3"], c["b3"])


# ----------------------------------------------------------------------------
# Deterministic parameter init (synthetic — structure only, no checkpoint)
# ----------------------------------------------------------------------------
def init_params(key, c_in=4, c1=8, c2=16, hw=16, hidden=256, num_classes=10):
    ks = jax.random.split(key, 10)

    def conv_w(k, cin, cout):
        return (0.05 * jax.random.normal(k, (3, 3, cin, cout))).astype(jnp.float32)

    def lin_w(k, fin, fout):
        return (0.05 * jax.random.normal(k, (fin, fout))).astype(jnp.float32)

    def bias(k, n):
        return (0.01 * jax.random.normal(k, (1, n))).astype(jnp.float32)

    feat_dim = c2 * hw * hw   # stand-in for 256 * 7 * 7
    return {
        "cnn": {
            "w1": conv_w(ks[0], c_in, c1), "b1": bias(ks[1], c1),
            "w2": conv_w(ks[2], c1, c2), "b2": bias(ks[3], c2),
        },
        "classifier": {
            "w1": lin_w(ks[4], feat_dim, hidden), "b1": bias(ks[5], hidden),
            "w2": lin_w(ks[6], hidden, hidden), "b2": bias(ks[7], hidden),
            "w3": lin_w(ks[8], hidden, num_classes), "b3": bias(ks[9], num_classes),
        },
    }


if __name__ == "__main__":
    key = jax.random.PRNGKey(0)
    pkey, xkey = jax.random.split(key)
    params = init_params(pkey)
    kparams = prepare_kernel_params(params, c2=16, hw=16)

    # NCHW input, like the PyTorch module.
    x = jax.random.normal(xkey, (2, 4, 16, 16), dtype=jnp.float32)

    out = single_res_cnn_forward(x, kparams)
    out = jax.block_until_ready(out)

    ref = reference_forward(x, params)
    assert out.shape == (2, 10)
    assert bool(jnp.all(jnp.isfinite(out)))
    assert bool(jnp.allclose(out, ref, rtol=2e-2, atol=2e-3))

    print("KERNEL_OK")
</pallas_src>

<mosaic_0001>
module attributes {stable_mosaic.version = 11 : i64} {
  func.func @_cnn_kernel(%arg0: i32, %arg1: memref<1x16x16x4xf32, #tpu.memory_space<vmem>>, %arg2: memref<36x8xbf16, #tpu.memory_space<vmem>>, %arg3: memref<1x8xf32, #tpu.memory_space<vmem>>, %arg4: memref<72x16xbf16, #tpu.memory_space<vmem>>, %arg5: memref<1x16xf32, #tpu.memory_space<vmem>>, %arg6: memref<1x256x16xf32, #tpu.memory_space<vmem>>, %arg7: memref<18x18x4xf32, #tpu.memory_space<vmem>>, %arg8: memref<256x36xbf16, #tpu.memory_space<vmem>>, %arg9: memref<18x18x8xf32, #tpu.memory_space<vmem>>, %arg10: memref<256x72xbf16, #tpu.memory_space<vmem>>) attributes {dimension_semantics = [#tpu.dimension_semantics<parallel>], iteration_bounds = array<i64: 2>, scalar_prefetch = 0 : i64, scratch_operands = 4 : i64, tpu.core_type = #tpu.core_type<tc>, window_params = [{transform_indices = @transform_0, window_bounds = array<i64: 1, 16, 16, 4>}, {pipeline_mode = #tpu.pipeline_mode<synchronous>, transform_indices = @transform_1, window_bounds = array<i64: 36, 8>}, {pipeline_mode = #tpu.pipeline_mode<synchronous>, transform_indices = @transform_2, window_bounds = array<i64: 1, 8>}, {pipeline_mode = #tpu.pipeline_mode<synchronous>, transform_indices = @transform_3, window_bounds = array<i64: 72, 16>}, {pipeline_mode = #tpu.pipeline_mode<synchronous>, transform_indices = @transform_4, window_bounds = array<i64: 1, 16>}, {transform_indices = @transform_5, window_bounds = array<i64: 1, 256, 16>}]} {
    %cst = arith.constant 0.000000e+00 : f32
    %0 = vector.broadcast %cst : f32 to vector<18x18x4xf32>
    %c0 = arith.constant 0 : index
    %c0_0 = arith.constant 0 : index
    %c0_1 = arith.constant 0 : index
    %1 = vector.load %arg7[%c0, %c0_0, %c0_1] : memref<18x18x4xf32, #tpu.memory_space<vmem>>, vector<18x18x4xf32>
    tpu.vector_store %arg7[%c0, %c0_0, %c0_1], %0 {strides = array<i32>} : memref<18x18x4xf32, #tpu.memory_space<vmem>>, vector<18x18x4xf32>,
    %c0_2 = arith.constant 0 : index
    %c0_3 = arith.constant 0 : index
    %c0_4 = arith.constant 0 : index
    %c0_5 = arith.constant 0 : index
    %2 = vector.load %arg1[%c0_2, %c0_3, %c0_4, %c0_5] : memref<1x16x16x4xf32, #tpu.memory_space<vmem>>, vector<1x16x16x4xf32>
    %3 = vector.shape_cast %2 : vector<1x16x16x4xf32> to vector<16x16x4xf32>
    %c1 = arith.constant 1 : index
    %c1_6 = arith.constant 1 : index
    %c0_7 = arith.constant 0 : index
    %4 = vector.load %arg7[%c1, %c1_6, %c0_7] : memref<18x18x4xf32, #tpu.memory_space<vmem>>, vector<16x16x4xf32>
    tpu.vector_store %arg7[%c1, %c1_6, %c0_7], %3 {strides = array<i32>} : memref<18x18x4xf32, #tpu.memory_space<vmem>>, vector<16x16x4xf32>,
    %c0_8 = arith.constant 0 : index
    %c0_9 = arith.constant 0 : index
    %c0_10 = arith.constant 0 : index
    %5 = vector.load %arg7[%c0_8, %c0_9, %c0_10] : memref<18x18x4xf32, #tpu.memory_space<vmem>>, vector<16x16x4xf32>
    %6 = vector.shape_cast %5 : vector<16x16x4xf32> to vector<256x4xf32>
    %7 = arith.truncf %6 : vector<256x4xf32> to vector<256x4xbf16>
    %c0_11 = arith.constant 0 : index
    %c0_12 = arith.constant 0 : index
    %8 = vector.load %arg8[%c0_11, %c0_12] : memref<256x36xbf16, #tpu.memory_space<vmem>>, vector<256x4xbf16>
    tpu.vector_store %arg8[%c0_11, %c0_12], %7 {strides = array<i32>} : memref<256x36xbf16, #tpu.memory_space<vmem>>, vector<256x4xbf16>,
    %c0_13 = arith.constant 0 : index
    %c1_14 = arith.constant 1 : index
    %c0_15 = arith.constant 0 : index
    %9 = vector.load %arg7[%c0_13, %c1_14, %c0_15] : memref<18x18x4xf32, #tpu.memory_space<vmem>>, vector<16x16x4xf32>
    %10 = vector.shape_cast %9 : vector<16x16x4xf32> to vector<256x4xf32>
    %11 = arith.truncf %10 : vector<256x4xf32> to vector<256x4xbf16>
    %c0_16 = arith.constant 0 : index
    %c4 = arith.constant 4 : index
    %12 = vector.load %arg8[%c0_16, %c4] : memref<256x36xbf16, #tpu.memory_space<vmem>>, vector<256x4xbf16>
    tpu.vector_store %arg8[%c0_16, %c4], %11 {strides = array<i32>} : memref<256x36xbf16, #tpu.memory_space<vmem>>, vector<256x4xbf16>,
    %c0_17 = arith.constant 0 : index
    %c2 = arith.constant 2 : index
    %c0_18 = arith.constant 0 : index
    %13 = vector.load %arg7[%c0_17, %c2, %c0_18] : memref<18x18x4xf32, #tpu.memory_space<vmem>>, vector<16x16x4xf32>
    %14 = vector.shape_cast %13 : vector<16x16x4xf32> to vector<256x4xf32>
    %15 = arith.truncf %14 : vector<256x4xf32> to vector<256x4xbf16>
    %c0_19 = arith.constant 0 : index
    %c8 = arith.constant 8 : index
    %16 = vector.load %arg8[%c0_19, %c8] : memref<256x36xbf16, #tpu.memory_space<vmem>>, vector<256x4xbf16>
    tpu.vector_store %arg8[%c0_19, %c8], %15 {strides = array<i32>} : memref<256x36xbf16, #tpu.memory_space<vmem>>, vector<256x4xbf16>,
    %c1_20 = arith.constant 1 : index
    %c0_21 = arith.constant 0 : index
    %c0_22 = arith.constant 0 : index
    %17 = vector.load %arg7[%c1_20, %c0_21, %c0_22] : memref<18x18x4xf32, #tpu.memory_space<vmem>>, vector<16x16x4xf32>
    %18 = vector.shape_cast %17 : vector<16x16x4xf32> to vector<256x4xf32>
    %19 = arith.truncf %18 : vector<256x4xf32> to vector<256x4xbf16>
    %c0_23 = arith.constant 0 : index
    %c12 = arith.constant 12 : index
    %20 = vector.load %arg8[%c0_23, %c12] : memref<256x36xbf16, #tpu.memory_space<vmem>>, vector<256x4xbf16>
    tpu.vector_store %arg8[%c0_23, %c12], %19 {strides = array<i32>} : memref<256x36xbf16, #tpu.memory_space<vmem>>, vector<256x4xbf16>,
    %c1_24 = arith.constant 1 : index
    %c1_25 = arith.constant 1 : index
    %c0_26 = arith.constant 0 : index
    %21 = vector.load %arg7[%c1_24, %c1_25, %c0_26] : memref<18x18x4xf32, #tpu.memory_space<vmem>>, vector<16x16x4xf32>
    %22 = vector.shape_cast %21 : vector<16x16x4xf32> to vector<256x4xf32>
    %23 = arith.truncf %22 : vector<256x4xf32> to vector<256x4xbf16>
    %c0_27 = arith.constant 0 : index
    %c16 = arith.constant 16 : index
    %24 = vector.load %arg8[%c0_27, %c16] : memref<256x36xbf16, #tpu.memory_space<vmem>>, vector<256x4xbf16>
    tpu.vector_store %arg8[%c0_27, %c16], %23 {strides = array<i32>} : memref<256x36xbf16, #tpu.memory_space<vmem>>, vector<256x4xbf16>,
    %c1_28 = arith.constant 1 : index
    %c2_29 = arith.constant 2 : index
    %c0_30 = arith.constant 0 : index
    %25 = vector.load %arg7[%c1_28, %c2_29, %c0_30] : memref<18x18x4xf32, #tpu.memory_space<vmem>>, vector<16x16x4xf32>
    %26 = vector.shape_cast %25 : vector<16x16x4xf32> to vector<256x4xf32>
    %27 = arith.truncf %26 : vector<256x4xf32> to vector<256x4xbf16>
    %c0_31 = arith.constant 0 : index
    %c20 = arith.constant 20 : index
    %28 = vector.load %arg8[%c0_31, %c20] : memref<256x36xbf16, #tpu.memory_space<vmem>>, vector<256x4xbf16>
    tpu.vector_store %arg8[%c0_31, %c20], %27 {strides = array<i32>} : memref<256x36xbf16, #tpu.memory_space<vmem>>, vector<256x4xbf16>,
    %c2_32 = arith.constant 2 : index
    %c0_33 = arith.constant 0 : index
    %c0_34 = arith.constant 0 : index
    %29 = vector.load %arg7[%c2_32, %c0_33, %c0_34] : memref<18x18x4xf32, #tpu.memory_space<vmem>>, vector<16x16x4xf32>
    %30 = vector.shape_cast %29 : vector<16x16x4xf32> to vector<256x4xf32>
    %31 = arith.truncf %30 : vector<256x4xf32> to vector<256x4xbf16>
    %c0_35 = arith.constant 0 : index
    %c24 = arith.constant 24 : index
    %32 = vector.load %arg8[%c0_35, %c24] : memref<256x36xbf16, #tpu.memory_space<vmem>>, vector<256x4xbf16>
    tpu.vector_store %arg8[%c0_35, %c24], %31 {strides = array<i32>} : memref<256x36xbf16, #tpu.memory_space<vmem>>, vector<256x4xbf16>,
    %c2_36 = arith.constant 2 : index
    %c1_37 = arith.constant 1 : index
    %c0_38 = arith.constant 0 : index
    %33 = vector.load %arg7[%c2_36, %c1_37, %c0_38] : memref<18x18x4xf32, #tpu.memory_space<vmem>>, vector<16x16x4xf32>
    %34 = vector.shape_cast %33 : vector<16x16x4xf32> to vector<256x4xf32>
    %35 = arith.truncf %34 : vector<256x4xf32> to vector<256x4xbf16>
    %c0_39 = arith.constant 0 : index
    %c28 = arith.constant 28 : index
    %36 = vector.load %arg8[%c0_39, %c28] : memref<256x36xbf16, #tpu.memory_space<vmem>>, vector<256x4xbf16>
    tpu.vector_store %arg8[%c0_39, %c28], %35 {strides = array<i32>} : memref<256x36xbf16, #tpu.memory_space<vmem>>, vector<256x4xbf16>,
    %c2_40 = arith.constant 2 : index
    %c2_41 = arith.constant 2 : index
    %c0_42 = arith.constant 0 : index
    %37 = vector.load %arg7[%c2_40, %c2_41, %c0_42] : memref<18x18x4xf32, #tpu.memory_space<vmem>>, vector<16x16x4xf32>
    %38 = vector.shape_cast %37 : vector<16x16x4xf32> to vector<256x4xf32>
    %39 = arith.truncf %38 : vector<256x4xf32> to vector<256x4xbf16>
    %c0_43 = arith.constant 0 : index
    %c32 = arith.constant 32 : index
    %40 = vector.load %arg8[%c0_43, %c32] : memref<256x36xbf16, #tpu.memory_space<vmem>>, vector<256x4xbf16>
    tpu.vector_store %arg8[%c0_43, %c32], %39 {strides = array<i32>} : memref<256x36xbf16, #tpu.memory_space<vmem>>, vector<256x4xbf16>,
    %c0_44 = arith.constant 0 : index
    %c0_45 = arith.constant 0 : index
    %41 = vector.load %arg8[%c0_44, %c0_45] : memref<256x36xbf16, #tpu.memory_space<vmem>>, vector<256x36xbf16>
    %c0_46 = arith.constant 0 : index
    %c0_47 = arith.constant 0 : index
    %42 = vector.load %arg2[%c0_46, %c0_47] : memref<36x8xbf16, #tpu.memory_space<vmem>>, vector<36x8xbf16>
    %cst_48 = arith.constant dense<0.000000e+00> : vector<256x8xf32>
    %43 = tpu.matmul %41, %42, %cst_48 {dimension_numbers = #tpu.dot_dimension_numbers<[1], [0], [0], [1], [0, 0, 1, 1], [], []>} : vector<256x36xbf16>, vector<36x8xbf16>, vector<256x8xf32> -> vector<256x8xf32>
    %c0_49 = arith.constant 0 : index
    %c0_50 = arith.constant 0 : index
    %44 = vector.load %arg3[%c0_49, %c0_50] : memref<1x8xf32, #tpu.memory_space<vmem>>, vector<1x8xf32>
    %45 = vector.broadcast %44 : vector<1x8xf32> to vector<256x8xf32>
    %46 = arith.addf %43, %45 : vector<256x8xf32>
    %cst_51 = arith.constant 0.000000e+00 : f32
    %47 = vector.broadcast %cst_51 : f32 to vector<256x8xf32>
    %48 = arith.maximumf %46, %47 : vector<256x8xf32>
    %cst_52 = arith.constant 0.000000e+00 : f32
    %49 = vector.broadcast %cst_52 : f32 to vector<18x18x8xf32>
    %c0_53 = arith.constant 0 : index
    %c0_54 = arith.constant 0 : index
    %c0_55 = arith.constant 0 : index
    %50 = vector.load %arg9[%c0_53, %c0_54, %c0_55] : memref<18x18x8xf32, #tpu.memory_space<vmem>>, vector<18x18x8xf32>
    tpu.vector_store %arg9[%c0_53, %c0_54, %c0_55], %49 {strides = array<i32>} : memref<18x18x8xf32, #tpu.memory_space<vmem>>, vector<18x18x8xf32>,
    %51 = vector.shape_cast %48 : vector<256x8xf32> to vector<16x16x8xf32>
    %c1_56 = arith.constant 1 : index
    %c1_57 = arith.constant 1 : index
    %c0_58 = arith.constant 0 : index
    %52 = vector.load %arg9[%c1_56, %c1_57, %c0_58] : memref<18x18x8xf32, #tpu.memory_space<vmem>>, vector<16x16x8xf32>
    tpu.vector_store %arg9[%c1_56, %c1_57, %c0_58], %51 {strides = array<i32>} : memref<18x18x8xf32, #tpu.memory_space<vmem>>, vector<16x16x8xf32>,
    %c0_59 = arith.constant 0 : index
    %c0_60 = arith.constant 0 : index
    %c0_61 = arith.constant 0 : index
    %53 = vector.load %arg9[%c0_59, %c0_60, %c0_61] : memref<18x18x8xf32, #tpu.memory_space<vmem>>, vector<16x16x8xf32>
    %54 = vector.shape_cast %53 : vector<16x16x8xf32> to vector<256x8xf32>
    %55 = arith.truncf %54 : vector<256x8xf32> to vector<256x8xbf16>
    %c0_62 = arith.constant 0 : index
    %c0_63 = arith.constant 0 : index
    %56 = vector.load %arg10[%c0_62, %c0_63] : memref<256x72xbf16, #tpu.memory_space<vmem>>, vector<256x8xbf16>
    tpu.vector_store %arg10[%c0_62, %c0_63], %55 {strides = array<i32>} : memref<256x72xbf16, #tpu.memory_space<vmem>>, vector<256x8xbf16>,
    %c0_64 = arith.constant 0 : index
    %c1_65 = arith.constant 1 : index
    %c0_66 = arith.constant 0 : index
    %57 = vector.load %arg9[%c0_64, %c1_65, %c0_66] : memref<18x18x8xf32, #tpu.memory_space<vmem>>, vector<16x16x8xf32>
    %58 = vector.shape_cast %57 : vector<16x16x8xf32> to vector<256x8xf32>
    %59 = arith.truncf %58 : vector<256x8xf32> to vector<256x8xbf16>
    %c0_67 = arith.constant 0 : index
    %c8_68 = arith.constant 8 : index
    %60 = vector.load %arg10[%c0_67, %c8_68] : memref<256x72xbf16, #tpu.memory_space<vmem>>, vector<256x8xbf16>
    tpu.vector_store %arg10[%c0_67, %c8_68], %59 {strides = array<i32>} : memref<256x72xbf16, #tpu.memory_space<vmem>>, vector<256x8xbf16>,
    %c0_69 = arith.constant 0 : index
    %c2_70 = arith.constant 2 : index
    %c0_71 = arith.constant 0 : index
    %61 = vector.load %arg9[%c0_69, %c2_70, %c0_71] : memref<18x18x8xf32, #tpu.memory_space<vmem>>, vector<16x16x8xf32>
    %62 = vector.shape_cast %61 : vector<16x16x8xf32> to vector<256x8xf32>
    %63 = arith.truncf %62 : vector<256x8xf32> to vector<256x8xbf16>
    %c0_72 = arith.constant 0 : index
    %c16_73 = arith.constant 16 : index
    %64 = vector.load %arg10[%c0_72, %c16_73] : memref<256x72xbf16, #tpu.memory_space<vmem>>, vector<256x8xbf16>
    tpu.vector_store %arg10[%c0_72, %c16_73], %63 {strides = array<i32>} : memref<256x72xbf16, #tpu.memory_space<vmem>>, vector<256x8xbf16>,
    %c1_74 = arith.constant 1 : index
    %c0_75 = arith.constant 0 : index
    %c0_76 = arith.constant 0 : index
    %65 = vector.load %arg9[%c1_74, %c0_75, %c0_76] : memref<18x18x8xf32, #tpu.memory_space<vmem>>, vector<16x16x8xf32>
    %66 = vector.shape_cast %65 : vector<16x16x8xf32> to vector<256x8xf32>
    %67 = arith.truncf %66 : vector<256x8xf32> to vector<256x8xbf16>
    %c0_77 = arith.constant 0 : index
    %c24_78 = arith.constant 24 : index
    %68 = vector.load %arg10[%c0_77, %c24_78] : memref<256x72xbf16, #tpu.memory_space<vmem>>, vector<256x8xbf16>
    tpu.vector_store %arg10[%c0_77, %c24_78], %67 {strides = array<i32>} : memref<256x72xbf16, #tpu.memory_space<vmem>>, vector<256x8xbf16>,
    %c1_79 = arith.constant 1 : index
    %c1_80 = arith.constant 1 : index
    %c0_81 = arith.constant 0 : index
    %69 = vector.load %arg9[%c1_79, %c1_80, %c0_81] : memref<18x18x8xf32, #tpu.memory_space<vmem>>, vector<16x16x8xf32>
    %70 = vector.shape_cast %69 : vector<16x16x8xf32> to vector<256x8xf32>
    %71 = arith.truncf %70 : vector<256x8xf32> to vector<256x8xbf16>
    %c0_82 = arith.constant 0 : index
    %c32_83 = arith.constant 32 : index
    %72 = vector.load %arg10[%c0_82, %c32_83] : memref<256x72xbf16, #tpu.memory_space<vmem>>, vector<256x8xbf16>
    tpu.vector_store %arg10[%c0_82, %c32_83], %71 {strides = array<i32>} : memref<256x72xbf16, #tpu.memory_space<vmem>>, vector<256x8xbf16>,
    %c1_84 = arith.constant 1 : index
    %c2_85 = arith.constant 2 : index
    %c0_86 = arith.constant 0 : index
    %73 = vector.load %arg9[%c1_84, %c2_85, %c0_86] : memref<18x18x8xf32, #tpu.memory_space<vmem>>, vector<16x16x8xf32>
    %74 = vector.shape_cast %73 : vector<16x16x8xf32> to vector<256x8xf32>
    %75 = arith.truncf %74 : vector<256x8xf32> to vector<256x8xbf16>
    %c0_87 = arith.constant 0 : index
    %c40 = arith.constant 40 : index
    %76 = vector.load %arg10[%c0_87, %c40] : memref<256x72xbf16, #tpu.memory_space<vmem>>, vector<256x8xbf16>
    tpu.vector_store %arg10[%c0_87, %c40], %75 {strides = array<i32>} : memref<256x72xbf16, #tpu.memory_space<vmem>>, vector<256x8xbf16>,
    %c2_88 = arith.constant 2 : index
    %c0_89 = arith.constant 0 : index
    %c0_90 = arith.constant 0 : index
    %77 = vector.load %arg9[%c2_88, %c0_89, %c0_90] : memref<18x18x8xf32, #tpu.memory_space<vmem>>, vector<16x16x8xf32>
    %78 = vector.shape_cast %77 : vector<16x16x8xf32> to vector<256x8xf32>
    %79 = arith.truncf %78 : vector<256x8xf32> to vector<256x8xbf16>
    %c0_91 = arith.constant 0 : index
    %c48 = arith.constant 48 : index
    %80 = vector.load %arg10[%c0_91, %c48] : memref<256x72xbf16, #tpu.memory_space<vmem>>, vector<256x8xbf16>
    tpu.vector_store %arg10[%c0_91, %c48], %79 {strides = array<i32>} : memref<256x72xbf16, #tpu.memory_space<vmem>>, vector<256x8xbf16>,
    %c2_92 = arith.constant 2 : index
    %c1_93 = arith.constant 1 : index
    %c0_94 = arith.constant 0 : index
    %81 = vector.load %arg9[%c2_92, %c1_93, %c0_94] : memref<18x18x8xf32, #tpu.memory_space<vmem>>, vector<16x16x8xf32>
    %82 = vector.shape_cast %81 : vector<16x16x8xf32> to vector<256x8xf32>
    %83 = arith.truncf %82 : vector<256x8xf32> to vector<256x8xbf16>
    %c0_95 = arith.constant 0 : index
    %c56 = arith.constant 56 : index
    %84 = vector.load %arg10[%c0_95, %c56] : memref<256x72xbf16, #tpu.memory_space<vmem>>, vector<256x8xbf16>
    tpu.vector_store %arg10[%c0_95, %c56], %83 {strides = array<i32>} : memref<256x72xbf16, #tpu.memory_space<vmem>>, vector<256x8xbf16>,
    %c2_96 = arith.constant 2 : index
    %c2_97 = arith.constant 2 : index
    %c0_98 = arith.constant 0 : index
    %85 = vector.load %arg9[%c2_96, %c2_97, %c0_98] : memref<18x18x8xf32, #tpu.memory_space<vmem>>, vector<16x16x8xf32>
    %86 = vector.shape_cast %85 : vector<16x16x8xf32> to vector<256x8xf32>
    %87 = arith.truncf %86 : vector<256x8xf32> to vector<256x8xbf16>
    %c0_99 = arith.constant 0 : index
    %c64 = arith.constant 64 : index
    %88 = vector.load %arg10[%c0_99, %c64] : memref<256x72xbf16, #tpu.memory_space<vmem>>, vector<256x8xbf16>
    tpu.vector_store %arg10[%c0_99, %c64], %87 {strides = array<i32>} : memref<256x72xbf16, #tpu.memory_space<vmem>>, vector<256x8xbf16>,
    %c0_100 = arith.constant 0 : index
    %c0_101 = arith.constant 0 : index
    %89 = vector.load %arg10[%c0_100, %c0_101] : memref<256x72xbf16, #tpu.memory_space<vmem>>, vector<256x72xbf16>
    %c0_102 = arith.constant 0 : index
    %c0_103 = arith.constant 0 : index
    %90 = vector.load %arg4[%c0_102, %c0_103] : memref<72x16xbf16, #tpu.memory_space<vmem>>, vector<72x16xbf16>
    %cst_104 = arith.constant dense<0.000000e+00> : vector<256x16xf32>
    %91 = tpu.matmul %89, %90, %cst_104 {dimension_numbers = #tpu.dot_dimension_numbers<[1], [0], [0], [1], [0, 0, 1, 1], [], []>} : vector<256x72xbf16>, vector<72x16xbf16>, vector<256x16xf32> -> vector<256x16xf32>
    %c0_105 = arith.constant 0 : index
    %c0_106 = arith.constant 0 : index
    %92 = vector.load %arg5[%c0_105, %c0_106] : memref<1x16xf32, #tpu.memory_space<vmem>>, vector<1x16xf32>
    %93 = vector.broadcast %92 : vector<1x16xf32> to vector<256x16xf32>
    %94 = arith.addf %91, %93 : vector<256x16xf32>
    %cst_107 = arith.constant 0.000000e+00 : f32
    %95 = vector.broadcast %cst_107 : f32 to vector<256x16xf32>
    %96 = arith.maximumf %94, %95 : vector<256x16xf32>
    %c0_108 = arith.constant 0 : index
    %c0_109 = arith.constant 0 : index
    %c0_110 = arith.constant 0 : index
    %97 = vector.load %arg6[%c0_108, %c0_109, %c0_110] : memref<1x256x16xf32, #tpu.memory_space<vmem>>, vector<1x256x16xf32>
    %98 = vector.shape_cast %97 : vector<1x256x16xf32> to vector<256x16xf32>
    %99 = vector.shape_cast %96 : vector<256x16xf32> to vector<1x256x16xf32>
    tpu.vector_store %arg6[%c0_108, %c0_109, %c0_110], %99 {strides = array<i32>} : memref<1x256x16xf32, #tpu.memory_space<vmem>>, vector<1x256x16xf32>,
    return
  }
  func.func @transform_0(%arg0: i32) -> (i32, i32, i32, i32) {
    %c0_i32 = arith.constant 0 : i32
    %c0_i32_0 = arith.constant 0 : i32
    %c0_i32_1 = arith.constant 0 : i32
    %c0_i32_2 = arith.constant 0 : i32
    return %arg0, %c0_i32, %c0_i32_0, %c0_i32_1 : i32, i32, i32, i32
  }
  func.func @transform_1(%arg0: i32) -> (i32, i32) {
    %c0_i32 = arith.constant 0 : i32
    %c0_i32_0 = arith.constant 0 : i32
    %c0_i32_1 = arith.constant 0 : i32
    return %c0_i32, %c0_i32_0 : i32, i32
  }
  func.func @transform_2(%arg0: i32) -> (i32, i32) {
    %c0_i32 = arith.constant 0 : i32
    %c0_i32_0 = arith.constant 0 : i32
    %c0_i32_1 = arith.constant 0 : i32
    return %c0_i32, %c0_i32_0 : i32, i32
  }
  func.func @transform_3(%arg0: i32) -> (i32, i32) {
    %c0_i32 = arith.constant 0 : i32
    %c0_i32_0 = arith.constant 0 : i32
    %c0_i32_1 = arith.constant 0 : i32
    return %c0_i32, %c0_i32_0 : i32, i32
  }
  func.func @transform_4(%arg0: i32) -> (i32, i32) {
    %c0_i32 = arith.constant 0 : i32
    %c0_i32_0 = arith.constant 0 : i32
    %c0_i32_1 = arith.constant 0 : i32
    return %c0_i32, %c0_i32_0 : i32, i32
  }
  func.func @transform_5(%arg0: i32) -> (i32, i32, i32) {
    %c0_i32 = arith.constant 0 : i32
    %c0_i32_0 = arith.constant 0 : i32
    %c0_i32_1 = arith.constant 0 : i32
    return %arg0, %c0_i32, %c0_i32_0 : i32, i32, i32
  }
}

module attributes {stable_mosaic.version = 11 : i64} {
  func.func @_classifier_kernel(%arg0: i32, %arg1: memref<2x512xf32, #tpu.memory_space<vmem>>, %arg2: memref<512x256xbf16, #tpu.memory_space<vmem>>, %arg3: memref<1x256xf32, #tpu.memory_space<vmem>>, %arg4: memref<256x256xbf16, #tpu.memory_space<vmem>>, %arg5: memref<1x256xf32, #tpu.memory_space<vmem>>, %arg6: memref<256x10xbf16, #tpu.memory_space<vmem>>, %arg7: memref<1x10xf32, #tpu.memory_space<vmem>>, %arg8: memref<2x10xf32, #tpu.memory_space<vmem>>, %arg9: memref<2x256xf32, #tpu.memory_space<vmem>>) attributes {dimension_semantics = [#tpu.dimension_semantics<arbitrary>], iteration_bounds = array<i64: 8>, scalar_prefetch = 0 : i64, scratch_operands = 1 : i64, tpu.core_type = #tpu.core_type<tc>, window_params = [{transform_indices = @transform_0, window_bounds = array<i64: 2, 512>}, {transform_indices = @transform_1, window_bounds = array<i64: 512, 256>}, {pipeline_mode = #tpu.pipeline_mode<synchronous>, transform_indices = @transform_2, window_bounds = array<i64: 1, 256>}, {pipeline_mode = #tpu.pipeline_mode<synchronous>, transform_indices = @transform_3, window_bounds = array<i64: 256, 256>}, {pipeline_mode = #tpu.pipeline_mode<synchronous>, transform_indices = @transform_4, window_bounds = array<i64: 1, 256>}, {pipeline_mode = #tpu.pipeline_mode<synchronous>, transform_indices = @transform_5, window_bounds = array<i64: 256, 10>}, {pipeline_mode = #tpu.pipeline_mode<synchronous>, transform_indices = @transform_6, window_bounds = array<i64: 1, 10>}, {pipeline_mode = #tpu.pipeline_mode<synchronous>, transform_indices = @transform_7, window_bounds = array<i64: 2, 10>}]} {
    %c0_i32 = arith.constant 0 : i32
    %0 = arith.cmpi eq, %arg0, %c0_i32 : i32
    %1 = arith.extui %0 : i1 to i32
    %c0_i32_0 = arith.constant 0 : i32
    %2 = arith.cmpi ne, %1, %c0_i32_0 : i32
    scf.if %2 {
      %cst_9 = arith.constant 0.000000e+00 : f32
      %13 = vector.broadcast %cst_9 : f32 to vector<2x256xf32>
      %c0_10 = arith.constant 0 : index
      %c0_11 = arith.constant 0 : index
      %14 = vector.load %arg9[%c0_10, %c0_11] : memref<2x256xf32, #tpu.memory_space<vmem>>, vector<2x256xf32>
      tpu.vector_store %arg9[%c0_10, %c0_11], %13 {strides = array<i32>} : memref<2x256xf32, #tpu.memory_space<vmem>>, vector<2x256xf32>,
    } else {
    }
    %c0 = arith.constant 0 : index
    %c0_1 = arith.constant 0 : index
    %3 = vector.load %arg9[%c0, %c0_1] : memref<2x256xf32, #tpu.memory_space<vmem>>, vector<2x256xf32>
    %c0_2 = arith.constant 0 : index
    %c0_3 = arith.constant 0 : index
    %4 = vector.load %arg1[%c0_2, %c0_3] : memref<2x512xf32, #tpu.memory_space<vmem>>, vector<2x512xf32>
    %5 = arith.truncf %4 : vector<2x512xf32> to vector<2x512xbf16>
    %c0_4 = arith.constant 0 : index
    %c0_5 = arith.constant 0 : index
    %6 = vector.load %arg2[%c0_4, %c0_5] : memref<512x256xbf16, #tpu.memory_space<vmem>>, vector<512x256xbf16>
    %cst = arith.constant dense<0.000000e+00> : vector<2x256xf32>
    %7 = tpu.matmul %5, %6, %cst {dimension_numbers = #tpu.dot_dimension_numbers<[1], [0], [0], [1], [0, 0, 1, 1], [], []>} : vector<2x512xbf16>, vector<512x256xbf16>, vector<2x256xf32> -> vector<2x256xf32>
    %8 = arith.addf %3, %7 : vector<2x256xf32>
    %c0_6 = arith.constant 0 : index
    %c0_7 = arith.constant 0 : index
    %9 = vector.load %arg9[%c0_6, %c0_7] : memref<2x256xf32, #tpu.memory_space<vmem>>, vector<2x256xf32>
    tpu.vector_store %arg9[%c0_6, %c0_7], %8 {strides = array<i32>} : memref<2x256xf32, #tpu.memory_space<vmem>>, vector<2x256xf32>,
    %c7_i32 = arith.constant 7 : i32
    %10 = arith.cmpi eq, %arg0, %c7_i32 : i32
    %11 = arith.extui %10 : i1 to i32
    %c0_i32_8 = arith.constant 0 : i32
    %12 = arith.cmpi ne, %11, %c0_i32_8 : i32
    scf.if %12 {
      %c0_9 = arith.constant 0 : index
      %c0_10 = arith.constant 0 : index
      %13 = vector.load %arg9[%c0_9, %c0_10] : memref<2x256xf32, #tpu.memory_space<vmem>>, vector<2x256xf32>
      %c0_11 = arith.constant 0 : index
      %c0_12 = arith.constant 0 : index
      %14 = vector.load %arg3[%c0_11, %c0_12] : memref<1x256xf32, #tpu.memory_space<vmem>>, vector<1x256xf32>
      %15 = vector.broadcast %14 : vector<1x256xf32> to vector<2x256xf32>
      %16 = arith.addf %13, %15 : vector<2x256xf32>
      %cst_13 = arith.constant 0.000000e+00 : f32
      %17 = vector.broadcast %cst_13 : f32 to vector<2x256xf32>
      %18 = arith.maximumf %16, %17 : vector<2x256xf32>
      %19 = arith.truncf %18 : vector<2x256xf32> to vector<2x256xbf16>
      %c0_14 = arith.constant 0 : index
      %c0_15 = arith.constant 0 : index
      %20 = vector.load %arg4[%c0_14, %c0_15] : memref<256x256xbf16, #tpu.memory_space<vmem>>, vector<256x256xbf16>
      %cst_16 = arith.constant dense<0.000000e+00> : vector<2x256xf32>
      %21 = tpu.matmul %19, %20, %cst_16 {dimension_numbers = #tpu.dot_dimension_numbers<[1], [0], [0], [1], [0, 0, 1, 1], [], []>} : vector<2x256xbf16>, vector<256x256xbf16>, vector<2x256xf32> -> vector<2x256xf32>
      %c0_17 = arith.constant 0 : index
      %c0_18 = arith.constant 0 : index
      %22 = vector.load %arg5[%c0_17, %c0_18] : memref<1x256xf32, #tpu.memory_space<vmem>>, vector<1x256xf32>
      %23 = vector.broadcast %22 : vector<1x256xf32> to vector<2x256xf32>
      %24 = arith.addf %21, %23 : vector<2x256xf32>
      %cst_19 = arith.constant 0.000000e+00 : f32
      %25 = vector.broadcast %cst_19 : f32 to vector<2x256xf32>
      %26 = arith.maximumf %24, %25 : vector<2x256xf32>
      %27 = arith.truncf %26 : vector<2x256xf32> to vector<2x256xbf16>
      %c0_20 = arith.constant 0 : index
      %c0_21 = arith.constant 0 : index
      %28 = vector.load %arg6[%c0_20, %c0_21] : memref<256x10xbf16, #tpu.memory_space<vmem>>, vector<256x10xbf16>
      %cst_22 = arith.constant dense<0.000000e+00> : vector<2x10xf32>
      %29 = tpu.matmul %27, %28, %cst_22 {dimension_numbers = #tpu.dot_dimension_numbers<[1], [0], [0], [1], [0, 0, 1, 1], [], []>} : vector<2x256xbf16>, vector<256x10xbf16>, vector<2x10xf32> -> vector<2x10xf32>
      %c0_23 = arith.constant 0 : index
      %c0_24 = arith.constant 0 : index
      %30 = vector.load %arg7[%c0_23, %c0_24] : memref<1x10xf32, #tpu.memory_space<vmem>>, vector<1x10xf32>
      %31 = vector.broadcast %30 : vector<1x10xf32> to vector<2x10xf32>
      %32 = arith.addf %29, %31 : vector<2x10xf32>
      %c0_25 = arith.constant 0 : index
      %c0_26 = arith.constant 0 : index
      %33 = vector.load %arg8[%c0_25, %c0_26] : memref<2x10xf32, #tpu.memory_space<vmem>>, vector<2x10xf32>
      tpu.vector_store %arg8[%c0_25, %c0_26], %32 {strides = array<i32>} : memref<2x10xf32, #tpu.memory_space<vmem>>, vector<2x10xf32>,
    } else {
    }
    return
  }
  func.func @transform_0(%arg0: i32) -> (i32, i32) {
    %c0_i32 = arith.constant 0 : i32
    %c0_i32_0 = arith.constant 0 : i32
    return %c0_i32, %arg0 : i32, i32
  }
  func.func @transform_1(%arg0: i32) -> (i32, i32) {
    %c0_i32 = arith.constant 0 : i32
    %c0_i32_0 = arith.constant 0 : i32
    return %arg0, %c0_i32 : i32, i32
  }
  func.func @transform_2(%arg0: i32) -> (i32, i32) {
    %c0_i32 = arith.constant 0 : i32
    %c0_i32_0 = arith.constant 0 : i32
    %c0_i32_1 = arith.constant 0 : i32
    return %c0_i32, %c0_i32_0 : i32, i32
  }
  func.func @transform_3(%arg0: i32) -> (i32, i32) {
    %c0_i32 = arith.constant 0 : i32
    %c0_i32_0 = arith.constant 0 : i32
    %c0_i32_1 = arith.constant 0 : i32
    return %c0_i32, %c0_i32_0 : i32, i32
  }
  func.func @transform_4(%arg0: i32) -> (i32, i32) {
    %c0_i32 = arith.constant 0 : i32
    %c0_i32_0 = arith.constant 0 : i32
    %c0_i32_1 = arith.constant 0 : i32
    return %c0_i32, %c0_i32_0 : i32, i32
  }
  func.func @transform_5(%arg0: i32) -> (i32, i32) {
    %c0_i32 = arith.constant 0 : i32
    %c0_i32_0 = arith.constant 0 : i32
    %c0_i32_1 = arith.constant 0 : i32
    return %c0_i32, %c0_i32_0 : i32, i32
  }
  func.func @transform_6(%arg0: i32) -> (i32, i32) {
    %c0_i32 = arith.constant 0 : i32
    %c0_i32_0 = arith.constant 0 : i32
    %c0_i32_1 = arith.constant 0 : i32
    return %c0_i32, %c0_i32_0 : i32, i32
  }
  func.func @transform_7(%arg0: i32) -> (i32, i32) {
    %c0_i32 = arith.constant 0 : i32
    %c0_i32_0 = arith.constant 0 : i32
    %c0_i32_1 = arith.constant 0 : i32
    return %c0_i32, %c0_i32_0 : i32, i32
  }
}

</mosaic_0001>

<llo_original>
// kernel: single_res_cnn_forward.3
$region0: #{single_res_cnn_forward.3}
  #allocation0 [shape = 'u32[]', space=smem, size = 0x4, offset = 0x4, fixed_abs, tag = 'smem constant byte address 0x4 - core index']
  #allocation1 [shape = 'u32[72,128]{1,0:T(1,128)}', space=vmem, size = 0x9000, scoped, tag = 'internal scratch']
  #allocation2 [shape = 'f32[2,256]{1,0:T(2,128)}', space=vmem, size = 0x800, scoped, tag = 'scratch operand']
  %s0 = inlined_call_operand.vmem [shape: f32[2,4096], index: 0, kind: input, shape index: {}]
  %s1 = inlined_call_operand.hbm [shape: bf16[4096,256], index: 1, kind: input, shape index: {}]
  %s2 = inlined_call_operand.hbm [shape: f32[1,256], index: 2, kind: input, shape index: {}]
  %s3 = inlined_call_operand.hbm [shape: bf16[256,256], index: 3, kind: input, shape index: {}]
  %s4 = inlined_call_operand.hbm [shape: f32[1,256], index: 4, kind: input, shape index: {}]
  %s5 = inlined_call_operand.vmem [shape: bf16[256,10], index: 5, kind: input, shape index: {}]
  %s6 = inlined_call_operand.hbm [shape: f32[1,10], index: 6, kind: input, shape index: {}]
  %s7 = inlined_call_operand.hbm [shape: f32[2,10], index: 7, kind: output, shape index: {}]
  %s8 = sld [smem:[#allocation0]]
  $region89: #{single_res_cnn_forward.3} parent=0
    _
  %s10 = ssub.s32 1, %s8
  %s11 = scalar_select 0, %s10, %s8
  $region1: #{single_res_cnn_forward.3} parent=0
    #allocation3 [shape = 'u8[524288]{0}', space=vmem, size = 0x80000, scoped, tag = 'input window, operand 1']
    #allocation4 [shape = 's32[2]{0}', space=sflag, size = 0x8, scoped, tag = 'scoped memory for single_res_cnn_forward.3']
    #allocation5 [shape = 's32[2]{0}', space=sflag, size = 0x8, scoped, tag = 'scoped memory for single_res_cnn_forward.3']
    #allocation6 [shape = 'u8[1024]{0}', space=vmem, size = 0x400, scoped, tag = 'input window, operand 2, single buffered']
    #allocation7 [shape = 's32[1]{0}', space=sflag, size = 0x4, scoped, tag = 'scoped memory for single_res_cnn_forward.3']
    #allocation8 [shape = 'u8[131072]{0}', space=vmem, size = 0x20000, scoped, tag = 'input window, operand 3, single buffered']
    #allocation9 [shape = 'u8[1024]{0}', space=vmem, size = 0x400, scoped, tag = 'input window, operand 4, single buffered']
    #allocation10 [shape = 's32[1]{0}', space=sflag, size = 0x4, scoped, tag = 'scoped memory for single_res_cnn_forward.3']
    #allocation11 [shape = 'u8[512]{0}', space=vmem, size = 0x400, scoped, tag = 'input window, operand 6, single buffered']
    #allocation12 [shape = 'u8[1024]{0}', space=vmem, size = 0x400, scoped, tag = 'output window, operand 0, single buffered']
    %12 = vsyncpa [#allocation4], 0
    %s13 = scalar_lea.sflag [#allocation4], 1
    %14 = vsyncpa %s13, 0
    %15 = vsyncpa [#allocation7], 0
    %16 = vsyncpa [#allocation10], 0
    %17 = vsyncpa [#allocation5], 0
    loop: start=0, step=1, limit=10
    $region2: #{single_res_cnn_forward.3} parent=1 // loop_pre_header
      _
    $region3: #{single_res_cnn_forward.3} parent=1 // loop_header
      %s19 = sphi 0, %s23
      %p20 = scmp.ge.s32.totalorder %s19, 10
      %s29 = sphi 0, %s31
      %s32 = sphi 0, %s29
      %s33 = sphi 0, %s32
      %s49 = sphi 0, %s33
      %s55 = sphi 0, %s57
      %s58 = sphi 0, %s55
      %s59 = sphi 0, %s58
      %s75 = sphi 0, %s59
      %s79 = sphi 0, %s79
      %s81 = sphi 0, %s79
      %s82 = sphi 0, %s81
      %s96 = sphi 0, %s82
      %s100 = sphi 0, %s100
      %s102 = sphi 0, %s100
      %s103 = sphi 0, %s102
      %s117 = sphi 0, %s103
      %s121 = sphi 0, %s121
      %s123 = sphi 0, %s121
      %s124 = sphi 0, %s123
      %s138 = sphi 0, %s124
      %s142 = sphi 0, %s142
      %s144 = sphi 0, %s142
      %s145 = sphi 0, %s144
      %s159 = sphi 0, %s145
      %s163 = sphi 0, %s163
      %s165 = sphi 0, %s163
      %s166 = sphi 0, %s165
      %s180 = sphi 0, %s166
      %s184 = sphi 0, %s184
      %s186 = sphi 0, %s184
      %s187 = sphi 0, %s186
      %s201 = sphi 0, %s187
    $region4: #{single_res_cnn_forward.3} parent=1 // loop_header_branch
      %22 = sbr.rel (%p20) target = $region8
    $region5: #{single_res_cnn_forward.3} parent=1 // loop_body
      %s24 = ssub.s32 %s19, 1
      %s25 = ssub.s32 %s19, 2
      %s26 = sadd.s32 %s19, 1
      %s27 = ssub.s32 %s19, %s26
      %p28 = scmp.eq.s32.totalorder %s27, 0
      %s30 = sadd.s32 %s29, 1
      %s31 = scalar_select %p28, %s29, %s30
      %p34 = pneg %p28
      %p35 = scmp.eq.s32.totalorder %s19, 7
      %p36 = por %p34, %p35
      %p37 = scmp.ne.s32.totalorder %s29, %s32
      %p38 = scmp.eq.s32.totalorder %s19, 0
      %p39 = por %p37, %p38
      %p40 = scmp.ne.s32.totalorder %s29, %s32
      %p41 = scmp.eq.s32.totalorder %s24, 7
      %p42 = por %p40, %p41
      %p43 = scmp.ne.s32.totalorder %s32, %s33
      %p44 = scmp.eq.s32.totalorder %s24, 0
      %p45 = por %p43, %p44
      %p46 = scmp.ne.s32.totalorder %s32, %s33
      %p47 = scmp.eq.s32.totalorder %s25, 7
      %p48 = por %p46, %p47
      %p50 = scmp.ne.s32.totalorder %s33, %s49
      %p51 = scmp.eq.s32.totalorder %s25, 0
      %p52 = por %p50, %p51
      %s53 = ssub.s32 %s19, %s26
      %p54 = scmp.eq.s32.totalorder %s53, 0
      %s56 = sadd.s32 %s55, 1
      %s57 = scalar_select %p54, %s55, %s56
      %p60 = pneg %p54
      %p61 = scmp.eq.s32.totalorder %s19, 7
      %p62 = por %p60, %p61
      %p63 = scmp.ne.s32.totalorder %s55, %s58
      %p64 = scmp.eq.s32.totalorder %s19, 0
      %p65 = por %p63, %p64
      %p66 = scmp.ne.s32.totalorder %s55, %s58
      %p67 = scmp.eq.s32.totalorder %s24, 7
      %p68 = por %p66, %p67
      %p69 = scmp.ne.s32.totalorder %s58, %s59
      %p70 = scmp.eq.s32.totalorder %s24, 0
      %p71 = por %p69, %p70
      %p72 = scmp.ne.s32.totalorder %s58, %s59
      %p73 = scmp.eq.s32.totalorder %s25, 7
      %p74 = por %p72, %p73
      %p76 = scmp.ne.s32.totalorder %s59, %s75
      %p77 = scmp.eq.s32.totalorder %s25, 0
      %p78 = por %p76, %p77
      %s80 = sadd.s32 %s79, 1
      %p83 = scmp.eq.s32.totalorder %s19, 7
      %p84 = scmp.ne.s32.totalorder %s79, %s81
      %p85 = scmp.eq.s32.totalorder %s19, 0
      %p86 = por %p84, %p85
      %p87 = scmp.ne.s32.totalorder %s79, %s81
      %p88 = scmp.eq.s32.totalorder %s24, 7
      %p89 = por %p87, %p88
      %p90 = scmp.ne.s32.totalorder %s81, %s82
      %p91 = scmp.eq.s32.totalorder %s24, 0
      %p92 = por %p90, %p91
      %p93 = scmp.ne.s32.totalorder %s81, %s82
      %p94 = scmp.eq.s32.totalorder %s25, 7
      %p95 = por %p93, %p94
      %p97 = scmp.ne.s32.totalorder %s82, %s96
      %p98 = scmp.eq.s32.totalorder %s25, 0
      %p99 = por %p97, %p98
      %s101 = sadd.s32 %s100, 1
      %p104 = scmp.eq.s32.totalorder %s19, 7
      %p105 = scmp.ne.s32.totalorder %s100, %s102
      %p106 = scmp.eq.s32.totalorder %s19, 0
      %p107 = por %p105, %p106
      %p108 = scmp.ne.s32.totalorder %s100, %s102
      %p109 = scmp.eq.s32.totalorder %s24, 7
      %p110 = por %p108, %p109
      %p111 = scmp.ne.s32.totalorder %s102, %s103
      %p112 = scmp.eq.s32.totalorder %s24, 0
      %p113 = por %p111, %p112
      %p114 = scmp.ne.s32.totalorder %s102, %s103
      %p115 = scmp.eq.s32.totalorder %s25, 7
      %p116 = por %p114, %p115
      %p118 = scmp.ne.s32.totalorder %s103, %s117
      %p119 = scmp.eq.s32.totalorder %s25, 0
      %p120 = por %p118, %p119
      %s122 = sadd.s32 %s121, 1
      %p125 = scmp.eq.s32.totalorder %s19, 7
      %p126 = scmp.ne.s32.totalorder %s121, %s123
      %p127 = scmp.eq.s32.totalorder %s19, 0
      %p128 = por %p126, %p127
      %p129 = scmp.ne.s32.totalorder %s121, %s123
      %p130 = scmp.eq.s32.totalorder %s24, 7
      %p131 = por %p129, %p130
      %p132 = scmp.ne.s32.totalorder %s123, %s124
      %p133 = scmp.eq.s32.totalorder %s24, 0
      %p134 = por %p132, %p133
      %p135 = scmp.ne.s32.totalorder %s123, %s124
      %p136 = scmp.eq.s32.totalorder %s25, 7
      %p137 = por %p135, %p136
      %p139 = scmp.ne.s32.totalorder %s124, %s138
      %p140 = scmp.eq.s32.totalorder %s25, 0
      %p141 = por %p139, %p140
      %s143 = sadd.s32 %s142, 1
      %p146 = scmp.eq.s32.totalorder %s19, 7
      %p147 = scmp.ne.s32.totalorder %s142, %s144
      %p148 = scmp.eq.s32.totalorder %s19, 0
      %p149 = por %p147, %p148
      %p150 = scmp.ne.s32.totalorder %s142, %s144
      %p151 = scmp.eq.s32.totalorder %s24, 7
      %p152 = por %p150, %p151
      %p153 = scmp.ne.s32.totalorder %s144, %s145
      %p154 = scmp.eq.s32.totalorder %s24, 0
      %p155 = por %p153, %p154
      %p156 = scmp.ne.s32.totalorder %s144, %s145
      %p157 = scmp.eq.s32.totalorder %s25, 7
      %p158 = por %p156, %p157
      %p160 = scmp.ne.s32.totalorder %s145, %s159
      %p161 = scmp.eq.s32.totalorder %s25, 0
      %p162 = por %p160, %p161
      %s164 = sadd.s32 %s163, 1
      %p167 = scmp.eq.s32.totalorder %s19, 7
      %p168 = scmp.ne.s32.totalorder %s163, %s165
      %p169 = scmp.eq.s32.totalorder %s19, 0
      %p170 = por %p168, %p169
      %p171 = scmp.ne.s32.totalorder %s163, %s165
      %p172 = scmp.eq.s32.totalorder %s24, 7
      %p173 = por %p171, %p172
      %p174 = scmp.ne.s32.totalorder %s165, %s166
      %p175 = scmp.eq.s32.totalorder %s24, 0
      %p176 = por %p174, %p175
      %p177 = scmp.ne.s32.totalorder %s165, %s166
      %p178 = scmp.eq.s32.totalorder %s25, 7
      %p179 = por %p177, %p178
      %p181 = scmp.ne.s32.totalorder %s166, %s180
      %p182 = scmp.eq.s32.totalorder %s25, 0
      %p183 = por %p181, %p182
      %s185 = sadd.s32 %s184, 1
      %p188 = scmp.eq.s32.totalorder %s19, 7
      %p189 = scmp.ne.s32.totalorder %s184, %s186
      %p190 = scmp.eq.s32.totalorder %s19, 0
      %p191 = por %p189, %p190
      %p192 = scmp.ne.s32.totalorder %s184, %s186
      %p193 = scmp.eq.s32.totalorder %s24, 7
      %p194 = por %p192, %p193
      %p195 = scmp.ne.s32.totalorder %s186, %s187
      %p196 = scmp.eq.s32.totalorder %s24, 0
      %p197 = por %p195, %p196
      %p198 = scmp.ne.s32.totalorder %s186, %s187
      %p199 = scmp.eq.s32.totalorder %s25, 7
      %p200 = por %p198, %p199
      %p202 = scmp.ne.s32.totalorder %s187, %s201
      %p203 = scmp.eq.s32.totalorder %s25, 0
      %p204 = por %p202, %p203
      %p205 = scmp.le.s32.totalorder 1, %s19
      %p206 = scmp.lt.s32.totalorder %s19, 9
      %p207 = pnand %p205, %p206
      %p208 = pneg %p207
      // Predicated region
      $region9: #{single_res_cnn_forward.3} parent=5 // pred_check
        _
      $region10: #{single_res_cnn_forward.3} parent=5 // pred_check_branch
        %210 = sbr.rel (%p207) target = $region12
      $region11: #{single_res_cnn_forward.3} parent=5 // pred_region
        %s211 = ssub.s32 %s19, 1
        // Predicated region
        $region13: #{single_res_cnn_forward.3} parent=11 // pred_check
          %p212 = pneg %p92
        $region14: #{single_res_cnn_forward.3} parent=11 // pred_check_branch
          %214 = sbr.rel (%p212) target = $region16
        $region15: #{single_res_cnn_forward.3} parent=11 // pred_region
          %216 = vsyncadd [#allocation7], 0
          %s218 = sshll.u32 %s2, 4
          %s219 = int_to_ptr.hbm [resolvable:$true] %s218
          %s220 = sshll.u32 [#allocation6], 4
          %s221 = int_to_ptr.vmem [resolvable:$true] %s220
          %223 = dma.hbm_to_vmem [thread:$0]  %s219, 32, %s221, [#allocation7]
        $region16: #{single_res_cnn_forward.3} parent=11 // pred_fallthru
          _
        // Predicated region
        $region17: #{single_res_cnn_forward.3} parent=11 // pred_check
          %p224 = pneg %p113
        $region18: #{single_res_cnn_forward.3} parent=11 // pred_check_branch
          %226 = sbr.rel (%p224) target = $region20
        $region19: #{single_res_cnn_forward.3} parent=11 // pred_region
          %228 = vsyncadd [#allocation7], 0
          %s229 = sshll.u32 %s3, 4
          %s230 = int_to_ptr.hbm [resolvable:$true] %s229
          %s231 = sshll.u32 [#allocation8], 4
          %s232 = int_to_ptr.vmem [resolvable:$true] %s231
          %237 = dma.hbm_to_vmem [thread:$0]  %s230, 4096, %s232, [#allocation7], 128, 128, 8
        $region20: #{single_res_cnn_forward.3} parent=11 // pred_fallthru
          _
        // Predicated region
        $region21: #{single_res_cnn_forward.3} parent=11 // pred_check
          %p238 = pneg %p134
        $region22: #{single_res_cnn_forward.3} parent=11 // pred_check_branch
          %240 = sbr.rel (%p238) target = $region24
        $region23: #{single_res_cnn_forward.3} parent=11 // pred_region
          %242 = vsyncadd [#allocation10], 0
          %s244 = sshll.u32 %s4, 4
          %s245 = int_to_ptr.hbm [resolvable:$true] %s244
          %s246 = sshll.u32 [#allocation9], 4
          %s247 = int_to_ptr.vmem [resolvable:$true] %s246
          %249 = dma.hbm_to_vmem [thread:$0]  %s245, 32, %s247, [#allocation10]
        $region24: #{single_res_cnn_forward.3} parent=11 // pred_fallthru
          _
        // Predicated region
        $region25: #{single_res_cnn_forward.3} parent=11 // pred_check
          %p250 = pneg %p155
        $region26: #{single_res_cnn_forward.3} parent=11 // pred_check_branch
          %252 = sbr.rel (%p250) target = $region28
        $region27: #{single_res_cnn_forward.3} parent=11 // pred_region
          _
        $region28: #{single_res_cnn_forward.3} parent=11 // pred_fallthru
          _
        // Predicated region
        $region29: #{single_res_cnn_forward.3} parent=11 // pred_check
          %p253 = pneg %p176
        $region30: #{single_res_cnn_forward.3} parent=11 // pred_check_branch
          %255 = sbr.rel (%p253) target = $region32
        $region31: #{single_res_cnn_forward.3} parent=11 // pred_region
          %257 = vsyncadd [#allocation10], 0
          %s259 = sshll.u32 %s6, 4
          %s260 = int_to_ptr.hbm [resolvable:$true] %s259
          %s261 = sshll.u32 [#allocation11], 4
          %s262 = int_to_ptr.vmem [resolvable:$true] %s261
          %264 = dma.hbm_to_vmem [thread:$0]  %s260, 16, %s262, [#allocation10]
        $region32: #{single_res_cnn_forward.3} parent=11 // pred_fallthru
          _
      $region12: #{single_res_cnn_forward.3} parent=5 // pred_fallthru
        _
      %p265 = scmp.lt.s32.totalorder %s19, 8
      // Predicated region
      $region33: #{single_res_cnn_forward.3} parent=5 // pred_check
        %p266 = pneg %p265
      $region34: #{single_res_cnn_forward.3} parent=5 // pred_check_branch
        %268 = sbr.rel (%p266) target = $region36
      $region35: #{single_res_cnn_forward.3} parent=5 // pred_region
        // Predicated region
        $region37: #{single_res_cnn_forward.3} parent=35 // pred_check
          %p269 = pneg %p39
        $region38: #{single_res_cnn_forward.3} parent=35 // pred_check_branch
          %271 = sbr.rel (%p269) target = $region40
        $region39: #{single_res_cnn_forward.3} parent=35 // pred_region
          %s272 = smul.u32 4, %s19
          %p273 = scmp.lt.s32.totalorder %s272, 31
          %s274 = scalar_select %p273, %s272, 31
          %s275 = smul.addr %s274, 2
          %s276 = scalar_lea.vmem %s0, %s275
          %s277 = smul.u32 4, %s19
        $region40: #{single_res_cnn_forward.3} parent=35 // pred_fallthru
          _
        // Predicated region
        $region41: #{single_res_cnn_forward.3} parent=35 // pred_check
          %p278 = pneg %p65
        $region42: #{single_res_cnn_forward.3} parent=35 // pred_check_branch
          %280 = sbr.rel (%p278) target = $region44
        $region43: #{single_res_cnn_forward.3} parent=35 // pred_region
          %s281 = sand.u32 %s55, 1
          %s282 = scalar_lea.sflag [#allocation4], %s281
          %s283 = sand.u32 %s55, 1
          %s284 = smul.addr %s283, 512
          %s285 = scalar_lea.vmem [#allocation3], %s284
          %s286 = smul.u32 64, %s19
          %288 = vsyncadd %s282, 0
          %s289 = smul.addr %s286, 2
          %s290 = smul.addr %s289, 4
          %s291 = scalar_lea.hbm %s1, %s290
          %s292 = sshll.u32 %s291, 4
          %s293 = int_to_ptr.hbm [resolvable:$true] %s292
          %s294 = sshll.u32 %s285, 4
          %s295 = int_to_ptr.vmem [resolvable:$true] %s294
          %300 = dma.hbm_to_vmem [thread:$0]  %s293, 8192, %s295, %s282, 128, 128, 8
        $region44: #{single_res_cnn_forward.3} parent=35 // pred_fallthru
          _
      $region36: #{single_res_cnn_forward.3} parent=5 // pred_fallthru
        _
      %p301 = scmp.le.s32.totalorder 1, %s19
      %p302 = scmp.lt.s32.totalorder %s19, 9
      %p303 = pnand %p301, %p302
      %p304 = pneg %p303
      // Predicated region
      $region45: #{single_res_cnn_forward.3} parent=5 // pred_check
        _
      $region46: #{single_res_cnn_forward.3} parent=5 // pred_check_branch
        %306 = sbr.rel (%p303) target = $region48
      $region47: #{single_res_cnn_forward.3} parent=5 // pred_region
        %s307 = ssub.s32 %s19, 1
        %s308 = sand.u32 %s58, 1
        %s309 = scalar_lea.sflag [#allocation4], %s308
        %s310 = sand.u32 %s58, 1
        %s311 = smul.addr %s310, 512
        %s312 = scalar_lea.vmem [#allocation3], %s311
        // Predicated region
        $region49: #{single_res_cnn_forward.3} parent=47 // pred_check
          %p313 = pneg %p71
        $region50: #{single_res_cnn_forward.3} parent=47 // pred_check_branch
          %315 = sbr.rel (%p313) target = $region52
        $region51: #{single_res_cnn_forward.3} parent=47 // pred_region
          %317 = dma.done %s309, 8192
        $region52: #{single_res_cnn_forward.3} parent=47 // pred_fallthru
          _
        // Predicated region
        $region53: #{single_res_cnn_forward.3} parent=47 // pred_check
          %p318 = pneg %p92
        $region54: #{single_res_cnn_forward.3} parent=47 // pred_check_branch
          %320 = sbr.rel (%p318) target = $region56
        $region55: #{single_res_cnn_forward.3} parent=47 // pred_region
          %322 = dma.done [#allocation7], 32
        $region56: #{single_res_cnn_forward.3} parent=47 // pred_fallthru
          _
        // Predicated region
        $region57: #{single_res_cnn_forward.3} parent=47 // pred_check
          %p323 = pneg %p113
        $region58: #{single_res_cnn_forward.3} parent=47 // pred_check_branch
          %325 = sbr.rel (%p323) target = $region60
        $region59: #{single_res_cnn_forward.3} parent=47 // pred_region
          %327 = dma.done [#allocation7], 4096
        $region60: #{single_res_cnn_forward.3} parent=47 // pred_fallthru
          _
        // Predicated region
        $region61: #{single_res_cnn_forward.3} parent=47 // pred_check
          %p328 = pneg %p134
        $region62: #{single_res_cnn_forward.3} parent=47 // pred_check_branch
          %330 = sbr.rel (%p328) target = $region64
        $region63: #{single_res_cnn_forward.3} parent=47 // pred_region
          %332 = dma.done [#allocation10], 32
        $region64: #{single_res_cnn_forward.3} parent=47 // pred_fallthru
          _
        // Predicated region
        $region65: #{single_res_cnn_forward.3} parent=47 // pred_check
          %p333 = pneg %p176
        $region66: #{single_res_cnn_forward.3} parent=47 // pred_check_branch
          %335 = sbr.rel (%p333) target = $region68
        $region67: #{single_res_cnn_forward.3} parent=47 // pred_region
          %337 = dma.done [#allocation10], 16
        $region68: #{single_res_cnn_forward.3} parent=47 // pred_fallthru
          _
        %s338 = smul.u32 4, %s24
        %p339 = scmp.lt.s32.totalorder %s338, 31
        %s340 = scalar_select %p339, %s338, 31
        %s341 = smul.addr %s340, 2
        %s342 = scalar_lea.vmem %s0, %s341
        %p343 = pneg %p45
        %p344 = pneg %p42
        %s345 = sand.u32 %s58, 1
        %s346 = scalar_lea.sflag [#allocation4], %s345
        %s347 = sand.u32 %s58, 1
        %s348 = smul.addr %s347, 512
        %s349 = scalar_lea.vmem [#allocation3], %s348
        %p350 = pneg %p71
        %p351 = pneg %p68
        %p352 = pneg %p92
        %p353 = pneg %p89
        %p354 = pneg %p113
        %p355 = pneg %p110
        %p356 = pneg %p134
        %p357 = pneg %p131
        %p358 = pneg %p155
        %p359 = pneg %p152
        %p360 = pneg %p176
        %p361 = pneg %p173
        %p362 = pneg %p197
        %p363 = pneg %p194
        %s364 = smul.u32 4, %s24
        %p365 = scmp.lt.s32.totalorder %s364, 31
        %s366 = scalar_select %p365, %s364, 31
        %s367 = smul.addr %s366, 2
        %s368 = scalar_lea.vmem %s0, %s367
        %s369 = smul.u32 4, %s24
        %s370 = smul.u32 64, %s24
        %p371 = scmp.eq.s32.totalorder %s24, 0
        // Predicated region
        $region69: #{single_res_cnn_forward.3} parent=47 // pred_check
          %p372 = pneg %p371
        $region70: #{single_res_cnn_forward.3} parent=47 // pred_check_branch
          %374 = sbr.rel (%p372) target = $region72
        $region71: #{single_res_cnn_forward.3} parent=47 // pred_region
          %375 = vst [vmem:[#allocation2] sm:$0xf] 0.0
        $region72: #{single_res_cnn_forward.3} parent=47 // pred_fallthru
          _
        %v376 = vld [vmem:[#allocation2] sm:$0xf]
        %v377 = vld [vmem:[%s368] sm:$0xff]
        %379 = vst [vmem:[#allocation1] ss:$4 sm:$0xff] %v377
        %v380 = vld.sshfl [vmem:[#allocation1] sm:$0xff pattern:$0x73625140]
        %v381 = vld.sshfl [vmem:[#allocation1 + $0x8] sm:$0xff pattern:$0x73625140]
        %v382 = vld.sshfl [vmem:[#allocation1 + $0x10] sm:$0xff pattern:$0x73625140]
        %v383 = vld.sshfl [vmem:[#allocation1 + $0x18] sm:$0xff pattern:$0x73625140]
        %v388 = vpack.c.bf16 %v380, %v380
        %v389 = vpack.c.bf16 %v381, %v381
        %v390 = vpack.c.bf16 %v382, %v382
        %v391 = vpack.c.bf16 %v383, %v383
        %v392 = vld [vmem:[%s312] sm:$0xff]
        %v393 = vld [vmem:[%s312 + $0x8] sm:$0xff]
        %v394 = vld [vmem:[%s312 + $0x10] sm:$0xff]
        %v395 = vld [vmem:[%s312 + $0x18] sm:$0xff]
        %v396 = vld [vmem:[%s312 + $0x20] sm:$0xff]
        %v397 = vld [vmem:[%s312 + $0x28] sm:$0xff]
        %v398 = vld [vmem:[%s312 + $0x30] sm:$0xff]
        %v399 = vld [vmem:[%s312 + $0x38] sm:$0xff]
        %v400 = vld [vmem:[%s312 + $0x40] sm:$0xff]
        %v401 = vld [vmem:[%s312 + $0x48] sm:$0xff]
        %v402 = vld [vmem:[%s312 + $0x50] sm:$0xff]
        %v403 = vld [vmem:[%s312 + $0x58] sm:$0xff]
        %v404 = vld [vmem:[%s312 + $0x60] sm:$0xff]
        %v405 = vld [vmem:[%s312 + $0x68] sm:$0xff]
        %v406 = vld [vmem:[%s312 + $0x70] sm:$0xff]
        %v407 = vld [vmem:[%s312 + $0x78] sm:$0xff]
        %v408 = vld [vmem:[%s312 + $0x80] sm:$0xff]
        %v409 = vld [vmem:[%s312 + $0x88] sm:$0xff]
        %v410 = vld [vmem:[%s312 + $0x90] sm:$0xff]
        %v411 = vld [vmem:[%s312 + $0x98] sm:$0xff]
        %v412 = vld [vmem:[%s312 + $0xa0] sm:$0xff]
        %v413 = vld [vmem:[%s312 + $0xa8] sm:$0xff]
        %v414 = vld [vmem:[%s312 + $0xb0] sm:$0xff]
        %v415 = vld [vmem:[%s312 + $0xb8] sm:$0xff]
        %v416 = vld [vmem:[%s312 + $0xc0] sm:$0xff]
        %v417 = vld [vmem:[%s312 + $0xc8] sm:$0xff]
        %v418 = vld [vmem:[%s312 + $0xd0] sm:$0xff]
        %v419 = vld [vmem:[%s312 + $0xd8] sm:$0xff]
        %v420 = vld [vmem:[%s312 + $0xe0] sm:$0xff]
        %v421 = vld [vmem:[%s312 + $0xe8] sm:$0xff]
        %v422 = vld [vmem:[%s312 + $0xf0] sm:$0xff]
        %v423 = vld [vmem:[%s312 + $0xf8] sm:$0xff]
        %v424 = vld [vmem:[%s312 + $0x100] sm:$0xff]
        %v425 = vld [vmem:[%s312 + $0x108] sm:$0xff]
        %v426 = vld [vmem:[%s312 + $0x110] sm:$0xff]
        %v427 = vld [vmem:[%s312 + $0x118] sm:$0xff]
        %v428 = vld [vmem:[%s312 + $0x120] sm:$0xff]
        %v429 = vld [vmem:[%s312 + $0x128] sm:$0xff]
        %v430 = vld [vmem:[%s312 + $0x130] sm:$0xff]
        %v431 = vld [vmem:[%s312 + $0x138] sm:$0xff]
        %v432 = vld [vmem:[%s312 + $0x140] sm:$0xff]
        %v433 = vld [vmem:[%s312 + $0x148] sm:$0xff]
        %v434 = vld [vmem:[%s312 + $0x150] sm:$0xff]
        %v435 = vld [vmem:[%s312 + $0x158] sm:$0xff]
        %v436 = vld [vmem:[%s312 + $0x160] sm:$0xff]
        %v437 = vld [vmem:[%s312 + $0x168] sm:$0xff]
        %v438 = vld [vmem:[%s312 + $0x170] sm:$0xff]
        %v439 = vld [vmem:[%s312 + $0x178] sm:$0xff]
        %v440 = vld [vmem:[%s312 + $0x180] sm:$0xff]
        %v441 = vld [vmem:[%s312 + $0x188] sm:$0xff]
        %v442 = vld [vmem:[%s312 + $0x190] sm:$0xff]
        %v443 = vld [vmem:[%s312 + $0x198] sm:$0xff]
        %v444 = vld [vmem:[%s312 + $0x1a0] sm:$0xff]
        %v445 = vld [vmem:[%s312 + $0x1a8] sm:$0xff]
        %v446 = vld [vmem:[%s312 + $0x1b0] sm:$0xff]
        %v447 = vld [vmem:[%s312 + $0x1b8] sm:$0xff]
        %v448 = vld [vmem:[%s312 + $0x1c0] sm:$0xff]
        %v449 = vld [vmem:[%s312 + $0x1c8] sm:$0xff]
        %v450 = vld [vmem:[%s312 + $0x1d0] sm:$0xff]
        %v451 = vld [vmem:[%s312 + $0x1d8] sm:$0xff]
        %v452 = vld [vmem:[%s312 + $0x1e0] sm:$0xff]
        %v453 = vld [vmem:[%s312 + $0x1e8] sm:$0xff]
        %v454 = vld [vmem:[%s312 + $0x1f0] sm:$0xff]
        %v455 = vld [vmem:[%s312 + $0x1f8] sm:$0xff]
        %v520 = vunpack.c.l.b16 %v392
        %v521 = vunpack.c.h.b16 %v392
        %v522 = vunpack.c.l.b16 %v393
        %v523 = vunpack.c.h.b16 %v393
        %v524 = vunpack.c.l.b16 %v394
        %v525 = vunpack.c.h.b16 %v394
        %v526 = vunpack.c.l.b16 %v395
        %v527 = vunpack.c.h.b16 %v395
        %v528 = vunpack.c.l.b16 %v396
        %v529 = vunpack.c.h.b16 %v396
        %v530 = vunpack.c.l.b16 %v397
        %v531 = vunpack.c.h.b16 %v397
        %v532 = vunpack.c.l.b16 %v398
        %v533 = vunpack.c.h.b16 %v398
        %v534 = vunpack.c.l.b16 %v399
        %v535 = vunpack.c.h.b16 %v399
        %v536 = vunpack.c.l.b16 %v400
        %v537 = vunpack.c.h.b16 %v400
        %v538 = vunpack.c.l.b16 %v401
        %v539 = vunpack.c.h.b16 %v401
        %v540 = vunpack.c.l.b16 %v402
        %v541 = vunpack.c.h.b16 %v402
        %v542 = vunpack.c.l.b16 %v403
        %v543 = vunpack.c.h.b16 %v403
        %v544 = vunpack.c.l.b16 %v404
        %v545 = vunpack.c.h.b16 %v404
        %v546 = vunpack.c.l.b16 %v405
        %v547 = vunpack.c.h.b16 %v405
        %v548 = vunpack.c.l.b16 %v406
        %v549 = vunpack.c.h.b16 %v406
        %v550 = vunpack.c.l.b16 %v407
        %v551 = vunpack.c.h.b16 %v407
        %v552 = vunpack.c.l.b16 %v408
        %v553 = vunpack.c.h.b16 %v408
        %v554 = vunpack.c.l.b16 %v409
        %v555 = vunpack.c.h.b16 %v409
        %v556 = vunpack.c.l.b16 %v410
        %v557 = vunpack.c.h.b16 %v410
        %v558 = vunpack.c.l.b16 %v411
        %v559 = vunpack.c.h.b16 %v411
        %v560 = vunpack.c.l.b16 %v412
        %v561 = vunpack.c.h.b16 %v412
        %v562 = vunpack.c.l.b16 %v413
        %v563 = vunpack.c.h.b16 %v413
        %v564 = vunpack.c.l.b16 %v414
        %v565 = vunpack.c.h.b16 %v414
        %v566 = vunpack.c.l.b16 %v415
        %v567 = vunpack.c.h.b16 %v415
        %v568 = vunpack.c.l.b16 %v416
        %v569 = vunpack.c.h.b16 %v416
        %v570 = vunpack.c.l.b16 %v417
        %v571 = vunpack.c.h.b16 %v417
        %v572 = vunpack.c.l.b16 %v418
        %v573 = vunpack.c.h.b16 %v418
        %v574 = vunpack.c.l.b16 %v419
        %v575 = vunpack.c.h.b16 %v419
        %v576 = vunpack.c.l.b16 %v420
        %v577 = vunpack.c.h.b16 %v420
        %v578 = vunpack.c.l.b16 %v421
        %v579 = vunpack.c.h.b16 %v421
        %v580 = vunpack.c.l.b16 %v422
        %v581 = vunpack.c.h.b16 %v422
        %v582 = vunpack.c.l.b16 %v423
        %v583 = vunpack.c.h.b16 %v423
        %v584 = vunpack.c.l.b16 %v424
        %v585 = vunpack.c.h.b16 %v424
        %v586 = vunpack.c.l.b16 %v425
        %v587 = vunpack.c.h.b16 %v425
        %v588 = vunpack.c.l.b16 %v426
        %v589 = vunpack.c.h.b16 %v426
        %v590 = vunpack.c.l.b16 %v427
        %v591 = vunpack.c.h.b16 %v427
        %v592 = vunpack.c.l.b16 %v428
        %v593 = vunpack.c.h.b16 %v428
        %v594 = vunpack.c.l.b16 %v429
        %v595 = vunpack.c.h.b16 %v429
        %v596 = vunpack.c.l.b16 %v430
        %v597 = vunpack.c.h.b16 %v430
        %v598 = vunpack.c.l.b16 %v431
        %v599 = vunpack.c.h.b16 %v431
        %v600 = vunpack.c.l.b16 %v432
        %v601 = vunpack.c.h.b16 %v432
        %v602 = vunpack.c.l.b16 %v433
        %v603 = vunpack.c.h.b16 %v433
        %v604 = vunpack.c.l.b16 %v434
        %v605 = vunpack.c.h.b16 %v434
        %v606 = vunpack.c.l.b16 %v435
        %v607 = vunpack.c.h.b16 %v435
        %v608 = vunpack.c.l.b16 %v436
        %v609 = vunpack.c.h.b16 %v436
        %v610 = vunpack.c.l.b16 %v437
        %v611 = vunpack.c.h.b16 %v437
        %v612 = vunpack.c.l.b16 %v438
        %v613 = vunpack.c.h.b16 %v438
        %v614 = vunpack.c.l.b16 %v439
        %v615 = vunpack.c.h.b16 %v439
        %v616 = vunpack.c.l.b16 %v440
        %v617 = vunpack.c.h.b16 %v440
        %v618 = vunpack.c.l.b16 %v441
        %v619 = vunpack.c.h.b16 %v441
        %v620 = vunpack.c.l.b16 %v442
        %v621 = vunpack.c.h.b16 %v442
        %v622 = vunpack.c.l.b16 %v443
        %v623 = vunpack.c.h.b16 %v443
        %v624 = vunpack.c.l.b16 %v444
        %v625 = vunpack.c.h.b16 %v444
        %v626 = vunpack.c.l.b16 %v445
        %v627 = vunpack.c.h.b16 %v445
        %v628 = vunpack.c.l.b16 %v446
        %v629 = vunpack.c.h.b16 %v446
        %v630 = vunpack.c.l.b16 %v447
        %v631 = vunpack.c.h.b16 %v447
        %v632 = vunpack.c.l.b16 %v448
        %v633 = vunpack.c.h.b16 %v448
        %v634 = vunpack.c.l.b16 %v449
        %v635 = vunpack.c.h.b16 %v449
        %v636 = vunpack.c.l.b16 %v450
        %v637 = vunpack.c.h.b16 %v450
        %v638 = vunpack.c.l.b16 %v451
        %v639 = vunpack.c.h.b16 %v451
        %v640 = vunpack.c.l.b16 %v452
        %v641 = vunpack.c.h.b16 %v452
        %v642 = vunpack.c.l.b16 %v453
        %v643 = vunpack.c.h.b16 %v453
        %v644 = vunpack.c.l.b16 %v454
        %v645 = vunpack.c.h.b16 %v454
        %v646 = vunpack.c.l.b16 %v455
        %v647 = vunpack.c.h.b16 %v455
        %v648 = vpack.c.b16 %v522, %v520
        %v649 = vpack.c.b16 %v523, %v521
        %v650 = vpack.c.b16 %v526, %v524
        %v651 = vpack.c.b16 %v527, %v525
        %v652 = vpack.c.b16 %v530, %v528
        %v653 = vpack.c.b16 %v531, %v529
        %v654 = vpack.c.b16 %v534, %v532
        %v655 = vpack.c.b16 %v535, %v533
        %v656 = vpack.c.b16 %v538, %v536
        %v657 = vpack.c.b16 %v539, %v537
        %v658 = vpack.c.b16 %v542, %v540
        %v659 = vpack.c.b16 %v543, %v541
        %v660 = vpack.c.b16 %v546, %v544
        %v661 = vpack.c.b16 %v547, %v545
        %v662 = vpack.c.b16 %v550, %v548
        %v663 = vpack.c.b16 %v551, %v549
        %v664 = vpack.c.b16 %v554, %v552
        %v665 = vpack.c.b16 %v555, %v553
        %v666 = vpack.c.b16 %v558, %v556
        %v667 = vpack.c.b16 %v559, %v557
        %v668 = vpack.c.b16 %v562, %v560
        %v669 = vpack.c.b16 %v563, %v561
        %v670 = vpack.c.b16 %v566, %v564
        %v671 = vpack.c.b16 %v567, %v565
        %v672 = vpack.c.b16 %v570, %v568
        %v673 = vpack.c.b16 %v571, %v569
        %v674 = vpack.c.b16 %v574, %v572
        %v675 = vpack.c.b16 %v575, %v573
        %v676 = vpack.c.b16 %v578, %v576
        %v677 = vpack.c.b16 %v579, %v577
        %v678 = vpack.c.b16 %v582, %v580
        %v679 = vpack.c.b16 %v583, %v581
        %v680 = vpack.c.b16 %v586, %v584
        %v681 = vpack.c.b16 %v587, %v585
        %v682 = vpack.c.b16 %v590, %v588
        %v683 = vpack.c.b16 %v591, %v589
        %v684 = vpack.c.b16 %v594, %v592
        %v685 = vpack.c.b16 %v595, %v593
        %v686 = vpack.c.b16 %v598, %v596
        %v687 = vpack.c.b16 %v599, %v597
        %v688 = vpack.c.b16 %v602, %v600
        %v689 = vpack.c.b16 %v603, %v601
        %v690 = vpack.c.b16 %v606, %v604
        %v691 = vpack.c.b16 %v607, %v605
        %v692 = vpack.c.b16 %v610, %v608
        %v693 = vpack.c.b16 %v611, %v609
        %v694 = vpack.c.b16 %v614, %v612
        %v695 = vpack.c.b16 %v615, %v613
        %v696 = vpack.c.b16 %v618, %v616
        %v697 = vpack.c.b16 %v619, %v617
        %v698 = vpack.c.b16 %v622, %v620
        %v699 = vpack.c.b16 %v623, %v621
        %v700 = vpack.c.b16 %v626, %v624
        %v701 = vpack.c.b16 %v627, %v625
        %v702 = vpack.c.b16 %v630, %v628
        %v703 = vpack.c.b16 %v631, %v629
        %v704 = vpack.c.b16 %v634, %v632
        %v705 = vpack.c.b16 %v635, %v633
        %v706 = vpack.c.b16 %v638, %v636
        %v707 = vpack.c.b16 %v639, %v637
        %v708 = vpack.c.b16 %v642, %v640
        %v709 = vpack.c.b16 %v643, %v641
        %v710 = vpack.c.b16 %v646, %v644
        %v711 = vpack.c.b16 %v647, %v645
        %776 = vmatpush.bf16.msra.mxu0 %v662
        %777 = vmatpush.bf16.msra.mxu0 %v660
        %778 = vmatpush.bf16.msra.mxu0 %v658
        %779 = vmatpush.bf16.msra.mxu0 %v656
        %780 = vmatpush.bf16.msra.mxu0 %v654
        %781 = vmatpush.bf16.msra.mxu0 %v652
        %782 = vmatpush.bf16.msra.mxu0 %v650
        %783 = vmatpush.bf16.msra.mxu0 %v648
        %784 = vmatmul.bf16.gmra.mxu0 %v388
        %v785 = vpop.f32.mrf.mxu0
        %v786 = vadd.f32 0.0, %v785
        %v787 = vpop.f32.mrf.mxu0
        %788 = vdwg.mxu0
        %789 = vmatpush.bf16.msra.mxu0 %v678
        %790 = vmatpush.bf16.msra.mxu0 %v676
        %791 = vmatpush.bf16.msra.mxu0 %v674
        %792 = vmatpush.bf16.msra.mxu0 %v672
        %793 = vmatpush.bf16.msra.mxu0 %v670
        %794 = vmatpush.bf16.msra.mxu0 %v668
        %795 = vmatpush.bf16.msra.mxu0 %v666
        %796 = vmatpush.bf16.msra.mxu0 %v664
        %797 = vmatmul.bf16.gmra.mxu0 %v389
        %v798 = vpop.f32.mrf.mxu0
        %v799 = vadd.f32 %v786, %v798
        %v800 = vpop.f32.mrf.mxu0
        %801 = vdwg.mxu0
        %802 = vmatpush.bf16.msra.mxu0 %v694
        %803 = vmatpush.bf16.msra.mxu0 %v692
        %804 = vmatpush.bf16.msra.mxu0 %v690
        %805 = vmatpush.bf16.msra.mxu0 %v688
        %806 = vmatpush.bf16.msra.mxu0 %v686
        %807 = vmatpush.bf16.msra.mxu0 %v684
        %808 = vmatpush.bf16.msra.mxu0 %v682
        %809 = vmatpush.bf16.msra.mxu0 %v680
        %810 = vmatmul.bf16.gmra.mxu0 %v390
        %v811 = vpop.f32.mrf.mxu0
        %v812 = vadd.f32 %v799, %v811
        %v813 = vpop.f32.mrf.mxu0
        %814 = vdwg.mxu0
        %815 = vmatpush.bf16.msra.mxu0 %v710
        %816 = vmatpush.bf16.msra.mxu0 %v708
        %817 = vmatpush.bf16.msra.mxu0 %v706
        %818 = vmatpush.bf16.msra.mxu0 %v704
        %819 = vmatpush.bf16.msra.mxu0 %v702
        %820 = vmatpush.bf16.msra.mxu0 %v700
        %821 = vmatpush.bf16.msra.mxu0 %v698
        %822 = vmatpush.bf16.msra.mxu0 %v696
        %823 = vmatmul.bf16.gmra.mxu0 %v391
        %v824 = vpop.f32.mrf.mxu0
        %v825 = vadd.f32 %v812, %v824
        %v826 = vpop.f32.mrf.mxu0
        %827 = vdwg.mxu0
        %828 = vmatpush.bf16.msra.mxu0 %v663
        %829 = vmatpush.bf16.msra.mxu0 %v661
        %830 = vmatpush.bf16.msra.mxu0 %v659
        %831 = vmatpush.bf16.msra.mxu0 %v657
        %832 = vmatpush.bf16.msra.mxu0 %v655
        %833 = vmatpush.bf16.msra.mxu0 %v653
        %834 = vmatpush.bf16.msra.mxu0 %v651
        %835 = vmatpush.bf16.msra.mxu0 %v649
        %836 = vmatmul.bf16.gmra.mxu0 %v388
        %v837 = vpop.f32.mrf.mxu0
        %v838 = vadd.f32 0.0, %v837
        %v839 = vpop.f32.mrf.mxu0
        %840 = vdwg.mxu0
        %841 = vmatpush.bf16.msra.mxu0 %v679
        %842 = vmatpush.bf16.msra.mxu0 %v677
        %843 = vmatpush.bf16.msra.mxu0 %v675
        %844 = vmatpush.bf16.msra.mxu0 %v673
        %845 = vmatpush.bf16.msra.mxu0 %v671
        %846 = vmatpush.bf16.msra.mxu0 %v669
        %847 = vmatpush.bf16.msra.mxu0 %v667
        %848 = vmatpush.bf16.msra.mxu0 %v665
        %849 = vmatmul.bf16.gmra.mxu0 %v389
        %v850 = vpop.f32.mrf.mxu0
        %v851 = vadd.f32 %v838, %v850
        %v852 = vpop.f32.mrf.mxu0
        %853 = vdwg.mxu0
        %854 = vmatpush.bf16.msra.mxu0 %v695
        %855 = vmatpush.bf16.msra.mxu0 %v693
        %856 = vmatpush.bf16.msra.mxu0 %v691
        %857 = vmatpush.bf16.msra.mxu0 %v689
        %858 = vmatpush.bf16.msra.mxu0 %v687
        %859 = vmatpush.bf16.msra.mxu0 %v685
        %860 = vmatpush.bf16.msra.mxu0 %v683
        %861 = vmatpush.bf16.msra.mxu0 %v681
        %862 = vmatmul.bf16.gmra.mxu0 %v390
        %v863 = vpop.f32.mrf.mxu0
        %v864 = vadd.f32 %v851, %v863
        %v865 = vpop.f32.mrf.mxu0
        %866 = vdwg.mxu0
        %867 = vmatpush.bf16.msra.mxu0 %v711
        %868 = vmatpush.bf16.msra.mxu0 %v709
        %869 = vmatpush.bf16.msra.mxu0 %v707
        %870 = vmatpush.bf16.msra.mxu0 %v705
        %871 = vmatpush.bf16.msra.mxu0 %v703
        %872 = vmatpush.bf16.msra.mxu0 %v701
        %873 = vmatpush.bf16.msra.mxu0 %v699
        %874 = vmatpush.bf16.msra.mxu0 %v697
        %875 = vmatmul.bf16.gmra.mxu0 %v391
        %v876 = vpop.f32.mrf.mxu0
        %v877 = vadd.f32 %v864, %v876
        %v878 = vpop.f32.mrf.mxu0
        %879 = vdwg.mxu0
        %v882 = vrot.slane %v877, 6
        %vm883 = vcmask 1041408
        %v884 = vsel %vm883, %v825, %v882
        %v886 = vadd.f32 %v376, %v884
        %887 = vst [vmem:[#allocation2] sm:$0xf] %v886
        %p888 = scmp.eq.s32.totalorder %s24, 7
        // Predicated region
        $region73: #{single_res_cnn_forward.3} parent=47 // pred_check
          %p889 = pneg %p888
        $region74: #{single_res_cnn_forward.3} parent=47 // pred_check_branch
          %891 = sbr.rel (%p889) target = $region76
        $region75: #{single_res_cnn_forward.3} parent=47 // pred_region
          %v892 = vld [vmem:[#allocation2] sm:$0xf]
          %v893 = vld [vmem:[#allocation6] sm:$0x3]
          %v895 = vperm.slane %v893, 0
          %v896 = vperm.slane %v893, 1
          %v897 = vrot.slane %v896, 6
          %v898 = vsel %vm883, %v895, %v897
          %v900 = vadd.f32 %v892, %v898
          %v901 = vmax.f32 %v900, 0.0
          %903 = vst [vmem:[#allocation1] ss:$4 sm:$0xff] %v901
          %v904 = vld.sshfl [vmem:[#allocation1] sm:$0xff pattern:$0x73625140]
          %v905 = vld.sshfl [vmem:[#allocation1 + $0x8] sm:$0xff pattern:$0x73625140]
          %v908 = vpack.c.bf16 %v904, %v904
          %v909 = vpack.c.bf16 %v905, %v905
          %v910 = vld [vmem:[#allocation8] sm:$0xff]
          %v911 = vld [vmem:[#allocation8 + $0x8] sm:$0xff]
          %v912 = vld [vmem:[#allocation8 + $0x10] sm:$0xff]
          %v913 = vld [vmem:[#allocation8 + $0x18] sm:$0xff]
          %v914 = vld [vmem:[#allocation8 + $0x20] sm:$0xff]
          %v915 = vld [vmem:[#allocation8 + $0x28] sm:$0xff]
          %v916 = vld [vmem:[#allocation8 + $0x30] sm:$0xff]
          %v917 = vld [vmem:[#allocation8 + $0x38] sm:$0xff]
          %v918 = vld [vmem:[#allocation8 + $0x40] sm:$0xff]
          %v919 = vld [vmem:[#allocation8 + $0x48] sm:$0xff]
          %v920 = vld [vmem:[#allocation8 + $0x50] sm:$0xff]
          %v921 = vld [vmem:[#allocation8 + $0x58] sm:$0xff]
          %v922 = vld [vmem:[#allocation8 + $0x60] sm:$0xff]
          %v923 = vld [vmem:[#allocation8 + $0x68] sm:$0xff]
          %v924 = vld [vmem:[#allocation8 + $0x70] sm:$0xff]
          %v925 = vld [vmem:[#allocation8 + $0x78] sm:$0xff]
          %v926 = vld [vmem:[#allocation8 + $0x80] sm:$0xff]
          %v927 = vld [vmem:[#allocation8 + $0x88] sm:$0xff]
          %v928 = vld [vmem:[#allocation8 + $0x90] sm:$0xff]
          %v929 = vld [vmem:[#allocation8 + $0x98] sm:$0xff]
          %v930 = vld [vmem:[#allocation8 + $0xa0] sm:$0xff]
          %v931 = vld [vmem:[#allocation8 + $0xa8] sm:$0xff]
          %v932 = vld [vmem:[#allocation8 + $0xb0] sm:$0xff]
          %v933 = vld [vmem:[#allocation8 + $0xb8] sm:$0xff]
          %v934 = vld [vmem:[#allocation8 + $0xc0] sm:$0xff]
          %v935 = vld [vmem:[#allocation8 + $0xc8] sm:$0xff]
          %v936 = vld [vmem:[#allocation8 + $0xd0] sm:$0xff]
          %v937 = vld [vmem:[#allocation8 + $0xd8] sm:$0xff]
          %v938 = vld [vmem:[#allocation8 + $0xe0] sm:$0xff]
          %v939 = vld [vmem:[#allocation8 + $0xe8] sm:$0xff]
          %v940 = vld [vmem:[#allocation8 + $0xf0] sm:$0xff]
          %v941 = vld [vmem:[#allocation8 + $0xf8] sm:$0xff]
          %v942 = vld [vmem:[#allocation9] sm:$0x3]
          %v944 = vperm.slane %v942, 0
          %v945 = vperm.slane %v942, 1
          %v980 = vunpack.c.l.b16 %v910
          %v981 = vunpack.c.h.b16 %v910
          %v982 = vunpack.c.l.b16 %v911
          %v983 = vunpack.c.h.b16 %v911
          %v984 = vunpack.c.l.b16 %v912
          %v985 = vunpack.c.h.b16 %v912
          %v986 = vunpack.c.l.b16 %v913
          %v987 = vunpack.c.h.b16 %v913
          %v988 = vunpack.c.l.b16 %v914
          %v989 = vunpack.c.h.b16 %v914
          %v990 = vunpack.c.l.b16 %v915
          %v991 = vunpack.c.h.b16 %v915
          %v992 = vunpack.c.l.b16 %v916
          %v993 = vunpack.c.h.b16 %v916
          %v994 = vunpack.c.l.b16 %v917
          %v995 = vunpack.c.h.b16 %v917
          %v996 = vunpack.c.l.b16 %v918
          %v997 = vunpack.c.h.b16 %v918
          %v998 = vunpack.c.l.b16 %v919
          %v999 = vunpack.c.h.b16 %v919
          %v1000 = vunpack.c.l.b16 %v920
          %v1001 = vunpack.c.h.b16 %v920
          %v1002 = vunpack.c.l.b16 %v921
          %v1003 = vunpack.c.h.b16 %v921
          %v1004 = vunpack.c.l.b16 %v922
          %v1005 = vunpack.c.h.b16 %v922
          %v1006 = vunpack.c.l.b16 %v923
          %v1007 = vunpack.c.h.b16 %v923
          %v1008 = vunpack.c.l.b16 %v924
          %v1009 = vunpack.c.h.b16 %v924
          %v1010 = vunpack.c.l.b16 %v925
          %v1011 = vunpack.c.h.b16 %v925
          %v1012 = vunpack.c.l.b16 %v926
          %v1013 = vunpack.c.h.b16 %v926
          %v1014 = vunpack.c.l.b16 %v927
          %v1015 = vunpack.c.h.b16 %v927
          %v1016 = vunpack.c.l.b16 %v928
          %v1017 = vunpack.c.h.b16 %v928
          %v1018 = vunpack.c.l.b16 %v929
          %v1019 = vunpack.c.h.b16 %v929
          %v1020 = vunpack.c.l.b16 %v930
          %v1021 = vunpack.c.h.b16 %v930
          %v1022 = vunpack.c.l.b16 %v931
          %v1023 = vunpack.c.h.b16 %v931
          %v1024 = vunpack.c.l.b16 %v932
          %v1025 = vunpack.c.h.b16 %v932
          %v1026 = vunpack.c.l.b16 %v933
          %v1027 = vunpack.c.h.b16 %v933
          %v1028 = vunpack.c.l.b16 %v934
          %v1029 = vunpack.c.h.b16 %v934
          %v1030 = vunpack.c.l.b16 %v935
          %v1031 = vunpack.c.h.b16 %v935
          %v1032 = vunpack.c.l.b16 %v936
          %v1033 = vunpack.c.h.b16 %v936
          %v1034 = vunpack.c.l.b16 %v937
          %v1035 = vunpack.c.h.b16 %v937
          %v1036 = vunpack.c.l.b16 %v938
          %v1037 = vunpack.c.h.b16 %v938
          %v1038 = vunpack.c.l.b16 %v939
          %v1039 = vunpack.c.h.b16 %v939
          %v1040 = vunpack.c.l.b16 %v940
          %v1041 = vunpack.c.h.b16 %v940
          %v1042 = vunpack.c.l.b16 %v941
          %v1043 = vunpack.c.h.b16 %v941
          %v1044 = vpack.c.b16 %v982, %v980
          %v1045 = vpack.c.b16 %v983, %v981
          %v1046 = vpack.c.b16 %v986, %v984
          %v1047 = vpack.c.b16 %v987, %v985
          %v1048 = vpack.c.b16 %v990, %v988
          %v1049 = vpack.c.b16 %v991, %v989
          %v1050 = vpack.c.b16 %v994, %v992
          %v1051 = vpack.c.b16 %v995, %v993
          %v1052 = vpack.c.b16 %v998, %v996
          %v1053 = vpack.c.b16 %v999, %v997
          %v1054 = vpack.c.b16 %v1002, %v1000
          %v1055 = vpack.c.b16 %v1003, %v1001
          %v1056 = vpack.c.b16 %v1006, %v1004
          %v1057 = vpack.c.b16 %v1007, %v1005
          %v1058 = vpack.c.b16 %v1010, %v1008
          %v1059 = vpack.c.b16 %v1011, %v1009
          %v1060 = vpack.c.b16 %v1014, %v1012
          %v1061 = vpack.c.b16 %v1015, %v1013
          %v1062 = vpack.c.b16 %v1018, %v1016
          %v1063 = vpack.c.b16 %v1019, %v1017
          %v1064 = vpack.c.b16 %v1022, %v1020
          %v1065 = vpack.c.b16 %v1023, %v1021
          %v1066 = vpack.c.b16 %v1026, %v1024
          %v1067 = vpack.c.b16 %v1027, %v1025
          %v1068 = vpack.c.b16 %v1030, %v1028
          %v1069 = vpack.c.b16 %v1031, %v1029
          %v1070 = vpack.c.b16 %v1034, %v1032
          %v1071 = vpack.c.b16 %v1035, %v1033
          %v1072 = vpack.c.b16 %v1038, %v1036
          %v1073 = vpack.c.b16 %v1039, %v1037
          %v1074 = vpack.c.b16 %v1042, %v1040
          %v1075 = vpack.c.b16 %v1043, %v1041
          %1108 = vmatpush.bf16.msra.mxu0 %v1058
          %1109 = vmatpush.bf16.msra.mxu0 %v1056
          %1110 = vmatpush.bf16.msra.mxu0 %v1054
          %1111 = vmatpush.bf16.msra.mxu0 %v1052
          %1112 = vmatpush.bf16.msra.mxu0 %v1050
          %1113 = vmatpush.bf16.msra.mxu0 %v1048
          %1114 = vmatpush.bf16.msra.mxu0 %v1046
          %1115 = vmatpush.bf16.msra.mxu0 %v1044
          %1116 = vmatmul.bf16.gmra.mxu0 %v908
          %v1117 = vpop.f32.mrf.mxu0
          %v1118 = vadd.f32 %v944, %v1117
          %v1119 = vpop.f32.mrf.mxu0
          %1120 = vdwg.mxu0
          %1121 = vmatpush.bf16.msra.mxu0 %v1074
          %1122 = vmatpush.bf16.msra.mxu0 %v1072
          %1123 = vmatpush.bf16.msra.mxu0 %v1070
          %1124 = vmatpush.bf16.msra.mxu0 %v1068
          %1125 = vmatpush.bf16.msra.mxu0 %v1066
          %1126 = vmatpush.bf16.msra.mxu0 %v1064
          %1127 = vmatpush.bf16.msra.mxu0 %v1062
          %1128 = vmatpush.bf16.msra.mxu0 %v1060
          %1129 = vmatmul.bf16.gmra.mxu0 %v909
          %v1130 = vpop.f32.mrf.mxu0
          %v1131 = vadd.f32 %v1118, %v1130
          %v1132 = vpop.f32.mrf.mxu0
          %1133 = vdwg.mxu0
          %1134 = vmatpush.bf16.msra.mxu0 %v1059
          %1135 = vmatpush.bf16.msra.mxu0 %v1057
          %1136 = vmatpush.bf16.msra.mxu0 %v1055
          %1137 = vmatpush.bf16.msra.mxu0 %v1053
          %1138 = vmatpush.bf16.msra.mxu0 %v1051
          %1139 = vmatpush.bf16.msra.mxu0 %v1049
          %1140 = vmatpush.bf16.msra.mxu0 %v1047
          %1141 = vmatpush.bf16.msra.mxu0 %v1045
          %1142 = vmatmul.bf16.gmra.mxu0 %v908
          %v1143 = vpop.f32.mrf.mxu0
          %v1144 = vadd.f32 %v945, %v1143
          %v1145 = vpop.f32.mrf.mxu0
          %1146 = vdwg.mxu0
          %1147 = vmatpush.bf16.msra.mxu0 %v1075
          %1148 = vmatpush.bf16.msra.mxu0 %v1073
          %1149 = vmatpush.bf16.msra.mxu0 %v1071
          %1150 = vmatpush.bf16.msra.mxu0 %v1069
          %1151 = vmatpush.bf16.msra.mxu0 %v1067
          %1152 = vmatpush.bf16.msra.mxu0 %v1065
          %1153 = vmatpush.bf16.msra.mxu0 %v1063
          %1154 = vmatpush.bf16.msra.mxu0 %v1061
          %1155 = vmatmul.bf16.gmra.mxu0 %v909
          %v1156 = vpop.f32.mrf.mxu0
          %v1157 = vadd.f32 %v1144, %v1156
          %v1158 = vpop.f32.mrf.mxu0
          %1159 = vdwg.mxu0
          %v1160 = vmax.f32 %v1131, 0.0
          %v1161 = vmax.f32 %v1157, 0.0
          %v1162 = vpack.c.bf16 %v1160, %v1160
          %v1163 = vpack.c.bf16 %v1161, %v1161
          %v1164 = vld [vmem:[%s5] sm:$0xf]
          %v1165 = vld [vmem:[%s5 + $0x4] sm:$0xf]
          %v1166 = vld [vmem:[%s5 + $0x8] sm:$0xf]
          %v1167 = vld [vmem:[%s5 + $0xc] sm:$0xf]
          %v1168 = vld [vmem:[%s5 + $0x10] sm:$0xf]
          %v1169 = vld [vmem:[%s5 + $0x14] sm:$0xf]
          %v1170 = vld [vmem:[%s5 + $0x18] sm:$0xf]
          %v1171 = vld [vmem:[%s5 + $0x1c] sm:$0xf]
          %v1172 = vld [vmem:[%s5 + $0x20] sm:$0xf]
          %v1173 = vld [vmem:[%s5 + $0x24] sm:$0xf]
          %v1174 = vld [vmem:[%s5 + $0x28] sm:$0xf]
          %v1175 = vld [vmem:[%s5 + $0x2c] sm:$0xf]
          %v1176 = vld [vmem:[%s5 + $0x30] sm:$0xf]
          %v1177 = vld [vmem:[%s5 + $0x34] sm:$0xf]
          %v1178 = vld [vmem:[%s5 + $0x38] sm:$0xf]
          %v1179 = vld [vmem:[%s5 + $0x3c] sm:$0xf]
          %v1180 = vld [vmem:[%s5 + $0x40] sm:$0xf]
          %v1181 = vld [vmem:[%s5 + $0x44] sm:$0xf]
          %v1182 = vld [vmem:[%s5 + $0x48] sm:$0xf]
          %v1183 = vld [vmem:[%s5 + $0x4c] sm:$0xf]
          %v1184 = vld [vmem:[%s5 + $0x50] sm:$0xf]
          %v1185 = vld [vmem:[%s5 + $0x54] sm:$0xf]
          %v1186 = vld [vmem:[%s5 + $0x58] sm:$0xf]
          %v1187 = vld [vmem:[%s5 + $0x5c] sm:$0xf]
          %v1188 = vld [vmem:[%s5 + $0x60] sm:$0xf]
          %v1189 = vld [vmem:[%s5 + $0x64] sm:$0xf]
          %v1190 = vld [vmem:[%s5 + $0x68] sm:$0xf]
          %v1191 = vld [vmem:[%s5 + $0x6c] sm:$0xf]
          %v1192 = vld [vmem:[%s5 + $0x70] sm:$0xf]
          %v1193 = vld [vmem:[%s5 + $0x74] sm:$0xf]
          %v1194 = vld [vmem:[%s5 + $0x78] sm:$0xf]
          %v1195 = vld [vmem:[%s5 + $0x7c] sm:$0xf]
          %v1196 = vld [vmem:[#allocation11] sm:$0x1]
          %v1198 = vperm.slane %v1196, 0
          %v1232 = vunpack.c.l.b16 %v1164
          %v1233 = vunpack.c.l.b16 %v1165
          %v1234 = vunpack.c.l.b16 %v1166
          %v1235 = vunpack.c.l.b16 %v1167
          %v1236 = vunpack.c.l.b16 %v1168
          %v1237 = vunpack.c.l.b16 %v1169
          %v1238 = vunpack.c.l.b16 %v1170
          %v1239 = vunpack.c.l.b16 %v1171
          %v1240 = vunpack.c.l.b16 %v1172
          %v1241 = vunpack.c.l.b16 %v1173
          %v1242 = vunpack.c.l.b16 %v1174
          %v1243 = vunpack.c.l.b16 %v1175
          %v1244 = vunpack.c.l.b16 %v1176
          %v1245 = vunpack.c.l.b16 %v1177
          %v1246 = vunpack.c.l.b16 %v1178
          %v1247 = vunpack.c.l.b16 %v1179
          %v1248 = vunpack.c.l.b16 %v1180
          %v1249 = vunpack.c.l.b16 %v1181
          %v1250 = vunpack.c.l.b16 %v1182
          %v1251 = vunpack.c.l.b16 %v1183
          %v1252 = vunpack.c.l.b16 %v1184
          %v1253 = vunpack.c.l.b16 %v1185
          %v1254 = vunpack.c.l.b16 %v1186
          %v1255 = vunpack.c.l.b16 %v1187
          %v1256 = vunpack.c.l.b16 %v1188
          %v1257 = vunpack.c.l.b16 %v1189
          %v1258 = vunpack.c.l.b16 %v1190
          %v1259 = vunpack.c.l.b16 %v1191
          %v1260 = vunpack.c.l.b16 %v1192
          %v1261 = vunpack.c.l.b16 %v1193
          %v1262 = vunpack.c.l.b16 %v1194
          %v1263 = vunpack.c.l.b16 %v1195
          %v1264 = vpack.c.b16 %v1233, %v1232
          %v1265 = vpack.c.b16 %v1235, %v1234
          %v1266 = vpack.c.b16 %v1237, %v1236
          %v1267 = vpack.c.b16 %v1239, %v1238
          %v1268 = vpack.c.b16 %v1241, %v1240
          %v1269 = vpack.c.b16 %v1243, %v1242
          %v1270 = vpack.c.b16 %v1245, %v1244
          %v1271 = vpack.c.b16 %v1247, %v1246
          %v1272 = vpack.c.b16 %v1249, %v1248
          %v1273 = vpack.c.b16 %v1251, %v1250
          %v1274 = vpack.c.b16 %v1253, %v1252
          %v1275 = vpack.c.b16 %v1255, %v1254
          %v1276 = vpack.c.b16 %v1257, %v1256
          %v1277 = vpack.c.b16 %v1259, %v1258
          %v1278 = vpack.c.b16 %v1261, %v1260
          %v1279 = vpack.c.b16 %v1263, %v1262
          %1296 = vmatpush.bf16.msra.mxu0 %v1271
          %1297 = vmatpush.bf16.msra.mxu0 %v1270
          %1298 = vmatpush.bf16.msra.mxu0 %v1269
          %1299 = vmatpush.bf16.msra.mxu0 %v1268
          %1300 = vmatpush.bf16.msra.mxu0 %v1267
          %1301 = vmatpush.bf16.msra.mxu0 %v1266
          %1302 = vmatpush.bf16.msra.mxu0 %v1265
          %1303 = vmatpush.bf16.msra.mxu0 %v1264
          %1304 = vmatmul.bf16.gmra.mxu0 %v1162
          %v1305 = vpop.f32.mrf.mxu0
          %v1306 = vadd.f32 %v1198, %v1305
          %v1307 = vpop.f32.mrf.mxu0
          %1308 = vdwg.mxu0
          %1309 = vmatpush.bf16.msra.mxu0 %v1279
          %1310 = vmatpush.bf16.msra.mxu0 %v1278
          %1311 = vmatpush.bf16.msra.mxu0 %v1277
          %1312 = vmatpush.bf16.msra.mxu0 %v1276
          %1313 = vmatpush.bf16.msra.mxu0 %v1275
          %1314 = vmatpush.bf16.msra.mxu0 %v1274
          %1315 = vmatpush.bf16.msra.mxu0 %v1273
          %1316 = vmatpush.bf16.msra.mxu0 %v1272
          %1317 = vmatmul.bf16.gmra.mxu0 %v1163
          %v1318 = vpop.f32.mrf.mxu0
          %v1319 = vadd.f32 %v1306, %v1318
          %v1320 = vpop.f32.mrf.mxu0
          %1321 = vdwg.mxu0
          %vm1322 = vcmask 74752
          %1323 = vst.msk [vmem:[#allocation12] sm:$0x3] %vm1322, %v1319
        $region76: #{single_res_cnn_forward.3} parent=47 // pred_fallthru
          _
        // Predicated region
        $region77: #{single_res_cnn_forward.3} parent=47 // pred_check
          %p1324 = pneg %p194
        $region78: #{single_res_cnn_forward.3} parent=47 // pred_check_branch
          %1326 = sbr.rel (%p1324) target = $region80
        $region79: #{single_res_cnn_forward.3} parent=47 // pred_region
          %1328 = vsyncadd [#allocation5], 0
          %s1330 = sshll.u32 [#allocation12], 4
          %s1331 = int_to_ptr.vmem [resolvable:$true] %s1330
          %s1332 = sshll.u32 %s7, 4
          %s1333 = int_to_ptr.hbm [resolvable:$true] %s1332
          %1335 = dma.vmem_to_hbm [thread:$0]  %s1331, 32, %s1333, [#allocation5]
        $region80: #{single_res_cnn_forward.3} parent=47 // pred_fallthru
          _
        // Predicated region
        $region81: #{single_res_cnn_forward.3} parent=47 // pred_check
          %p1336 = pneg %p194
        $region82: #{single_res_cnn_forward.3} parent=47 // pred_check_branch
          %1338 = sbr.rel (%p1336) target = $region84
        $region83: #{single_res_cnn_forward.3} parent=47 // pred_region
          %1340 = dma.done [#allocation5], 32
        $region84: #{single_res_cnn_forward.3} parent=47 // pred_fallthru
          _
      $region48: #{single_res_cnn_forward.3} parent=5 // pred_fallthru
        _
      %p1341 = scmp.le.s32.totalorder 2, %s19
      // Predicated region
      $region85: #{single_res_cnn_forward.3} parent=5 // pred_check
        %p1342 = pneg %p1341
      $region86: #{single_res_cnn_forward.3} parent=5 // pred_check_branch
        %1344 = sbr.rel (%p1342) target = $region88
      $region87: #{single_res_cnn_forward.3} parent=5 // pred_region
        %s1345 = ssub.s32 %s19, 2
      $region88: #{single_res_cnn_forward.3} parent=5 // pred_fallthru
        _
    $region6: #{single_res_cnn_forward.3} parent=1 // loop_footer
      %s23 = sadd.s32 1, %s19
    $region7: #{single_res_cnn_forward.3} parent=1 // loop_footer_branch
      %18 = sbr.rel target = $region3
    $region8: #{single_res_cnn_forward.3} parent=1 // loop_exit
      _
    %1346 = vsyncpa [#allocation4], 1
    %s1347 = scalar_lea.sflag [#allocation4], 1
    %1348 = vsyncpa %s1347, 1
    %1349 = vsyncpa [#allocation7], 1
    %1350 = vsyncpa [#allocation10], 1
    %1351 = vsyncpa [#allocation5], 1
    %s1352 = scalar_lea.sflag [#allocation5], 1
    %1353 = vsyncpa %s1352, 1

// kernel: single_res_cnn_forward.2
$region0: #{single_res_cnn_forward.2}
  #allocation0 [shape = 'u32[]', space=smem, size = 0x4, offset = 0x4, fixed_abs, tag = 'smem constant byte address 0x4 - core index']
  #allocation1 [shape = 'u32[72,128]{1,0:T(1,128)}', space=vmem, size = 0x9000, scoped, tag = 'internal scratch']
  #allocation2 [shape = 'f32[18,18,4]{2,1,0:T(8,128)}', space=vmem, size = 0x36000, scoped, tag = 'scratch operand']
  #allocation3 [shape = 'bf16[256,36]{1,0:T(8,128)(2,1)}', space=vmem, size = 0x10000, scoped, tag = 'scratch operand']
  #allocation4 [shape = 'f32[18,18,8]{2,1,0:T(8,128)}', space=vmem, size = 0x36000, scoped, tag = 'scratch operand']
  #allocation5 [shape = 'bf16[256,72]{1,0:T(8,128)(2,1)}', space=vmem, size = 0x10000, scoped, tag = 'scratch operand']
  %s0 = inlined_call_operand.vmem [shape: f32[2,16,16,4], index: 0, kind: input, shape index: {}]
  %s1 = inlined_call_operand.vmem [shape: bf16[36,8], index: 1, kind: input, shape index: {}]
  %s2 = inlined_call_operand.hbm [shape: f32[1,8], index: 2, kind: input, shape index: {}]
  %s3 = inlined_call_operand.vmem [shape: bf16[72,16], index: 3, kind: input, shape index: {}]
  %s4 = inlined_call_operand.hbm [shape: f32[1,16], index: 4, kind: input, shape index: {}]
  %s5 = inlined_call_operand.vmem [shape: f32[2,256,16], index: 5, kind: output, shape index: {}]
  %s6 = sld [smem:[#allocation0]]
  $region61: #{single_res_cnn_forward.2} parent=0
    _
  %s8 = ssub.s32 1, %s6
  %s9 = scalar_select 0, %s8, %s6
  $region1: #{single_res_cnn_forward.2} parent=0
    #allocation6 [shape = 'u8[512]{0}', space=vmem, size = 0x400, scoped, tag = 'input window, operand 2, single buffered']
    #allocation7 [shape = 's32[2]{0}', space=sflag, size = 0x8, scoped, tag = 'scoped memory for single_res_cnn_forward.2']
    #allocation8 [shape = 'u8[512]{0}', space=vmem, size = 0x400, scoped, tag = 'input window, operand 4, single buffered']
    #allocation9 [shape = 's32[1]{0}', space=sflag, size = 0x4, scoped, tag = 'scoped memory for single_res_cnn_forward.2']
    %10 = vsyncpa [#allocation7], 0
    %11 = vsyncpa [#allocation9], 0
    loop: start=0, step=1, limit=4
    $region2: #{single_res_cnn_forward.2} parent=1 // loop_pre_header
      _
    $region3: #{single_res_cnn_forward.2} parent=1 // loop_header
      %s13 = sphi 0, %s17
      %p14 = scmp.ge.s32.totalorder %s13, 4
      %s23 = sphi 0, %s25
      %s26 = sphi 0, %s23
      %s27 = sphi 0, %s26
      %s43 = sphi 0, %s27
      %s47 = sphi 0, %s47
      %s49 = sphi 0, %s47
      %s50 = sphi 0, %s49
      %s64 = sphi 0, %s50
      %s68 = sphi 0, %s68
      %s70 = sphi 0, %s68
      %s71 = sphi 0, %s70
      %s85 = sphi 0, %s71
      %s89 = sphi 0, %s89
      %s91 = sphi 0, %s89
      %s92 = sphi 0, %s91
      %s106 = sphi 0, %s92
      %s110 = sphi 0, %s110
      %s112 = sphi 0, %s110
      %s113 = sphi 0, %s112
      %s127 = sphi 0, %s113
      %s133 = sphi 0, %s135
      %s136 = sphi 0, %s133
      %s137 = sphi 0, %s136
      %s153 = sphi 0, %s137
    $region4: #{single_res_cnn_forward.2} parent=1 // loop_header_branch
      %16 = sbr.rel (%p14) target = $region8
    $region5: #{single_res_cnn_forward.2} parent=1 // loop_body
      %s18 = ssub.s32 %s13, 1
      %s19 = ssub.s32 %s13, 2
      %s20 = sadd.s32 %s13, 1
      %s21 = ssub.s32 %s13, %s20
      %p22 = scmp.eq.s32.totalorder %s21, 0
      %s24 = sadd.s32 %s23, 1
      %s25 = scalar_select %p22, %s23, %s24
      %p28 = pneg %p22
      %p29 = scmp.eq.s32.totalorder %s13, 1
      %p30 = por %p28, %p29
      %p31 = scmp.ne.s32.totalorder %s23, %s26
      %p32 = scmp.eq.s32.totalorder %s13, 0
      %p33 = por %p31, %p32
      %p34 = scmp.ne.s32.totalorder %s23, %s26
      %p35 = scmp.eq.s32.totalorder %s18, 1
      %p36 = por %p34, %p35
      %p37 = scmp.ne.s32.totalorder %s26, %s27
      %p38 = scmp.eq.s32.totalorder %s18, 0
      %p39 = por %p37, %p38
      %p40 = scmp.ne.s32.totalorder %s26, %s27
      %p41 = scmp.eq.s32.totalorder %s19, 1
      %p42 = por %p40, %p41
      %p44 = scmp.ne.s32.totalorder %s27, %s43
      %p45 = scmp.eq.s32.totalorder %s19, 0
      %p46 = por %p44, %p45
      %s48 = sadd.s32 %s47, 1
      %p51 = scmp.eq.s32.totalorder %s13, 1
      %p52 = scmp.ne.s32.totalorder %s47, %s49
      %p53 = scmp.eq.s32.totalorder %s13, 0
      %p54 = por %p52, %p53
      %p55 = scmp.ne.s32.totalorder %s47, %s49
      %p56 = scmp.eq.s32.totalorder %s18, 1
      %p57 = por %p55, %p56
      %p58 = scmp.ne.s32.totalorder %s49, %s50
      %p59 = scmp.eq.s32.totalorder %s18, 0
      %p60 = por %p58, %p59
      %p61 = scmp.ne.s32.totalorder %s49, %s50
      %p62 = scmp.eq.s32.totalorder %s19, 1
      %p63 = por %p61, %p62
      %p65 = scmp.ne.s32.totalorder %s50, %s64
      %p66 = scmp.eq.s32.totalorder %s19, 0
      %p67 = por %p65, %p66
      %s69 = sadd.s32 %s68, 1
      %p72 = scmp.eq.s32.totalorder %s13, 1
      %p73 = scmp.ne.s32.totalorder %s68, %s70
      %p74 = scmp.eq.s32.totalorder %s13, 0
      %p75 = por %p73, %p74
      %p76 = scmp.ne.s32.totalorder %s68, %s70
      %p77 = scmp.eq.s32.totalorder %s18, 1
      %p78 = por %p76, %p77
      %p79 = scmp.ne.s32.totalorder %s70, %s71
      %p80 = scmp.eq.s32.totalorder %s18, 0
      %p81 = por %p79, %p80
      %p82 = scmp.ne.s32.totalorder %s70, %s71
      %p83 = scmp.eq.s32.totalorder %s19, 1
      %p84 = por %p82, %p83
      %p86 = scmp.ne.s32.totalorder %s71, %s85
      %p87 = scmp.eq.s32.totalorder %s19, 0
      %p88 = por %p86, %p87
      %s90 = sadd.s32 %s89, 1
      %p93 = scmp.eq.s32.totalorder %s13, 1
      %p94 = scmp.ne.s32.totalorder %s89, %s91
      %p95 = scmp.eq.s32.totalorder %s13, 0
      %p96 = por %p94, %p95
      %p97 = scmp.ne.s32.totalorder %s89, %s91
      %p98 = scmp.eq.s32.totalorder %s18, 1
      %p99 = por %p97, %p98
      %p100 = scmp.ne.s32.totalorder %s91, %s92
      %p101 = scmp.eq.s32.totalorder %s18, 0
      %p102 = por %p100, %p101
      %p103 = scmp.ne.s32.totalorder %s91, %s92
      %p104 = scmp.eq.s32.totalorder %s19, 1
      %p105 = por %p103, %p104
      %p107 = scmp.ne.s32.totalorder %s92, %s106
      %p108 = scmp.eq.s32.totalorder %s19, 0
      %p109 = por %p107, %p108
      %s111 = sadd.s32 %s110, 1
      %p114 = scmp.eq.s32.totalorder %s13, 1
      %p115 = scmp.ne.s32.totalorder %s110, %s112
      %p116 = scmp.eq.s32.totalorder %s13, 0
      %p117 = por %p115, %p116
      %p118 = scmp.ne.s32.totalorder %s110, %s112
      %p119 = scmp.eq.s32.totalorder %s18, 1
      %p120 = por %p118, %p119
      %p121 = scmp.ne.s32.totalorder %s112, %s113
      %p122 = scmp.eq.s32.totalorder %s18, 0
      %p123 = por %p121, %p122
      %p124 = scmp.ne.s32.totalorder %s112, %s113
      %p125 = scmp.eq.s32.totalorder %s19, 1
      %p126 = por %p124, %p125
      %p128 = scmp.ne.s32.totalorder %s113, %s127
      %p129 = scmp.eq.s32.totalorder %s19, 0
      %p130 = por %p128, %p129
      %s131 = ssub.s32 %s13, %s20
      %p132 = scmp.eq.s32.totalorder %s131, 0
      %s134 = sadd.s32 %s133, 1
      %s135 = scalar_select %p132, %s133, %s134
      %p138 = pneg %p132
      %p139 = scmp.eq.s32.totalorder %s13, 1
      %p140 = por %p138, %p139
      %p141 = scmp.ne.s32.totalorder %s133, %s136
      %p142 = scmp.eq.s32.totalorder %s13, 0
      %p143 = por %p141, %p142
      %p144 = scmp.ne.s32.totalorder %s133, %s136
      %p145 = scmp.eq.s32.totalorder %s18, 1
      %p146 = por %p144, %p145
      %p147 = scmp.ne.s32.totalorder %s136, %s137
      %p148 = scmp.eq.s32.totalorder %s18, 0
      %p149 = por %p147, %p148
      %p150 = scmp.ne.s32.totalorder %s136, %s137
      %p151 = scmp.eq.s32.totalorder %s19, 1
      %p152 = por %p150, %p151
      %p154 = scmp.ne.s32.totalorder %s137, %s153
      %p155 = scmp.eq.s32.totalorder %s19, 0
      %p156 = por %p154, %p155
      %p157 = scmp.le.s32.totalorder 1, %s13
      %p158 = scmp.lt.s32.totalorder %s13, 3
      %p159 = pnand %p157, %p158
      %p160 = pneg %p159
      // Predicated region
      $region9: #{single_res_cnn_forward.2} parent=5 // pred_check
        _
      $region10: #{single_res_cnn_forward.2} parent=5 // pred_check_branch
        %162 = sbr.rel (%p159) target = $region12
      $region11: #{single_res_cnn_forward.2} parent=5 // pred_region
        %s163 = ssub.s32 %s13, 1
        // Predicated region
        $region13: #{single_res_cnn_forward.2} parent=11 // pred_check
          %p164 = pneg %p60
        $region14: #{single_res_cnn_forward.2} parent=11 // pred_check_branch
          %166 = sbr.rel (%p164) target = $region16
        $region15: #{single_res_cnn_forward.2} parent=11 // pred_region
          _
        $region16: #{single_res_cnn_forward.2} parent=11 // pred_fallthru
          _
        // Predicated region
        $region17: #{single_res_cnn_forward.2} parent=11 // pred_check
          %p167 = pneg %p81
        $region18: #{single_res_cnn_forward.2} parent=11 // pred_check_branch
          %169 = sbr.rel (%p167) target = $region20
        $region19: #{single_res_cnn_forward.2} parent=11 // pred_region
          %171 = vsyncadd [#allocation7], 0
          %s173 = sshll.u32 %s2, 4
          %s174 = int_to_ptr.hbm [resolvable:$true] %s173
          %s175 = sshll.u32 [#allocation6], 4
          %s176 = int_to_ptr.vmem [resolvable:$true] %s175
          %178 = dma.hbm_to_vmem [thread:$0]  %s174, 16, %s176, [#allocation7]
        $region20: #{single_res_cnn_forward.2} parent=11 // pred_fallthru
          _
        // Predicated region
        $region21: #{single_res_cnn_forward.2} parent=11 // pred_check
          %p179 = pneg %p102
        $region22: #{single_res_cnn_forward.2} parent=11 // pred_check_branch
          %181 = sbr.rel (%p179) target = $region24
        $region23: #{single_res_cnn_forward.2} parent=11 // pred_region
          _
        $region24: #{single_res_cnn_forward.2} parent=11 // pred_fallthru
          _
        // Predicated region
        $region25: #{single_res_cnn_forward.2} parent=11 // pred_check
          %p182 = pneg %p123
        $region26: #{single_res_cnn_forward.2} parent=11 // pred_check_branch
          %184 = sbr.rel (%p182) target = $region28
        $region27: #{single_res_cnn_forward.2} parent=11 // pred_region
          %186 = vsyncadd [#allocation9], 0
          %s188 = sshll.u32 %s4, 4
          %s189 = int_to_ptr.hbm [resolvable:$true] %s188
          %s190 = sshll.u32 [#allocation8], 4
          %s191 = int_to_ptr.vmem [resolvable:$true] %s190
          %193 = dma.hbm_to_vmem [thread:$0]  %s189, 16, %s191, [#allocation9]
        $region28: #{single_res_cnn_forward.2} parent=11 // pred_fallthru
          _
      $region12: #{single_res_cnn_forward.2} parent=5 // pred_fallthru
        _
      %p194 = scmp.lt.s32.totalorder %s13, 2
      // Predicated region
      $region29: #{single_res_cnn_forward.2} parent=5 // pred_check
        %p195 = pneg %p194
      $region30: #{single_res_cnn_forward.2} parent=5 // pred_check_branch
        %197 = sbr.rel (%p195) target = $region32
      $region31: #{single_res_cnn_forward.2} parent=5 // pred_region
        // Predicated region
        $region33: #{single_res_cnn_forward.2} parent=31 // pred_check
          %p198 = pneg %p33
        $region34: #{single_res_cnn_forward.2} parent=31 // pred_check_branch
          %200 = sbr.rel (%p198) target = $region36
        $region35: #{single_res_cnn_forward.2} parent=31 // pred_region
          %p201 = scmp.lt.s32.totalorder %s13, 1
          %s202 = scalar_select %p201, %s13, 1
          %s203 = smul.addr %s202, 32
          %s204 = smul.addr %s203, 8
          %s205 = scalar_lea.vmem %s0, %s204
        $region36: #{single_res_cnn_forward.2} parent=31 // pred_fallthru
          _
      $region32: #{single_res_cnn_forward.2} parent=5 // pred_fallthru
        _
      %p206 = scmp.le.s32.totalorder 1, %s13
      %p207 = scmp.lt.s32.totalorder %s13, 3
      %p208 = pnand %p206, %p207
      %p209 = pneg %p208
      // Predicated region
      $region37: #{single_res_cnn_forward.2} parent=5 // pred_check
        _
      $region38: #{single_res_cnn_forward.2} parent=5 // pred_check_branch
        %211 = sbr.rel (%p208) target = $region40
      $region39: #{single_res_cnn_forward.2} parent=5 // pred_region
        %s212 = ssub.s32 %s13, 1
        // Predicated region
        $region41: #{single_res_cnn_forward.2} parent=39 // pred_check
          %p213 = pneg %p81
        $region42: #{single_res_cnn_forward.2} parent=39 // pred_check_branch
          %215 = sbr.rel (%p213) target = $region44
        $region43: #{single_res_cnn_forward.2} parent=39 // pred_region
          %217 = dma.done [#allocation7], 16
        $region44: #{single_res_cnn_forward.2} parent=39 // pred_fallthru
          _
        // Predicated region
        $region45: #{single_res_cnn_forward.2} parent=39 // pred_check
          %p218 = pneg %p123
        $region46: #{single_res_cnn_forward.2} parent=39 // pred_check_branch
          %220 = sbr.rel (%p218) target = $region48
        $region47: #{single_res_cnn_forward.2} parent=39 // pred_region
          %222 = dma.done [#allocation9], 16
        $region48: #{single_res_cnn_forward.2} parent=39 // pred_fallthru
          _
        %p223 = scmp.lt.s32.totalorder %s18, 1
        %s224 = scalar_select %p223, %s18, 1
        %s225 = smul.addr %s224, 32
        %s226 = smul.addr %s225, 8
        %s227 = scalar_lea.vmem %s0, %s226
        %p228 = pneg %p39
        %p229 = pneg %p36
        %p230 = pneg %p60
        %p231 = pneg %p57
        %p232 = pneg %p81
        %p233 = pneg %p78
        %p234 = pneg %p102
        %p235 = pneg %p99
        %p236 = pneg %p123
        %p237 = pneg %p120
        %p238 = pneg %p149
        %p239 = pneg %p146
        %p240 = scmp.lt.s32.totalorder %s18, 1
        %s241 = scalar_select %p240, %s18, 1
        %s242 = smul.addr %s241, 32
        %s243 = smul.addr %s242, 8
        %s244 = scalar_lea.vmem %s5, %s243
        %p245 = scmp.lt.s32.totalorder %s18, 1
        %s246 = scalar_select %p245, %s18, 1
        %s247 = smul.addr %s246, 32
        %s248 = smul.addr %s247, 8
        %s249 = scalar_lea.vmem %s0, %s248
        %p250 = scmp.lt.s32.totalorder %s18, 1
        %s251 = scalar_select %p250, %s18, 1
        %s252 = smul.addr %s251, 32
        %s253 = smul.addr %s252, 8
        %s254 = scalar_lea.vmem %s5, %s253
        %vm256 = vcmask 31744
        %257 = vst.msk [vmem:[#allocation2] sm:$0xff] %vm256, 0.0
        %258 = vst.msk [vmem:[#allocation2 + $0x8] sm:$0xff] %vm256, 0.0
        %vm259 = vcmask 25600
        %260 = vst.msk [vmem:[#allocation2 + $0x10] sm:$0x3] %vm259, 0.0
        %261 = vst.msk [vmem:[#allocation2 + $0x18] sm:$0xff] %vm256, 0.0
        %262 = vst.msk [vmem:[#allocation2 + $0x20] sm:$0xff] %vm256, 0.0
        %263 = vst.msk [vmem:[#allocation2 + $0x28] sm:$0x3] %vm259, 0.0
        %264 = vst.msk [vmem:[#allocation2 + $0x30] sm:$0xff] %vm256, 0.0
        %265 = vst.msk [vmem:[#allocation2 + $0x38] sm:$0xff] %vm256, 0.0
        %266 = vst.msk [vmem:[#allocation2 + $0x40] sm:$0x3] %vm259, 0.0
        %267 = vst.msk [vmem:[#allocation2 + $0x48] sm:$0xff] %vm256, 0.0
        %268 = vst.msk [vmem:[#allocation2 + $0x50] sm:$0xff] %vm256, 0.0
        %269 = vst.msk [vmem:[#allocation2 + $0x58] sm:$0x3] %vm259, 0.0
        %270 = vst.msk [vmem:[#allocation2 + $0x60] sm:$0xff] %vm256, 0.0
        %271 = vst.msk [vmem:[#allocation2 + $0x68] sm:$0xff] %vm256, 0.0
        %272 = vst.msk [vmem:[#allocation2 + $0x70] sm:$0x3] %vm259, 0.0
        %273 = vst.msk [vmem:[#allocation2 + $0x78] sm:$0xff] %vm256, 0.0
        %274 = vst.msk [vmem:[#allocation2 + $0x80] sm:$0xff] %vm256, 0.0
        %275 = vst.msk [vmem:[#allocation2 + $0x88] sm:$0x3] %vm259, 0.0
        %276 = vst.msk [vmem:[#allocation2 + $0x90] sm:$0xff] %vm256, 0.0
        %277 = vst.msk [vmem:[#allocation2 + $0x98] sm:$0xff] %vm256, 0.0
        %278 = vst.msk [vmem:[#allocation2 + $0xa0] sm:$0x3] %vm259, 0.0
        %279 = vst.msk [vmem:[#allocation2 + $0xa8] sm:$0xff] %vm256, 0.0
        %280 = vst.msk [vmem:[#allocation2 + $0xb0] sm:$0xff] %vm256, 0.0
        %281 = vst.msk [vmem:[#allocation2 + $0xb8] sm:$0x3] %vm259, 0.0
        %282 = vst.msk [vmem:[#allocation2 + $0xc0] sm:$0xff] %vm256, 0.0
        %283 = vst.msk [vmem:[#allocation2 + $0xc8] sm:$0xff] %vm256, 0.0
        %284 = vst.msk [vmem:[#allocation2 + $0xd0] sm:$0x3] %vm259, 0.0
        %285 = vst.msk [vmem:[#allocation2 + $0xd8] sm:$0xff] %vm256, 0.0
        %286 = vst.msk [vmem:[#allocation2 + $0xe0] sm:$0xff] %vm256, 0.0
        %287 = vst.msk [vmem:[#allocation2 + $0xe8] sm:$0x3] %vm259, 0.0
        %288 = vst.msk [vmem:[#allocation2 + $0xf0] sm:$0xff] %vm256, 0.0
        %289 = vst.msk [vmem:[#allocation2 + $0xf8] sm:$0xff] %vm256, 0.0
        %290 = vst.msk [vmem:[#allocation2 + $0x100] sm:$0x3] %vm259, 0.0
        %291 = vst.msk [vmem:[#allocation2 + $0x108] sm:$0xff] %vm256, 0.0
        %292 = vst.msk [vmem:[#allocation2 + $0x110] sm:$0xff] %vm256, 0.0
        %293 = vst.msk [vmem:[#allocation2 + $0x118] sm:$0x3] %vm259, 0.0
        %294 = vst.msk [vmem:[#allocation2 + $0x120] sm:$0xff] %vm256, 0.0
        %295 = vst.msk [vmem:[#allocation2 + $0x128] sm:$0xff] %vm256, 0.0
        %296 = vst.msk [vmem:[#allocation2 + $0x130] sm:$0x3] %vm259, 0.0
        %297 = vst.msk [vmem:[#allocation2 + $0x138] sm:$0xff] %vm256, 0.0
        %298 = vst.msk [vmem:[#allocation2 + $0x140] sm:$0xff] %vm256, 0.0
        %299 = vst.msk [vmem:[#allocation2 + $0x148] sm:$0x3] %vm259, 0.0
        %300 = vst.msk [vmem:[#allocation2 + $0x150] sm:$0xff] %vm256, 0.0
        %301 = vst.msk [vmem:[#allocation2 + $0x158] sm:$0xff] %vm256, 0.0
        %302 = vst.msk [vmem:[#allocation2 + $0x160] sm:$0x3] %vm259, 0.0
        %303 = vst.msk [vmem:[#allocation2 + $0x168] sm:$0xff] %vm256, 0.0
        %304 = vst.msk [vmem:[#allocation2 + $0x170] sm:$0xff] %vm256, 0.0
        %305 = vst.msk [vmem:[#allocation2 + $0x178] sm:$0x3] %vm259, 0.0
        %306 = vst.msk [vmem:[#allocation2 + $0x180] sm:$0xff] %vm256, 0.0
        %307 = vst.msk [vmem:[#allocation2 + $0x188] sm:$0xff] %vm256, 0.0
        %308 = vst.msk [vmem:[#allocation2 + $0x190] sm:$0x3] %vm259, 0.0
        %309 = vst.msk [vmem:[#allocation2 + $0x198] sm:$0xff] %vm256, 0.0
        %310 = vst.msk [vmem:[#allocation2 + $0x1a0] sm:$0xff] %vm256, 0.0
        %311 = vst.msk [vmem:[#allocation2 + $0x1a8] sm:$0x3] %vm259, 0.0
        %v312 = vld [vmem:[%s249] sm:$0xff]
        %v313 = vld [vmem:[%s249 + $0x8] sm:$0xff]
        %v314 = vld [vmem:[%s249 + $0x10] sm:$0xff]
        %v315 = vld [vmem:[%s249 + $0x18] sm:$0xff]
        %v316 = vld [vmem:[%s249 + $0x20] sm:$0xff]
        %v317 = vld [vmem:[%s249 + $0x28] sm:$0xff]
        %v318 = vld [vmem:[%s249 + $0x30] sm:$0xff]
        %v319 = vld [vmem:[%s249 + $0x38] sm:$0xff]
        %v320 = vld [vmem:[%s249 + $0x40] sm:$0xff]
        %v321 = vld [vmem:[%s249 + $0x48] sm:$0xff]
        %v322 = vld [vmem:[%s249 + $0x50] sm:$0xff]
        %v323 = vld [vmem:[%s249 + $0x58] sm:$0xff]
        %v324 = vld [vmem:[%s249 + $0x60] sm:$0xff]
        %v325 = vld [vmem:[%s249 + $0x68] sm:$0xff]
        %v326 = vld [vmem:[%s249 + $0x70] sm:$0xff]
        %v327 = vld [vmem:[%s249 + $0x78] sm:$0xff]
        %v328 = vld [vmem:[%s249 + $0x80] sm:$0xff]
        %v329 = vld [vmem:[%s249 + $0x88] sm:$0xff]
        %v330 = vld [vmem:[%s249 + $0x90] sm:$0xff]
        %v331 = vld [vmem:[%s249 + $0x98] sm:$0xff]
        %v332 = vld [vmem:[%s249 + $0xa0] sm:$0xff]
        %v333 = vld [vmem:[%s249 + $0xa8] sm:$0xff]
        %v334 = vld [vmem:[%s249 + $0xb0] sm:$0xff]
        %v335 = vld [vmem:[%s249 + $0xb8] sm:$0xff]
        %v336 = vld [vmem:[%s249 + $0xc0] sm:$0xff]
        %v337 = vld [vmem:[%s249 + $0xc8] sm:$0xff]
        %v338 = vld [vmem:[%s249 + $0xd0] sm:$0xff]
        %v339 = vld [vmem:[%s249 + $0xd8] sm:$0xff]
        %v340 = vld [vmem:[%s249 + $0xe0] sm:$0xff]
        %v341 = vld [vmem:[%s249 + $0xe8] sm:$0xff]
        %v342 = vld [vmem:[%s249 + $0xf0] sm:$0xff]
        %v343 = vld [vmem:[%s249 + $0xf8] sm:$0xff]
        %s344 = scalar_lea.vmem [#allocation2], 24
        %345 = vst.msk [vmem:[%s344 + $0x1] sm:$0xff] %vm256, %v312
        %346 = vst.msk [vmem:[%s344 + $0x9] sm:$0xff] %vm256, %v313
        %347 = vst.msk [vmem:[%s344 + $0x19] sm:$0xff] %vm256, %v314
        %348 = vst.msk [vmem:[%s344 + $0x21] sm:$0xff] %vm256, %v315
        %349 = vst.msk [vmem:[%s344 + $0x31] sm:$0xff] %vm256, %v316
        %350 = vst.msk [vmem:[%s344 + $0x39] sm:$0xff] %vm256, %v317
        %351 = vst.msk [vmem:[%s344 + $0x49] sm:$0xff] %vm256, %v318
        %352 = vst.msk [vmem:[%s344 + $0x51] sm:$0xff] %vm256, %v319
        %353 = vst.msk [vmem:[%s344 + $0x61] sm:$0xff] %vm256, %v320
        %354 = vst.msk [vmem:[%s344 + $0x69] sm:$0xff] %vm256, %v321
        %355 = vst.msk [vmem:[%s344 + $0x79] sm:$0xff] %vm256, %v322
        %356 = vst.msk [vmem:[%s344 + $0x81] sm:$0xff] %vm256, %v323
        %357 = vst.msk [vmem:[%s344 + $0x91] sm:$0xff] %vm256, %v324
        %358 = vst.msk [vmem:[%s344 + $0x99] sm:$0xff] %vm256, %v325
        %359 = vst.msk [vmem:[%s344 + $0xa9] sm:$0xff] %vm256, %v326
        %360 = vst.msk [vmem:[%s344 + $0xb1] sm:$0xff] %vm256, %v327
        %361 = vst.msk [vmem:[%s344 + $0xc1] sm:$0xff] %vm256, %v328
        %362 = vst.msk [vmem:[%s344 + $0xc9] sm:$0xff] %vm256, %v329
        %363 = vst.msk [vmem:[%s344 + $0xd9] sm:$0xff] %vm256, %v330
        %364 = vst.msk [vmem:[%s344 + $0xe1] sm:$0xff] %vm256, %v331
        %365 = vst.msk [vmem:[%s344 + $0xf1] sm:$0xff] %vm256, %v332
        %366 = vst.msk [vmem:[%s344 + $0xf9] sm:$0xff] %vm256, %v333
        %367 = vst.msk [vmem:[%s344 + $0x109] sm:$0xff] %vm256, %v334
        %368 = vst.msk [vmem:[%s344 + $0x111] sm:$0xff] %vm256, %v335
        %369 = vst.msk [vmem:[%s344 + $0x121] sm:$0xff] %vm256, %v336
        %370 = vst.msk [vmem:[%s344 + $0x129] sm:$0xff] %vm256, %v337
        %371 = vst.msk [vmem:[%s344 + $0x139] sm:$0xff] %vm256, %v338
        %372 = vst.msk [vmem:[%s344 + $0x141] sm:$0xff] %vm256, %v339
        %373 = vst.msk [vmem:[%s344 + $0x151] sm:$0xff] %vm256, %v340
        %374 = vst.msk [vmem:[%s344 + $0x159] sm:$0xff] %vm256, %v341
        %375 = vst.msk [vmem:[%s344 + $0x169] sm:$0xff] %vm256, %v342
        %376 = vst.msk [vmem:[%s344 + $0x171] sm:$0xff] %vm256, %v343
        %v377 = vld [vmem:[#allocation2] sm:$0xff]
        %v378 = vld [vmem:[#allocation2 + $0x8] sm:$0xff]
        %v379 = vld [vmem:[#allocation2 + $0x18] sm:$0xff]
        %v380 = vld [vmem:[#allocation2 + $0x20] sm:$0xff]
        %v381 = vld [vmem:[#allocation2 + $0x30] sm:$0xff]
        %v382 = vld [vmem:[#allocation2 + $0x38] sm:$0xff]
        %v383 = vld [vmem:[#allocation2 + $0x48] sm:$0xff]
        %v384 = vld [vmem:[#allocation2 + $0x50] sm:$0xff]
        %v385 = vld [vmem:[#allocation2 + $0x60] sm:$0xff]
        %v386 = vld [vmem:[#allocation2 + $0x68] sm:$0xff]
        %v387 = vld [vmem:[#allocation2 + $0x78] sm:$0xff]
        %v388 = vld [vmem:[#allocation2 + $0x80] sm:$0xff]
        %v389 = vld [vmem:[#allocation2 + $0x90] sm:$0xff]
        %v390 = vld [vmem:[#allocation2 + $0x98] sm:$0xff]
        %v391 = vld [vmem:[#allocation2 + $0xa8] sm:$0xff]
        %v392 = vld [vmem:[#allocation2 + $0xb0] sm:$0xff]
        %v393 = vld [vmem:[#allocation2 + $0xc0] sm:$0xff]
        %v394 = vld [vmem:[#allocation2 + $0xc8] sm:$0xff]
        %v395 = vld [vmem:[#allocation2 + $0xd8] sm:$0xff]
        %v396 = vld [vmem:[#allocation2 + $0xe0] sm:$0xff]
        %v397 = vld [vmem:[#allocation2 + $0xf0] sm:$0xff]
        %v398 = vld [vmem:[#allocation2 + $0xf8] sm:$0xff]
        %v399 = vld [vmem:[#allocation2 + $0x108] sm:$0xff]
        %v400 = vld [vmem:[#allocation2 + $0x110] sm:$0xff]
        %v401 = vld [vmem:[#allocation2 + $0x120] sm:$0xff]
        %v402 = vld [vmem:[#allocation2 + $0x128] sm:$0xff]
        %v403 = vld [vmem:[#allocation2 + $0x138] sm:$0xff]
        %v404 = vld [vmem:[#allocation2 + $0x140] sm:$0xff]
        %v405 = vld [vmem:[#allocation2 + $0x150] sm:$0xff]
        %v406 = vld [vmem:[#allocation2 + $0x158] sm:$0xff]
        %v407 = vld [vmem:[#allocation2 + $0x168] sm:$0xff]
        %v408 = vld [vmem:[#allocation2 + $0x170] sm:$0xff]
        %v409 = vpack.c.bf16 %v377, %v377
        %v410 = vpack.c.bf16 %v378, %v378
        %v411 = vpack.c.bf16 %v379, %v379
        %v412 = vpack.c.bf16 %v380, %v380
        %v413 = vpack.c.bf16 %v381, %v381
        %v414 = vpack.c.bf16 %v382, %v382
        %v415 = vpack.c.bf16 %v383, %v383
        %v416 = vpack.c.bf16 %v384, %v384
        %v417 = vpack.c.bf16 %v385, %v385
        %v418 = vpack.c.bf16 %v386, %v386
        %v419 = vpack.c.bf16 %v387, %v387
        %v420 = vpack.c.bf16 %v388, %v388
        %v421 = vpack.c.bf16 %v389, %v389
        %v422 = vpack.c.bf16 %v390, %v390
        %v423 = vpack.c.bf16 %v391, %v391
        %v424 = vpack.c.bf16 %v392, %v392
        %v425 = vpack.c.bf16 %v393, %v393
        %v426 = vpack.c.bf16 %v394, %v394
        %v427 = vpack.c.bf16 %v395, %v395
        %v428 = vpack.c.bf16 %v396, %v396
        %v429 = vpack.c.bf16 %v397, %v397
        %v430 = vpack.c.bf16 %v398, %v398
        %v431 = vpack.c.bf16 %v399, %v399
        %v432 = vpack.c.bf16 %v400, %v400
        %v433 = vpack.c.bf16 %v401, %v401
        %v434 = vpack.c.bf16 %v402, %v402
        %v435 = vpack.c.bf16 %v403, %v403
        %v436 = vpack.c.bf16 %v404, %v404
        %v437 = vpack.c.bf16 %v405, %v405
        %v438 = vpack.c.bf16 %v406, %v406
        %v439 = vpack.c.bf16 %v407, %v407
        %v440 = vpack.c.bf16 %v408, %v408
        %vm441 = vcmask 27648
        %442 = vst.msk [vmem:[#allocation3] sm:$0xf] %vm441, %v409
        %443 = vst.msk [vmem:[#allocation3 + $0x4] sm:$0xf] %vm441, %v410
        %444 = vst.msk [vmem:[#allocation3 + $0x8] sm:$0xf] %vm441, %v411
        %445 = vst.msk [vmem:[#allocation3 + $0xc] sm:$0xf] %vm441, %v412
        %446 = vst.msk [vmem:[#allocation3 + $0x10] sm:$0xf] %vm441, %v413
        %447 = vst.msk [vmem:[#allocation3 + $0x14] sm:$0xf] %vm441, %v414
        %448 = vst.msk [vmem:[#allocation3 + $0x18] sm:$0xf] %vm441, %v415
        %449 = vst.msk [vmem:[#allocation3 + $0x1c] sm:$0xf] %vm441, %v416
        %450 = vst.msk [vmem:[#allocation3 + $0x20] sm:$0xf] %vm441, %v417
        %451 = vst.msk [vmem:[#allocation3 + $0x24] sm:$0xf] %vm441, %v418
        %452 = vst.msk [vmem:[#allocation3 + $0x28] sm:$0xf] %vm441, %v419
        %453 = vst.msk [vmem:[#allocation3 + $0x2c] sm:$0xf] %vm441, %v420
        %454 = vst.msk [vmem:[#allocation3 + $0x30] sm:$0xf] %vm441, %v421
        %455 = vst.msk [vmem:[#allocation3 + $0x34] sm:$0xf] %vm441, %v422
        %456 = vst.msk [vmem:[#allocation3 + $0x38] sm:$0xf] %vm441, %v423
        %457 = vst.msk [vmem:[#allocation3 + $0x3c] sm:$0xf] %vm441, %v424
        %458 = vst.msk [vmem:[#allocation3 + $0x40] sm:$0xf] %vm441, %v425
        %459 = vst.msk [vmem:[#allocation3 + $0x44] sm:$0xf] %vm441, %v426
        %460 = vst.msk [vmem:[#allocation3 + $0x48] sm:$0xf] %vm441, %v427
        %461 = vst.msk [vmem:[#allocation3 + $0x4c] sm:$0xf] %vm441, %v428
        %462 = vst.msk [vmem:[#allocation3 + $0x50] sm:$0xf] %vm441, %v429
        %463 = vst.msk [vmem:[#allocation3 + $0x54] sm:$0xf] %vm441, %v430
        %464 = vst.msk [vmem:[#allocation3 + $0x58] sm:$0xf] %vm441, %v431
        %465 = vst.msk [vmem:[#allocation3 + $0x5c] sm:$0xf] %vm441, %v432
        %466 = vst.msk [vmem:[#allocation3 + $0x60] sm:$0xf] %vm441, %v433
        %467 = vst.msk [vmem:[#allocation3 + $0x64] sm:$0xf] %vm441, %v434
        %468 = vst.msk [vmem:[#allocation3 + $0x68] sm:$0xf] %vm441, %v435
        %469 = vst.msk [vmem:[#allocation3 + $0x6c] sm:$0xf] %vm441, %v436
        %470 = vst.msk [vmem:[#allocation3 + $0x70] sm:$0xf] %vm441, %v437
        %471 = vst.msk [vmem:[#allocation3 + $0x74] sm:$0xf] %vm441, %v438
        %472 = vst.msk [vmem:[#allocation3 + $0x78] sm:$0xf] %vm441, %v439
        %473 = vst.msk [vmem:[#allocation3 + $0x7c] sm:$0xf] %vm441, %v440
        %v474 = vld [vmem:[#allocation2 + $0x1] sm:$0xff]
        %v475 = vld [vmem:[#allocation2 + $0x9] sm:$0xff]
        %v476 = vld [vmem:[#allocation2 + $0x19] sm:$0xff]
        %v477 = vld [vmem:[#allocation2 + $0x21] sm:$0xff]
        %v478 = vld [vmem:[#allocation2 + $0x31] sm:$0xff]
        %v479 = vld [vmem:[#allocation2 + $0x39] sm:$0xff]
        %v480 = vld [vmem:[#allocation2 + $0x49] sm:$0xff]
        %v481 = vld [vmem:[#allocation2 + $0x51] sm:$0xff]
        %v482 = vld [vmem:[#allocation2 + $0x61] sm:$0xff]
        %v483 = vld [vmem:[#allocation2 + $0x69] sm:$0xff]
        %v484 = vld [vmem:[#allocation2 + $0x79] sm:$0xff]
        %v485 = vld [vmem:[#allocation2 + $0x81] sm:$0xff]
        %v486 = vld [vmem:[#allocation2 + $0x91] sm:$0xff]
        %v487 = vld [vmem:[#allocation2 + $0x99] sm:$0xff]
        %v488 = vld [vmem:[#allocation2 + $0xa9] sm:$0xff]
        %v489 = vld [vmem:[#allocation2 + $0xb1] sm:$0xff]
        %v490 = vld [vmem:[#allocation2 + $0xc1] sm:$0xff]
        %v491 = vld [vmem:[#allocation2 + $0xc9] sm:$0xff]
        %v492 = vld [vmem:[#allocation2 + $0xd9] sm:$0xff]
        %v493 = vld [vmem:[#allocation2 + $0xe1] sm:$0xff]
        %v494 = vld [vmem:[#allocation2 + $0xf1] sm:$0xff]
        %v495 = vld [vmem:[#allocation2 + $0xf9] sm:$0xff]
        %v496 = vld [vmem:[#allocation2 + $0x109] sm:$0xff]
        %v497 = vld [vmem:[#allocation2 + $0x111] sm:$0xff]
        %v498 = vld [vmem:[#allocation2 + $0x121] sm:$0xff]
        %v499 = vld [vmem:[#allocation2 + $0x129] sm:$0xff]
        %v500 = vld [vmem:[#allocation2 + $0x139] sm:$0xff]
        %v501 = vld [vmem:[#allocation2 + $0x141] sm:$0xff]
        %v502 = vld [vmem:[#allocation2 + $0x151] sm:$0xff]
        %v503 = vld [vmem:[#allocation2 + $0x159] sm:$0xff]
        %v504 = vld [vmem:[#allocation2 + $0x169] sm:$0xff]
        %v505 = vld [vmem:[#allocation2 + $0x171] sm:$0xff]
        %v506 = vpack.c.bf16 %v474, %v474
        %v507 = vpack.c.bf16 %v475, %v475
        %v508 = vpack.c.bf16 %v476, %v476
        %v509 = vpack.c.bf16 %v477, %v477
        %v510 = vpack.c.bf16 %v478, %v478
        %v511 = vpack.c.bf16 %v479, %v479
        %v512 = vpack.c.bf16 %v480, %v480
        %v513 = vpack.c.bf16 %v481, %v481
        %v514 = vpack.c.bf16 %v482, %v482
        %v515 = vpack.c.bf16 %v483, %v483
        %v516 = vpack.c.bf16 %v484, %v484
        %v517 = vpack.c.bf16 %v485, %v485
        %v518 = vpack.c.bf16 %v486, %v486
        %v519 = vpack.c.bf16 %v487, %v487
        %v520 = vpack.c.bf16 %v488, %v488
        %v521 = vpack.c.bf16 %v489, %v489
        %v522 = vpack.c.bf16 %v490, %v490
        %v523 = vpack.c.bf16 %v491, %v491
        %v524 = vpack.c.bf16 %v492, %v492
        %v525 = vpack.c.bf16 %v493, %v493
        %v526 = vpack.c.bf16 %v494, %v494
        %v527 = vpack.c.bf16 %v495, %v495
        %v528 = vpack.c.bf16 %v496, %v496
        %v529 = vpack.c.bf16 %v497, %v497
        %v530 = vpack.c.bf16 %v498, %v498
        %v531 = vpack.c.bf16 %v499, %v499
        %v532 = vpack.c.bf16 %v500, %v500
        %v533 = vpack.c.bf16 %v501, %v501
        %v534 = vpack.c.bf16 %v502, %v502
        %v535 = vpack.c.bf16 %v503, %v503
        %v536 = vpack.c.bf16 %v504, %v504
        %v537 = vpack.c.bf16 %v505, %v505
        %570 = vrot.lane.b32.xlu0 %v506, 4
        %v571 = vpop.permute.xlu0 %570
        %572 = vrot.lane.b32.xlu0 %v507, 4
        %v573 = vpop.permute.xlu0 %572
        %574 = vrot.lane.b32.xlu0 %v508, 4
        %v575 = vpop.permute.xlu0 %574
        %576 = vrot.lane.b32.xlu0 %v509, 4
        %v577 = vpop.permute.xlu0 %576
        %578 = vrot.lane.b32.xlu0 %v510, 4
        %v579 = vpop.permute.xlu0 %578
        %580 = vrot.lane.b32.xlu0 %v511, 4
        %v581 = vpop.permute.xlu0 %580
        %582 = vrot.lane.b32.xlu0 %v512, 4
        %v583 = vpop.permute.xlu0 %582
        %584 = vrot.lane.b32.xlu0 %v513, 4
        %v585 = vpop.permute.xlu0 %584
        %586 = vrot.lane.b32.xlu0 %v514, 4
        %v587 = vpop.permute.xlu0 %586
        %588 = vrot.lane.b32.xlu0 %v515, 4
        %v589 = vpop.permute.xlu0 %588
        %590 = vrot.lane.b32.xlu0 %v516, 4
        %v591 = vpop.permute.xlu0 %590
        %592 = vrot.lane.b32.xlu0 %v517, 4
        %v593 = vpop.permute.xlu0 %592
        %594 = vrot.lane.b32.xlu0 %v518, 4
        %v595 = vpop.permute.xlu0 %594
        %596 = vrot.lane.b32.xlu0 %v519, 4
        %v597 = vpop.permute.xlu0 %596
        %598 = vrot.lane.b32.xlu0 %v520, 4
        %v599 = vpop.permute.xlu0 %598
        %600 = vrot.lane.b32.xlu0 %v521, 4
        %v601 = vpop.permute.xlu0 %600
        %602 = vrot.lane.b32.xlu0 %v522, 4
        %v603 = vpop.permute.xlu0 %602
        %604 = vrot.lane.b32.xlu0 %v523, 4
        %v605 = vpop.permute.xlu0 %604
        %606 = vrot.lane.b32.xlu0 %v524, 4
        %v607 = vpop.permute.xlu0 %606
        %608 = vrot.lane.b32.xlu0 %v525, 4
        %v609 = vpop.permute.xlu0 %608
        %610 = vrot.lane.b32.xlu0 %v526, 4
        %v611 = vpop.permute.xlu0 %610
        %612 = vrot.lane.b32.xlu0 %v527, 4
        %v613 = vpop.permute.xlu0 %612
        %614 = vrot.lane.b32.xlu0 %v528, 4
        %v615 = vpop.permute.xlu0 %614
        %616 = vrot.lane.b32.xlu0 %v529, 4
        %v617 = vpop.permute.xlu0 %616
        %618 = vrot.lane.b32.xlu0 %v530, 4
        %v619 = vpop.permute.xlu0 %618
        %620 = vrot.lane.b32.xlu0 %v531, 4
        %v621 = vpop.permute.xlu0 %620
        %622 = vrot.lane.b32.xlu0 %v532, 4
        %v623 = vpop.permute.xlu0 %622
        %624 = vrot.lane.b32.xlu0 %v533, 4
        %v625 = vpop.permute.xlu0 %624
        %626 = vrot.lane.b32.xlu0 %v534, 4
        %v627 = vpop.permute.xlu0 %626
        %628 = vrot.lane.b32.xlu0 %v535, 4
        %v629 = vpop.permute.xlu0 %628
        %630 = vrot.lane.b32.xlu0 %v536, 4
        %v631 = vpop.permute.xlu0 %630
        %632 = vrot.lane.b32.xlu0 %v537, 4
        %v633 = vpop.permute.xlu0 %632
        %vm666 = vcmask 60448
        %667 = vst.msk [vmem:[#allocation3] sm:$0xf] %vm666, %v571
        %668 = vst.msk [vmem:[#allocation3 + $0x4] sm:$0xf] %vm666, %v573
        %669 = vst.msk [vmem:[#allocation3 + $0x8] sm:$0xf] %vm666, %v575
        %670 = vst.msk [vmem:[#allocation3 + $0xc] sm:$0xf] %vm666, %v577
        %671 = vst.msk [vmem:[#allocation3 + $0x10] sm:$0xf] %vm666, %v579
        %672 = vst.msk [vmem:[#allocation3 + $0x14] sm:$0xf] %vm666, %v581
        %673 = vst.msk [vmem:[#allocation3 + $0x18] sm:$0xf] %vm666, %v583
        %674 = vst.msk [vmem:[#allocation3 + $0x1c] sm:$0xf] %vm666, %v585
        %675 = vst.msk [vmem:[#allocation3 + $0x20] sm:$0xf] %vm666, %v587
        %676 = vst.msk [vmem:[#allocation3 + $0x24] sm:$0xf] %vm666, %v589
        %677 = vst.msk [vmem:[#allocation3 + $0x28] sm:$0xf] %vm666, %v591
        %678 = vst.msk [vmem:[#allocation3 + $0x2c] sm:$0xf] %vm666, %v593
        %679 = vst.msk [vmem:[#allocation3 + $0x30] sm:$0xf] %vm666, %v595
        %680 = vst.msk [vmem:[#allocation3 + $0x34] sm:$0xf] %vm666, %v597
        %681 = vst.msk [vmem:[#allocation3 + $0x38] sm:$0xf] %vm666, %v599
        %682 = vst.msk [vmem:[#allocation3 + $0x3c] sm:$0xf] %vm666, %v601
        %683 = vst.msk [vmem:[#allocation3 + $0x40] sm:$0xf] %vm666, %v603
        %684 = vst.msk [vmem:[#allocation3 + $0x44] sm:$0xf] %vm666, %v605
        %685 = vst.msk [vmem:[#allocation3 + $0x48] sm:$0xf] %vm666, %v607
        %686 = vst.msk [vmem:[#allocation3 + $0x4c] sm:$0xf] %vm666, %v609
        %687 = vst.msk [vmem:[#allocation3 + $0x50] sm:$0xf] %vm666, %v611
        %688 = vst.msk [vmem:[#allocation3 + $0x54] sm:$0xf] %vm666, %v613
        %689 = vst.msk [vmem:[#allocation3 + $0x58] sm:$0xf] %vm666, %v615
        %690 = vst.msk [vmem:[#allocation3 + $0x5c] sm:$0xf] %vm666, %v617
        %691 = vst.msk [vmem:[#allocation3 + $0x60] sm:$0xf] %vm666, %v619
        %692 = vst.msk [vmem:[#allocation3 + $0x64] sm:$0xf] %vm666, %v621
        %693 = vst.msk [vmem:[#allocation3 + $0x68] sm:$0xf] %vm666, %v623
        %694 = vst.msk [vmem:[#allocation3 + $0x6c] sm:$0xf] %vm666, %v625
        %695 = vst.msk [vmem:[#allocation3 + $0x70] sm:$0xf] %vm666, %v627
        %696 = vst.msk [vmem:[#allocation3 + $0x74] sm:$0xf] %vm666, %v629
        %697 = vst.msk [vmem:[#allocation3 + $0x78] sm:$0xf] %vm666, %v631
        %698 = vst.msk [vmem:[#allocation3 + $0x7c] sm:$0xf] %vm666, %v633
        %v699 = vld [vmem:[#allocation2 + $0x2] sm:$0xff]
        %v700 = vld [vmem:[#allocation2 + $0xa] sm:$0xff]
        %v701 = vld [vmem:[#allocation2 + $0x1a] sm:$0xff]
        %v702 = vld [vmem:[#allocation2 + $0x22] sm:$0xff]
        %v703 = vld [vmem:[#allocation2 + $0x32] sm:$0xff]
        %v704 = vld [vmem:[#allocation2 + $0x3a] sm:$0xff]
        %v705 = vld [vmem:[#allocation2 + $0x4a] sm:$0xff]
        %v706 = vld [vmem:[#allocation2 + $0x52] sm:$0xff]
        %v707 = vld [vmem:[#allocation2 + $0x62] sm:$0xff]
        %v708 = vld [vmem:[#allocation2 + $0x6a] sm:$0xff]
        %v709 = vld [vmem:[#allocation2 + $0x7a] sm:$0xff]
        %v710 = vld [vmem:[#allocation2 + $0x82] sm:$0xff]
        %v711 = vld [vmem:[#allocation2 + $0x92] sm:$0xff]
        %v712 = vld [vmem:[#allocation2 + $0x9a] sm:$0xff]
        %v713 = vld [vmem:[#allocation2 + $0xaa] sm:$0xff]
        %v714 = vld [vmem:[#allocation2 + $0xb2] sm:$0xff]
        %v715 = vld [vmem:[#allocation2 + $0xc2] sm:$0xff]
        %v716 = vld [vmem:[#allocation2 + $0xca] sm:$0xff]
        %v717 = vld [vmem:[#allocation2 + $0xda] sm:$0xff]
        %v718 = vld [vmem:[#allocation2 + $0xe2] sm:$0xff]
        %v719 = vld [vmem:[#allocation2 + $0xf2] sm:$0xff]
        %v720 = vld [vmem:[#allocation2 + $0xfa] sm:$0xff]
        %v721 = vld [vmem:[#allocation2 + $0x10a] sm:$0xff]
        %v722 = vld [vmem:[#allocation2 + $0x112] sm:$0xff]
        %v723 = vld [vmem:[#allocation2 + $0x122] sm:$0xff]
        %v724 = vld [vmem:[#allocation2 + $0x12a] sm:$0xff]
        %v725 = vld [vmem:[#allocation2 + $0x13a] sm:$0xff]
        %v726 = vld [vmem:[#allocation2 + $0x142] sm:$0xff]
        %v727 = vld [vmem:[#allocation2 + $0x152] sm:$0xff]
        %v728 = vld [vmem:[#allocation2 + $0x15a] sm:$0xff]
        %v729 = vld [vmem:[#allocation2 + $0x16a] sm:$0xff]
        %v730 = vld [vmem:[#allocation2 + $0x172] sm:$0xff]
        %v731 = vpack.c.bf16 %v699, %v699
        %v732 = vpack.c.bf16 %v700, %v700
        %v733 = vpack.c.bf16 %v701, %v701
        %v734 = vpack.c.bf16 %v702, %v702
        %v735 = vpack.c.bf16 %v703, %v703
        %v736 = vpack.c.bf16 %v704, %v704
        %v737 = vpack.c.bf16 %v705, %v705
        %v738 = vpack.c.bf16 %v706, %v706
        %v739 = vpack.c.bf16 %v707, %v707
        %v740 = vpack.c.bf16 %v708, %v708
        %v741 = vpack.c.bf16 %v709, %v709
        %v742 = vpack.c.bf16 %v710, %v710
        %v743 = vpack.c.bf16 %v711, %v711
        %v744 = vpack.c.bf16 %v712, %v712
        %v745 = vpack.c.bf16 %v713, %v713
        %v746 = vpack.c.bf16 %v714, %v714
        %v747 = vpack.c.bf16 %v715, %v715
        %v748 = vpack.c.bf16 %v716, %v716
        %v749 = vpack.c.bf16 %v717, %v717
        %v750 = vpack.c.bf16 %v718, %v718
        %v751 = vpack.c.bf16 %v719, %v719
        %v752 = vpack.c.bf16 %v720, %v720
        %v753 = vpack.c.bf16 %v721, %v721
        %v754 = vpack.c.bf16 %v722, %v722
        %v755 = vpack.c.bf16 %v723, %v723
        %v756 = vpack.c.bf16 %v724, %v724
        %v757 = vpack.c.bf16 %v725, %v725
        %v758 = vpack.c.bf16 %v726, %v726
        %v759 = vpack.c.bf16 %v727, %v727
        %v760 = vpack.c.bf16 %v728, %v728
        %v761 = vpack.c.bf16 %v729, %v729
        %v762 = vpack.c.bf16 %v730, %v730
        %795 = vrot.lane.b32.xlu0 %v731, 8
        %v796 = vpop.permute.xlu0 %795
        %797 = vrot.lane.b32.xlu0 %v732, 8
        %v798 = vpop.permute.xlu0 %797
        %799 = vrot.lane.b32.xlu0 %v733, 8
        %v800 = vpop.permute.xlu0 %799
        %801 = vrot.lane.b32.xlu0 %v734, 8
        %v802 = vpop.permute.xlu0 %801
        %803 = vrot.lane.b32.xlu0 %v735, 8
        %v804 = vpop.permute.xlu0 %803
        %805 = vrot.lane.b32.xlu0 %v736, 8
        %v806 = vpop.permute.xlu0 %805
        %807 = vrot.lane.b32.xlu0 %v737, 8
        %v808 = vpop.permute.xlu0 %807
        %809 = vrot.lane.b32.xlu0 %v738, 8
        %v810 = vpop.permute.xlu0 %809
        %811 = vrot.lane.b32.xlu0 %v739, 8
        %v812 = vpop.permute.xlu0 %811
        %813 = vrot.lane.b32.xlu0 %v740, 8
        %v814 = vpop.permute.xlu0 %813
        %815 = vrot.lane.b32.xlu0 %v741, 8
        %v816 = vpop.permute.xlu0 %815
        %817 = vrot.lane.b32.xlu0 %v742, 8
        %v818 = vpop.permute.xlu0 %817
        %819 = vrot.lane.b32.xlu0 %v743, 8
        %v820 = vpop.permute.xlu0 %819
        %821 = vrot.lane.b32.xlu0 %v744, 8
        %v822 = vpop.permute.xlu0 %821
        %823 = vrot.lane.b32.xlu0 %v745, 8
        %v824 = vpop.permute.xlu0 %823
        %825 = vrot.lane.b32.xlu0 %v746, 8
        %v826 = vpop.permute.xlu0 %825
        %827 = vrot.lane.b32.xlu0 %v747, 8
        %v828 = vpop.permute.xlu0 %827
        %829 = vrot.lane.b32.xlu0 %v748, 8
        %v830 = vpop.permute.xlu0 %829
        %831 = vrot.lane.b32.xlu0 %v749, 8
        %v832 = vpop.permute.xlu0 %831
        %833 = vrot.lane.b32.xlu0 %v750, 8
        %v834 = vpop.permute.xlu0 %833
        %835 = vrot.lane.b32.xlu0 %v751, 8
        %v836 = vpop.permute.xlu0 %835
        %837 = vrot.lane.b32.xlu0 %v752, 8
        %v838 = vpop.permute.xlu0 %837
        %839 = vrot.lane.b32.xlu0 %v753, 8
        %v840 = vpop.permute.xlu0 %839
        %841 = vrot.lane.b32.xlu0 %v754, 8
        %v842 = vpop.permute.xlu0 %841
        %843 = vrot.lane.b32.xlu0 %v755, 8
        %v844 = vpop.permute.xlu0 %843
        %845 = vrot.lane.b32.xlu0 %v756, 8
        %v846 = vpop.permute.xlu0 %845
        %847 = vrot.lane.b32.xlu0 %v757, 8
        %v848 = vpop.permute.xlu0 %847
        %849 = vrot.lane.b32.xlu0 %v758, 8
        %v850 = vpop.permute.xlu0 %849
        %851 = vrot.lane.b32.xlu0 %v759, 8
        %v852 = vpop.permute.xlu0 %851
        %853 = vrot.lane.b32.xlu0 %v760, 8
        %v854 = vpop.permute.xlu0 %853
        %855 = vrot.lane.b32.xlu0 %v761, 8
        %v856 = vpop.permute.xlu0 %855
        %857 = vrot.lane.b32.xlu0 %v762, 8
        %v858 = vpop.permute.xlu0 %857
        %vm891 = vcmask 93248
        %892 = vst.msk [vmem:[#allocation3] sm:$0xf] %vm891, %v796
        %893 = vst.msk [vmem:[#allocation3 + $0x4] sm:$0xf] %vm891, %v798
        %894 = vst.msk [vmem:[#allocation3 + $0x8] sm:$0xf] %vm891, %v800
        %895 = vst.msk [vmem:[#allocation3 + $0xc] sm:$0xf] %vm891, %v802
        %896 = vst.msk [vmem:[#allocation3 + $0x10] sm:$0xf] %vm891, %v804
        %897 = vst.msk [vmem:[#allocation3 + $0x14] sm:$0xf] %vm891, %v806
        %898 = vst.msk [vmem:[#allocation3 + $0x18] sm:$0xf] %vm891, %v808
        %899 = vst.msk [vmem:[#allocation3 + $0x1c] sm:$0xf] %vm891, %v810
        %900 = vst.msk [vmem:[#allocation3 + $0x20] sm:$0xf] %vm891, %v812
        %901 = vst.msk [vmem:[#allocation3 + $0x24] sm:$0xf] %vm891, %v814
        %902 = vst.msk [vmem:[#allocation3 + $0x28] sm:$0xf] %vm891, %v816
        %903 = vst.msk [vmem:[#allocation3 + $0x2c] sm:$0xf] %vm891, %v818
        %904 = vst.msk [vmem:[#allocation3 + $0x30] sm:$0xf] %vm891, %v820
        %905 = vst.msk [vmem:[#allocation3 + $0x34] sm:$0xf] %vm891, %v822
        %906 = vst.msk [vmem:[#allocation3 + $0x38] sm:$0xf] %vm891, %v824
        %907 = vst.msk [vmem:[#allocation3 + $0x3c] sm:$0xf] %vm891, %v826
        %908 = vst.msk [vmem:[#allocation3 + $0x40] sm:$0xf] %vm891, %v828
        %909 = vst.msk [vmem:[#allocation3 + $0x44] sm:$0xf] %vm891, %v830
        %910 = vst.msk [vmem:[#allocation3 + $0x48] sm:$0xf] %vm891, %v832
        %911 = vst.msk [vmem:[#allocation3 + $0x4c] sm:$0xf] %vm891, %v834
        %912 = vst.msk [vmem:[#allocation3 + $0x50] sm:$0xf] %vm891, %v836
        %913 = vst.msk [vmem:[#allocation3 + $0x54] sm:$0xf] %vm891, %v838
        %914 = vst.msk [vmem:[#allocation3 + $0x58] sm:$0xf] %vm891, %v840
        %915 = vst.msk [vmem:[#allocation3 + $0x5c] sm:$0xf] %vm891, %v842
        %916 = vst.msk [vmem:[#allocation3 + $0x60] sm:$0xf] %vm891, %v844
        %917 = vst.msk [vmem:[#allocation3 + $0x64] sm:$0xf] %vm891, %v846
        %918 = vst.msk [vmem:[#allocation3 + $0x68] sm:$0xf] %vm891, %v848
        %919 = vst.msk [vmem:[#allocation3 + $0x6c] sm:$0xf] %vm891, %v850
        %920 = vst.msk [vmem:[#allocation3 + $0x70] sm:$0xf] %vm891, %v852
        %921 = vst.msk [vmem:[#allocation3 + $0x74] sm:$0xf] %vm891, %v854
        %922 = vst.msk [vmem:[#allocation3 + $0x78] sm:$0xf] %vm891, %v856
        %923 = vst.msk [vmem:[#allocation3 + $0x7c] sm:$0xf] %vm891, %v858
        %v924 = vld [vmem:[%s344] sm:$0xff]
        %v925 = vld [vmem:[%s344 + $0x8] sm:$0xff]
        %v926 = vld [vmem:[%s344 + $0x18] sm:$0xff]
        %v927 = vld [vmem:[%s344 + $0x20] sm:$0xff]
        %v928 = vld [vmem:[%s344 + $0x30] sm:$0xff]
        %v929 = vld [vmem:[%s344 + $0x38] sm:$0xff]
        %v930 = vld [vmem:[%s344 + $0x48] sm:$0xff]
        %v931 = vld [vmem:[%s344 + $0x50] sm:$0xff]
        %v932 = vld [vmem:[%s344 + $0x60] sm:$0xff]
        %v933 = vld [vmem:[%s344 + $0x68] sm:$0xff]
        %v934 = vld [vmem:[%s344 + $0x78] sm:$0xff]
        %v935 = vld [vmem:[%s344 + $0x80] sm:$0xff]
        %v936 = vld [vmem:[%s344 + $0x90] sm:$0xff]
        %v937 = vld [vmem:[%s344 + $0x98] sm:$0xff]
        %v938 = vld [vmem:[%s344 + $0xa8] sm:$0xff]
        %v939 = vld [vmem:[%s344 + $0xb0] sm:$0xff]
        %v940 = vld [vmem:[%s344 + $0xc0] sm:$0xff]
        %v941 = vld [vmem:[%s344 + $0xc8] sm:$0xff]
        %v942 = vld [vmem:[%s344 + $0xd8] sm:$0xff]
        %v943 = vld [vmem:[%s344 + $0xe0] sm:$0xff]
        %v944 = vld [vmem:[%s344 + $0xf0] sm:$0xff]
        %v945 = vld [vmem:[%s344 + $0xf8] sm:$0xff]
        %v946 = vld [vmem:[%s344 + $0x108] sm:$0xff]
        %v947 = vld [vmem:[%s344 + $0x110] sm:$0xff]
        %v948 = vld [vmem:[%s344 + $0x120] sm:$0xff]
        %v949 = vld [vmem:[%s344 + $0x128] sm:$0xff]
        %v950 = vld [vmem:[%s344 + $0x138] sm:$0xff]
        %v951 = vld [vmem:[%s344 + $0x140] sm:$0xff]
        %v952 = vld [vmem:[%s344 + $0x150] sm:$0xff]
        %v953 = vld [vmem:[%s344 + $0x158] sm:$0xff]
        %v954 = vld [vmem:[%s344 + $0x168] sm:$0xff]
        %v955 = vld [vmem:[%s344 + $0x170] sm:$0xff]
        %v956 = vpack.c.bf16 %v924, %v924
        %v957 = vpack.c.bf16 %v925, %v925
        %v958 = vpack.c.bf16 %v926, %v926
        %v959 = vpack.c.bf16 %v927, %v927
        %v960 = vpack.c.bf16 %v928, %v928
        %v961 = vpack.c.bf16 %v929, %v929
        %v962 = vpack.c.bf16 %v930, %v930
        %v963 = vpack.c.bf16 %v931, %v931
        %v964 = vpack.c.bf16 %v932, %v932
        %v965 = vpack.c.bf16 %v933, %v933
        %v966 = vpack.c.bf16 %v934, %v934
        %v967 = vpack.c.bf16 %v935, %v935
        %v968 = vpack.c.bf16 %v936, %v936
        %v969 = vpack.c.bf16 %v937, %v937
        %v970 = vpack.c.bf16 %v938, %v938
        %v971 = vpack.c.bf16 %v939, %v939
        %v972 = vpack.c.bf16 %v940, %v940
        %v973 = vpack.c.bf16 %v941, %v941
        %v974 = vpack.c.bf16 %v942, %v942
        %v975 = vpack.c.bf16 %v943, %v943
        %v976 = vpack.c.bf16 %v944, %v944
        %v977 = vpack.c.bf16 %v945, %v945
        %v978 = vpack.c.bf16 %v946, %v946
        %v979 = vpack.c.bf16 %v947, %v947
        %v980 = vpack.c.bf16 %v948, %v948
        %v981 = vpack.c.bf16 %v949, %v949
        %v982 = vpack.c.bf16 %v950, %v950
        %v983 = vpack.c.bf16 %v951, %v951
        %v984 = vpack.c.bf16 %v952, %v952
        %v985 = vpack.c.bf16 %v953, %v953
        %v986 = vpack.c.bf16 %v954, %v954
        %v987 = vpack.c.bf16 %v955, %v955
        %1020 = vrot.lane.b32.xlu0 %v956, 12
        %v1021 = vpop.permute.xlu0 %1020
        %1022 = vrot.lane.b32.xlu0 %v957, 12
        %v1023 = vpop.permute.xlu0 %1022
        %1024 = vrot.lane.b32.xlu0 %v958, 12
        %v1025 = vpop.permute.xlu0 %1024
        %1026 = vrot.lane.b32.xlu0 %v959, 12
        %v1027 = vpop.permute.xlu0 %1026
        %1028 = vrot.lane.b32.xlu0 %v960, 12
        %v1029 = vpop.permute.xlu0 %1028
        %1030 = vrot.lane.b32.xlu0 %v961, 12
        %v1031 = vpop.permute.xlu0 %1030
        %1032 = vrot.lane.b32.xlu0 %v962, 12
        %v1033 = vpop.permute.xlu0 %1032
        %1034 = vrot.lane.b32.xlu0 %v963, 12
        %v1035 = vpop.permute.xlu0 %1034
        %1036 = vrot.lane.b32.xlu0 %v964, 12
        %v1037 = vpop.permute.xlu0 %1036
        %1038 = vrot.lane.b32.xlu0 %v965, 12
        %v1039 = vpop.permute.xlu0 %1038
        %1040 = vrot.lane.b32.xlu0 %v966, 12
        %v1041 = vpop.permute.xlu0 %1040
        %1042 = vrot.lane.b32.xlu0 %v967, 12
        %v1043 = vpop.permute.xlu0 %1042
        %1044 = vrot.lane.b32.xlu0 %v968, 12
        %v1045 = vpop.permute.xlu0 %1044
        %1046 = vrot.lane.b32.xlu0 %v969, 12
        %v1047 = vpop.permute.xlu0 %1046
        %1048 = vrot.lane.b32.xlu0 %v970, 12
        %v1049 = vpop.permute.xlu0 %1048
        %1050 = vrot.lane.b32.xlu0 %v971, 12
        %v1051 = vpop.permute.xlu0 %1050
        %1052 = vrot.lane.b32.xlu0 %v972, 12
        %v1053 = vpop.permute.xlu0 %1052
        %1054 = vrot.lane.b32.xlu0 %v973, 12
        %v1055 = vpop.permute.xlu0 %1054
        %1056 = vrot.lane.b32.xlu0 %v974, 12
        %v1057 = vpop.permute.xlu0 %1056
        %1058 = vrot.lane.b32.xlu0 %v975, 12
        %v1059 = vpop.permute.xlu0 %1058
        %1060 = vrot.lane.b32.xlu0 %v976, 12
        %v1061 = vpop.permute.xlu0 %1060
        %1062 = vrot.lane.b32.xlu0 %v977, 12
        %v1063 = vpop.permute.xlu0 %1062
        %1064 = vrot.lane.b32.xlu0 %v978, 12
        %v1065 = vpop.permute.xlu0 %1064
        %1066 = vrot.lane.b32.xlu0 %v979, 12
        %v1067 = vpop.permute.xlu0 %1066
        %1068 = vrot.lane.b32.xlu0 %v980, 12
        %v1069 = vpop.permute.xlu0 %1068
        %1070 = vrot.lane.b32.xlu0 %v981, 12
        %v1071 = vpop.permute.xlu0 %1070
        %1072 = vrot.lane.b32.xlu0 %v982, 12
        %v1073 = vpop.permute.xlu0 %1072
        %1074 = vrot.lane.b32.xlu0 %v983, 12
        %v1075 = vpop.permute.xlu0 %1074
        %1076 = vrot.lane.b32.xlu0 %v984, 12
        %v1077 = vpop.permute.xlu0 %1076
        %1078 = vrot.lane.b32.xlu0 %v985, 12
        %v1079 = vpop.permute.xlu0 %1078
        %1080 = vrot.lane.b32.xlu0 %v986, 12
        %v1081 = vpop.permute.xlu0 %1080
        %1082 = vrot.lane.b32.xlu0 %v987, 12
        %v1083 = vpop.permute.xlu0 %1082
        %vm1116 = vcmask 126048
        %1117 = vst.msk [vmem:[#allocation3] sm:$0xf] %vm1116, %v1021
        %1118 = vst.msk [vmem:[#allocation3 + $0x4] sm:$0xf] %vm1116, %v1023
        %1119 = vst.msk [vmem:[#allocation3 + $0x8] sm:$0xf] %vm1116, %v1025
        %1120 = vst.msk [vmem:[#allocation3 + $0xc] sm:$0xf] %vm1116, %v1027
        %1121 = vst.msk [vmem:[#allocation3 + $0x10] sm:$0xf] %vm1116, %v1029
        %1122 = vst.msk [vmem:[#allocation3 + $0x14] sm:$0xf] %vm1116, %v1031
        %1123 = vst.msk [vmem:[#allocation3 + $0x18] sm:$0xf] %vm1116, %v1033
        %1124 = vst.msk [vmem:[#allocation3 + $0x1c] sm:$0xf] %vm1116, %v1035
        %1125 = vst.msk [vmem:[#allocation3 + $0x20] sm:$0xf] %vm1116, %v1037
        %1126 = vst.msk [vmem:[#allocation3 + $0x24] sm:$0xf] %vm1116, %v1039
        %1127 = vst.msk [vmem:[#allocation3 + $0x28] sm:$0xf] %vm1116, %v1041
        %1128 = vst.msk [vmem:[#allocation3 + $0x2c] sm:$0xf] %vm1116, %v1043
        %1129 = vst.msk [vmem:[#allocation3 + $0x30] sm:$0xf] %vm1116, %v1045
        %1130 = vst.msk [vmem:[#allocation3 + $0x34] sm:$0xf] %vm1116, %v1047
        %1131 = vst.msk [vmem:[#allocation3 + $0x38] sm:$0xf] %vm1116, %v1049
        %1132 = vst.msk [vmem:[#allocation3 + $0x3c] sm:$0xf] %vm1116, %v1051
        %1133 = vst.msk [vmem:[#allocation3 + $0x40] sm:$0xf] %vm1116, %v1053
        %1134 = vst.msk [vmem:[#allocation3 + $0x44] sm:$0xf] %vm1116, %v1055
        %1135 = vst.msk [vmem:[#allocation3 + $0x48] sm:$0xf] %vm1116, %v1057
        %1136 = vst.msk [vmem:[#allocation3 + $0x4c] sm:$0xf] %vm1116, %v1059
        %1137 = vst.msk [vmem:[#allocation3 + $0x50] sm:$0xf] %vm1116, %v1061
        %1138 = vst.msk [vmem:[#allocation3 + $0x54] sm:$0xf] %vm1116, %v1063
        %1139 = vst.msk [vmem:[#allocation3 + $0x58] sm:$0xf] %vm1116, %v1065
        %1140 = vst.msk [vmem:[#allocation3 + $0x5c] sm:$0xf] %vm1116, %v1067
        %1141 = vst.msk [vmem:[#allocation3 + $0x60] sm:$0xf] %vm1116, %v1069
        %1142 = vst.msk [vmem:[#allocation3 + $0x64] sm:$0xf] %vm1116, %v1071
        %1143 = vst.msk [vmem:[#allocation3 + $0x68] sm:$0xf] %vm1116, %v1073
        %1144 = vst.msk [vmem:[#allocation3 + $0x6c] sm:$0xf] %vm1116, %v1075
        %1145 = vst.msk [vmem:[#allocation3 + $0x70] sm:$0xf] %vm1116, %v1077
        %1146 = vst.msk [vmem:[#allocation3 + $0x74] sm:$0xf] %vm1116, %v1079
        %1147 = vst.msk [vmem:[#allocation3 + $0x78] sm:$0xf] %vm1116, %v1081
        %1148 = vst.msk [vmem:[#allocation3 + $0x7c] sm:$0xf] %vm1116, %v1083
        %v1149 = vld [vmem:[%s344 + $0x1] sm:$0xff]
        %v1150 = vld [vmem:[%s344 + $0x9] sm:$0xff]
        %v1151 = vld [vmem:[%s344 + $0x19] sm:$0xff]
        %v1152 = vld [vmem:[%s344 + $0x21] sm:$0xff]
        %v1153 = vld [vmem:[%s344 + $0x31] sm:$0xff]
        %v1154 = vld [vmem:[%s344 + $0x39] sm:$0xff]
        %v1155 = vld [vmem:[%s344 + $0x49] sm:$0xff]
        %v1156 = vld [vmem:[%s344 + $0x51] sm:$0xff]
        %v1157 = vld [vmem:[%s344 + $0x61] sm:$0xff]
        %v1158 = vld [vmem:[%s344 + $0x69] sm:$0xff]
        %v1159 = vld [vmem:[%s344 + $0x79] sm:$0xff]
        %v1160 = vld [vmem:[%s344 + $0x81] sm:$0xff]
        %v1161 = vld [vmem:[%s344 + $0x91] sm:$0xff]
        %v1162 = vld [vmem:[%s344 + $0x99] sm:$0xff]
        %v1163 = vld [vmem:[%s344 + $0xa9] sm:$0xff]
        %v1164 = vld [vmem:[%s344 + $0xb1] sm:$0xff]
        %v1165 = vld [vmem:[%s344 + $0xc1] sm:$0xff]
        %v1166 = vld [vmem:[%s344 + $0xc9] sm:$0xff]
        %v1167 = vld [vmem:[%s344 + $0xd9] sm:$0xff]
        %v1168 = vld [vmem:[%s344 + $0xe1] sm:$0xff]
        %v1169 = vld [vmem:[%s344 + $0xf1] sm:$0xff]
        %v1170 = vld [vmem:[%s344 + $0xf9] sm:$0xff]
        %v1171 = vld [vmem:[%s344 + $0x109] sm:$0xff]
        %v1172 = vld [vmem:[%s344 + $0x111] sm:$0xff]
        %v1173 = vld [vmem:[%s344 + $0x121] sm:$0xff]
        %v1174 = vld [vmem:[%s344 + $0x129] sm:$0xff]
        %v1175 = vld [vmem:[%s344 + $0x139] sm:$0xff]
        %v1176 = vld [vmem:[%s344 + $0x141] sm:$0xff]
        %v1177 = vld [vmem:[%s344 + $0x151] sm:$0xff]
        %v1178 = vld [vmem:[%s344 + $0x159] sm:$0xff]
        %v1179 = vld [vmem:[%s344 + $0x169] sm:$0xff]
        %v1180 = vld [vmem:[%s344 + $0x171] sm:$0xff]
        %v1181 = vpack.c.bf16 %v1149, %v1149
        %v1182 = vpack.c.bf16 %v1150, %v1150
        %v1183 = vpack.c.bf16 %v1151, %v1151
        %v1184 = vpack.c.bf16 %v1152, %v1152
        %v1185 = vpack.c.bf16 %v1153, %v1153
        %v1186 = vpack.c.bf16 %v1154, %v1154
        %v1187 = vpack.c.bf16 %v1155, %v1155
        %v1188 = vpack.c.bf16 %v1156, %v1156
        %v1189 = vpack.c.bf16 %v1157, %v1157
        %v1190 = vpack.c.bf16 %v1158, %v1158
        %v1191 = vpack.c.bf16 %v1159, %v1159
        %v1192 = vpack.c.bf16 %v1160, %v1160
        %v1193 = vpack.c.bf16 %v1161, %v1161
        %v1194 = vpack.c.bf16 %v1162, %v1162
        %v1195 = vpack.c.bf16 %v1163, %v1163
        %v1196 = vpack.c.bf16 %v1164, %v1164
        %v1197 = vpack.c.bf16 %v1165, %v1165
        %v1198 = vpack.c.bf16 %v1166, %v1166
        %v1199 = vpack.c.bf16 %v1167, %v1167
        %v1200 = vpack.c.bf16 %v1168, %v1168
        %v1201 = vpack.c.bf16 %v1169, %v1169
        %v1202 = vpack.c.bf16 %v1170, %v1170
        %v1203 = vpack.c.bf16 %v1171, %v1171
        %v1204 = vpack.c.bf16 %v1172, %v1172
        %v1205 = vpack.c.bf16 %v1173, %v1173
        %v1206 = vpack.c.bf16 %v1174, %v1174
        %v1207 = vpack.c.bf16 %v1175, %v1175
        %v1208 = vpack.c.bf16 %v1176, %v1176
        %v1209 = vpack.c.bf16 %v1177, %v1177
        %v1210 = vpack.c.bf16 %v1178, %v1178
        %v1211 = vpack.c.bf16 %v1179, %v1179
        %v1212 = vpack.c.bf16 %v1180, %v1180
        %1245 = vrot.lane.b32.xlu0 %v1181, 16
        %v1246 = vpop.permute.xlu0 %1245
        %1247 = vrot.lane.b32.xlu0 %v1182, 16
        %v1248 = vpop.permute.xlu0 %1247
        %1249 = vrot.lane.b32.xlu0 %v1183, 16
        %v1250 = vpop.permute.xlu0 %1249
        %1251 = vrot.lane.b32.xlu0 %v1184, 16
        %v1252 = vpop.permute.xlu0 %1251
        %1253 = vrot.lane.b32.xlu0 %v1185, 16
        %v1254 = vpop.permute.xlu0 %1253
        %1255 = vrot.lane.b32.xlu0 %v1186, 16
        %v1256 = vpop.permute.xlu0 %1255
        %1257 = vrot.lane.b32.xlu0 %v1187, 16
        %v1258 = vpop.permute.xlu0 %1257
        %1259 = vrot.lane.b32.xlu0 %v1188, 16
        %v1260 = vpop.permute.xlu0 %1259
        %1261 = vrot.lane.b32.xlu0 %v1189, 16
        %v1262 = vpop.permute.xlu0 %1261
        %1263 = vrot.lane.b32.xlu0 %v1190, 16
        %v1264 = vpop.permute.xlu0 %1263
        %1265 = vrot.lane.b32.xlu0 %v1191, 16
        %v1266 = vpop.permute.xlu0 %1265
        %1267 = vrot.lane.b32.xlu0 %v1192, 16
        %v1268 = vpop.permute.xlu0 %1267
        %1269 = vrot.lane.b32.xlu0 %v1193, 16
        %v1270 = vpop.permute.xlu0 %1269
        %1271 = vrot.lane.b32.xlu0 %v1194, 16
        %v1272 = vpop.permute.xlu0 %1271
        %1273 = vrot.lane.b32.xlu0 %v1195, 16
        %v1274 = vpop.permute.xlu0 %1273
        %1275 = vrot.lane.b32.xlu0 %v1196, 16
        %v1276 = vpop.permute.xlu0 %1275
        %1277 = vrot.lane.b32.xlu0 %v1197, 16
        %v1278 = vpop.permute.xlu0 %1277
        %1279 = vrot.lane.b32.xlu0 %v1198, 16
        %v1280 = vpop.permute.xlu0 %1279
        %1281 = vrot.lane.b32.xlu0 %v1199, 16
        %v1282 = vpop.permute.xlu0 %1281
        %1283 = vrot.lane.b32.xlu0 %v1200, 16
        %v1284 = vpop.permute.xlu0 %1283
        %1285 = vrot.lane.b32.xlu0 %v1201, 16
        %v1286 = vpop.permute.xlu0 %1285
        %1287 = vrot.lane.b32.xlu0 %v1202, 16
        %v1288 = vpop.permute.xlu0 %1287
        %1289 = vrot.lane.b32.xlu0 %v1203, 16
        %v1290 = vpop.permute.xlu0 %1289
        %1291 = vrot.lane.b32.xlu0 %v1204, 16
        %v1292 = vpop.permute.xlu0 %1291
        %1293 = vrot.lane.b32.xlu0 %v1205, 16
        %v1294 = vpop.permute.xlu0 %1293
        %1295 = vrot.lane.b32.xlu0 %v1206, 16
        %v1296 = vpop.permute.xlu0 %1295
        %1297 = vrot.lane.b32.xlu0 %v1207, 16
        %v1298 = vpop.permute.xlu0 %1297
        %1299 = vrot.lane.b32.xlu0 %v1208, 16
        %v1300 = vpop.permute.xlu0 %1299
        %1301 = vrot.lane.b32.xlu0 %v1209, 16
        %v1302 = vpop.permute.xlu0 %1301
        %1303 = vrot.lane.b32.xlu0 %v1210, 16
        %v1304 = vpop.permute.xlu0 %1303
        %1305 = vrot.lane.b32.xlu0 %v1211, 16
        %v1306 = vpop.permute.xlu0 %1305
        %1307 = vrot.lane.b32.xlu0 %v1212, 16
        %v1308 = vpop.permute.xlu0 %1307
        %vm1341 = vcmask 158848
        %1342 = vst.msk [vmem:[#allocation3] sm:$0xf] %vm1341, %v1246
        %1343 = vst.msk [vmem:[#allocation3 + $0x4] sm:$0xf] %vm1341, %v1248
        %1344 = vst.msk [vmem:[#allocation3 + $0x8] sm:$0xf] %vm1341, %v1250
        %1345 = vst.msk [vmem:[#allocation3 + $0xc] sm:$0xf] %vm1341, %v1252
        %1346 = vst.msk [vmem:[#allocation3 + $0x10] sm:$0xf] %vm1341, %v1254
        %1347 = vst.msk [vmem:[#allocation3 + $0x14] sm:$0xf] %vm1341, %v1256
        %1348 = vst.msk [vmem:[#allocation3 + $0x18] sm:$0xf] %vm1341, %v1258
        %1349 = vst.msk [vmem:[#allocation3 + $0x1c] sm:$0xf] %vm1341, %v1260
        %1350 = vst.msk [vmem:[#allocation3 + $0x20] sm:$0xf] %vm1341, %v1262
        %1351 = vst.msk [vmem:[#allocation3 + $0x24] sm:$0xf] %vm1341, %v1264
        %1352 = vst.msk [vmem:[#allocation3 + $0x28] sm:$0xf] %vm1341, %v1266
        %1353 = vst.msk [vmem:[#allocation3 + $0x2c] sm:$0xf] %vm1341, %v1268
        %1354 = vst.msk [vmem:[#allocation3 + $0x30] sm:$0xf] %vm1341, %v1270
        %1355 = vst.msk [vmem:[#allocation3 + $0x34] sm:$0xf] %vm1341, %v1272
        %1356 = vst.msk [vmem:[#allocation3 + $0x38] sm:$0xf] %vm1341, %v1274
        %1357 = vst.msk [vmem:[#allocation3 + $0x3c] sm:$0xf] %vm1341, %v1276
        %1358 = vst.msk [vmem:[#allocation3 + $0x40] sm:$0xf] %vm1341, %v1278
        %1359 = vst.msk [vmem:[#allocation3 + $0x44] sm:$0xf] %vm1341, %v1280
        %1360 = vst.msk [vmem:[#allocation3 + $0x48] sm:$0xf] %vm1341, %v1282
        %1361 = vst.msk [vmem:[#allocation3 + $0x4c] sm:$0xf] %vm1341, %v1284
        %1362 = vst.msk [vmem:[#allocation3 + $0x50] sm:$0xf] %vm1341, %v1286
        %1363 = vst.msk [vmem:[#allocation3 + $0x54] sm:$0xf] %vm1341, %v1288
        %1364 = vst.msk [vmem:[#allocation3 + $0x58] sm:$0xf] %vm1341, %v1290
        %1365 = vst.msk [vmem:[#allocation3 + $0x5c] sm:$0xf] %vm1341, %v1292
        %1366 = vst.msk [vmem:[#allocation3 + $0x60] sm:$0xf] %vm1341, %v1294
        %1367 = vst.msk [vmem:[#allocation3 + $0x64] sm:$0xf] %vm1341, %v1296
        %1368 = vst.msk [vmem:[#allocation3 + $0x68] sm:$0xf] %vm1341, %v1298
        %1369 = vst.msk [vmem:[#allocation3 + $0x6c] sm:$0xf] %vm1341, %v1300
        %1370 = vst.msk [vmem:[#allocation3 + $0x70] sm:$0xf] %vm1341, %v1302
        %1371 = vst.msk [vmem:[#allocation3 + $0x74] sm:$0xf] %vm1341, %v1304
        %1372 = vst.msk [vmem:[#allocation3 + $0x78] sm:$0xf] %vm1341, %v1306
        %1373 = vst.msk [vmem:[#allocation3 + $0x7c] sm:$0xf] %vm1341, %v1308
        %v1374 = vld [vmem:[%s344 + $0x2] sm:$0xff]
        %v1375 = vld [vmem:[%s344 + $0xa] sm:$0xff]
        %v1376 = vld [vmem:[%s344 + $0x1a] sm:$0xff]
        %v1377 = vld [vmem:[%s344 + $0x22] sm:$0xff]
        %v1378 = vld [vmem:[%s344 + $0x32] sm:$0xff]
        %v1379 = vld [vmem:[%s344 + $0x3a] sm:$0xff]
        %v1380 = vld [vmem:[%s344 + $0x4a] sm:$0xff]
        %v1381 = vld [vmem:[%s344 + $0x52] sm:$0xff]
        %v1382 = vld [vmem:[%s344 + $0x62] sm:$0xff]
        %v1383 = vld [vmem:[%s344 + $0x6a] sm:$0xff]
        %v1384 = vld [vmem:[%s344 + $0x7a] sm:$0xff]
        %v1385 = vld [vmem:[%s344 + $0x82] sm:$0xff]
        %v1386 = vld [vmem:[%s344 + $0x92] sm:$0xff]
        %v1387 = vld [vmem:[%s344 + $0x9a] sm:$0xff]
        %v1388 = vld [vmem:[%s344 + $0xaa] sm:$0xff]
        %v1389 = vld [vmem:[%s344 + $0xb2] sm:$0xff]
        %v1390 = vld [vmem:[%s344 + $0xc2] sm:$0xff]
        %v1391 = vld [vmem:[%s344 + $0xca] sm:$0xff]
        %v1392 = vld [vmem:[%s344 + $0xda] sm:$0xff]
        %v1393 = vld [vmem:[%s344 + $0xe2] sm:$0xff]
        %v1394 = vld [vmem:[%s344 + $0xf2] sm:$0xff]
        %v1395 = vld [vmem:[%s344 + $0xfa] sm:$0xff]
        %v1396 = vld [vmem:[%s344 + $0x10a] sm:$0xff]
        %v1397 = vld [vmem:[%s344 + $0x112] sm:$0xff]
        %v1398 = vld [vmem:[%s344 + $0x122] sm:$0xff]
        %v1399 = vld [vmem:[%s344 + $0x12a] sm:$0xff]
        %v1400 = vld [vmem:[%s344 + $0x13a] sm:$0xff]
        %v1401 = vld [vmem:[%s344 + $0x142] sm:$0xff]
        %v1402 = vld [vmem:[%s344 + $0x152] sm:$0xff]
        %v1403 = vld [vmem:[%s344 + $0x15a] sm:$0xff]
        %v1404 = vld [vmem:[%s344 + $0x16a] sm:$0xff]
        %v1405 = vld [vmem:[%s344 + $0x172] sm:$0xff]
        %v1406 = vpack.c.bf16 %v1374, %v1374
        %v1407 = vpack.c.bf16 %v1375, %v1375
        %v1408 = vpack.c.bf16 %v1376, %v1376
        %v1409 = vpack.c.bf16 %v1377, %v1377
        %v1410 = vpack.c.bf16 %v1378, %v1378
        %v1411 = vpack.c.bf16 %v1379, %v1379
        %v1412 = vpack.c.bf16 %v1380, %v1380
        %v1413 = vpack.c.bf16 %v1381, %v1381
        %v1414 = vpack.c.bf16 %v1382, %v1382
        %v1415 = vpack.c.bf16 %v1383, %v1383
        %v1416 = vpack.c.bf16 %v1384, %v1384
        %v1417 = vpack.c.bf16 %v1385, %v1385
        %v1418 = vpack.c.bf16 %v1386, %v1386
        %v1419 = vpack.c.bf16 %v1387, %v1387
        %v1420 = vpack.c.bf16 %v1388, %v1388
        %v1421 = vpack.c.bf16 %v1389, %v1389
        %v1422 = vpack.c.bf16 %v1390, %v1390
        %v1423 = vpack.c.bf16 %v1391, %v1391
        %v1424 = vpack.c.bf16 %v1392, %v1392
        %v1425 = vpack.c.bf16 %v1393, %v1393
        %v1426 = vpack.c.bf16 %v1394, %v1394
        %v1427 = vpack.c.bf16 %v1395, %v1395
        %v1428 = vpack.c.bf16 %v1396, %v1396
        %v1429 = vpack.c.bf16 %v1397, %v1397
        %v1430 = vpack.c.bf16 %v1398, %v1398
        %v1431 = vpack.c.bf16 %v1399, %v1399
        %v1432 = vpack.c.bf16 %v1400, %v1400
        %v1433 = vpack.c.bf16 %v1401, %v1401
        %v1434 = vpack.c.bf16 %v1402, %v1402
        %v1435 = vpack.c.bf16 %v1403, %v1403
        %v1436 = vpack.c.bf16 %v1404, %v1404
        %v1437 = vpack.c.bf16 %v1405, %v1405
        %1470 = vrot.lane.b32.xlu0 %v1406, 20
        %v1471 = vpop.permute.xlu0 %1470
        %1472 = vrot.lane.b32.xlu0 %v1407, 20
        %v1473 = vpop.permute.xlu0 %1472
        %1474 = vrot.lane.b32.xlu0 %v1408, 20
        %v1475 = vpop.permute.xlu0 %1474
        %1476 = vrot.lane.b32.xlu0 %v1409, 20
        %v1477 = vpop.permute.xlu0 %1476
        %1478 = vrot.lane.b32.xlu0 %v1410, 20
        %v1479 = vpop.permute.xlu0 %1478
        %1480 = vrot.lane.b32.xlu0 %v1411, 20
        %v1481 = vpop.permute.xlu0 %1480
        %1482 = vrot.lane.b32.xlu0 %v1412, 20
        %v1483 = vpop.permute.xlu0 %1482
        %1484 = vrot.lane.b32.xlu0 %v1413, 20
        %v1485 = vpop.permute.xlu0 %1484
        %1486 = vrot.lane.b32.xlu0 %v1414, 20
        %v1487 = vpop.permute.xlu0 %1486
        %1488 = vrot.lane.b32.xlu0 %v1415, 20
        %v1489 = vpop.permute.xlu0 %1488
        %1490 = vrot.lane.b32.xlu0 %v1416, 20
        %v1491 = vpop.permute.xlu0 %1490
        %1492 = vrot.lane.b32.xlu0 %v1417, 20
        %v1493 = vpop.permute.xlu0 %1492
        %1494 = vrot.lane.b32.xlu0 %v1418, 20
        %v1495 = vpop.permute.xlu0 %1494
        %1496 = vrot.lane.b32.xlu0 %v1419, 20
        %v1497 = vpop.permute.xlu0 %1496
        %1498 = vrot.lane.b32.xlu0 %v1420, 20
        %v1499 = vpop.permute.xlu0 %1498
        %1500 = vrot.lane.b32.xlu0 %v1421, 20
        %v1501 = vpop.permute.xlu0 %1500
        %1502 = vrot.lane.b32.xlu0 %v1422, 20
        %v1503 = vpop.permute.xlu0 %1502
        %1504 = vrot.lane.b32.xlu0 %v1423, 20
        %v1505 = vpop.permute.xlu0 %1504
        %1506 = vrot.lane.b32.xlu0 %v1424, 20
        %v1507 = vpop.permute.xlu0 %1506
        %1508 = vrot.lane.b32.xlu0 %v1425, 20
        %v1509 = vpop.permute.xlu0 %1508
        %1510 = vrot.lane.b32.xlu0 %v1426, 20
        %v1511 = vpop.permute.xlu0 %1510
        %1512 = vrot.lane.b32.xlu0 %v1427, 20
        %v1513 = vpop.permute.xlu0 %1512
        %1514 = vrot.lane.b32.xlu0 %v1428, 20
        %v1515 = vpop.permute.xlu0 %1514
        %1516 = vrot.lane.b32.xlu0 %v1429, 20
        %v1517 = vpop.permute.xlu0 %1516
        %1518 = vrot.lane.b32.xlu0 %v1430, 20
        %v1519 = vpop.permute.xlu0 %1518
        %1520 = vrot.lane.b32.xlu0 %v1431, 20
        %v1521 = vpop.permute.xlu0 %1520
        %1522 = vrot.lane.b32.xlu0 %v1432, 20
        %v1523 = vpop.permute.xlu0 %1522
        %1524 = vrot.lane.b32.xlu0 %v1433, 20
        %v1525 = vpop.permute.xlu0 %1524
        %1526 = vrot.lane.b32.xlu0 %v1434, 20
        %v1527 = vpop.permute.xlu0 %1526
        %1528 = vrot.lane.b32.xlu0 %v1435, 20
        %v1529 = vpop.permute.xlu0 %1528
        %1530 = vrot.lane.b32.xlu0 %v1436, 20
        %v1531 = vpop.permute.xlu0 %1530
        %1532 = vrot.lane.b32.xlu0 %v1437, 20
        %v1533 = vpop.permute.xlu0 %1532
        %vm1566 = vcmask 191648
        %1567 = vst.msk [vmem:[#allocation3] sm:$0xf] %vm1566, %v1471
        %1568 = vst.msk [vmem:[#allocation3 + $0x4] sm:$0xf] %vm1566, %v1473
        %1569 = vst.msk [vmem:[#allocation3 + $0x8] sm:$0xf] %vm1566, %v1475
        %1570 = vst.msk [vmem:[#allocation3 + $0xc] sm:$0xf] %vm1566, %v1477
        %1571 = vst.msk [vmem:[#allocation3 + $0x10] sm:$0xf] %vm1566, %v1479
        %1572 = vst.msk [vmem:[#allocation3 + $0x14] sm:$0xf] %vm1566, %v1481
        %1573 = vst.msk [vmem:[#allocation3 + $0x18] sm:$0xf] %vm1566, %v1483
        %1574 = vst.msk [vmem:[#allocation3 + $0x1c] sm:$0xf] %vm1566, %v1485
        %1575 = vst.msk [vmem:[#allocation3 + $0x20] sm:$0xf] %vm1566, %v1487
        %1576 = vst.msk [vmem:[#allocation3 + $0x24] sm:$0xf] %vm1566, %v1489
        %1577 = vst.msk [vmem:[#allocation3 + $0x28] sm:$0xf] %vm1566, %v1491
        %1578 = vst.msk [vmem:[#allocation3 + $0x2c] sm:$0xf] %vm1566, %v1493
        %1579 = vst.msk [vmem:[#allocation3 + $0x30] sm:$0xf] %vm1566, %v1495
        %1580 = vst.msk [vmem:[#allocation3 + $0x34] sm:$0xf] %vm1566, %v1497
        %1581 = vst.msk [vmem:[#allocation3 + $0x38] sm:$0xf] %vm1566, %v1499
        %1582 = vst.msk [vmem:[#allocation3 + $0x3c] sm:$0xf] %vm1566, %v1501
        %1583 = vst.msk [vmem:[#allocation3 + $0x40] sm:$0xf] %vm1566, %v1503
        %1584 = vst.msk [vmem:[#allocation3 + $0x44] sm:$0xf] %vm1566, %v1505
        %1585 = vst.msk [vmem:[#allocation3 + $0x48] sm:$0xf] %vm1566, %v1507
        %1586 = vst.msk [vmem:[#allocation3 + $0x4c] sm:$0xf] %vm1566, %v1509
        %1587 = vst.msk [vmem:[#allocation3 + $0x50] sm:$0xf] %vm1566, %v1511
        %1588 = vst.msk [vmem:[#allocation3 + $0x54] sm:$0xf] %vm1566, %v1513
        %1589 = vst.msk [vmem:[#allocation3 + $0x58] sm:$0xf] %vm1566, %v1515
        %1590 = vst.msk [vmem:[#allocation3 + $0x5c] sm:$0xf] %vm1566, %v1517
        %1591 = vst.msk [vmem:[#allocation3 + $0x60] sm:$0xf] %vm1566, %v1519
        %1592 = vst.msk [vmem:[#allocation3 + $0x64] sm:$0xf] %vm1566, %v1521
        %1593 = vst.msk [vmem:[#allocation3 + $0x68] sm:$0xf] %vm1566, %v1523
        %1594 = vst.msk [vmem:[#allocation3 + $0x6c] sm:$0xf] %vm1566, %v1525
        %1595 = vst.msk [vmem:[#allocation3 + $0x70] sm:$0xf] %vm1566, %v1527
        %1596 = vst.msk [vmem:[#allocation3 + $0x74] sm:$0xf] %vm1566, %v1529
        %1597 = vst.msk [vmem:[#allocation3 + $0x78] sm:$0xf] %vm1566, %v1531
        %1598 = vst.msk [vmem:[#allocation3 + $0x7c] sm:$0xf] %vm1566, %v1533
        %s1599 = scalar_lea.vmem [#allocation2], 48
        %v1600 = vld [vmem:[%s1599] sm:$0xff]
        %v1601 = vld [vmem:[%s1599 + $0x8] sm:$0xff]
        %v1602 = vld [vmem:[%s1599 + $0x18] sm:$0xff]
        %v1603 = vld [vmem:[%s1599 + $0x20] sm:$0xff]
        %v1604 = vld [vmem:[%s1599 + $0x30] sm:$0xff]
        %v1605 = vld [vmem:[%s1599 + $0x38] sm:$0xff]
        %v1606 = vld [vmem:[%s1599 + $0x48] sm:$0xff]
        %v1607 = vld [vmem:[%s1599 + $0x50] sm:$0xff]
        %v1608 = vld [vmem:[%s1599 + $0x60] sm:$0xff]
        %v1609 = vld [vmem:[%s1599 + $0x68] sm:$0xff]
        %v1610 = vld [vmem:[%s1599 + $0x78] sm:$0xff]
        %v1611 = vld [vmem:[%s1599 + $0x80] sm:$0xff]
        %v1612 = vld [vmem:[%s1599 + $0x90] sm:$0xff]
        %v1613 = vld [vmem:[%s1599 + $0x98] sm:$0xff]
        %v1614 = vld [vmem:[%s1599 + $0xa8] sm:$0xff]
        %v1615 = vld [vmem:[%s1599 + $0xb0] sm:$0xff]
        %v1616 = vld [vmem:[%s1599 + $0xc0] sm:$0xff]
        %v1617 = vld [vmem:[%s1599 + $0xc8] sm:$0xff]
        %v1618 = vld [vmem:[%s1599 + $0xd8] sm:$0xff]
        %v1619 = vld [vmem:[%s1599 + $0xe0] sm:$0xff]
        %v1620 = vld [vmem:[%s1599 + $0xf0] sm:$0xff]
        %v1621 = vld [vmem:[%s1599 + $0xf8] sm:$0xff]
        %v1622 = vld [vmem:[%s1599 + $0x108] sm:$0xff]
        %v1623 = vld [vmem:[%s1599 + $0x110] sm:$0xff]
        %v1624 = vld [vmem:[%s1599 + $0x120] sm:$0xff]
        %v1625 = vld [vmem:[%s1599 + $0x128] sm:$0xff]
        %v1626 = vld [vmem:[%s1599 + $0x138] sm:$0xff]
        %v1627 = vld [vmem:[%s1599 + $0x140] sm:$0xff]
        %v1628 = vld [vmem:[%s1599 + $0x150] sm:$0xff]
        %v1629 = vld [vmem:[%s1599 + $0x158] sm:$0xff]
        %v1630 = vld [vmem:[%s1599 + $0x168] sm:$0xff]
        %v1631 = vld [vmem:[%s1599 + $0x170] sm:$0xff]
        %v1632 = vpack.c.bf16 %v1600, %v1600
        %v1633 = vpack.c.bf16 %v1601, %v1601
        %v1634 = vpack.c.bf16 %v1602, %v1602
        %v1635 = vpack.c.bf16 %v1603, %v1603
        %v1636 = vpack.c.bf16 %v1604, %v1604
        %v1637 = vpack.c.bf16 %v1605, %v1605
        %v1638 = vpack.c.bf16 %v1606, %v1606
        %v1639 = vpack.c.bf16 %v1607, %v1607
        %v1640 = vpack.c.bf16 %v1608, %v1608
        %v1641 = vpack.c.bf16 %v1609, %v1609
        %v1642 = vpack.c.bf16 %v1610, %v1610
        %v1643 = vpack.c.bf16 %v1611, %v1611
        %v1644 = vpack.c.bf16 %v1612, %v1612
        %v1645 = vpack.c.bf16 %v1613, %v1613
        %v1646 = vpack.c.bf16 %v1614, %v1614
        %v1647 = vpack.c.bf16 %v1615, %v1615
        %v1648 = vpack.c.bf16 %v1616, %v1616
        %v1649 = vpack.c.bf16 %v1617, %v1617
        %v1650 = vpack.c.bf16 %v1618, %v1618
        %v1651 = vpack.c.bf16 %v1619, %v1619
        %v1652 = vpack.c.bf16 %v1620, %v1620
        %v1653 = vpack.c.bf16 %v1621, %v1621
        %v1654 = vpack.c.bf16 %v1622, %v1622
        %v1655 = vpack.c.bf16 %v1623, %v1623
        %v1656 = vpack.c.bf16 %v1624, %v1624
        %v1657 = vpack.c.bf16 %v1625, %v1625
        %v1658 = vpack.c.bf16 %v1626, %v1626
        %v1659 = vpack.c.bf16 %v1627, %v1627
        %v1660 = vpack.c.bf16 %v1628, %v1628
        %v1661 = vpack.c.bf16 %v1629, %v1629
        %v1662 = vpack.c.bf16 %v1630, %v1630
        %v1663 = vpack.c.bf16 %v1631, %v1631
        %1696 = vrot.lane.b32.xlu0 %v1632, 24
        %v1697 = vpop.permute.xlu0 %1696
        %1698 = vrot.lane.b32.xlu0 %v1633, 24
        %v1699 = vpop.permute.xlu0 %1698
        %1700 = vrot.lane.b32.xlu0 %v1634, 24
        %v1701 = vpop.permute.xlu0 %1700
        %1702 = vrot.lane.b32.xlu0 %v1635, 24
        %v1703 = vpop.permute.xlu0 %1702
        %1704 = vrot.lane.b32.xlu0 %v1636, 24
        %v1705 = vpop.permute.xlu0 %1704
        %1706 = vrot.lane.b32.xlu0 %v1637, 24
        %v1707 = vpop.permute.xlu0 %1706
        %1708 = vrot.lane.b32.xlu0 %v1638, 24
        %v1709 = vpop.permute.xlu0 %1708
        %1710 = vrot.lane.b32.xlu0 %v1639, 24
        %v1711 = vpop.permute.xlu0 %1710
        %1712 = vrot.lane.b32.xlu0 %v1640, 24
        %v1713 = vpop.permute.xlu0 %1712
        %1714 = vrot.lane.b32.xlu0 %v1641, 24
        %v1715 = vpop.permute.xlu0 %1714
        %1716 = vrot.lane.b32.xlu0 %v1642, 24
        %v1717 = vpop.permute.xlu0 %1716
        %1718 = vrot.lane.b32.xlu0 %v1643, 24
        %v1719 = vpop.permute.xlu0 %1718
        %1720 = vrot.lane.b32.xlu0 %v1644, 24
        %v1721 = vpop.permute.xlu0 %1720
        %1722 = vrot.lane.b32.xlu0 %v1645, 24
        %v1723 = vpop.permute.xlu0 %1722
        %1724 = vrot.lane.b32.xlu0 %v1646, 24
        %v1725 = vpop.permute.xlu0 %1724
        %1726 = vrot.lane.b32.xlu0 %v1647, 24
        %v1727 = vpop.permute.xlu0 %1726
        %1728 = vrot.lane.b32.xlu0 %v1648, 24
        %v1729 = vpop.permute.xlu0 %1728
        %1730 = vrot.lane.b32.xlu0 %v1649, 24
        %v1731 = vpop.permute.xlu0 %1730
        %1732 = vrot.lane.b32.xlu0 %v1650, 24
        %v1733 = vpop.permute.xlu0 %1732
        %1734 = vrot.lane.b32.xlu0 %v1651, 24
        %v1735 = vpop.permute.xlu0 %1734
        %1736 = vrot.lane.b32.xlu0 %v1652, 24
        %v1737 = vpop.permute.xlu0 %1736
        %1738 = vrot.lane.b32.xlu0 %v1653, 24
        %v1739 = vpop.permute.xlu0 %1738
        %1740 = vrot.lane.b32.xlu0 %v1654, 24
        %v1741 = vpop.permute.xlu0 %1740
        %1742 = vrot.lane.b32.xlu0 %v1655, 24
        %v1743 = vpop.permute.xlu0 %1742
        %1744 = vrot.lane.b32.xlu0 %v1656, 24
        %v1745 = vpop.permute.xlu0 %1744
        %1746 = vrot.lane.b32.xlu0 %v1657, 24
        %v1747 = vpop.permute.xlu0 %1746
        %1748 = vrot.lane.b32.xlu0 %v1658, 24
        %v1749 = vpop.permute.xlu0 %1748
        %1750 = vrot.lane.b32.xlu0 %v1659, 24
        %v1751 = vpop.permute.xlu0 %1750
        %1752 = vrot.lane.b32.xlu0 %v1660, 24
        %v1753 = vpop.permute.xlu0 %1752
        %1754 = vrot.lane.b32.xlu0 %v1661, 24
        %v1755 = vpop.permute.xlu0 %1754
        %1756 = vrot.lane.b32.xlu0 %v1662, 24
        %v1757 = vpop.permute.xlu0 %1756
        %1758 = vrot.lane.b32.xlu0 %v1663, 24
        %v1759 = vpop.permute.xlu0 %1758
        %vm1792 = vcmask 224448
        %1793 = vst.msk [vmem:[#allocation3] sm:$0xf] %vm1792, %v1697
        %1794 = vst.msk [vmem:[#allocation3 + $0x4] sm:$0xf] %vm1792, %v1699
        %1795 = vst.msk [vmem:[#allocation3 + $0x8] sm:$0xf] %vm1792, %v1701
        %1796 = vst.msk [vmem:[#allocation3 + $0xc] sm:$0xf] %vm1792, %v1703
        %1797 = vst.msk [vmem:[#allocation3 + $0x10] sm:$0xf] %vm1792, %v1705
        %1798 = vst.msk [vmem:[#allocation3 + $0x14] sm:$0xf] %vm1792, %v1707
        %1799 = vst.msk [vmem:[#allocation3 + $0x18] sm:$0xf] %vm1792, %v1709
        %1800 = vst.msk [vmem:[#allocation3 + $0x1c] sm:$0xf] %vm1792, %v1711
        %1801 = vst.msk [vmem:[#allocation3 + $0x20] sm:$0xf] %vm1792, %v1713
        %1802 = vst.msk [vmem:[#allocation3 + $0x24] sm:$0xf] %vm1792, %v1715
        %1803 = vst.msk [vmem:[#allocation3 + $0x28] sm:$0xf] %vm1792, %v1717
        %1804 = vst.msk [vmem:[#allocation3 + $0x2c] sm:$0xf] %vm1792, %v1719
        %1805 = vst.msk [vmem:[#allocation3 + $0x30] sm:$0xf] %vm1792, %v1721
        %1806 = vst.msk [vmem:[#allocation3 + $0x34] sm:$0xf] %vm1792, %v1723
        %1807 = vst.msk [vmem:[#allocation3 + $0x38] sm:$0xf] %vm1792, %v1725
        %1808 = vst.msk [vmem:[#allocation3 + $0x3c] sm:$0xf] %vm1792, %v1727
        %1809 = vst.msk [vmem:[#allocation3 + $0x40] sm:$0xf] %vm1792, %v1729
        %1810 = vst.msk [vmem:[#allocation3 + $0x44] sm:$0xf] %vm1792, %v1731
        %1811 = vst.msk [vmem:[#allocation3 + $0x48] sm:$0xf] %vm1792, %v1733
        %1812 = vst.msk [vmem:[#allocation3 + $0x4c] sm:$0xf] %vm1792, %v1735
        %1813 = vst.msk [vmem:[#allocation3 + $0x50] sm:$0xf] %vm1792, %v1737
        %1814 = vst.msk [vmem:[#allocation3 + $0x54] sm:$0xf] %vm1792, %v1739
        %1815 = vst.msk [vmem:[#allocation3 + $0x58] sm:$0xf] %vm1792, %v1741
        %1816 = vst.msk [vmem:[#allocation3 + $0x5c] sm:$0xf] %vm1792, %v1743
        %1817 = vst.msk [vmem:[#allocation3 + $0x60] sm:$0xf] %vm1792, %v1745
        %1818 = vst.msk [vmem:[#allocation3 + $0x64] sm:$0xf] %vm1792, %v1747
        %1819 = vst.msk [vmem:[#allocation3 + $0x68] sm:$0xf] %vm1792, %v1749
        %1820 = vst.msk [vmem:[#allocation3 + $0x6c] sm:$0xf] %vm1792, %v1751
        %1821 = vst.msk [vmem:[#allocation3 + $0x70] sm:$0xf] %vm1792, %v1753
        %1822 = vst.msk [vmem:[#allocation3 + $0x74] sm:$0xf] %vm1792, %v1755
        %1823 = vst.msk [vmem:[#allocation3 + $0x78] sm:$0xf] %vm1792, %v1757
        %1824 = vst.msk [vmem:[#allocation3 + $0x7c] sm:$0xf] %vm1792, %v1759
        %v1825 = vld [vmem:[%s1599 + $0x1] sm:$0xff]
        %v1826 = vld [vmem:[%s1599 + $0x9] sm:$0xff]
        %v1827 = vld [vmem:[%s1599 + $0x19] sm:$0xff]
        %v1828 = vld [vmem:[%s1599 + $0x21] sm:$0xff]
        %v1829 = vld [vmem:[%s1599 + $0x31] sm:$0xff]
        %v1830 = vld [vmem:[%s1599 + $0x39] sm:$0xff]
        %v1831 = vld [vmem:[%s1599 + $0x49] sm:$0xff]
        %v1832 = vld [vmem:[%s1599 + $0x51] sm:$0xff]
        %v1833 = vld [vmem:[%s1599 + $0x61] sm:$0xff]
        %v1834 = vld [vmem:[%s1599 + $0x69] sm:$0xff]
        %v1835 = vld [vmem:[%s1599 + $0x79] sm:$0xff]
        %v1836 = vld [vmem:[%s1599 + $0x81] sm:$0xff]
        %v1837 = vld [vmem:[%s1599 + $0x91] sm:$0xff]
        %v1838 = vld [vmem:[%s1599 + $0x99] sm:$0xff]
        %v1839 = vld [vmem:[%s1599 + $0xa9] sm:$0xff]
        %v1840 = vld [vmem:[%s1599 + $0xb1] sm:$0xff]
        %v1841 = vld [vmem:[%s1599 + $0xc1] sm:$0xff]
        %v1842 = vld [vmem:[%s1599 + $0xc9] sm:$0xff]
        %v1843 = vld [vmem:[%s1599 + $0xd9] sm:$0xff]
        %v1844 = vld [vmem:[%s1599 + $0xe1] sm:$0xff]
        %v1845 = vld [vmem:[%s1599 + $0xf1] sm:$0xff]
        %v1846 = vld [vmem:[%s1599 + $0xf9] sm:$0xff]
        %v1847 = vld [vmem:[%s1599 + $0x109] sm:$0xff]
        %v1848 = vld [vmem:[%s1599 + $0x111] sm:$0xff]
        %v1849 = vld [vmem:[%s1599 + $0x121] sm:$0xff]
        %v1850 = vld [vmem:[%s1599 + $0x129] sm:$0xff]
        %v1851 = vld [vmem:[%s1599 + $0x139] sm:$0xff]
        %v1852 = vld [vmem:[%s1599 + $0x141] sm:$0xff]
        %v1853 = vld [vmem:[%s1599 + $0x151] sm:$0xff]
        %v1854 = vld [vmem:[%s1599 + $0x159] sm:$0xff]
        %v1855 = vld [vmem:[%s1599 + $0x169] sm:$0xff]
        %v1856 = vld [vmem:[%s1599 + $0x171] sm:$0xff]
        %v1857 = vpack.c.bf16 %v1825, %v1825
        %v1858 = vpack.c.bf16 %v1826, %v1826
        %v1859 = vpack.c.bf16 %v1827, %v1827
        %v1860 = vpack.c.bf16 %v1828, %v1828
        %v1861 = vpack.c.bf16 %v1829, %v1829
        %v1862 = vpack.c.bf16 %v1830, %v1830
        %v1863 = vpack.c.bf16 %v1831, %v1831
        %v1864 = vpack.c.bf16 %v1832, %v1832
        %v1865 = vpack.c.bf16 %v1833, %v1833
        %v1866 = vpack.c.bf16 %v1834, %v1834
        %v1867 = vpack.c.bf16 %v1835, %v1835
        %v1868 = vpack.c.bf16 %v1836, %v1836
        %v1869 = vpack.c.bf16 %v1837, %v1837
        %v1870 = vpack.c.bf16 %v1838, %v1838
        %v1871 = vpack.c.bf16 %v1839, %v1839
        %v1872 = vpack.c.bf16 %v1840, %v1840
        %v1873 = vpack.c.bf16 %v1841, %v1841
        %v1874 = vpack.c.bf16 %v1842, %v1842
        %v1875 = vpack.c.bf16 %v1843, %v1843
        %v1876 = vpack.c.bf16 %v1844, %v1844
        %v1877 = vpack.c.bf16 %v1845, %v1845
        %v1878 = vpack.c.bf16 %v1846, %v1846
        %v1879 = vpack.c.bf16 %v1847, %v1847
        %v1880 = vpack.c.bf16 %v1848, %v1848
        %v1881 = vpack.c.bf16 %v1849, %v1849
        %v1882 = vpack.c.bf16 %v1850, %v1850
        %v1883 = vpack.c.bf16 %v1851, %v1851
        %v1884 = vpack.c.bf16 %v1852, %v1852
        %v1885 = vpack.c.bf16 %v1853, %v1853
        %v1886 = vpack.c.bf16 %v1854, %v1854
        %v1887 = vpack.c.bf16 %v1855, %v1855
        %v1888 = vpack.c.bf16 %v1856, %v1856
        %1921 = vrot.lane.b32.xlu0 %v1857, 28
        %v1922 = vpop.permute.xlu0 %1921
        %1923 = vrot.lane.b32.xlu0 %v1858, 28
        %v1924 = vpop.permute.xlu0 %1923
        %1925 = vrot.lane.b32.xlu0 %v1859, 28
        %v1926 = vpop.permute.xlu0 %1925
        %1927 = vrot.lane.b32.xlu0 %v1860, 28
        %v1928 = vpop.permute.xlu0 %1927
        %1929 = vrot.lane.b32.xlu0 %v1861, 28
        %v1930 = vpop.permute.xlu0 %1929
        %1931 = vrot.lane.b32.xlu0 %v1862, 28
        %v1932 = vpop.permute.xlu0 %1931
        %1933 = vrot.lane.b32.xlu0 %v1863, 28
        %v1934 = vpop.permute.xlu0 %1933
        %1935 = vrot.lane.b32.xlu0 %v1864, 28
        %v1936 = vpop.permute.xlu0 %1935
        %1937 = vrot.lane.b32.xlu0 %v1865, 28
        %v1938 = vpop.permute.xlu0 %1937
        %1939 = vrot.lane.b32.xlu0 %v1866, 28
        %v1940 = vpop.permute.xlu0 %1939
        %1941 = vrot.lane.b32.xlu0 %v1867, 28
        %v1942 = vpop.permute.xlu0 %1941
        %1943 = vrot.lane.b32.xlu0 %v1868, 28
        %v1944 = vpop.permute.xlu0 %1943
        %1945 = vrot.lane.b32.xlu0 %v1869, 28
        %v1946 = vpop.permute.xlu0 %1945
        %1947 = vrot.lane.b32.xlu0 %v1870, 28
        %v1948 = vpop.permute.xlu0 %1947
        %1949 = vrot.lane.b32.xlu0 %v1871, 28
        %v1950 = vpop.permute.xlu0 %1949
        %1951 = vrot.lane.b32.xlu0 %v1872, 28
        %v1952 = vpop.permute.xlu0 %1951
        %1953 = vrot.lane.b32.xlu0 %v1873, 28
        %v1954 = vpop.permute.xlu0 %1953
        %1955 = vrot.lane.b32.xlu0 %v1874, 28
        %v1956 = vpop.permute.xlu0 %1955
        %1957 = vrot.lane.b32.xlu0 %v1875, 28
        %v1958 = vpop.permute.xlu0 %1957
        %1959 = vrot.lane.b32.xlu0 %v1876, 28
        %v1960 = vpop.permute.xlu0 %1959
        %1961 = vrot.lane.b32.xlu0 %v1877, 28
        %v1962 = vpop.permute.xlu0 %1961
        %1963 = vrot.lane.b32.xlu0 %v1878, 28
        %v1964 = vpop.permute.xlu0 %1963
        %1965 = vrot.lane.b32.xlu0 %v1879, 28
        %v1966 = vpop.permute.xlu0 %1965
        %1967 = vrot.lane.b32.xlu0 %v1880, 28
        %v1968 = vpop.permute.xlu0 %1967
        %1969 = vrot.lane.b32.xlu0 %v1881, 28
        %v1970 = vpop.permute.xlu0 %1969
        %1971 = vrot.lane.b32.xlu0 %v1882, 28
        %v1972 = vpop.permute.xlu0 %1971
        %1973 = vrot.lane.b32.xlu0 %v1883, 28
        %v1974 = vpop.permute.xlu0 %1973
        %1975 = vrot.lane.b32.xlu0 %v1884, 28
        %v1976 = vpop.permute.xlu0 %1975
        %1977 = vrot.lane.b32.xlu0 %v1885, 28
        %v1978 = vpop.permute.xlu0 %1977
        %1979 = vrot.lane.b32.xlu0 %v1886, 28
        %v1980 = vpop.permute.xlu0 %1979
        %1981 = vrot.lane.b32.xlu0 %v1887, 28
        %v1982 = vpop.permute.xlu0 %1981
        %1983 = vrot.lane.b32.xlu0 %v1888, 28
        %v1984 = vpop.permute.xlu0 %1983
        %vm2017 = vcmask 257248
        %2018 = vst.msk [vmem:[#allocation3] sm:$0xf] %vm2017, %v1922
        %2019 = vst.msk [vmem:[#allocation3 + $0x4] sm:$0xf] %vm2017, %v1924
        %2020 = vst.msk [vmem:[#allocation3 + $0x8] sm:$0xf] %vm2017, %v1926
        %2021 = vst.msk [vmem:[#allocation3 + $0xc] sm:$0xf] %vm2017, %v1928
        %2022 = vst.msk [vmem:[#allocation3 + $0x10] sm:$0xf] %vm2017, %v1930
        %2023 = vst.msk [vmem:[#allocation3 + $0x14] sm:$0xf] %vm2017, %v1932
        %2024 = vst.msk [vmem:[#allocation3 + $0x18] sm:$0xf] %vm2017, %v1934
        %2025 = vst.msk [vmem:[#allocation3 + $0x1c] sm:$0xf] %vm2017, %v1936
        %2026 = vst.msk [vmem:[#allocation3 + $0x20] sm:$0xf] %vm2017, %v1938
        %2027 = vst.msk [vmem:[#allocation3 + $0x24] sm:$0xf] %vm2017, %v1940
        %2028 = vst.msk [vmem:[#allocation3 + $0x28] sm:$0xf] %vm2017, %v1942
        %2029 = vst.msk [vmem:[#allocation3 + $0x2c] sm:$0xf] %vm2017, %v1944
        %2030 = vst.msk [vmem:[#allocation3 + $0x30] sm:$0xf] %vm2017, %v1946
        %2031 = vst.msk [vmem:[#allocation3 + $0x34] sm:$0xf] %vm2017, %v1948
        %2032 = vst.msk [vmem:[#allocation3 + $0x38] sm:$0xf] %vm2017, %v1950
        %2033 = vst.msk [vmem:[#allocation3 + $0x3c] sm:$0xf] %vm2017, %v1952
        %2034 = vst.msk [vmem:[#allocation3 + $0x40] sm:$0xf] %vm2017, %v1954
        %2035 = vst.msk [vmem:[#allocation3 + $0x44] sm:$0xf] %vm2017, %v1956
        %2036 = vst.msk [vmem:[#allocation3 + $0x48] sm:$0xf] %vm2017, %v1958
        %2037 = vst.msk [vmem:[#allocation3 + $0x4c] sm:$0xf] %vm2017, %v1960
        %2038 = vst.msk [vmem:[#allocation3 + $0x50] sm:$0xf] %vm2017, %v1962
        %2039 = vst.msk [vmem:[#allocation3 + $0x54] sm:$0xf] %vm2017, %v1964
        %2040 = vst.msk [vmem:[#allocation3 + $0x58] sm:$0xf] %vm2017, %v1966
        %2041 = vst.msk [vmem:[#allocation3 + $0x5c] sm:$0xf] %vm2017, %v1968
        %2042 = vst.msk [vmem:[#allocation3 + $0x60] sm:$0xf] %vm2017, %v1970
        %2043 = vst.msk [vmem:[#allocation3 + $0x64] sm:$0xf] %vm2017, %v1972
        %2044 = vst.msk [vmem:[#allocation3 + $0x68] sm:$0xf] %vm2017, %v1974
        %2045 = vst.msk [vmem:[#allocation3 + $0x6c] sm:$0xf] %vm2017, %v1976
        %2046 = vst.msk [vmem:[#allocation3 + $0x70] sm:$0xf] %vm2017, %v1978
        %2047 = vst.msk [vmem:[#allocation3 + $0x74] sm:$0xf] %vm2017, %v1980
        %2048 = vst.msk [vmem:[#allocation3 + $0x78] sm:$0xf] %vm2017, %v1982
        %2049 = vst.msk [vmem:[#allocation3 + $0x7c] sm:$0xf] %vm2017, %v1984
        %v2050 = vld [vmem:[%s1599 + $0x2] sm:$0xff]
        %v2051 = vld [vmem:[%s1599 + $0xa] sm:$0xff]
        %v2052 = vld [vmem:[%s1599 + $0x1a] sm:$0xff]
        %v2053 = vld [vmem:[%s1599 + $0x22] sm:$0xff]
        %v2054 = vld [vmem:[%s1599 + $0x32] sm:$0xff]
        %v2055 = vld [vmem:[%s1599 + $0x3a] sm:$0xff]
        %v2056 = vld [vmem:[%s1599 + $0x4a] sm:$0xff]
        %v2057 = vld [vmem:[%s1599 + $0x52] sm:$0xff]
        %v2058 = vld [vmem:[%s1599 + $0x62] sm:$0xff]
        %v2059 = vld [vmem:[%s1599 + $0x6a] sm:$0xff]
        %v2060 = vld [vmem:[%s1599 + $0x7a] sm:$0xff]
        %v2061 = vld [vmem:[%s1599 + $0x82] sm:$0xff]
        %v2062 = vld [vmem:[%s1599 + $0x92] sm:$0xff]
        %v2063 = vld [vmem:[%s1599 + $0x9a] sm:$0xff]
        %v2064 = vld [vmem:[%s1599 + $0xaa] sm:$0xff]
        %v2065 = vld [vmem:[%s1599 + $0xb2] sm:$0xff]
        %v2066 = vld [vmem:[%s1599 + $0xc2] sm:$0xff]
        %v2067 = vld [vmem:[%s1599 + $0xca] sm:$0xff]
        %v2068 = vld [vmem:[%s1599 + $0xda] sm:$0xff]
        %v2069 = vld [vmem:[%s1599 + $0xe2] sm:$0xff]
        %v2070 = vld [vmem:[%s1599 + $0xf2] sm:$0xff]
        %v2071 = vld [vmem:[%s1599 + $0xfa] sm:$0xff]
        %v2072 = vld [vmem:[%s1599 + $0x10a] sm:$0xff]
        %v2073 = vld [vmem:[%s1599 + $0x112] sm:$0xff]
        %v2074 = vld [vmem:[%s1599 + $0x122] sm:$0xff]
        %v2075 = vld [vmem:[%s1599 + $0x12a] sm:$0xff]
        %v2076 = vld [vmem:[%s1599 + $0x13a] sm:$0xff]
        %v2077 = vld [vmem:[%s1599 + $0x142] sm:$0xff]
        %v2078 = vld [vmem:[%s1599 + $0x152] sm:$0xff]
        %v2079 = vld [vmem:[%s1599 + $0x15a] sm:$0xff]
        %v2080 = vld [vmem:[%s1599 + $0x16a] sm:$0xff]
        %v2081 = vld [vmem:[%s1599 + $0x172] sm:$0xff]
        %v2082 = vpack.c.bf16 %v2050, %v2050
        %v2083 = vpack.c.bf16 %v2051, %v2051
        %v2084 = vpack.c.bf16 %v2052, %v2052
        %v2085 = vpack.c.bf16 %v2053, %v2053
        %v2086 = vpack.c.bf16 %v2054, %v2054
        %v2087 = vpack.c.bf16 %v2055, %v2055
        %v2088 = vpack.c.bf16 %v2056, %v2056
        %v2089 = vpack.c.bf16 %v2057, %v2057
        %v2090 = vpack.c.bf16 %v2058, %v2058
        %v2091 = vpack.c.bf16 %v2059, %v2059
        %v2092 = vpack.c.bf16 %v2060, %v2060
        %v2093 = vpack.c.bf16 %v2061, %v2061
        %v2094 = vpack.c.bf16 %v2062, %v2062
        %v2095 = vpack.c.bf16 %v2063, %v2063
        %v2096 = vpack.c.bf16 %v2064, %v2064
        %v2097 = vpack.c.bf16 %v2065, %v2065
        %v2098 = vpack.c.bf16 %v2066, %v2066
        %v2099 = vpack.c.bf16 %v2067, %v2067
        %v2100 = vpack.c.bf16 %v2068, %v2068
        %v2101 = vpack.c.bf16 %v2069, %v2069
        %v2102 = vpack.c.bf16 %v2070, %v2070
        %v2103 = vpack.c.bf16 %v2071, %v2071
        %v2104 = vpack.c.bf16 %v2072, %v2072
        %v2105 = vpack.c.bf16 %v2073, %v2073
        %v2106 = vpack.c.bf16 %v2074, %v2074
        %v2107 = vpack.c.bf16 %v2075, %v2075
        %v2108 = vpack.c.bf16 %v2076, %v2076
        %v2109 = vpack.c.bf16 %v2077, %v2077
        %v2110 = vpack.c.bf16 %v2078, %v2078
        %v2111 = vpack.c.bf16 %v2079, %v2079
        %v2112 = vpack.c.bf16 %v2080, %v2080
        %v2113 = vpack.c.bf16 %v2081, %v2081
        %2146 = vrot.lane.b32.xlu0 %v2082, 32
        %v2147 = vpop.permute.xlu0 %2146
        %2148 = vrot.lane.b32.xlu0 %v2083, 32
        %v2149 = vpop.permute.xlu0 %2148
        %2150 = vrot.lane.b32.xlu0 %v2084, 32
        %v2151 = vpop.permute.xlu0 %2150
        %2152 = vrot.lane.b32.xlu0 %v2085, 32
        %v2153 = vpop.permute.xlu0 %2152
        %2154 = vrot.lane.b32.xlu0 %v2086, 32
        %v2155 = vpop.permute.xlu0 %2154
        %2156 = vrot.lane.b32.xlu0 %v2087, 32
        %v2157 = vpop.permute.xlu0 %2156
        %2158 = vrot.lane.b32.xlu0 %v2088, 32
        %v2159 = vpop.permute.xlu0 %2158
        %2160 = vrot.lane.b32.xlu0 %v2089, 32
        %v2161 = vpop.permute.xlu0 %2160
        %2162 = vrot.lane.b32.xlu0 %v2090, 32
        %v2163 = vpop.permute.xlu0 %2162
        %2164 = vrot.lane.b32.xlu0 %v2091, 32
        %v2165 = vpop.permute.xlu0 %2164
        %2166 = vrot.lane.b32.xlu0 %v2092, 32
        %v2167 = vpop.permute.xlu0 %2166
        %2168 = vrot.lane.b32.xlu0 %v2093, 32
        %v2169 = vpop.permute.xlu0 %2168
        %2170 = vrot.lane.b32.xlu0 %v2094, 32
        %v2171 = vpop.permute.xlu0 %2170
        %2172 = vrot.lane.b32.xlu0 %v2095, 32
        %v2173 = vpop.permute.xlu0 %2172
        %2174 = vrot.lane.b32.xlu0 %v2096, 32
        %v2175 = vpop.permute.xlu0 %2174
        %2176 = vrot.lane.b32.xlu0 %v2097, 32
        %v2177 = vpop.permute.xlu0 %2176
        %2178 = vrot.lane.b32.xlu0 %v2098, 32
        %v2179 = vpop.permute.xlu0 %2178
        %2180 = vrot.lane.b32.xlu0 %v2099, 32
        %v2181 = vpop.permute.xlu0 %2180
        %2182 = vrot.lane.b32.xlu0 %v2100, 32
        %v2183 = vpop.permute.xlu0 %2182
        %2184 = vrot.lane.b32.xlu0 %v2101, 32
        %v2185 = vpop.permute.xlu0 %2184
        %2186 = vrot.lane.b32.xlu0 %v2102, 32
        %v2187 = vpop.permute.xlu0 %2186
        %2188 = vrot.lane.b32.xlu0 %v2103, 32
        %v2189 = vpop.permute.xlu0 %2188
        %2190 = vrot.lane.b32.xlu0 %v2104, 32
        %v2191 = vpop.permute.xlu0 %2190
        %2192 = vrot.lane.b32.xlu0 %v2105, 32
        %v2193 = vpop.permute.xlu0 %2192
        %2194 = vrot.lane.b32.xlu0 %v2106, 32
        %v2195 = vpop.permute.xlu0 %2194
        %2196 = vrot.lane.b32.xlu0 %v2107, 32
        %v2197 = vpop.permute.xlu0 %2196
        %2198 = vrot.lane.b32.xlu0 %v2108, 32
        %v2199 = vpop.permute.xlu0 %2198
        %2200 = vrot.lane.b32.xlu0 %v2109, 32
        %v2201 = vpop.permute.xlu0 %2200
        %2202 = vrot.lane.b32.xlu0 %v2110, 32
        %v2203 = vpop.permute.xlu0 %2202
        %2204 = vrot.lane.b32.xlu0 %v2111, 32
        %v2205 = vpop.permute.xlu0 %2204
        %2206 = vrot.lane.b32.xlu0 %v2112, 32
        %v2207 = vpop.permute.xlu0 %2206
        %2208 = vrot.lane.b32.xlu0 %v2113, 32
        %v2209 = vpop.permute.xlu0 %2208
        %vm2242 = vcmask 290048
        %2243 = vst.msk [vmem:[#allocation3] sm:$0xf] %vm2242, %v2147
        %2244 = vst.msk [vmem:[#allocation3 + $0x4] sm:$0xf] %vm2242, %v2149
        %2245 = vst.msk [vmem:[#allocation3 + $0x8] sm:$0xf] %vm2242, %v2151
        %2246 = vst.msk [vmem:[#allocation3 + $0xc] sm:$0xf] %vm2242, %v2153
        %2247 = vst.msk [vmem:[#allocation3 + $0x10] sm:$0xf] %vm2242, %v2155
        %2248 = vst.msk [vmem:[#allocation3 + $0x14] sm:$0xf] %vm2242, %v2157
        %2249 = vst.msk [vmem:[#allocation3 + $0x18] sm:$0xf] %vm2242, %v2159
        %2250 = vst.msk [vmem:[#allocation3 + $0x1c] sm:$0xf] %vm2242, %v2161
        %2251 = vst.msk [vmem:[#allocation3 + $0x20] sm:$0xf] %vm2242, %v2163
        %2252 = vst.msk [vmem:[#allocation3 + $0x24] sm:$0xf] %vm2242, %v2165
        %2253 = vst.msk [vmem:[#allocation3 + $0x28] sm:$0xf] %vm2242, %v2167
        %2254 = vst.msk [vmem:[#allocation3 + $0x2c] sm:$0xf] %vm2242, %v2169
        %2255 = vst.msk [vmem:[#allocation3 + $0x30] sm:$0xf] %vm2242, %v2171
        %2256 = vst.msk [vmem:[#allocation3 + $0x34] sm:$0xf] %vm2242, %v2173
        %2257 = vst.msk [vmem:[#allocation3 + $0x38] sm:$0xf] %vm2242, %v2175
        %2258 = vst.msk [vmem:[#allocation3 + $0x3c] sm:$0xf] %vm2242, %v2177
        %2259 = vst.msk [vmem:[#allocation3 + $0x40] sm:$0xf] %vm2242, %v2179
        %2260 = vst.msk [vmem:[#allocation3 + $0x44] sm:$0xf] %vm2242, %v2181
        %2261 = vst.msk [vmem:[#allocation3 + $0x48] sm:$0xf] %vm2242, %v2183
        %2262 = vst.msk [vmem:[#allocation3 + $0x4c] sm:$0xf] %vm2242, %v2185
        %2263 = vst.msk [vmem:[#allocation3 + $0x50] sm:$0xf] %vm2242, %v2187
        %2264 = vst.msk [vmem:[#allocation3 + $0x54] sm:$0xf] %vm2242, %v2189
        %2265 = vst.msk [vmem:[#allocation3 + $0x58] sm:$0xf] %vm2242, %v2191
        %2266 = vst.msk [vmem:[#allocation3 + $0x5c] sm:$0xf] %vm2242, %v2193
        %2267 = vst.msk [vmem:[#allocation3 + $0x60] sm:$0xf] %vm2242, %v2195
        %2268 = vst.msk [vmem:[#allocation3 + $0x64] sm:$0xf] %vm2242, %v2197
        %2269 = vst.msk [vmem:[#allocation3 + $0x68] sm:$0xf] %vm2242, %v2199
        %2270 = vst.msk [vmem:[#allocation3 + $0x6c] sm:$0xf] %vm2242, %v2201
        %2271 = vst.msk [vmem:[#allocation3 + $0x70] sm:$0xf] %vm2242, %v2203
        %2272 = vst.msk [vmem:[#allocation3 + $0x74] sm:$0xf] %vm2242, %v2205
        %2273 = vst.msk [vmem:[#allocation3 + $0x78] sm:$0xf] %vm2242, %v2207
        %2274 = vst.msk [vmem:[#allocation3 + $0x7c] sm:$0xf] %vm2242, %v2209
        %v2275 = vld [vmem:[#allocation3] sm:$0xf]
        %v2276 = vld [vmem:[#allocation3 + $0x4] sm:$0xf]
        %v2277 = vld [vmem:[#allocation3 + $0x8] sm:$0xf]
        %v2278 = vld [vmem:[#allocation3 + $0xc] sm:$0xf]
        %v2279 = vld [vmem:[#allocation3 + $0x10] sm:$0xf]
        %v2280 = vld [vmem:[#allocation3 + $0x14] sm:$0xf]
        %v2281 = vld [vmem:[#allocation3 + $0x18] sm:$0xf]
        %v2282 = vld [vmem:[#allocation3 + $0x1c] sm:$0xf]
        %v2283 = vld [vmem:[#allocation3 + $0x20] sm:$0xf]
        %v2284 = vld [vmem:[#allocation3 + $0x24] sm:$0xf]
        %v2285 = vld [vmem:[#allocation3 + $0x28] sm:$0xf]
        %v2286 = vld [vmem:[#allocation3 + $0x2c] sm:$0xf]
        %v2287 = vld [vmem:[#allocation3 + $0x30] sm:$0xf]
        %v2288 = vld [vmem:[#allocation3 + $0x34] sm:$0xf]
        %v2289 = vld [vmem:[#allocation3 + $0x38] sm:$0xf]
        %v2290 = vld [vmem:[#allocation3 + $0x3c] sm:$0xf]
        %v2291 = vld [vmem:[#allocation3 + $0x40] sm:$0xf]
        %v2292 = vld [vmem:[#allocation3 + $0x44] sm:$0xf]
        %v2293 = vld [vmem:[#allocation3 + $0x48] sm:$0xf]
        %v2294 = vld [vmem:[#allocation3 + $0x4c] sm:$0xf]
        %v2295 = vld [vmem:[#allocation3 + $0x50] sm:$0xf]
        %v2296 = vld [vmem:[#allocation3 + $0x54] sm:$0xf]
        %v2297 = vld [vmem:[#allocation3 + $0x58] sm:$0xf]
        %v2298 = vld [vmem:[#allocation3 + $0x5c] sm:$0xf]
        %v2299 = vld [vmem:[#allocation3 + $0x60] sm:$0xf]
        %v2300 = vld [vmem:[#allocation3 + $0x64] sm:$0xf]
        %v2301 = vld [vmem:[#allocation3 + $0x68] sm:$0xf]
        %v2302 = vld [vmem:[#allocation3 + $0x6c] sm:$0xf]
        %v2303 = vld [vmem:[#allocation3 + $0x70] sm:$0xf]
        %v2304 = vld [vmem:[#allocation3 + $0x74] sm:$0xf]
        %v2305 = vld [vmem:[#allocation3 + $0x78] sm:$0xf]
        %v2306 = vld [vmem:[#allocation3 + $0x7c] sm:$0xf]
        %v2307 = vld [vmem:[%s1] sm:$0xf]
        %v2308 = vld [vmem:[%s1 + $0x4] sm:$0xf]
        %v2309 = vld [vmem:[%s1 + $0x8] sm:$0xf]
        %v2310 = vld [vmem:[%s1 + $0xc] sm:$0xf]
        %v2311 = vld [vmem:[%s1 + $0x10] sm:$0x3]
        %v2312 = vld [vmem:[#allocation6] sm:$0x1]
        %v2314 = vperm.slane %v2312, 0
        %v2348 = vunpack.c.l.b16 %v2275
        %v2349 = vunpack.c.l.b16 %v2276
        %v2350 = vunpack.c.l.b16 %v2277
        %v2351 = vunpack.c.l.b16 %v2278
        %v2352 = vunpack.c.l.b16 %v2279
        %v2353 = vunpack.c.l.b16 %v2280
        %v2354 = vunpack.c.l.b16 %v2281
        %v2355 = vunpack.c.l.b16 %v2282
        %v2356 = vunpack.c.l.b16 %v2283
        %v2357 = vunpack.c.l.b16 %v2284
        %v2358 = vunpack.c.l.b16 %v2285
        %v2359 = vunpack.c.l.b16 %v2286
        %v2360 = vunpack.c.l.b16 %v2287
        %v2361 = vunpack.c.l.b16 %v2288
        %v2362 = vunpack.c.l.b16 %v2289
        %v2363 = vunpack.c.l.b16 %v2290
        %v2364 = vunpack.c.l.b16 %v2291
        %v2365 = vunpack.c.l.b16 %v2292
        %v2366 = vunpack.c.l.b16 %v2293
        %v2367 = vunpack.c.l.b16 %v2294
        %v2368 = vunpack.c.l.b16 %v2295
        %v2369 = vunpack.c.l.b16 %v2296
        %v2370 = vunpack.c.l.b16 %v2297
        %v2371 = vunpack.c.l.b16 %v2298
        %v2372 = vunpack.c.l.b16 %v2299
        %v2373 = vunpack.c.l.b16 %v2300
        %v2374 = vunpack.c.l.b16 %v2301
        %v2375 = vunpack.c.l.b16 %v2302
        %v2376 = vunpack.c.l.b16 %v2303
        %v2377 = vunpack.c.l.b16 %v2304
        %v2378 = vunpack.c.l.b16 %v2305
        %v2379 = vunpack.c.l.b16 %v2306
        %v2380 = vpack.c.b16 %v2349, %v2348
        %v2381 = vpack.c.b16 %v2351, %v2350
        %v2382 = vpack.c.b16 %v2353, %v2352
        %v2383 = vpack.c.b16 %v2355, %v2354
        %v2384 = vpack.c.b16 %v2357, %v2356
        %v2385 = vpack.c.b16 %v2359, %v2358
        %v2386 = vpack.c.b16 %v2361, %v2360
        %v2387 = vpack.c.b16 %v2363, %v2362
        %v2388 = vpack.c.b16 %v2365, %v2364
        %v2389 = vpack.c.b16 %v2367, %v2366
        %v2390 = vpack.c.b16 %v2369, %v2368
        %v2391 = vpack.c.b16 %v2371, %v2370
        %v2392 = vpack.c.b16 %v2373, %v2372
        %v2393 = vpack.c.b16 %v2375, %v2374
        %v2394 = vpack.c.b16 %v2377, %v2376
        %v2395 = vpack.c.b16 %v2379, %v2378
        %v2401 = vunpack.c.l.b16 %v2307
        %v2402 = vunpack.c.l.b16 %v2308
        %v2403 = vunpack.c.l.b16 %v2309
        %v2404 = vunpack.c.l.b16 %v2310
        %v2405 = vunpack.c.l.b16 %v2311
        %v2406 = vpack.c.b16 %v2402, %v2401
        %v2407 = vpack.c.b16 %v2404, %v2403
        %v2408 = vpack.c.b16 %v2405, %v2405
        %vm2411 = vcmask 293888
        %v2413 = vsel %vm2411, %v2380, 0
        %v2416 = vsel %vm2411, %v2381, 0
        %v2419 = vsel %vm2411, %v2382, 0
        %v2422 = vsel %vm2411, %v2383, 0
        %v2425 = vsel %vm2411, %v2384, 0
        %v2428 = vsel %vm2411, %v2385, 0
        %v2431 = vsel %vm2411, %v2386, 0
        %v2434 = vsel %vm2411, %v2387, 0
        %v2437 = vsel %vm2411, %v2388, 0
        %v2440 = vsel %vm2411, %v2389, 0
        %v2443 = vsel %vm2411, %v2390, 0
        %v2446 = vsel %vm2411, %v2391, 0
        %v2449 = vsel %vm2411, %v2392, 0
        %v2452 = vsel %vm2411, %v2393, 0
        %v2455 = vsel %vm2411, %v2394, 0
        %v2458 = vsel %vm2411, %v2395, 0
        %vm2460 = vcmask 1041408
        %v2462 = vsel %vm2460, %v2408, 0
        %2464 = vmatpush.bf16.msra.mxu0 0
        %2465 = vmatpush.bf16.msra.mxu0 0
        %2466 = vmatpush.bf16.msra.mxu0 0
        %2467 = vmatpush.bf16.msra.mxu0 0
        %2468 = vmatpush.bf16.msra.mxu0 0
        %2469 = vmatpush.bf16.msra.mxu0 %v2462
        %2470 = vmatpush.bf16.msra.mxu0 %v2407
        %2471 = vmatpush.bf16.msra.mxu0 %v2406
        %2472 = vmatmul.bf16.gmra.mxu0 %v2413
        %v2473 = vpop.f32.mrf.mxu0
        %v2474 = vadd.f32 %v2314, %v2473
        %v2475 = vpop.f32.mrf.mxu0
        %v2476 = vadd.f32 %v2314, %v2475
        %2477 = vmatmul.bf16.gmra.mxu0 %v2416
        %v2478 = vpop.f32.mrf.mxu0
        %v2479 = vadd.f32 %v2314, %v2478
        %v2480 = vpop.f32.mrf.mxu0
        %v2481 = vadd.f32 %v2314, %v2480
        %2482 = vmatmul.bf16.gmra.mxu0 %v2419
        %v2483 = vpop.f32.mrf.mxu0
        %v2484 = vadd.f32 %v2314, %v2483
        %v2485 = vpop.f32.mrf.mxu0
        %v2486 = vadd.f32 %v2314, %v2485
        %2487 = vmatmul.bf16.gmra.mxu0 %v2422
        %v2488 = vpop.f32.mrf.mxu0
        %v2489 = vadd.f32 %v2314, %v2488
        %v2490 = vpop.f32.mrf.mxu0
        %v2491 = vadd.f32 %v2314, %v2490
        %2492 = vmatmul.bf16.gmra.mxu0 %v2425
        %v2493 = vpop.f32.mrf.mxu0
        %v2494 = vadd.f32 %v2314, %v2493
        %v2495 = vpop.f32.mrf.mxu0
        %v2496 = vadd.f32 %v2314, %v2495
        %2497 = vmatmul.bf16.gmra.mxu0 %v2428
        %v2498 = vpop.f32.mrf.mxu0
        %v2499 = vadd.f32 %v2314, %v2498
        %v2500 = vpop.f32.mrf.mxu0
        %v2501 = vadd.f32 %v2314, %v2500
        %2502 = vmatmul.bf16.gmra.mxu0 %v2431
        %v2503 = vpop.f32.mrf.mxu0
        %v2504 = vadd.f32 %v2314, %v2503
        %v2505 = vpop.f32.mrf.mxu0
        %v2506 = vadd.f32 %v2314, %v2505
        %2507 = vmatmul.bf16.gmra.mxu0 %v2434
        %v2508 = vpop.f32.mrf.mxu0
        %v2509 = vadd.f32 %v2314, %v2508
        %v2510 = vpop.f32.mrf.mxu0
        %v2511 = vadd.f32 %v2314, %v2510
        %2512 = vmatmul.bf16.gmra.mxu0 %v2437
        %v2513 = vpop.f32.mrf.mxu0
        %v2514 = vadd.f32 %v2314, %v2513
        %v2515 = vpop.f32.mrf.mxu0
        %v2516 = vadd.f32 %v2314, %v2515
        %2517 = vmatmul.bf16.gmra.mxu0 %v2440
        %v2518 = vpop.f32.mrf.mxu0
        %v2519 = vadd.f32 %v2314, %v2518
        %v2520 = vpop.f32.mrf.mxu0
        %v2521 = vadd.f32 %v2314, %v2520
        %2522 = vmatmul.bf16.gmra.mxu0 %v2443
        %v2523 = vpop.f32.mrf.mxu0
        %v2524 = vadd.f32 %v2314, %v2523
        %v2525 = vpop.f32.mrf.mxu0
        %v2526 = vadd.f32 %v2314, %v2525
        %2527 = vmatmul.bf16.gmra.mxu0 %v2446
        %v2528 = vpop.f32.mrf.mxu0
        %v2529 = vadd.f32 %v2314, %v2528
        %v2530 = vpop.f32.mrf.mxu0
        %v2531 = vadd.f32 %v2314, %v2530
        %2532 = vmatmul.bf16.gmra.mxu0 %v2449
        %v2533 = vpop.f32.mrf.mxu0
        %v2534 = vadd.f32 %v2314, %v2533
        %v2535 = vpop.f32.mrf.mxu0
        %v2536 = vadd.f32 %v2314, %v2535
        %2537 = vmatmul.bf16.gmra.mxu0 %v2452
        %v2538 = vpop.f32.mrf.mxu0
        %v2539 = vadd.f32 %v2314, %v2538
        %v2540 = vpop.f32.mrf.mxu0
        %v2541 = vadd.f32 %v2314, %v2540
        %2542 = vmatmul.bf16.gmra.mxu0 %v2455
        %v2543 = vpop.f32.mrf.mxu0
        %v2544 = vadd.f32 %v2314, %v2543
        %v2545 = vpop.f32.mrf.mxu0
        %v2546 = vadd.f32 %v2314, %v2545
        %2547 = vmatmul.bf16.gmra.mxu0 %v2458
        %v2548 = vpop.f32.mrf.mxu0
        %v2549 = vadd.f32 %v2314, %v2548
        %v2550 = vpop.f32.mrf.mxu0
        %v2551 = vadd.f32 %v2314, %v2550
        %2552 = vdwg.mxu0
        %v2553 = vmax.f32 %v2474, 0.0
        %v2554 = vmax.f32 %v2476, 0.0
        %v2555 = vmax.f32 %v2479, 0.0
        %v2556 = vmax.f32 %v2481, 0.0
        %v2557 = vmax.f32 %v2484, 0.0
        %v2558 = vmax.f32 %v2486, 0.0
        %v2559 = vmax.f32 %v2489, 0.0
        %v2560 = vmax.f32 %v2491, 0.0
        %v2561 = vmax.f32 %v2494, 0.0
        %v2562 = vmax.f32 %v2496, 0.0
        %v2563 = vmax.f32 %v2499, 0.0
        %v2564 = vmax.f32 %v2501, 0.0
        %v2565 = vmax.f32 %v2504, 0.0
        %v2566 = vmax.f32 %v2506, 0.0
        %v2567 = vmax.f32 %v2509, 0.0
        %v2568 = vmax.f32 %v2511, 0.0
        %v2569 = vmax.f32 %v2514, 0.0
        %v2570 = vmax.f32 %v2516, 0.0
        %v2571 = vmax.f32 %v2519, 0.0
        %v2572 = vmax.f32 %v2521, 0.0
        %v2573 = vmax.f32 %v2524, 0.0
        %v2574 = vmax.f32 %v2526, 0.0
        %v2575 = vmax.f32 %v2529, 0.0
        %v2576 = vmax.f32 %v2531, 0.0
        %v2577 = vmax.f32 %v2534, 0.0
        %v2578 = vmax.f32 %v2536, 0.0
        %v2579 = vmax.f32 %v2539, 0.0
        %v2580 = vmax.f32 %v2541, 0.0
        %v2581 = vmax.f32 %v2544, 0.0
        %v2582 = vmax.f32 %v2546, 0.0
        %v2583 = vmax.f32 %v2549, 0.0
        %v2584 = vmax.f32 %v2551, 0.0
        %vm2585 = vcmask 64512
        %2586 = vst.msk [vmem:[#allocation4] sm:$0xff] %vm2585, 0.0
        %2587 = vst.msk [vmem:[#allocation4 + $0x8] sm:$0xff] %vm2585, 0.0
        %vm2588 = vcmask 58368
        %2589 = vst.msk [vmem:[#allocation4 + $0x10] sm:$0x3] %vm2588, 0.0
        %2590 = vst.msk [vmem:[#allocation4 + $0x18] sm:$0xff] %vm2585, 0.0
        %2591 = vst.msk [vmem:[#allocation4 + $0x20] sm:$0xff] %vm2585, 0.0
        %2592 = vst.msk [vmem:[#allocation4 + $0x28] sm:$0x3] %vm2588, 0.0
        %2593 = vst.msk [vmem:[#allocation4 + $0x30] sm:$0xff] %vm2585, 0.0
        %2594 = vst.msk [vmem:[#allocation4 + $0x38] sm:$0xff] %vm2585, 0.0
        %2595 = vst.msk [vmem:[#allocation4 + $0x40] sm:$0x3] %vm2588, 0.0
        %2596 = vst.msk [vmem:[#allocation4 + $0x48] sm:$0xff] %vm2585, 0.0
        %2597 = vst.msk [vmem:[#allocation4 + $0x50] sm:$0xff] %vm2585, 0.0
        %2598 = vst.msk [vmem:[#allocation4 + $0x58] sm:$0x3] %vm2588, 0.0
        %2599 = vst.msk [vmem:[#allocation4 + $0x60] sm:$0xff] %vm2585, 0.0
        %2600 = vst.msk [vmem:[#allocation4 + $0x68] sm:$0xff] %vm2585, 0.0
        %2601 = vst.msk [vmem:[#allocation4 + $0x70] sm:$0x3] %vm2588, 0.0
        %2602 = vst.msk [vmem:[#allocation4 + $0x78] sm:$0xff] %vm2585, 0.0
        %2603 = vst.msk [vmem:[#allocation4 + $0x80] sm:$0xff] %vm2585, 0.0
        %2604 = vst.msk [vmem:[#allocation4 + $0x88] sm:$0x3] %vm2588, 0.0
        %2605 = vst.msk [vmem:[#allocation4 + $0x90] sm:$0xff] %vm2585, 0.0
        %2606 = vst.msk [vmem:[#allocation4 + $0x98] sm:$0xff] %vm2585, 0.0
        %2607 = vst.msk [vmem:[#allocation4 + $0xa0] sm:$0x3] %vm2588, 0.0
        %2608 = vst.msk [vmem:[#allocation4 + $0xa8] sm:$0xff] %vm2585, 0.0
        %2609 = vst.msk [vmem:[#allocation4 + $0xb0] sm:$0xff] %vm2585, 0.0
        %2610 = vst.msk [vmem:[#allocation4 + $0xb8] sm:$0x3] %vm2588, 0.0
        %2611 = vst.msk [vmem:[#allocation4 + $0xc0] sm:$0xff] %vm2585, 0.0
        %2612 = vst.msk [vmem:[#allocation4 + $0xc8] sm:$0xff] %vm2585, 0.0
        %2613 = vst.msk [vmem:[#allocation4 + $0xd0] sm:$0x3] %vm2588, 0.0
        %2614 = vst.msk [vmem:[#allocation4 + $0xd8] sm:$0xff] %vm2585, 0.0
        %2615 = vst.msk [vmem:[#allocation4 + $0xe0] sm:$0xff] %vm2585, 0.0
        %2616 = vst.msk [vmem:[#allocation4 + $0xe8] sm:$0x3] %vm2588, 0.0
        %2617 = vst.msk [vmem:[#allocation4 + $0xf0] sm:$0xff] %vm2585, 0.0
        %2618 = vst.msk [vmem:[#allocation4 + $0xf8] sm:$0xff] %vm2585, 0.0
        %2619 = vst.msk [vmem:[#allocation4 + $0x100] sm:$0x3] %vm2588, 0.0
        %2620 = vst.msk [vmem:[#allocation4 + $0x108] sm:$0xff] %vm2585, 0.0
        %2621 = vst.msk [vmem:[#allocation4 + $0x110] sm:$0xff] %vm2585, 0.0
        %2622 = vst.msk [vmem:[#allocation4 + $0x118] sm:$0x3] %vm2588, 0.0
        %2623 = vst.msk [vmem:[#allocation4 + $0x120] sm:$0xff] %vm2585, 0.0
        %2624 = vst.msk [vmem:[#allocation4 + $0x128] sm:$0xff] %vm2585, 0.0
        %2625 = vst.msk [vmem:[#allocation4 + $0x130] sm:$0x3] %vm2588, 0.0
        %2626 = vst.msk [vmem:[#allocation4 + $0x138] sm:$0xff] %vm2585, 0.0
        %2627 = vst.msk [vmem:[#allocation4 + $0x140] sm:$0xff] %vm2585, 0.0
        %2628 = vst.msk [vmem:[#allocation4 + $0x148] sm:$0x3] %vm2588, 0.0
        %2629 = vst.msk [vmem:[#allocation4 + $0x150] sm:$0xff] %vm2585, 0.0
        %2630 = vst.msk [vmem:[#allocation4 + $0x158] sm:$0xff] %vm2585, 0.0
        %2631 = vst.msk [vmem:[#allocation4 + $0x160] sm:$0x3] %vm2588, 0.0
        %2632 = vst.msk [vmem:[#allocation4 + $0x168] sm:$0xff] %vm2585, 0.0
        %2633 = vst.msk [vmem:[#allocation4 + $0x170] sm:$0xff] %vm2585, 0.0
        %2634 = vst.msk [vmem:[#allocation4 + $0x178] sm:$0x3] %vm2588, 0.0
        %2635 = vst.msk [vmem:[#allocation4 + $0x180] sm:$0xff] %vm2585, 0.0
        %2636 = vst.msk [vmem:[#allocation4 + $0x188] sm:$0xff] %vm2585, 0.0
        %2637 = vst.msk [vmem:[#allocation4 + $0x190] sm:$0x3] %vm2588, 0.0
        %2638 = vst.msk [vmem:[#allocation4 + $0x198] sm:$0xff] %vm2585, 0.0
        %2639 = vst.msk [vmem:[#allocation4 + $0x1a0] sm:$0xff] %vm2585, 0.0
        %2640 = vst.msk [vmem:[#allocation4 + $0x1a8] sm:$0x3] %vm2588, 0.0
        %s2641 = scalar_lea.vmem [#allocation4], 24
        %2642 = vst.msk [vmem:[%s2641 + $0x1] sm:$0xff] %vm2585, %v2553
        %2643 = vst.msk [vmem:[%s2641 + $0x9] sm:$0xff] %vm2585, %v2554
        %2644 = vst.msk [vmem:[%s2641 + $0x19] sm:$0xff] %vm2585, %v2555
        %2645 = vst.msk [vmem:[%s2641 + $0x21] sm:$0xff] %vm2585, %v2556
        %2646 = vst.msk [vmem:[%s2641 + $0x31] sm:$0xff] %vm2585, %v2557
        %2647 = vst.msk [vmem:[%s2641 + $0x39] sm:$0xff] %vm2585, %v2558
        %2648 = vst.msk [vmem:[%s2641 + $0x49] sm:$0xff] %vm2585, %v2559
        %2649 = vst.msk [vmem:[%s2641 + $0x51] sm:$0xff] %vm2585, %v2560
        %2650 = vst.msk [vmem:[%s2641 + $0x61] sm:$0xff] %vm2585, %v2561
        %2651 = vst.msk [vmem:[%s2641 + $0x69] sm:$0xff] %vm2585, %v2562
        %2652 = vst.msk [vmem:[%s2641 + $0x79] sm:$0xff] %vm2585, %v2563
        %2653 = vst.msk [vmem:[%s2641 + $0x81] sm:$0xff] %vm2585, %v2564
        %2654 = vst.msk [vmem:[%s2641 + $0x91] sm:$0xff] %vm2585, %v2565
        %2655 = vst.msk [vmem:[%s2641 + $0x99] sm:$0xff] %vm2585, %v2566
        %2656 = vst.msk [vmem:[%s2641 + $0xa9] sm:$0xff] %vm2585, %v2567
        %2657 = vst.msk [vmem:[%s2641 + $0xb1] sm:$0xff] %vm2585, %v2568
        %2658 = vst.msk [vmem:[%s2641 + $0xc1] sm:$0xff] %vm2585, %v2569
        %2659 = vst.msk [vmem:[%s2641 + $0xc9] sm:$0xff] %vm2585, %v2570
        %2660 = vst.msk [vmem:[%s2641 + $0xd9] sm:$0xff] %vm2585, %v2571
        %2661 = vst.msk [vmem:[%s2641 + $0xe1] sm:$0xff] %vm2585, %v2572
        %2662 = vst.msk [vmem:[%s2641 + $0xf1] sm:$0xff] %vm2585, %v2573
        %2663 = vst.msk [vmem:[%s2641 + $0xf9] sm:$0xff] %vm2585, %v2574
        %2664 = vst.msk [vmem:[%s2641 + $0x109] sm:$0xff] %vm2585, %v2575
        %2665 = vst.msk [vmem:[%s2641 + $0x111] sm:$0xff] %vm2585, %v2576
        %2666 = vst.msk [vmem:[%s2641 + $0x121] sm:$0xff] %vm2585, %v2577
        %2667 = vst.msk [vmem:[%s2641 + $0x129] sm:$0xff] %vm2585, %v2578
        %2668 = vst.msk [vmem:[%s2641 + $0x139] sm:$0xff] %vm2585, %v2579
        %2669 = vst.msk [vmem:[%s2641 + $0x141] sm:$0xff] %vm2585, %v2580
        %2670 = vst.msk [vmem:[%s2641 + $0x151] sm:$0xff] %vm2585, %v2581
        %2671 = vst.msk [vmem:[%s2641 + $0x159] sm:$0xff] %vm2585, %v2582
        %2672 = vst.msk [vmem:[%s2641 + $0x169] sm:$0xff] %vm2585, %v2583
        %2673 = vst.msk [vmem:[%s2641 + $0x171] sm:$0xff] %vm2585, %v2584
        %v2674 = vld [vmem:[#allocation4] sm:$0xff]
        %v2675 = vld [vmem:[#allocation4 + $0x8] sm:$0xff]
        %v2676 = vld [vmem:[#allocation4 + $0x18] sm:$0xff]
        %v2677 = vld [vmem:[#allocation4 + $0x20] sm:$0xff]
        %v2678 = vld [vmem:[#allocation4 + $0x30] sm:$0xff]
        %v2679 = vld [vmem:[#allocation4 + $0x38] sm:$0xff]
        %v2680 = vld [vmem:[#allocation4 + $0x48] sm:$0xff]
        %v2681 = vld [vmem:[#allocation4 + $0x50] sm:$0xff]
        %v2682 = vld [vmem:[#allocation4 + $0x60] sm:$0xff]
        %v2683 = vld [vmem:[#allocation4 + $0x68] sm:$0xff]
        %v2684 = vld [vmem:[#allocation4 + $0x78] sm:$0xff]
        %v2685 = vld [vmem:[#allocation4 + $0x80] sm:$0xff]
        %v2686 = vld [vmem:[#allocation4 + $0x90] sm:$0xff]
        %v2687 = vld [vmem:[#allocation4 + $0x98] sm:$0xff]
        %v2688 = vld [vmem:[#allocation4 + $0xa8] sm:$0xff]
        %v2689 = vld [vmem:[#allocation4 + $0xb0] sm:$0xff]
        %v2690 = vld [vmem:[#allocation4 + $0xc0] sm:$0xff]
        %v2691 = vld [vmem:[#allocation4 + $0xc8] sm:$0xff]
        %v2692 = vld [vmem:[#allocation4 + $0xd8] sm:$0xff]
        %v2693 = vld [vmem:[#allocation4 + $0xe0] sm:$0xff]
        %v2694 = vld [vmem:[#allocation4 + $0xf0] sm:$0xff]
        %v2695 = vld [vmem:[#allocation4 + $0xf8] sm:$0xff]
        %v2696 = vld [vmem:[#allocation4 + $0x108] sm:$0xff]
        %v2697 = vld [vmem:[#allocation4 + $0x110] sm:$0xff]
        %v2698 = vld [vmem:[#allocation4 + $0x120] sm:$0xff]
        %v2699 = vld [vmem:[#allocation4 + $0x128] sm:$0xff]
        %v2700 = vld [vmem:[#allocation4 + $0x138] sm:$0xff]
        %v2701 = vld [vmem:[#allocation4 + $0x140] sm:$0xff]
        %v2702 = vld [vmem:[#allocation4 + $0x150] sm:$0xff]
        %v2703 = vld [vmem:[#allocation4 + $0x158] sm:$0xff]
        %v2704 = vld [vmem:[#allocation4 + $0x168] sm:$0xff]
        %v2705 = vld [vmem:[#allocation4 + $0x170] sm:$0xff]
        %v2706 = vpack.c.bf16 %v2674, %v2674
        %v2707 = vpack.c.bf16 %v2675, %v2675
        %v2708 = vpack.c.bf16 %v2676, %v2676
        %v2709 = vpack.c.bf16 %v2677, %v2677
        %v2710 = vpack.c.bf16 %v2678, %v2678
        %v2711 = vpack.c.bf16 %v2679, %v2679
        %v2712 = vpack.c.bf16 %v2680, %v2680
        %v2713 = vpack.c.bf16 %v2681, %v2681
        %v2714 = vpack.c.bf16 %v2682, %v2682
        %v2715 = vpack.c.bf16 %v2683, %v2683
        %v2716 = vpack.c.bf16 %v2684, %v2684
        %v2717 = vpack.c.bf16 %v2685, %v2685
        %v2718 = vpack.c.bf16 %v2686, %v2686
        %v2719 = vpack.c.bf16 %v2687, %v2687
        %v2720 = vpack.c.bf16 %v2688, %v2688
        %v2721 = vpack.c.bf16 %v2689, %v2689
        %v2722 = vpack.c.bf16 %v2690, %v2690
        %v2723 = vpack.c.bf16 %v2691, %v2691
        %v2724 = vpack.c.bf16 %v2692, %v2692
        %v2725 = vpack.c.bf16 %v2693, %v2693
        %v2726 = vpack.c.bf16 %v2694, %v2694
        %v2727 = vpack.c.bf16 %v2695, %v2695
        %v2728 = vpack.c.bf16 %v2696, %v2696
        %v2729 = vpack.c.bf16 %v2697, %v2697
        %v2730 = vpack.c.bf16 %v2698, %v2698
        %v2731 = vpack.c.bf16 %v2699, %v2699
        %v2732 = vpack.c.bf16 %v2700, %v2700
        %v2733 = vpack.c.bf16 %v2701, %v2701
        %v2734 = vpack.c.bf16 %v2702, %v2702
        %v2735 = vpack.c.bf16 %v2703, %v2703
        %v2736 = vpack.c.bf16 %v2704, %v2704
        %v2737 = vpack.c.bf16 %v2705, %v2705
        %vm2738 = vcmask 60416
        %2739 = vst.msk [vmem:[#allocation5] sm:$0xf] %vm2738, %v2706
        %2740 = vst.msk [vmem:[#allocation5 + $0x4] sm:$0xf] %vm2738, %v2707
        %2741 = vst.msk [vmem:[#allocation5 + $0x8] sm:$0xf] %vm2738, %v2708
        %2742 = vst.msk [vmem:[#allocation5 + $0xc] sm:$0xf] %vm2738, %v2709
        %2743 = vst.msk [vmem:[#allocation5 + $0x10] sm:$0xf] %vm2738, %v2710
        %2744 = vst.msk [vmem:[#allocation5 + $0x14] sm:$0xf] %vm2738, %v2711
        %2745 = vst.msk [vmem:[#allocation5 + $0x18] sm:$0xf] %vm2738, %v2712
        %2746 = vst.msk [vmem:[#allocation5 + $0x1c] sm:$0xf] %vm2738, %v2713
        %2747 = vst.msk [vmem:[#allocation5 + $0x20] sm:$0xf] %vm2738, %v2714
        %2748 = vst.msk [vmem:[#allocation5 + $0x24] sm:$0xf] %vm2738, %v2715
        %2749 = vst.msk [vmem:[#allocation5 + $0x28] sm:$0xf] %vm2738, %v2716
        %2750 = vst.msk [vmem:[#allocation5 + $0x2c] sm:$0xf] %vm2738, %v2717
        %2751 = vst.msk [vmem:[#allocation5 + $0x30] sm:$0xf] %vm2738, %v2718
        %2752 = vst.msk [vmem:[#allocation5 + $0x34] sm:$0xf] %vm2738, %v2719
        %2753 = vst.msk [vmem:[#allocation5 + $0x38] sm:$0xf] %vm2738, %v2720
        %2754 = vst.msk [vmem:[#allocation5 + $0x3c] sm:$0xf] %vm2738, %v2721
        %2755 = vst.msk [vmem:[#allocation5 + $0x40] sm:$0xf] %vm2738, %v2722
        %2756 = vst.msk [vmem:[#allocation5 + $0x44] sm:$0xf] %vm2738, %v2723
        %2757 = vst.msk [vmem:[#allocation5 + $0x48] sm:$0xf] %vm2738, %v2724
        %2758 = vst.msk [vmem:[#allocation5 + $0x4c] sm:$0xf] %vm2738, %v2725
        %2759 = vst.msk [vmem:[#allocation5 + $0x50] sm:$0xf] %vm2738, %v2726
        %2760 = vst.msk [vmem:[#allocation5 + $0x54] sm:$0xf] %vm2738, %v2727
        %2761 = vst.msk [vmem:[#allocation5 + $0x58] sm:$0xf] %vm2738, %v2728
        %2762 = vst.msk [vmem:[#allocation5 + $0x5c] sm:$0xf] %vm2738, %v2729
        %2763 = vst.msk [vmem:[#allocation5 + $0x60] sm:$0xf] %vm2738, %v2730
        %2764 = vst.msk [vmem:[#allocation5 + $0x64] sm:$0xf] %vm2738, %v2731
        %2765 = vst.msk [vmem:[#allocation5 + $0x68] sm:$0xf] %vm2738, %v2732
        %2766 = vst.msk [vmem:[#allocation5 + $0x6c] sm:$0xf] %vm2738, %v2733
        %2767 = vst.msk [vmem:[#allocation5 + $0x70] sm:$0xf] %vm2738, %v2734
        %2768 = vst.msk [vmem:[#allocation5 + $0x74] sm:$0xf] %vm2738, %v2735
        %2769 = vst.msk [vmem:[#allocation5 + $0x78] sm:$0xf] %vm2738, %v2736
        %2770 = vst.msk [vmem:[#allocation5 + $0x7c] sm:$0xf] %vm2738, %v2737
        %v2771 = vld [vmem:[#allocation4 + $0x1] sm:$0xff]
        %v2772 = vld [vmem:[#allocation4 + $0x9] sm:$0xff]
        %v2773 = vld [vmem:[#allocation4 + $0x19] sm:$0xff]
        %v2774 = vld [vmem:[#allocation4 + $0x21] sm:$0xff]
        %v2775 = vld [vmem:[#allocation4 + $0x31] sm:$0xff]
        %v2776 = vld [vmem:[#allocation4 + $0x39] sm:$0xff]
        %v2777 = vld [vmem:[#allocation4 + $0x49] sm:$0xff]
        %v2778 = vld [vmem:[#allocation4 + $0x51] sm:$0xff]
        %v2779 = vld [vmem:[#allocation4 + $0x61] sm:$0xff]
        %v2780 = vld [vmem:[#allocation4 + $0x69] sm:$0xff]
        %v2781 = vld [vmem:[#allocation4 + $0x79] sm:$0xff]
        %v2782 = vld [vmem:[#allocation4 + $0x81] sm:$0xff]
        %v2783 = vld [vmem:[#allocation4 + $0x91] sm:$0xff]
        %v2784 = vld [vmem:[#allocation4 + $0x99] sm:$0xff]
        %v2785 = vld [vmem:[#allocation4 + $0xa9] sm:$0xff]
        %v2786 = vld [vmem:[#allocation4 + $0xb1] sm:$0xff]
        %v2787 = vld [vmem:[#allocation4 + $0xc1] sm:$0xff]
        %v2788 = vld [vmem:[#allocation4 + $0xc9] sm:$0xff]
        %v2789 = vld [vmem:[#allocation4 + $0xd9] sm:$0xff]
        %v2790 = vld [vmem:[#allocation4 + $0xe1] sm:$0xff]
        %v2791 = vld [vmem:[#allocation4 + $0xf1] sm:$0xff]
        %v2792 = vld [vmem:[#allocation4 + $0xf9] sm:$0xff]
        %v2793 = vld [vmem:[#allocation4 + $0x109] sm:$0xff]
        %v2794 = vld [vmem:[#allocation4 + $0x111] sm:$0xff]
        %v2795 = vld [vmem:[#allocation4 + $0x121] sm:$0xff]
        %v2796 = vld [vmem:[#allocation4 + $0x129] sm:$0xff]
        %v2797 = vld [vmem:[#allocation4 + $0x139] sm:$0xff]
        %v2798 = vld [vmem:[#allocation4 + $0x141] sm:$0xff]
        %v2799 = vld [vmem:[#allocation4 + $0x151] sm:$0xff]
        %v2800 = vld [vmem:[#allocation4 + $0x159] sm:$0xff]
        %v2801 = vld [vmem:[#allocation4 + $0x169] sm:$0xff]
        %v2802 = vld [vmem:[#allocation4 + $0x171] sm:$0xff]
        %v2803 = vpack.c.bf16 %v2771, %v2771
        %v2804 = vpack.c.bf16 %v2772, %v2772
        %v2805 = vpack.c.bf16 %v2773, %v2773
        %v2806 = vpack.c.bf16 %v2774, %v2774
        %v2807 = vpack.c.bf16 %v2775, %v2775
        %v2808 = vpack.c.bf16 %v2776, %v2776
        %v2809 = vpack.c.bf16 %v2777, %v2777
        %v2810 = vpack.c.bf16 %v2778, %v2778
        %v2811 = vpack.c.bf16 %v2779, %v2779
        %v2812 = vpack.c.bf16 %v2780, %v2780
        %v2813 = vpack.c.bf16 %v2781, %v2781
        %v2814 = vpack.c.bf16 %v2782, %v2782
        %v2815 = vpack.c.bf16 %v2783, %v2783
        %v2816 = vpack.c.bf16 %v2784, %v2784
        %v2817 = vpack.c.bf16 %v2785, %v2785
        %v2818 = vpack.c.bf16 %v2786, %v2786
        %v2819 = vpack.c.bf16 %v2787, %v2787
        %v2820 = vpack.c.bf16 %v2788, %v2788
        %v2821 = vpack.c.bf16 %v2789, %v2789
        %v2822 = vpack.c.bf16 %v2790, %v2790
        %v2823 = vpack.c.bf16 %v2791, %v2791
        %v2824 = vpack.c.bf16 %v2792, %v2792
        %v2825 = vpack.c.bf16 %v2793, %v2793
        %v2826 = vpack.c.bf16 %v2794, %v2794
        %v2827 = vpack.c.bf16 %v2795, %v2795
        %v2828 = vpack.c.bf16 %v2796, %v2796
        %v2829 = vpack.c.bf16 %v2797, %v2797
        %v2830 = vpack.c.bf16 %v2798, %v2798
        %v2831 = vpack.c.bf16 %v2799, %v2799
        %v2832 = vpack.c.bf16 %v2800, %v2800
        %v2833 = vpack.c.bf16 %v2801, %v2801
        %v2834 = vpack.c.bf16 %v2802, %v2802
        %2867 = vrot.lane.b32.xlu0 %v2803, 8
        %v2868 = vpop.permute.xlu0 %2867
        %2869 = vrot.lane.b32.xlu0 %v2804, 8
        %v2870 = vpop.permute.xlu0 %2869
        %2871 = vrot.lane.b32.xlu0 %v2805, 8
        %v2872 = vpop.permute.xlu0 %2871
        %2873 = vrot.lane.b32.xlu0 %v2806, 8
        %v2874 = vpop.permute.xlu0 %2873
        %2875 = vrot.lane.b32.xlu0 %v2807, 8
        %v2876 = vpop.permute.xlu0 %2875
        %2877 = vrot.lane.b32.xlu0 %v2808, 8
        %v2878 = vpop.permute.xlu0 %2877
        %2879 = vrot.lane.b32.xlu0 %v2809, 8
        %v2880 = vpop.permute.xlu0 %2879
        %2881 = vrot.lane.b32.xlu0 %v2810, 8
        %v2882 = vpop.permute.xlu0 %2881
        %2883 = vrot.lane.b32.xlu0 %v2811, 8
        %v2884 = vpop.permute.xlu0 %2883
        %2885 = vrot.lane.b32.xlu0 %v2812, 8
        %v2886 = vpop.permute.xlu0 %2885
        %2887 = vrot.lane.b32.xlu0 %v2813, 8
        %v2888 = vpop.permute.xlu0 %2887
        %2889 = vrot.lane.b32.xlu0 %v2814, 8
        %v2890 = vpop.permute.xlu0 %2889
        %2891 = vrot.lane.b32.xlu0 %v2815, 8
        %v2892 = vpop.permute.xlu0 %2891
        %2893 = vrot.lane.b32.xlu0 %v2816, 8
        %v2894 = vpop.permute.xlu0 %2893
        %2895 = vrot.lane.b32.xlu0 %v2817, 8
        %v2896 = vpop.permute.xlu0 %2895
        %2897 = vrot.lane.b32.xlu0 %v2818, 8
        %v2898 = vpop.permute.xlu0 %2897
        %2899 = vrot.lane.b32.xlu0 %v2819, 8
        %v2900 = vpop.permute.xlu0 %2899
        %2901 = vrot.lane.b32.xlu0 %v2820, 8
        %v2902 = vpop.permute.xlu0 %2901
        %2903 = vrot.lane.b32.xlu0 %v2821, 8
        %v2904 = vpop.permute.xlu0 %2903
        %2905 = vrot.lane.b32.xlu0 %v2822, 8
        %v2906 = vpop.permute.xlu0 %2905
        %2907 = vrot.lane.b32.xlu0 %v2823, 8
        %v2908 = vpop.permute.xlu0 %2907
        %2909 = vrot.lane.b32.xlu0 %v2824, 8
        %v2910 = vpop.permute.xlu0 %2909
        %2911 = vrot.lane.b32.xlu0 %v2825, 8
        %v2912 = vpop.permute.xlu0 %2911
        %2913 = vrot.lane.b32.xlu0 %v2826, 8
        %v2914 = vpop.permute.xlu0 %2913
        %2915 = vrot.lane.b32.xlu0 %v2827, 8
        %v2916 = vpop.permute.xlu0 %2915
        %2917 = vrot.lane.b32.xlu0 %v2828, 8
        %v2918 = vpop.permute.xlu0 %2917
        %2919 = vrot.lane.b32.xlu0 %v2829, 8
        %v2920 = vpop.permute.xlu0 %2919
        %2921 = vrot.lane.b32.xlu0 %v2830, 8
        %v2922 = vpop.permute.xlu0 %2921
        %2923 = vrot.lane.b32.xlu0 %v2831, 8
        %v2924 = vpop.permute.xlu0 %2923
        %2925 = vrot.lane.b32.xlu0 %v2832, 8
        %v2926 = vpop.permute.xlu0 %2925
        %2927 = vrot.lane.b32.xlu0 %v2833, 8
        %v2928 = vpop.permute.xlu0 %2927
        %2929 = vrot.lane.b32.xlu0 %v2834, 8
        %v2930 = vpop.permute.xlu0 %2929
        %vm2963 = vcmask 126016
        %2964 = vst.msk [vmem:[#allocation5] sm:$0xf] %vm2963, %v2868
        %2965 = vst.msk [vmem:[#allocation5 + $0x4] sm:$0xf] %vm2963, %v2870
        %2966 = vst.msk [vmem:[#allocation5 + $0x8] sm:$0xf] %vm2963, %v2872
        %2967 = vst.msk [vmem:[#allocation5 + $0xc] sm:$0xf] %vm2963, %v2874
        %2968 = vst.msk [vmem:[#allocation5 + $0x10] sm:$0xf] %vm2963, %v2876
        %2969 = vst.msk [vmem:[#allocation5 + $0x14] sm:$0xf] %vm2963, %v2878
        %2970 = vst.msk [vmem:[#allocation5 + $0x18] sm:$0xf] %vm2963, %v2880
        %2971 = vst.msk [vmem:[#allocation5 + $0x1c] sm:$0xf] %vm2963, %v2882
        %2972 = vst.msk [vmem:[#allocation5 + $0x20] sm:$0xf] %vm2963, %v2884
        %2973 = vst.msk [vmem:[#allocation5 + $0x24] sm:$0xf] %vm2963, %v2886
        %2974 = vst.msk [vmem:[#allocation5 + $0x28] sm:$0xf] %vm2963, %v2888
        %2975 = vst.msk [vmem:[#allocation5 + $0x2c] sm:$0xf] %vm2963, %v2890
        %2976 = vst.msk [vmem:[#allocation5 + $0x30] sm:$0xf] %vm2963, %v2892
        %2977 = vst.msk [vmem:[#allocation5 + $0x34] sm:$0xf] %vm2963, %v2894
        %2978 = vst.msk [vmem:[#allocation5 + $0x38] sm:$0xf] %vm2963, %v2896
        %2979 = vst.msk [vmem:[#allocation5 + $0x3c] sm:$0xf] %vm2963, %v2898
        %2980 = vst.msk [vmem:[#allocation5 + $0x40] sm:$0xf] %vm2963, %v2900
        %2981 = vst.msk [vmem:[#allocation5 + $0x44] sm:$0xf] %vm2963, %v2902
        %2982 = vst.msk [vmem:[#allocation5 + $0x48] sm:$0xf] %vm2963, %v2904
        %2983 = vst.msk [vmem:[#allocation5 + $0x4c] sm:$0xf] %vm2963, %v2906
        %2984 = vst.msk [vmem:[#allocation5 + $0x50] sm:$0xf] %vm2963, %v2908
        %2985 = vst.msk [vmem:[#allocation5 + $0x54] sm:$0xf] %vm2963, %v2910
        %2986 = vst.msk [vmem:[#allocation5 + $0x58] sm:$0xf] %vm2963, %v2912
        %2987 = vst.msk [vmem:[#allocation5 + $0x5c] sm:$0xf] %vm2963, %v2914
        %2988 = vst.msk [vmem:[#allocation5 + $0x60] sm:$0xf] %vm2963, %v2916
        %2989 = vst.msk [vmem:[#allocation5 + $0x64] sm:$0xf] %vm2963, %v2918
        %2990 = vst.msk [vmem:[#allocation5 + $0x68] sm:$0xf] %vm2963, %v2920
        %2991 = vst.msk [vmem:[#allocation5 + $0x6c] sm:$0xf] %vm2963, %v2922
        %2992 = vst.msk [vmem:[#allocation5 + $0x70] sm:$0xf] %vm2963, %v2924
        %2993 = vst.msk [vmem:[#allocation5 + $0x74] sm:$0xf] %vm2963, %v2926
        %2994 = vst.msk [vmem:[#allocation5 + $0x78] sm:$0xf] %vm2963, %v2928
        %2995 = vst.msk [vmem:[#allocation5 + $0x7c] sm:$0xf] %vm2963, %v2930
        %v2996 = vld [vmem:[#allocation4 + $0x2] sm:$0xff]
        %v2997 = vld [vmem:[#allocation4 + $0xa] sm:$0xff]
        %v2998 = vld [vmem:[#allocation4 + $0x1a] sm:$0xff]
        %v2999 = vld [vmem:[#allocation4 + $0x22] sm:$0xff]
        %v3000 = vld [vmem:[#allocation4 + $0x32] sm:$0xff]
        %v3001 = vld [vmem:[#allocation4 + $0x3a] sm:$0xff]
        %v3002 = vld [vmem:[#allocation4 + $0x4a] sm:$0xff]
        %v3003 = vld [vmem:[#allocation4 + $0x52] sm:$0xff]
        %v3004 = vld [vmem:[#allocation4 + $0x62] sm:$0xff]
        %v3005 = vld [vmem:[#allocation4 + $0x6a] sm:$0xff]
        %v3006 = vld [vmem:[#allocation4 + $0x7a] sm:$0xff]
        %v3007 = vld [vmem:[#allocation4 + $0x82] sm:$0xff]
        %v3008 = vld [vmem:[#allocation4 + $0x92] sm:$0xff]
        %v3009 = vld [vmem:[#allocation4 + $0x9a] sm:$0xff]
        %v3010 = vld [vmem:[#allocation4 + $0xaa] sm:$0xff]
        %v3011 = vld [vmem:[#allocation4 + $0xb2] sm:$0xff]
        %v3012 = vld [vmem:[#allocation4 + $0xc2] sm:$0xff]
        %v3013 = vld [vmem:[#allocation4 + $0xca] sm:$0xff]
        %v3014 = vld [vmem:[#allocation4 + $0xda] sm:$0xff]
        %v3015 = vld [vmem:[#allocation4 + $0xe2] sm:$0xff]
        %v3016 = vld [vmem:[#allocation4 + $0xf2] sm:$0xff]
        %v3017 = vld [vmem:[#allocation4 + $0xfa] sm:$0xff]
        %v3018 = vld [vmem:[#allocation4 + $0x10a] sm:$0xff]
        %v3019 = vld [vmem:[#allocation4 + $0x112] sm:$0xff]
        %v3020 = vld [vmem:[#allocation4 + $0x122] sm:$0xff]
        %v3021 = vld [vmem:[#allocation4 + $0x12a] sm:$0xff]
        %v3022 = vld [vmem:[#allocation4 + $0x13a] sm:$0xff]
        %v3023 = vld [vmem:[#allocation4 + $0x142] sm:$0xff]
        %v3024 = vld [vmem:[#allocation4 + $0x152] sm:$0xff]
        %v3025 = vld [vmem:[#allocation4 + $0x15a] sm:$0xff]
        %v3026 = vld [vmem:[#allocation4 + $0x16a] sm:$0xff]
        %v3027 = vld [vmem:[#allocation4 + $0x172] sm:$0xff]
        %v3028 = vpack.c.bf16 %v2996, %v2996
        %v3029 = vpack.c.bf16 %v2997, %v2997
        %v3030 = vpack.c.bf16 %v2998, %v2998
        %v3031 = vpack.c.bf16 %v2999, %v2999
        %v3032 = vpack.c.bf16 %v3000, %v3000
        %v3033 = vpack.c.bf16 %v3001, %v3001
        %v3034 = vpack.c.bf16 %v3002, %v3002
        %v3035 = vpack.c.bf16 %v3003, %v3003
        %v3036 = vpack.c.bf16 %v3004, %v3004
        %v3037 = vpack.c.bf16 %v3005, %v3005
        %v3038 = vpack.c.bf16 %v3006, %v3006
        %v3039 = vpack.c.bf16 %v3007, %v3007
        %v3040 = vpack.c.bf16 %v3008, %v3008
        %v3041 = vpack.c.bf16 %v3009, %v3009
        %v3042 = vpack.c.bf16 %v3010, %v3010
        %v3043 = vpack.c.bf16 %v3011, %v3011
        %v3044 = vpack.c.bf16 %v3012, %v3012
        %v3045 = vpack.c.bf16 %v3013, %v3013
        %v3046 = vpack.c.bf16 %v3014, %v3014
        %v3047 = vpack.c.bf16 %v3015, %v3015
        %v3048 = vpack.c.bf16 %v3016, %v3016
        %v3049 = vpack.c.bf16 %v3017, %v3017
        %v3050 = vpack.c.bf16 %v3018, %v3018
        %v3051 = vpack.c.bf16 %v3019, %v3019
        %v3052 = vpack.c.bf16 %v3020, %v3020
        %v3053 = vpack.c.bf16 %v3021, %v3021
        %v3054 = vpack.c.bf16 %v3022, %v3022
        %v3055 = vpack.c.bf16 %v3023, %v3023
        %v3056 = vpack.c.bf16 %v3024, %v3024
        %v3057 = vpack.c.bf16 %v3025, %v3025
        %v3058 = vpack.c.bf16 %v3026, %v3026
        %v3059 = vpack.c.bf16 %v3027, %v3027
        %3092 = vrot.lane.b32.xlu0 %v3028, 16
        %v3093 = vpop.permute.xlu0 %3092
        %3094 = vrot.lane.b32.xlu0 %v3029, 16
        %v3095 = vpop.permute.xlu0 %3094
        %3096 = vrot.lane.b32.xlu0 %v3030, 16
        %v3097 = vpop.permute.xlu0 %3096
        %3098 = vrot.lane.b32.xlu0 %v3031, 16
        %v3099 = vpop.permute.xlu0 %3098
        %3100 = vrot.lane.b32.xlu0 %v3032, 16
        %v3101 = vpop.permute.xlu0 %3100
        %3102 = vrot.lane.b32.xlu0 %v3033, 16
        %v3103 = vpop.permute.xlu0 %3102
        %3104 = vrot.lane.b32.xlu0 %v3034, 16
        %v3105 = vpop.permute.xlu0 %3104
        %3106 = vrot.lane.b32.xlu0 %v3035, 16
        %v3107 = vpop.permute.xlu0 %3106
        %3108 = vrot.lane.b32.xlu0 %v3036, 16
        %v3109 = vpop.permute.xlu0 %3108
        %3110 = vrot.lane.b32.xlu0 %v3037, 16
        %v3111 = vpop.permute.xlu0 %3110
        %3112 = vrot.lane.b32.xlu0 %v3038, 16
        %v3113 = vpop.permute.xlu0 %3112
        %3114 = vrot.lane.b32.xlu0 %v3039, 16
        %v3115 = vpop.permute.xlu0 %3114
        %3116 = vrot.lane.b32.xlu0 %v3040, 16
        %v3117 = vpop.permute.xlu0 %3116
        %3118 = vrot.lane.b32.xlu0 %v3041, 16
        %v3119 = vpop.permute.xlu0 %3118
        %3120 = vrot.lane.b32.xlu0 %v3042, 16
        %v3121 = vpop.permute.xlu0 %3120
        %3122 = vrot.lane.b32.xlu0 %v3043, 16
        %v3123 = vpop.permute.xlu0 %3122
        %3124 = vrot.lane.b32.xlu0 %v3044, 16
        %v3125 = vpop.permute.xlu0 %3124
        %3126 = vrot.lane.b32.xlu0 %v3045, 16
        %v3127 = vpop.permute.xlu0 %3126
        %3128 = vrot.lane.b32.xlu0 %v3046, 16
        %v3129 = vpop.permute.xlu0 %3128
        %3130 = vrot.lane.b32.xlu0 %v3047, 16
        %v3131 = vpop.permute.xlu0 %3130
        %3132 = vrot.lane.b32.xlu0 %v3048, 16
        %v3133 = vpop.permute.xlu0 %3132
        %3134 = vrot.lane.b32.xlu0 %v3049, 16
        %v3135 = vpop.permute.xlu0 %3134
        %3136 = vrot.lane.b32.xlu0 %v3050, 16
        %v3137 = vpop.permute.xlu0 %3136
        %3138 = vrot.lane.b32.xlu0 %v3051, 16
        %v3139 = vpop.permute.xlu0 %3138
        %3140 = vrot.lane.b32.xlu0 %v3052, 16
        %v3141 = vpop.permute.xlu0 %3140
        %3142 = vrot.lane.b32.xlu0 %v3053, 16
        %v3143 = vpop.permute.xlu0 %3142
        %3144 = vrot.lane.b32.xlu0 %v3054, 16
        %v3145 = vpop.permute.xlu0 %3144
        %3146 = vrot.lane.b32.xlu0 %v3055, 16
        %v3147 = vpop.permute.xlu0 %3146
        %3148 = vrot.lane.b32.xlu0 %v3056, 16
        %v3149 = vpop.permute.xlu0 %3148
        %3150 = vrot.lane.b32.xlu0 %v3057, 16
        %v3151 = vpop.permute.xlu0 %3150
        %3152 = vrot.lane.b32.xlu0 %v3058, 16
        %v3153 = vpop.permute.xlu0 %3152
        %3154 = vrot.lane.b32.xlu0 %v3059, 16
        %v3155 = vpop.permute.xlu0 %3154
        %vm3188 = vcmask 191616
        %3189 = vst.msk [vmem:[#allocation5] sm:$0xf] %vm3188, %v3093
        %3190 = vst.msk [vmem:[#allocation5 + $0x4] sm:$0xf] %vm3188, %v3095
        %3191 = vst.msk [vmem:[#allocation5 + $0x8] sm:$0xf] %vm3188, %v3097
        %3192 = vst.msk [vmem:[#allocation5 + $0xc] sm:$0xf] %vm3188, %v3099
        %3193 = vst.msk [vmem:[#allocation5 + $0x10] sm:$0xf] %vm3188, %v3101
        %3194 = vst.msk [vmem:[#allocation5 + $0x14] sm:$0xf] %vm3188, %v3103
        %3195 = vst.msk [vmem:[#allocation5 + $0x18] sm:$0xf] %vm3188, %v3105
        %3196 = vst.msk [vmem:[#allocation5 + $0x1c] sm:$0xf] %vm3188, %v3107
        %3197 = vst.msk [vmem:[#allocation5 + $0x20] sm:$0xf] %vm3188, %v3109
        %3198 = vst.msk [vmem:[#allocation5 + $0x24] sm:$0xf] %vm3188, %v3111
        %3199 = vst.msk [vmem:[#allocation5 + $0x28] sm:$0xf] %vm3188, %v3113
        %3200 = vst.msk [vmem:[#allocation5 + $0x2c] sm:$0xf] %vm3188, %v3115
        %3201 = vst.msk [vmem:[#allocation5 + $0x30] sm:$0xf] %vm3188, %v3117
        %3202 = vst.msk [vmem:[#allocation5 + $0x34] sm:$0xf] %vm3188, %v3119
        %3203 = vst.msk [vmem:[#allocation5 + $0x38] sm:$0xf] %vm3188, %v3121
        %3204 = vst.msk [vmem:[#allocation5 + $0x3c] sm:$0xf] %vm3188, %v3123
        %3205 = vst.msk [vmem:[#allocation5 + $0x40] sm:$0xf] %vm3188, %v3125
        %3206 = vst.msk [vmem:[#allocation5 + $0x44] sm:$0xf] %vm3188, %v3127
        %3207 = vst.msk [vmem:[#allocation5 + $0x48] sm:$0xf] %vm3188, %v3129
        %3208 = vst.msk [vmem:[#allocation5 + $0x4c] sm:$0xf] %vm3188, %v3131
        %3209 = vst.msk [vmem:[#allocation5 + $0x50] sm:$0xf] %vm3188, %v3133
        %3210 = vst.msk [vmem:[#allocation5 + $0x54] sm:$0xf] %vm3188, %v3135
        %3211 = vst.msk [vmem:[#allocation5 + $0x58] sm:$0xf] %vm3188, %v3137
        %3212 = vst.msk [vmem:[#allocation5 + $0x5c] sm:$0xf] %vm3188, %v3139
        %3213 = vst.msk [vmem:[#allocation5 + $0x60] sm:$0xf] %vm3188, %v3141
        %3214 = vst.msk [vmem:[#allocation5 + $0x64] sm:$0xf] %vm3188, %v3143
        %3215 = vst.msk [vmem:[#allocation5 + $0x68] sm:$0xf] %vm3188, %v3145
        %3216 = vst.msk [vmem:[#allocation5 + $0x6c] sm:$0xf] %vm3188, %v3147
        %3217 = vst.msk [vmem:[#allocation5 + $0x70] sm:$0xf] %vm3188, %v3149
        %3218 = vst.msk [vmem:[#allocation5 + $0x74] sm:$0xf] %vm3188, %v3151
        %3219 = vst.msk [vmem:[#allocation5 + $0x78] sm:$0xf] %vm3188, %v3153
        %3220 = vst.msk [vmem:[#allocation5 + $0x7c] sm:$0xf] %vm3188, %v3155
        %v3221 = vld [vmem:[%s2641] sm:$0xff]
        %v3222 = vld [vmem:[%s2641 + $0x8] sm:$0xff]
        %v3223 = vld [vmem:[%s2641 + $0x18] sm:$0xff]
        %v3224 = vld [vmem:[%s2641 + $0x20] sm:$0xff]
        %v3225 = vld [vmem:[%s2641 + $0x30] sm:$0xff]
        %v3226 = vld [vmem:[%s2641 + $0x38] sm:$0xff]
        %v3227 = vld [vmem:[%s2641 + $0x48] sm:$0xff]
        %v3228 = vld [vmem:[%s2641 + $0x50] sm:$0xff]
        %v3229 = vld [vmem:[%s2641 + $0x60] sm:$0xff]
        %v3230 = vld [vmem:[%s2641 + $0x68] sm:$0xff]
        %v3231 = vld [vmem:[%s2641 + $0x78] sm:$0xff]
        %v3232 = vld [vmem:[%s2641 + $0x80] sm:$0xff]
        %v3233 = vld [vmem:[%s2641 + $0x90] sm:$0xff]
        %v3234 = vld [vmem:[%s2641 + $0x98] sm:$0xff]
        %v3235 = vld [vmem:[%s2641 + $0xa8] sm:$0xff]
        %v3236 = vld [vmem:[%s2641 + $0xb0] sm:$0xff]
        %v3237 = vld [vmem:[%s2641 + $0xc0] sm:$0xff]
        %v3238 = vld [vmem:[%s2641 + $0xc8] sm:$0xff]
        %v3239 = vld [vmem:[%s2641 + $0xd8] sm:$0xff]
        %v3240 = vld [vmem:[%s2641 + $0xe0] sm:$0xff]
        %v3241 = vld [vmem:[%s2641 + $0xf0] sm:$0xff]
        %v3242 = vld [vmem:[%s2641 + $0xf8] sm:$0xff]
        %v3243 = vld [vmem:[%s2641 + $0x108] sm:$0xff]
        %v3244 = vld [vmem:[%s2641 + $0x110] sm:$0xff]
        %v3245 = vld [vmem:[%s2641 + $0x120] sm:$0xff]
        %v3246 = vld [vmem:[%s2641 + $0x128] sm:$0xff]
        %v3247 = vld [vmem:[%s2641 + $0x138] sm:$0xff]
        %v3248 = vld [vmem:[%s2641 + $0x140] sm:$0xff]
        %v3249 = vld [vmem:[%s2641 + $0x150] sm:$0xff]
        %v3250 = vld [vmem:[%s2641 + $0x158] sm:$0xff]
        %v3251 = vld [vmem:[%s2641 + $0x168] sm:$0xff]
        %v3252 = vld [vmem:[%s2641 + $0x170] sm:$0xff]
        %v3253 = vpack.c.bf16 %v3221, %v3221
        %v3254 = vpack.c.bf16 %v3222, %v3222
        %v3255 = vpack.c.bf16 %v3223, %v3223
        %v3256 = vpack.c.bf16 %v3224, %v3224
        %v3257 = vpack.c.bf16 %v3225, %v3225
        %v3258 = vpack.c.bf16 %v3226, %v3226
        %v3259 = vpack.c.bf16 %v3227, %v3227
        %v3260 = vpack.c.bf16 %v3228, %v3228
        %v3261 = vpack.c.bf16 %v3229, %v3229
        %v3262 = vpack.c.bf16 %v3230, %v3230
        %v3263 = vpack.c.bf16 %v3231, %v3231
        %v3264 = vpack.c.bf16 %v3232, %v3232
        %v3265 = vpack.c.bf16 %v3233, %v3233
        %v3266 = vpack.c.bf16 %v3234, %v3234
        %v3267 = vpack.c.bf16 %v3235, %v3235
        %v3268 = vpack.c.bf16 %v3236, %v3236
        %v3269 = vpack.c.bf16 %v3237, %v3237
        %v3270 = vpack.c.bf16 %v3238, %v3238
        %v3271 = vpack.c.bf16 %v3239, %v3239
        %v3272 = vpack.c.bf16 %v3240, %v3240
        %v3273 = vpack.c.bf16 %v3241, %v3241
        %v3274 = vpack.c.bf16 %v3242, %v3242
        %v3275 = vpack.c.bf16 %v3243, %v3243
        %v3276 = vpack.c.bf16 %v3244, %v3244
        %v3277 = vpack.c.bf16 %v3245, %v3245
        %v3278 = vpack.c.bf16 %v3246, %v3246
        %v3279 = vpack.c.bf16 %v3247, %v3247
        %v3280 = vpack.c.bf16 %v3248, %v3248
        %v3281 = vpack.c.bf16 %v3249, %v3249
        %v3282 = vpack.c.bf16 %v3250, %v3250
        %v3283 = vpack.c.bf16 %v3251, %v3251
        %v3284 = vpack.c.bf16 %v3252, %v3252
        %3317 = vrot.lane.b32.xlu0 %v3253, 24
        %v3318 = vpop.permute.xlu0 %3317
        %3319 = vrot.lane.b32.xlu0 %v3254, 24
        %v3320 = vpop.permute.xlu0 %3319
        %3321 = vrot.lane.b32.xlu0 %v3255, 24
        %v3322 = vpop.permute.xlu0 %3321
        %3323 = vrot.lane.b32.xlu0 %v3256, 24
        %v3324 = vpop.permute.xlu0 %3323
        %3325 = vrot.lane.b32.xlu0 %v3257, 24
        %v3326 = vpop.permute.xlu0 %3325
        %3327 = vrot.lane.b32.xlu0 %v3258, 24
        %v3328 = vpop.permute.xlu0 %3327
        %3329 = vrot.lane.b32.xlu0 %v3259, 24
        %v3330 = vpop.permute.xlu0 %3329
        %3331 = vrot.lane.b32.xlu0 %v3260, 24
        %v3332 = vpop.permute.xlu0 %3331
        %3333 = vrot.lane.b32.xlu0 %v3261, 24
        %v3334 = vpop.permute.xlu0 %3333
        %3335 = vrot.lane.b32.xlu0 %v3262, 24
        %v3336 = vpop.permute.xlu0 %3335
        %3337 = vrot.lane.b32.xlu0 %v3263, 24
        %v3338 = vpop.permute.xlu0 %3337
        %3339 = vrot.lane.b32.xlu0 %v3264, 24
        %v3340 = vpop.permute.xlu0 %3339
        %3341 = vrot.lane.b32.xlu0 %v3265, 24
        %v3342 = vpop.permute.xlu0 %3341
        %3343 = vrot.lane.b32.xlu0 %v3266, 24
        %v3344 = vpop.permute.xlu0 %3343
        %3345 = vrot.lane.b32.xlu0 %v3267, 24
        %v3346 = vpop.permute.xlu0 %3345
        %3347 = vrot.lane.b32.xlu0 %v3268, 24
        %v3348 = vpop.permute.xlu0 %3347
        %3349 = vrot.lane.b32.xlu0 %v3269, 24
        %v3350 = vpop.permute.xlu0 %3349
        %3351 = vrot.lane.b32.xlu0 %v3270, 24
        %v3352 = vpop.permute.xlu0 %3351
        %3353 = vrot.lane.b32.xlu0 %v3271, 24
        %v3354 = vpop.permute.xlu0 %3353
        %3355 = vrot.lane.b32.xlu0 %v3272, 24
        %v3356 = vpop.permute.xlu0 %3355
        %3357 = vrot.lane.b32.xlu0 %v3273, 24
        %v3358 = vpop.permute.xlu0 %3357
        %3359 = vrot.lane.b32.xlu0 %v3274, 24
        %v3360 = vpop.permute.xlu0 %3359
        %3361 = vrot.lane.b32.xlu0 %v3275, 24
        %v3362 = vpop.permute.xlu0 %3361
        %3363 = vrot.lane.b32.xlu0 %v3276, 24
        %v3364 = vpop.permute.xlu0 %3363
        %3365 = vrot.lane.b32.xlu0 %v3277, 24
        %v3366 = vpop.permute.xlu0 %3365
        %3367 = vrot.lane.b32.xlu0 %v3278, 24
        %v3368 = vpop.permute.xlu0 %3367
        %3369 = vrot.lane.b32.xlu0 %v3279, 24
        %v3370 = vpop.permute.xlu0 %3369
        %3371 = vrot.lane.b32.xlu0 %v3280, 24
        %v3372 = vpop.permute.xlu0 %3371
        %3373 = vrot.lane.b32.xlu0 %v3281, 24
        %v3374 = vpop.permute.xlu0 %3373
        %3375 = vrot.lane.b32.xlu0 %v3282, 24
        %v3376 = vpop.permute.xlu0 %3375
        %3377 = vrot.lane.b32.xlu0 %v3283, 24
        %v3378 = vpop.permute.xlu0 %3377
        %3379 = vrot.lane.b32.xlu0 %v3284, 24
        %v3380 = vpop.permute.xlu0 %3379
        %vm3413 = vcmask 257216
        %3414 = vst.msk [vmem:[#allocation5] sm:$0xf] %vm3413, %v3318
        %3415 = vst.msk [vmem:[#allocation5 + $0x4] sm:$0xf] %vm3413, %v3320
        %3416 = vst.msk [vmem:[#allocation5 + $0x8] sm:$0xf] %vm3413, %v3322
        %3417 = vst.msk [vmem:[#allocation5 + $0xc] sm:$0xf] %vm3413, %v3324
        %3418 = vst.msk [vmem:[#allocation5 + $0x10] sm:$0xf] %vm3413, %v3326
        %3419 = vst.msk [vmem:[#allocation5 + $0x14] sm:$0xf] %vm3413, %v3328
        %3420 = vst.msk [vmem:[#allocation5 + $0x18] sm:$0xf] %vm3413, %v3330
        %3421 = vst.msk [vmem:[#allocation5 + $0x1c] sm:$0xf] %vm3413, %v3332
        %3422 = vst.msk [vmem:[#allocation5 + $0x20] sm:$0xf] %vm3413, %v3334
        %3423 = vst.msk [vmem:[#allocation5 + $0x24] sm:$0xf] %vm3413, %v3336
        %3424 = vst.msk [vmem:[#allocation5 + $0x28] sm:$0xf] %vm3413, %v3338
        %3425 = vst.msk [vmem:[#allocation5 + $0x2c] sm:$0xf] %vm3413, %v3340
        %3426 = vst.msk [vmem:[#allocation5 + $0x30] sm:$0xf] %vm3413, %v3342
        %3427 = vst.msk [vmem:[#allocation5 + $0x34] sm:$0xf] %vm3413, %v3344
        %3428 = vst.msk [vmem:[#allocation5 + $0x38] sm:$0xf] %vm3413, %v3346
        %3429 = vst.msk [vmem:[#allocation5 + $0x3c] sm:$0xf] %vm3413, %v3348
        %3430 = vst.msk [vmem:[#allocation5 + $0x40] sm:$0xf] %vm3413, %v3350
        %3431 = vst.msk [vmem:[#allocation5 + $0x44] sm:$0xf] %vm3413, %v3352
        %3432 = vst.msk [vmem:[#allocation5 + $0x48] sm:$0xf] %vm3413, %v3354
        %3433 = vst.msk [vmem:[#allocation5 + $0x4c] sm:$0xf] %vm3413, %v3356
        %3434 = vst.msk [vmem:[#allocation5 + $0x50] sm:$0xf] %vm3413, %v3358
        %3435 = vst.msk [vmem:[#allocation5 + $0x54] sm:$0xf] %vm3413, %v3360
        %3436 = vst.msk [vmem:[#allocation5 + $0x58] sm:$0xf] %vm3413, %v3362
        %3437 = vst.msk [vmem:[#allocation5 + $0x5c] sm:$0xf] %vm3413, %v3364
        %3438 = vst.msk [vmem:[#allocation5 + $0x60] sm:$0xf] %vm3413, %v3366
        %3439 = vst.msk [vmem:[#allocation5 + $0x64] sm:$0xf] %vm3413, %v3368
        %3440 = vst.msk [vmem:[#allocation5 + $0x68] sm:$0xf] %vm3413, %v3370
        %3441 = vst.msk [vmem:[#allocation5 + $0x6c] sm:$0xf] %vm3413, %v3372
        %3442 = vst.msk [vmem:[#allocation5 + $0x70] sm:$0xf] %vm3413, %v3374
        %3443 = vst.msk [vmem:[#allocation5 + $0x74] sm:$0xf] %vm3413, %v3376
        %3444 = vst.msk [vmem:[#allocation5 + $0x78] sm:$0xf] %vm3413, %v3378
        %3445 = vst.msk [vmem:[#allocation5 + $0x7c] sm:$0xf] %vm3413, %v3380
        %v3446 = vld [vmem:[%s2641 + $0x1] sm:$0xff]
        %v3447 = vld [vmem:[%s2641 + $0x9] sm:$0xff]
        %v3448 = vld [vmem:[%s2641 + $0x19] sm:$0xff]
        %v3449 = vld [vmem:[%s2641 + $0x21] sm:$0xff]
        %v3450 = vld [vmem:[%s2641 + $0x31] sm:$0xff]
        %v3451 = vld [vmem:[%s2641 + $0x39] sm:$0xff]
        %v3452 = vld [vmem:[%s2641 + $0x49] sm:$0xff]
        %v3453 = vld [vmem:[%s2641 + $0x51] sm:$0xff]
        %v3454 = vld [vmem:[%s2641 + $0x61] sm:$0xff]
        %v3455 = vld [vmem:[%s2641 + $0x69] sm:$0xff]
        %v3456 = vld [vmem:[%s2641 + $0x79] sm:$0xff]
        %v3457 = vld [vmem:[%s2641 + $0x81] sm:$0xff]
        %v3458 = vld [vmem:[%s2641 + $0x91] sm:$0xff]
        %v3459 = vld [vmem:[%s2641 + $0x99] sm:$0xff]
        %v3460 = vld [vmem:[%s2641 + $0xa9] sm:$0xff]
        %v3461 = vld [vmem:[%s2641 + $0xb1] sm:$0xff]
        %v3462 = vld [vmem:[%s2641 + $0xc1] sm:$0xff]
        %v3463 = vld [vmem:[%s2641 + $0xc9] sm:$0xff]
        %v3464 = vld [vmem:[%s2641 + $0xd9] sm:$0xff]
        %v3465 = vld [vmem:[%s2641 + $0xe1] sm:$0xff]
        %v3466 = vld [vmem:[%s2641 + $0xf1] sm:$0xff]
        %v3467 = vld [vmem:[%s2641 + $0xf9] sm:$0xff]
        %v3468 = vld [vmem:[%s2641 + $0x109] sm:$0xff]
        %v3469 = vld [vmem:[%s2641 + $0x111] sm:$0xff]
        %v3470 = vld [vmem:[%s2641 + $0x121] sm:$0xff]
        %v3471 = vld [vmem:[%s2641 + $0x129] sm:$0xff]
        %v3472 = vld [vmem:[%s2641 + $0x139] sm:$0xff]
        %v3473 = vld [vmem:[%s2641 + $0x141] sm:$0xff]
        %v3474 = vld [vmem:[%s2641 + $0x151] sm:$0xff]
        %v3475 = vld [vmem:[%s2641 + $0x159] sm:$0xff]
        %v3476 = vld [vmem:[%s2641 + $0x169] sm:$0xff]
        %v3477 = vld [vmem:[%s2641 + $0x171] sm:$0xff]
        %v3478 = vpack.c.bf16 %v3446, %v3446
        %v3479 = vpack.c.bf16 %v3447, %v3447
        %v3480 = vpack.c.bf16 %v3448, %v3448
        %v3481 = vpack.c.bf16 %v3449, %v3449
        %v3482 = vpack.c.bf16 %v3450, %v3450
        %v3483 = vpack.c.bf16 %v3451, %v3451
        %v3484 = vpack.c.bf16 %v3452, %v3452
        %v3485 = vpack.c.bf16 %v3453, %v3453
        %v3486 = vpack.c.bf16 %v3454, %v3454
        %v3487 = vpack.c.bf16 %v3455, %v3455
        %v3488 = vpack.c.bf16 %v3456, %v3456
        %v3489 = vpack.c.bf16 %v3457, %v3457
        %v3490 = vpack.c.bf16 %v3458, %v3458
        %v3491 = vpack.c.bf16 %v3459, %v3459
        %v3492 = vpack.c.bf16 %v3460, %v3460
        %v3493 = vpack.c.bf16 %v3461, %v3461
        %v3494 = vpack.c.bf16 %v3462, %v3462
        %v3495 = vpack.c.bf16 %v3463, %v3463
        %v3496 = vpack.c.bf16 %v3464, %v3464
        %v3497 = vpack.c.bf16 %v3465, %v3465
        %v3498 = vpack.c.bf16 %v3466, %v3466
        %v3499 = vpack.c.bf16 %v3467, %v3467
        %v3500 = vpack.c.bf16 %v3468, %v3468
        %v3501 = vpack.c.bf16 %v3469, %v3469
        %v3502 = vpack.c.bf16 %v3470, %v3470
        %v3503 = vpack.c.bf16 %v3471, %v3471
        %v3504 = vpack.c.bf16 %v3472, %v3472
        %v3505 = vpack.c.bf16 %v3473, %v3473
        %v3506 = vpack.c.bf16 %v3474, %v3474
        %v3507 = vpack.c.bf16 %v3475, %v3475
        %v3508 = vpack.c.bf16 %v3476, %v3476
        %v3509 = vpack.c.bf16 %v3477, %v3477
        %3542 = vrot.lane.b32.xlu0 %v3478, 32
        %v3543 = vpop.permute.xlu0 %3542
        %3544 = vrot.lane.b32.xlu0 %v3479, 32
        %v3545 = vpop.permute.xlu0 %3544
        %3546 = vrot.lane.b32.xlu0 %v3480, 32
        %v3547 = vpop.permute.xlu0 %3546
        %3548 = vrot.lane.b32.xlu0 %v3481, 32
        %v3549 = vpop.permute.xlu0 %3548
        %3550 = vrot.lane.b32.xlu0 %v3482, 32
        %v3551 = vpop.permute.xlu0 %3550
        %3552 = vrot.lane.b32.xlu0 %v3483, 32
        %v3553 = vpop.permute.xlu0 %3552
        %3554 = vrot.lane.b32.xlu0 %v3484, 32
        %v3555 = vpop.permute.xlu0 %3554
        %3556 = vrot.lane.b32.xlu0 %v3485, 32
        %v3557 = vpop.permute.xlu0 %3556
        %3558 = vrot.lane.b32.xlu0 %v3486, 32
        %v3559 = vpop.permute.xlu0 %3558
        %3560 = vrot.lane.b32.xlu0 %v3487, 32
        %v3561 = vpop.permute.xlu0 %3560
        %3562 = vrot.lane.b32.xlu0 %v3488, 32
        %v3563 = vpop.permute.xlu0 %3562
        %3564 = vrot.lane.b32.xlu0 %v3489, 32
        %v3565 = vpop.permute.xlu0 %3564
        %3566 = vrot.lane.b32.xlu0 %v3490, 32
        %v3567 = vpop.permute.xlu0 %3566
        %3568 = vrot.lane.b32.xlu0 %v3491, 32
        %v3569 = vpop.permute.xlu0 %3568
        %3570 = vrot.lane.b32.xlu0 %v3492, 32
        %v3571 = vpop.permute.xlu0 %3570
        %3572 = vrot.lane.b32.xlu0 %v3493, 32
        %v3573 = vpop.permute.xlu0 %3572
        %3574 = vrot.lane.b32.xlu0 %v3494, 32
        %v3575 = vpop.permute.xlu0 %3574
        %3576 = vrot.lane.b32.xlu0 %v3495, 32
        %v3577 = vpop.permute.xlu0 %3576
        %3578 = vrot.lane.b32.xlu0 %v3496, 32
        %v3579 = vpop.permute.xlu0 %3578
        %3580 = vrot.lane.b32.xlu0 %v3497, 32
        %v3581 = vpop.permute.xlu0 %3580
        %3582 = vrot.lane.b32.xlu0 %v3498, 32
        %v3583 = vpop.permute.xlu0 %3582
        %3584 = vrot.lane.b32.xlu0 %v3499, 32
        %v3585 = vpop.permute.xlu0 %3584
        %3586 = vrot.lane.b32.xlu0 %v3500, 32
        %v3587 = vpop.permute.xlu0 %3586
        %3588 = vrot.lane.b32.xlu0 %v3501, 32
        %v3589 = vpop.permute.xlu0 %3588
        %3590 = vrot.lane.b32.xlu0 %v3502, 32
        %v3591 = vpop.permute.xlu0 %3590
        %3592 = vrot.lane.b32.xlu0 %v3503, 32
        %v3593 = vpop.permute.xlu0 %3592
        %3594 = vrot.lane.b32.xlu0 %v3504, 32
        %v3595 = vpop.permute.xlu0 %3594
        %3596 = vrot.lane.b32.xlu0 %v3505, 32
        %v3597 = vpop.permute.xlu0 %3596
        %3598 = vrot.lane.b32.xlu0 %v3506, 32
        %v3599 = vpop.permute.xlu0 %3598
        %3600 = vrot.lane.b32.xlu0 %v3507, 32
        %v3601 = vpop.permute.xlu0 %3600
        %3602 = vrot.lane.b32.xlu0 %v3508, 32
        %v3603 = vpop.permute.xlu0 %3602
        %3604 = vrot.lane.b32.xlu0 %v3509, 32
        %v3605 = vpop.permute.xlu0 %3604
        %vm3638 = vcmask 322816
        %3639 = vst.msk [vmem:[#allocation5] sm:$0xf] %vm3638, %v3543
        %3640 = vst.msk [vmem:[#allocation5 + $0x4] sm:$0xf] %vm3638, %v3545
        %3641 = vst.msk [vmem:[#allocation5 + $0x8] sm:$0xf] %vm3638, %v3547
        %3642 = vst.msk [vmem:[#allocation5 + $0xc] sm:$0xf] %vm3638, %v3549
        %3643 = vst.msk [vmem:[#allocation5 + $0x10] sm:$0xf] %vm3638, %v3551
        %3644 = vst.msk [vmem:[#allocation5 + $0x14] sm:$0xf] %vm3638, %v3553
        %3645 = vst.msk [vmem:[#allocation5 + $0x18] sm:$0xf] %vm3638, %v3555
        %3646 = vst.msk [vmem:[#allocation5 + $0x1c] sm:$0xf] %vm3638, %v3557
        %3647 = vst.msk [vmem:[#allocation5 + $0x20] sm:$0xf] %vm3638, %v3559
        %3648 = vst.msk [vmem:[#allocation5 + $0x24] sm:$0xf] %vm3638, %v3561
        %3649 = vst.msk [vmem:[#allocation5 + $0x28] sm:$0xf] %vm3638, %v3563
        %3650 = vst.msk [vmem:[#allocation5 + $0x2c] sm:$0xf] %vm3638, %v3565
        %3651 = vst.msk [vmem:[#allocation5 + $0x30] sm:$0xf] %vm3638, %v3567
        %3652 = vst.msk [vmem:[#allocation5 + $0x34] sm:$0xf] %vm3638, %v3569
        %3653 = vst.msk [vmem:[#allocation5 + $0x38] sm:$0xf] %vm3638, %v3571
        %3654 = vst.msk [vmem:[#allocation5 + $0x3c] sm:$0xf] %vm3638, %v3573
        %3655 = vst.msk [vmem:[#allocation5 + $0x40] sm:$0xf] %vm3638, %v3575
        %3656 = vst.msk [vmem:[#allocation5 + $0x44] sm:$0xf] %vm3638, %v3577
        %3657 = vst.msk [vmem:[#allocation5 + $0x48] sm:$0xf] %vm3638, %v3579
        %3658 = vst.msk [vmem:[#allocation5 + $0x4c] sm:$0xf] %vm3638, %v3581
        %3659 = vst.msk [vmem:[#allocation5 + $0x50] sm:$0xf] %vm3638, %v3583
        %3660 = vst.msk [vmem:[#allocation5 + $0x54] sm:$0xf] %vm3638, %v3585
        %3661 = vst.msk [vmem:[#allocation5 + $0x58] sm:$0xf] %vm3638, %v3587
        %3662 = vst.msk [vmem:[#allocation5 + $0x5c] sm:$0xf] %vm3638, %v3589
        %3663 = vst.msk [vmem:[#allocation5 + $0x60] sm:$0xf] %vm3638, %v3591
        %3664 = vst.msk [vmem:[#allocation5 + $0x64] sm:$0xf] %vm3638, %v3593
        %3665 = vst.msk [vmem:[#allocation5 + $0x68] sm:$0xf] %vm3638, %v3595
        %3666 = vst.msk [vmem:[#allocation5 + $0x6c] sm:$0xf] %vm3638, %v3597
        %3667 = vst.msk [vmem:[#allocation5 + $0x70] sm:$0xf] %vm3638, %v3599
        %3668 = vst.msk [vmem:[#allocation5 + $0x74] sm:$0xf] %vm3638, %v3601
        %3669 = vst.msk [vmem:[#allocation5 + $0x78] sm:$0xf] %vm3638, %v3603
        %3670 = vst.msk [vmem:[#allocation5 + $0x7c] sm:$0xf] %vm3638, %v3605
        %v3671 = vld [vmem:[%s2641 + $0x2] sm:$0xff]
        %v3672 = vld [vmem:[%s2641 + $0xa] sm:$0xff]
        %v3673 = vld [vmem:[%s2641 + $0x1a] sm:$0xff]
        %v3674 = vld [vmem:[%s2641 + $0x22] sm:$0xff]
        %v3675 = vld [vmem:[%s2641 + $0x32] sm:$0xff]
        %v3676 = vld [vmem:[%s2641 + $0x3a] sm:$0xff]
        %v3677 = vld [vmem:[%s2641 + $0x4a] sm:$0xff]
        %v3678 = vld [vmem:[%s2641 + $0x52] sm:$0xff]
        %v3679 = vld [vmem:[%s2641 + $0x62] sm:$0xff]
        %v3680 = vld [vmem:[%s2641 + $0x6a] sm:$0xff]
        %v3681 = vld [vmem:[%s2641 + $0x7a] sm:$0xff]
        %v3682 = vld [vmem:[%s2641 + $0x82] sm:$0xff]
        %v3683 = vld [vmem:[%s2641 + $0x92] sm:$0xff]
        %v3684 = vld [vmem:[%s2641 + $0x9a] sm:$0xff]
        %v3685 = vld [vmem:[%s2641 + $0xaa] sm:$0xff]
        %v3686 = vld [vmem:[%s2641 + $0xb2] sm:$0xff]
        %v3687 = vld [vmem:[%s2641 + $0xc2] sm:$0xff]
        %v3688 = vld [vmem:[%s2641 + $0xca] sm:$0xff]
        %v3689 = vld [vmem:[%s2641 + $0xda] sm:$0xff]
        %v3690 = vld [vmem:[%s2641 + $0xe2] sm:$0xff]
        %v3691 = vld [vmem:[%s2641 + $0xf2] sm:$0xff]
        %v3692 = vld [vmem:[%s2641 + $0xfa] sm:$0xff]
        %v3693 = vld [vmem:[%s2641 + $0x10a] sm:$0xff]
        %v3694 = vld [vmem:[%s2641 + $0x112] sm:$0xff]
        %v3695 = vld [vmem:[%s2641 + $0x122] sm:$0xff]
        %v3696 = vld [vmem:[%s2641 + $0x12a] sm:$0xff]
        %v3697 = vld [vmem:[%s2641 + $0x13a] sm:$0xff]
        %v3698 = vld [vmem:[%s2641 + $0x142] sm:$0xff]
        %v3699 = vld [vmem:[%s2641 + $0x152] sm:$0xff]
        %v3700 = vld [vmem:[%s2641 + $0x15a] sm:$0xff]
        %v3701 = vld [vmem:[%s2641 + $0x16a] sm:$0xff]
        %v3702 = vld [vmem:[%s2641 + $0x172] sm:$0xff]
        %v3703 = vpack.c.bf16 %v3671, %v3671
        %v3704 = vpack.c.bf16 %v3672, %v3672
        %v3705 = vpack.c.bf16 %v3673, %v3673
        %v3706 = vpack.c.bf16 %v3674, %v3674
        %v3707 = vpack.c.bf16 %v3675, %v3675
        %v3708 = vpack.c.bf16 %v3676, %v3676
        %v3709 = vpack.c.bf16 %v3677, %v3677
        %v3710 = vpack.c.bf16 %v3678, %v3678
        %v3711 = vpack.c.bf16 %v3679, %v3679
        %v3712 = vpack.c.bf16 %v3680, %v3680
        %v3713 = vpack.c.bf16 %v3681, %v3681
        %v3714 = vpack.c.bf16 %v3682, %v3682
        %v3715 = vpack.c.bf16 %v3683, %v3683
        %v3716 = vpack.c.bf16 %v3684, %v3684
        %v3717 = vpack.c.bf16 %v3685, %v3685
        %v3718 = vpack.c.bf16 %v3686, %v3686
        %v3719 = vpack.c.bf16 %v3687, %v3687
        %v3720 = vpack.c.bf16 %v3688, %v3688
        %v3721 = vpack.c.bf16 %v3689, %v3689
        %v3722 = vpack.c.bf16 %v3690, %v3690
        %v3723 = vpack.c.bf16 %v3691, %v3691
        %v3724 = vpack.c.bf16 %v3692, %v3692
        %v3725 = vpack.c.bf16 %v3693, %v3693
        %v3726 = vpack.c.bf16 %v3694, %v3694
        %v3727 = vpack.c.bf16 %v3695, %v3695
        %v3728 = vpack.c.bf16 %v3696, %v3696
        %v3729 = vpack.c.bf16 %v3697, %v3697
        %v3730 = vpack.c.bf16 %v3698, %v3698
        %v3731 = vpack.c.bf16 %v3699, %v3699
        %v3732 = vpack.c.bf16 %v3700, %v3700
        %v3733 = vpack.c.bf16 %v3701, %v3701
        %v3734 = vpack.c.bf16 %v3702, %v3702
        %3767 = vrot.lane.b32.xlu0 %v3703, 40
        %v3768 = vpop.permute.xlu0 %3767
        %3769 = vrot.lane.b32.xlu0 %v3704, 40
        %v3770 = vpop.permute.xlu0 %3769
        %3771 = vrot.lane.b32.xlu0 %v3705, 40
        %v3772 = vpop.permute.xlu0 %3771
        %3773 = vrot.lane.b32.xlu0 %v3706, 40
        %v3774 = vpop.permute.xlu0 %3773
        %3775 = vrot.lane.b32.xlu0 %v3707, 40
        %v3776 = vpop.permute.xlu0 %3775
        %3777 = vrot.lane.b32.xlu0 %v3708, 40
        %v3778 = vpop.permute.xlu0 %3777
        %3779 = vrot.lane.b32.xlu0 %v3709, 40
        %v3780 = vpop.permute.xlu0 %3779
        %3781 = vrot.lane.b32.xlu0 %v3710, 40
        %v3782 = vpop.permute.xlu0 %3781
        %3783 = vrot.lane.b32.xlu0 %v3711, 40
        %v3784 = vpop.permute.xlu0 %3783
        %3785 = vrot.lane.b32.xlu0 %v3712, 40
        %v3786 = vpop.permute.xlu0 %3785
        %3787 = vrot.lane.b32.xlu0 %v3713, 40
        %v3788 = vpop.permute.xlu0 %3787
        %3789 = vrot.lane.b32.xlu0 %v3714, 40
        %v3790 = vpop.permute.xlu0 %3789
        %3791 = vrot.lane.b32.xlu0 %v3715, 40
        %v3792 = vpop.permute.xlu0 %3791
        %3793 = vrot.lane.b32.xlu0 %v3716, 40
        %v3794 = vpop.permute.xlu0 %3793
        %3795 = vrot.lane.b32.xlu0 %v3717, 40
        %v3796 = vpop.permute.xlu0 %3795
        %3797 = vrot.lane.b32.xlu0 %v3718, 40
        %v3798 = vpop.permute.xlu0 %3797
        %3799 = vrot.lane.b32.xlu0 %v3719, 40
        %v3800 = vpop.permute.xlu0 %3799
        %3801 = vrot.lane.b32.xlu0 %v3720, 40
        %v3802 = vpop.permute.xlu0 %3801
        %3803 = vrot.lane.b32.xlu0 %v3721, 40
        %v3804 = vpop.permute.xlu0 %3803
        %3805 = vrot.lane.b32.xlu0 %v3722, 40
        %v3806 = vpop.permute.xlu0 %3805
        %3807 = vrot.lane.b32.xlu0 %v3723, 40
        %v3808 = vpop.permute.xlu0 %3807
        %3809 = vrot.lane.b32.xlu0 %v3724, 40
        %v3810 = vpop.permute.xlu0 %3809
        %3811 = vrot.lane.b32.xlu0 %v3725, 40
        %v3812 = vpop.permute.xlu0 %3811
        %3813 = vrot.lane.b32.xlu0 %v3726, 40
        %v3814 = vpop.permute.xlu0 %3813
        %3815 = vrot.lane.b32.xlu0 %v3727, 40
        %v3816 = vpop.permute.xlu0 %3815
        %3817 = vrot.lane.b32.xlu0 %v3728, 40
        %v3818 = vpop.permute.xlu0 %3817
        %3819 = vrot.lane.b32.xlu0 %v3729, 40
        %v3820 = vpop.permute.xlu0 %3819
        %3821 = vrot.lane.b32.xlu0 %v3730, 40
        %v3822 = vpop.permute.xlu0 %3821
        %3823 = vrot.lane.b32.xlu0 %v3731, 40
        %v3824 = vpop.permute.xlu0 %3823
        %3825 = vrot.lane.b32.xlu0 %v3732, 40
        %v3826 = vpop.permute.xlu0 %3825
        %3827 = vrot.lane.b32.xlu0 %v3733, 40
        %v3828 = vpop.permute.xlu0 %3827
        %3829 = vrot.lane.b32.xlu0 %v3734, 40
        %v3830 = vpop.permute.xlu0 %3829
        %vm3863 = vcmask 388416
        %3864 = vst.msk [vmem:[#allocation5] sm:$0xf] %vm3863, %v3768
        %3865 = vst.msk [vmem:[#allocation5 + $0x4] sm:$0xf] %vm3863, %v3770
        %3866 = vst.msk [vmem:[#allocation5 + $0x8] sm:$0xf] %vm3863, %v3772
        %3867 = vst.msk [vmem:[#allocation5 + $0xc] sm:$0xf] %vm3863, %v3774
        %3868 = vst.msk [vmem:[#allocation5 + $0x10] sm:$0xf] %vm3863, %v3776
        %3869 = vst.msk [vmem:[#allocation5 + $0x14] sm:$0xf] %vm3863, %v3778
        %3870 = vst.msk [vmem:[#allocation5 + $0x18] sm:$0xf] %vm3863, %v3780
        %3871 = vst.msk [vmem:[#allocation5 + $0x1c] sm:$0xf] %vm3863, %v3782
        %3872 = vst.msk [vmem:[#allocation5 + $0x20] sm:$0xf] %vm3863, %v3784
        %3873 = vst.msk [vmem:[#allocation5 + $0x24] sm:$0xf] %vm3863, %v3786
        %3874 = vst.msk [vmem:[#allocation5 + $0x28] sm:$0xf] %vm3863, %v3788
        %3875 = vst.msk [vmem:[#allocation5 + $0x2c] sm:$0xf] %vm3863, %v3790
        %3876 = vst.msk [vmem:[#allocation5 + $0x30] sm:$0xf] %vm3863, %v3792
        %3877 = vst.msk [vmem:[#allocation5 + $0x34] sm:$0xf] %vm3863, %v3794
        %3878 = vst.msk [vmem:[#allocation5 + $0x38] sm:$0xf] %vm3863, %v3796
        %3879 = vst.msk [vmem:[#allocation5 + $0x3c] sm:$0xf] %vm3863, %v3798
        %3880 = vst.msk [vmem:[#allocation5 + $0x40] sm:$0xf] %vm3863, %v3800
        %3881 = vst.msk [vmem:[#allocation5 + $0x44] sm:$0xf] %vm3863, %v3802
        %3882 = vst.msk [vmem:[#allocation5 + $0x48] sm:$0xf] %vm3863, %v3804
        %3883 = vst.msk [vmem:[#allocation5 + $0x4c] sm:$0xf] %vm3863, %v3806
        %3884 = vst.msk [vmem:[#allocation5 + $0x50] sm:$0xf] %vm3863, %v3808
        %3885 = vst.msk [vmem:[#allocation5 + $0x54] sm:$0xf] %vm3863, %v3810
        %3886 = vst.msk [vmem:[#allocation5 + $0x58] sm:$0xf] %vm3863, %v3812
        %3887 = vst.msk [vmem:[#allocation5 + $0x5c] sm:$0xf] %vm3863, %v3814
        %3888 = vst.msk [vmem:[#allocation5 + $0x60] sm:$0xf] %vm3863, %v3816
        %3889 = vst.msk [vmem:[#allocation5 + $0x64] sm:$0xf] %vm3863, %v3818
        %3890 = vst.msk [vmem:[#allocation5 + $0x68] sm:$0xf] %vm3863, %v3820
        %3891 = vst.msk [vmem:[#allocation5 + $0x6c] sm:$0xf] %vm3863, %v3822
        %3892 = vst.msk [vmem:[#allocation5 + $0x70] sm:$0xf] %vm3863, %v3824
        %3893 = vst.msk [vmem:[#allocation5 + $0x74] sm:$0xf] %vm3863, %v3826
        %3894 = vst.msk [vmem:[#allocation5 + $0x78] sm:$0xf] %vm3863, %v3828
        %3895 = vst.msk [vmem:[#allocation5 + $0x7c] sm:$0xf] %vm3863, %v3830
        %s3896 = scalar_lea.vmem [#allocation4], 48
        %v3897 = vld [vmem:[%s3896] sm:$0xff]
        %v3898 = vld [vmem:[%s3896 + $0x8] sm:$0xff]
        %v3899 = vld [vmem:[%s3896 + $0x18] sm:$0xff]
        %v3900 = vld [vmem:[%s3896 + $0x20] sm:$0xff]
        %v3901 = vld [vmem:[%s3896 + $0x30] sm:$0xff]
        %v3902 = vld [vmem:[%s3896 + $0x38] sm:$0xff]
        %v3903 = vld [vmem:[%s3896 + $0x48] sm:$0xff]
        %v3904 = vld [vmem:[%s3896 + $0x50] sm:$0xff]
        %v3905 = vld [vmem:[%s3896 + $0x60] sm:$0xff]
        %v3906 = vld [vmem:[%s3896 + $0x68] sm:$0xff]
        %v3907 = vld [vmem:[%s3896 + $0x78] sm:$0xff]
        %v3908 = vld [vmem:[%s3896 + $0x80] sm:$0xff]
        %v3909 = vld [vmem:[%s3896 + $0x90] sm:$0xff]
        %v3910 = vld [vmem:[%s3896 + $0x98] sm:$0xff]
        %v3911 = vld [vmem:[%s3896 + $0xa8] sm:$0xff]
        %v3912 = vld [vmem:[%s3896 + $0xb0] sm:$0xff]
        %v3913 = vld [vmem:[%s3896 + $0xc0] sm:$0xff]
        %v3914 = vld [vmem:[%s3896 + $0xc8] sm:$0xff]
        %v3915 = vld [vmem:[%s3896 + $0xd8] sm:$0xff]
        %v3916 = vld [vmem:[%s3896 + $0xe0] sm:$0xff]
        %v3917 = vld [vmem:[%s3896 + $0xf0] sm:$0xff]
        %v3918 = vld [vmem:[%s3896 + $0xf8] sm:$0xff]
        %v3919 = vld [vmem:[%s3896 + $0x108] sm:$0xff]
        %v3920 = vld [vmem:[%s3896 + $0x110] sm:$0xff]
        %v3921 = vld [vmem:[%s3896 + $0x120] sm:$0xff]
        %v3922 = vld [vmem:[%s3896 + $0x128] sm:$0xff]
        %v3923 = vld [vmem:[%s3896 + $0x138] sm:$0xff]
        %v3924 = vld [vmem:[%s3896 + $0x140] sm:$0xff]
        %v3925 = vld [vmem:[%s3896 + $0x150] sm:$0xff]
        %v3926 = vld [vmem:[%s3896 + $0x158] sm:$0xff]
        %v3927 = vld [vmem:[%s3896 + $0x168] sm:$0xff]
        %v3928 = vld [vmem:[%s3896 + $0x170] sm:$0xff]
        %v3929 = vpack.c.bf16 %v3897, %v3897
        %v3930 = vpack.c.bf16 %v3898, %v3898
        %v3931 = vpack.c.bf16 %v3899, %v3899
        %v3932 = vpack.c.bf16 %v3900, %v3900
        %v3933 = vpack.c.bf16 %v3901, %v3901
        %v3934 = vpack.c.bf16 %v3902, %v3902
        %v3935 = vpack.c.bf16 %v3903, %v3903
        %v3936 = vpack.c.bf16 %v3904, %v3904
        %v3937 = vpack.c.bf16 %v3905, %v3905
        %v3938 = vpack.c.bf16 %v3906, %v3906
        %v3939 = vpack.c.bf16 %v3907, %v3907
        %v3940 = vpack.c.bf16 %v3908, %v3908
        %v3941 = vpack.c.bf16 %v3909, %v3909
        %v3942 = vpack.c.bf16 %v3910, %v3910
        %v3943 = vpack.c.bf16 %v3911, %v3911
        %v3944 = vpack.c.bf16 %v3912, %v3912
        %v3945 = vpack.c.bf16 %v3913, %v3913
        %v3946 = vpack.c.bf16 %v3914, %v3914
        %v3947 = vpack.c.bf16 %v3915, %v3915
        %v3948 = vpack.c.bf16 %v3916, %v3916
        %v3949 = vpack.c.bf16 %v3917, %v3917
        %v3950 = vpack.c.bf16 %v3918, %v3918
        %v3951 = vpack.c.bf16 %v3919, %v3919
        %v3952 = vpack.c.bf16 %v3920, %v3920
        %v3953 = vpack.c.bf16 %v3921, %v3921
        %v3954 = vpack.c.bf16 %v3922, %v3922
        %v3955 = vpack.c.bf16 %v3923, %v3923
        %v3956 = vpack.c.bf16 %v3924, %v3924
        %v3957 = vpack.c.bf16 %v3925, %v3925
        %v3958 = vpack.c.bf16 %v3926, %v3926
        %v3959 = vpack.c.bf16 %v3927, %v3927
        %v3960 = vpack.c.bf16 %v3928, %v3928
        %3993 = vrot.lane.b32.xlu0 %v3929, 48
        %v3994 = vpop.permute.xlu0 %3993
        %3995 = vrot.lane.b32.xlu0 %v3930, 48
        %v3996 = vpop.permute.xlu0 %3995
        %3997 = vrot.lane.b32.xlu0 %v3931, 48
        %v3998 = vpop.permute.xlu0 %3997
        %3999 = vrot.lane.b32.xlu0 %v3932, 48
        %v4000 = vpop.permute.xlu0 %3999
        %4001 = vrot.lane.b32.xlu0 %v3933, 48
        %v4002 = vpop.permute.xlu0 %4001
        %4003 = vrot.lane.b32.xlu0 %v3934, 48
        %v4004 = vpop.permute.xlu0 %4003
        %4005 = vrot.lane.b32.xlu0 %v3935, 48
        %v4006 = vpop.permute.xlu0 %4005
        %4007 = vrot.lane.b32.xlu0 %v3936, 48
        %v4008 = vpop.permute.xlu0 %4007
        %4009 = vrot.lane.b32.xlu0 %v3937, 48
        %v4010 = vpop.permute.xlu0 %4009
        %4011 = vrot.lane.b32.xlu0 %v3938, 48
        %v4012 = vpop.permute.xlu0 %4011
        %4013 = vrot.lane.b32.xlu0 %v3939, 48
        %v4014 = vpop.permute.xlu0 %4013
        %4015 = vrot.lane.b32.xlu0 %v3940, 48
        %v4016 = vpop.permute.xlu0 %4015
        %4017 = vrot.lane.b32.xlu0 %v3941, 48
        %v4018 = vpop.permute.xlu0 %4017
        %4019 = vrot.lane.b32.xlu0 %v3942, 48
        %v4020 = vpop.permute.xlu0 %4019
        %4021 = vrot.lane.b32.xlu0 %v3943, 48
        %v4022 = vpop.permute.xlu0 %4021
        %4023 = vrot.lane.b32.xlu0 %v3944, 48
        %v4024 = vpop.permute.xlu0 %4023
        %4025 = vrot.lane.b32.xlu0 %v3945, 48
        %v4026 = vpop.permute.xlu0 %4025
        %4027 = vrot.lane.b32.xlu0 %v3946, 48
        %v4028 = vpop.permute.xlu0 %4027
        %4029 = vrot.lane.b32.xlu0 %v3947, 48
        %v4030 = vpop.permute.xlu0 %4029
        %4031 = vrot.lane.b32.xlu0 %v3948, 48
        %v4032 = vpop.permute.xlu0 %4031
        %4033 = vrot.lane.b32.xlu0 %v3949, 48
        %v4034 = vpop.permute.xlu0 %4033
        %4035 = vrot.lane.b32.xlu0 %v3950, 48
        %v4036 = vpop.permute.xlu0 %4035
        %4037 = vrot.lane.b32.xlu0 %v3951, 48
        %v4038 = vpop.permute.xlu0 %4037
        %4039 = vrot.lane.b32.xlu0 %v3952, 48
        %v4040 = vpop.permute.xlu0 %4039
        %4041 = vrot.lane.b32.xlu0 %v3953, 48
        %v4042 = vpop.permute.xlu0 %4041
        %4043 = vrot.lane.b32.xlu0 %v3954, 48
        %v4044 = vpop.permute.xlu0 %4043
        %4045 = vrot.lane.b32.xlu0 %v3955, 48
        %v4046 = vpop.permute.xlu0 %4045
        %4047 = vrot.lane.b32.xlu0 %v3956, 48
        %v4048 = vpop.permute.xlu0 %4047
        %4049 = vrot.lane.b32.xlu0 %v3957, 48
        %v4050 = vpop.permute.xlu0 %4049
        %4051 = vrot.lane.b32.xlu0 %v3958, 48
        %v4052 = vpop.permute.xlu0 %4051
        %4053 = vrot.lane.b32.xlu0 %v3959, 48
        %v4054 = vpop.permute.xlu0 %4053
        %4055 = vrot.lane.b32.xlu0 %v3960, 48
        %v4056 = vpop.permute.xlu0 %4055
        %vm4089 = vcmask 454016
        %4090 = vst.msk [vmem:[#allocation5] sm:$0xf] %vm4089, %v3994
        %4091 = vst.msk [vmem:[#allocation5 + $0x4] sm:$0xf] %vm4089, %v3996
        %4092 = vst.msk [vmem:[#allocation5 + $0x8] sm:$0xf] %vm4089, %v3998
        %4093 = vst.msk [vmem:[#allocation5 + $0xc] sm:$0xf] %vm4089, %v4000
        %4094 = vst.msk [vmem:[#allocation5 + $0x10] sm:$0xf] %vm4089, %v4002
        %4095 = vst.msk [vmem:[#allocation5 + $0x14] sm:$0xf] %vm4089, %v4004
        %4096 = vst.msk [vmem:[#allocation5 + $0x18] sm:$0xf] %vm4089, %v4006
        %4097 = vst.msk [vmem:[#allocation5 + $0x1c] sm:$0xf] %vm4089, %v4008
        %4098 = vst.msk [vmem:[#allocation5 + $0x20] sm:$0xf] %vm4089, %v4010
        %4099 = vst.msk [vmem:[#allocation5 + $0x24] sm:$0xf] %vm4089, %v4012
        %4100 = vst.msk [vmem:[#allocation5 + $0x28] sm:$0xf] %vm4089, %v4014
        %4101 = vst.msk [vmem:[#allocation5 + $0x2c] sm:$0xf] %vm4089, %v4016
        %4102 = vst.msk [vmem:[#allocation5 + $0x30] sm:$0xf] %vm4089, %v4018
        %4103 = vst.msk [vmem:[#allocation5 + $0x34] sm:$0xf] %vm4089, %v4020
        %4104 = vst.msk [vmem:[#allocation5 + $0x38] sm:$0xf] %vm4089, %v4022
        %4105 = vst.msk [vmem:[#allocation5 + $0x3c] sm:$0xf] %vm4089, %v4024
        %4106 = vst.msk [vmem:[#allocation5 + $0x40] sm:$0xf] %vm4089, %v4026
        %4107 = vst.msk [vmem:[#allocation5 + $0x44] sm:$0xf] %vm4089, %v4028
        %4108 = vst.msk [vmem:[#allocation5 + $0x48] sm:$0xf] %vm4089, %v4030
        %4109 = vst.msk [vmem:[#allocation5 + $0x4c] sm:$0xf] %vm4089, %v4032
        %4110 = vst.msk [vmem:[#allocation5 + $0x50] sm:$0xf] %vm4089, %v4034
        %4111 = vst.msk [vmem:[#allocation5 + $0x54] sm:$0xf] %vm4089, %v4036
        %4112 = vst.msk [vmem:[#allocation5 + $0x58] sm:$0xf] %vm4089, %v4038
        %4113 = vst.msk [vmem:[#allocation5 + $0x5c] sm:$0xf] %vm4089, %v4040
        %4114 = vst.msk [vmem:[#allocation5 + $0x60] sm:$0xf] %vm4089, %v4042
        %4115 = vst.msk [vmem:[#allocation5 + $0x64] sm:$0xf] %vm4089, %v4044
        %4116 = vst.msk [vmem:[#allocation5 + $0x68] sm:$0xf] %vm4089, %v4046
        %4117 = vst.msk [vmem:[#allocation5 + $0x6c] sm:$0xf] %vm4089, %v4048
        %4118 = vst.msk [vmem:[#allocation5 + $0x70] sm:$0xf] %vm4089, %v4050
        %4119 = vst.msk [vmem:[#allocation5 + $0x74] sm:$0xf] %vm4089, %v4052
        %4120 = vst.msk [vmem:[#allocation5 + $0x78] sm:$0xf] %vm4089, %v4054
        %4121 = vst.msk [vmem:[#allocation5 + $0x7c] sm:$0xf] %vm4089, %v4056
        %v4122 = vld [vmem:[%s3896 + $0x1] sm:$0xff]
        %v4123 = vld [vmem:[%s3896 + $0x9] sm:$0xff]
        %v4124 = vld [vmem:[%s3896 + $0x19] sm:$0xff]
        %v4125 = vld [vmem:[%s3896 + $0x21] sm:$0xff]
        %v4126 = vld [vmem:[%s3896 + $0x31] sm:$0xff]
        %v4127 = vld [vmem:[%s3896 + $0x39] sm:$0xff]
        %v4128 = vld [vmem:[%s3896 + $0x49] sm:$0xff]
        %v4129 = vld [vmem:[%s3896 + $0x51] sm:$0xff]
        %v4130 = vld [vmem:[%s3896 + $0x61] sm:$0xff]
        %v4131 = vld [vmem:[%s3896 + $0x69] sm:$0xff]
        %v4132 = vld [vmem:[%s3896 + $0x79] sm:$0xff]
        %v4133 = vld [vmem:[%s3896 + $0x81] sm:$0xff]
        %v4134 = vld [vmem:[%s3896 + $0x91] sm:$0xff]
        %v4135 = vld [vmem:[%s3896 + $0x99] sm:$0xff]
        %v4136 = vld [vmem:[%s3896 + $0xa9] sm:$0xff]
        %v4137 = vld [vmem:[%s3896 + $0xb1] sm:$0xff]
        %v4138 = vld [vmem:[%s3896 + $0xc1] sm:$0xff]
        %v4139 = vld [vmem:[%s3896 + $0xc9] sm:$0xff]
        %v4140 = vld [vmem:[%s3896 + $0xd9] sm:$0xff]
        %v4141 = vld [vmem:[%s3896 + $0xe1] sm:$0xff]
        %v4142 = vld [vmem:[%s3896 + $0xf1] sm:$0xff]
        %v4143 = vld [vmem:[%s3896 + $0xf9] sm:$0xff]
        %v4144 = vld [vmem:[%s3896 + $0x109] sm:$0xff]
        %v4145 = vld [vmem:[%s3896 + $0x111] sm:$0xff]
        %v4146 = vld [vmem:[%s3896 + $0x121] sm:$0xff]
        %v4147 = vld [vmem:[%s3896 + $0x129] sm:$0xff]
        %v4148 = vld [vmem:[%s3896 + $0x139] sm:$0xff]
        %v4149 = vld [vmem:[%s3896 + $0x141] sm:$0xff]
        %v4150 = vld [vmem:[%s3896 + $0x151] sm:$0xff]
        %v4151 = vld [vmem:[%s3896 + $0x159] sm:$0xff]
        %v4152 = vld [vmem:[%s3896 + $0x169] sm:$0xff]
        %v4153 = vld [vmem:[%s3896 + $0x171] sm:$0xff]
        %v4154 = vpack.c.bf16 %v4122, %v4122
        %v4155 = vpack.c.bf16 %v4123, %v4123
        %v4156 = vpack.c.bf16 %v4124, %v4124
        %v4157 = vpack.c.bf16 %v4125, %v4125
        %v4158 = vpack.c.bf16 %v4126, %v4126
        %v4159 = vpack.c.bf16 %v4127, %v4127
        %v4160 = vpack.c.bf16 %v4128, %v4128
        %v4161 = vpack.c.bf16 %v4129, %v4129
        %v4162 = vpack.c.bf16 %v4130, %v4130
        %v4163 = vpack.c.bf16 %v4131, %v4131
        %v4164 = vpack.c.bf16 %v4132, %v4132
        %v4165 = vpack.c.bf16 %v4133, %v4133
        %v4166 = vpack.c.bf16 %v4134, %v4134
        %v4167 = vpack.c.bf16 %v4135, %v4135
        %v4168 = vpack.c.bf16 %v4136, %v4136
        %v4169 = vpack.c.bf16 %v4137, %v4137
        %v4170 = vpack.c.bf16 %v4138, %v4138
        %v4171 = vpack.c.bf16 %v4139, %v4139
        %v4172 = vpack.c.bf16 %v4140, %v4140
        %v4173 = vpack.c.bf16 %v4141, %v4141
        %v4174 = vpack.c.bf16 %v4142, %v4142
        %v4175 = vpack.c.bf16 %v4143, %v4143
        %v4176 = vpack.c.bf16 %v4144, %v4144
        %v4177 = vpack.c.bf16 %v4145, %v4145
        %v4178 = vpack.c.bf16 %v4146, %v4146
        %v4179 = vpack.c.bf16 %v4147, %v4147
        %v4180 = vpack.c.bf16 %v4148, %v4148
        %v4181 = vpack.c.bf16 %v4149, %v4149
        %v4182 = vpack.c.bf16 %v4150, %v4150
        %v4183 = vpack.c.bf16 %v4151, %v4151
        %v4184 = vpack.c.bf16 %v4152, %v4152
        %v4185 = vpack.c.bf16 %v4153, %v4153
        %4218 = vrot.lane.b32.xlu0 %v4154, 56
        %v4219 = vpop.permute.xlu0 %4218
        %4220 = vrot.lane.b32.xlu0 %v4155, 56
        %v4221 = vpop.permute.xlu0 %4220
        %4222 = vrot.lane.b32.xlu0 %v4156, 56
        %v4223 = vpop.permute.xlu0 %4222
        %4224 = vrot.lane.b32.xlu0 %v4157, 56
        %v4225 = vpop.permute.xlu0 %4224
        %4226 = vrot.lane.b32.xlu0 %v4158, 56
        %v4227 = vpop.permute.xlu0 %4226
        %4228 = vrot.lane.b32.xlu0 %v4159, 56
        %v4229 = vpop.permute.xlu0 %4228
        %4230 = vrot.lane.b32.xlu0 %v4160, 56
        %v4231 = vpop.permute.xlu0 %4230
        %4232 = vrot.lane.b32.xlu0 %v4161, 56
        %v4233 = vpop.permute.xlu0 %4232
        %4234 = vrot.lane.b32.xlu0 %v4162, 56
        %v4235 = vpop.permute.xlu0 %4234
        %4236 = vrot.lane.b32.xlu0 %v4163, 56
        %v4237 = vpop.permute.xlu0 %4236
        %4238 = vrot.lane.b32.xlu0 %v4164, 56
        %v4239 = vpop.permute.xlu0 %4238
        %4240 = vrot.lane.b32.xlu0 %v4165, 56
        %v4241 = vpop.permute.xlu0 %4240
        %4242 = vrot.lane.b32.xlu0 %v4166, 56
        %v4243 = vpop.permute.xlu0 %4242
        %4244 = vrot.lane.b32.xlu0 %v4167, 56
        %v4245 = vpop.permute.xlu0 %4244
        %4246 = vrot.lane.b32.xlu0 %v4168, 56
        %v4247 = vpop.permute.xlu0 %4246
        %4248 = vrot.lane.b32.xlu0 %v4169, 56
        %v4249 = vpop.permute.xlu0 %4248
        %4250 = vrot.lane.b32.xlu0 %v4170, 56
        %v4251 = vpop.permute.xlu0 %4250
        %4252 = vrot.lane.b32.xlu0 %v4171, 56
        %v4253 = vpop.permute.xlu0 %4252
        %4254 = vrot.lane.b32.xlu0 %v4172, 56
        %v4255 = vpop.permute.xlu0 %4254
        %4256 = vrot.lane.b32.xlu0 %v4173, 56
        %v4257 = vpop.permute.xlu0 %4256
        %4258 = vrot.lane.b32.xlu0 %v4174, 56
        %v4259 = vpop.permute.xlu0 %4258
        %4260 = vrot.lane.b32.xlu0 %v4175, 56
        %v4261 = vpop.permute.xlu0 %4260
        %4262 = vrot.lane.b32.xlu0 %v4176, 56
        %v4263 = vpop.permute.xlu0 %4262
        %4264 = vrot.lane.b32.xlu0 %v4177, 56
        %v4265 = vpop.permute.xlu0 %4264
        %4266 = vrot.lane.b32.xlu0 %v4178, 56
        %v4267 = vpop.permute.xlu0 %4266
        %4268 = vrot.lane.b32.xlu0 %v4179, 56
        %v4269 = vpop.permute.xlu0 %4268
        %4270 = vrot.lane.b32.xlu0 %v4180, 56
        %v4271 = vpop.permute.xlu0 %4270
        %4272 = vrot.lane.b32.xlu0 %v4181, 56
        %v4273 = vpop.permute.xlu0 %4272
        %4274 = vrot.lane.b32.xlu0 %v4182, 56
        %v4275 = vpop.permute.xlu0 %4274
        %4276 = vrot.lane.b32.xlu0 %v4183, 56
        %v4277 = vpop.permute.xlu0 %4276
        %4278 = vrot.lane.b32.xlu0 %v4184, 56
        %v4279 = vpop.permute.xlu0 %4278
        %4280 = vrot.lane.b32.xlu0 %v4185, 56
        %v4281 = vpop.permute.xlu0 %4280
        %vm4314 = vcmask 519616
        %4315 = vst.msk [vmem:[#allocation5] sm:$0xf] %vm4314, %v4219
        %4316 = vst.msk [vmem:[#allocation5 + $0x4] sm:$0xf] %vm4314, %v4221
        %4317 = vst.msk [vmem:[#allocation5 + $0x8] sm:$0xf] %vm4314, %v4223
        %4318 = vst.msk [vmem:[#allocation5 + $0xc] sm:$0xf] %vm4314, %v4225
        %4319 = vst.msk [vmem:[#allocation5 + $0x10] sm:$0xf] %vm4314, %v4227
        %4320 = vst.msk [vmem:[#allocation5 + $0x14] sm:$0xf] %vm4314, %v4229
        %4321 = vst.msk [vmem:[#allocation5 + $0x18] sm:$0xf] %vm4314, %v4231
        %4322 = vst.msk [vmem:[#allocation5 + $0x1c] sm:$0xf] %vm4314, %v4233
        %4323 = vst.msk [vmem:[#allocation5 + $0x20] sm:$0xf] %vm4314, %v4235
        %4324 = vst.msk [vmem:[#allocation5 + $0x24] sm:$0xf] %vm4314, %v4237
        %4325 = vst.msk [vmem:[#allocation5 + $0x28] sm:$0xf] %vm4314, %v4239
        %4326 = vst.msk [vmem:[#allocation5 + $0x2c] sm:$0xf] %vm4314, %v4241
        %4327 = vst.msk [vmem:[#allocation5 + $0x30] sm:$0xf] %vm4314, %v4243
        %4328 = vst.msk [vmem:[#allocation5 + $0x34] sm:$0xf] %vm4314, %v4245
        %4329 = vst.msk [vmem:[#allocation5 + $0x38] sm:$0xf] %vm4314, %v4247
        %4330 = vst.msk [vmem:[#allocation5 + $0x3c] sm:$0xf] %vm4314, %v4249
        %4331 = vst.msk [vmem:[#allocation5 + $0x40] sm:$0xf] %vm4314, %v4251
        %4332 = vst.msk [vmem:[#allocation5 + $0x44] sm:$0xf] %vm4314, %v4253
        %4333 = vst.msk [vmem:[#allocation5 + $0x48] sm:$0xf] %vm4314, %v4255
        %4334 = vst.msk [vmem:[#allocation5 + $0x4c] sm:$0xf] %vm4314, %v4257
        %4335 = vst.msk [vmem:[#allocation5 + $0x50] sm:$0xf] %vm4314, %v4259
        %4336 = vst.msk [vmem:[#allocation5 + $0x54] sm:$0xf] %vm4314, %v4261
        %4337 = vst.msk [vmem:[#allocation5 + $0x58] sm:$0xf] %vm4314, %v4263
        %4338 = vst.msk [vmem:[#allocation5 + $0x5c] sm:$0xf] %vm4314, %v4265
        %4339 = vst.msk [vmem:[#allocation5 + $0x60] sm:$0xf] %vm4314, %v4267
        %4340 = vst.msk [vmem:[#allocation5 + $0x64] sm:$0xf] %vm4314, %v4269
        %4341 = vst.msk [vmem:[#allocation5 + $0x68] sm:$0xf] %vm4314, %v4271
        %4342 = vst.msk [vmem:[#allocation5 + $0x6c] sm:$0xf] %vm4314, %v4273
        %4343 = vst.msk [vmem:[#allocation5 + $0x70] sm:$0xf] %vm4314, %v4275
        %4344 = vst.msk [vmem:[#allocation5 + $0x74] sm:$0xf] %vm4314, %v4277
        %4345 = vst.msk [vmem:[#allocation5 + $0x78] sm:$0xf] %vm4314, %v4279
        %4346 = vst.msk [vmem:[#allocation5 + $0x7c] sm:$0xf] %vm4314, %v4281
        %v4347 = vld [vmem:[%s3896 + $0x2] sm:$0xff]
        %v4348 = vld [vmem:[%s3896 + $0xa] sm:$0xff]
        %v4349 = vld [vmem:[%s3896 + $0x1a] sm:$0xff]
        %v4350 = vld [vmem:[%s3896 + $0x22] sm:$0xff]
        %v4351 = vld [vmem:[%s3896 + $0x32] sm:$0xff]
        %v4352 = vld [vmem:[%s3896 + $0x3a] sm:$0xff]
        %v4353 = vld [vmem:[%s3896 + $0x4a] sm:$0xff]
        %v4354 = vld [vmem:[%s3896 + $0x52] sm:$0xff]
        %v4355 = vld [vmem:[%s3896 + $0x62] sm:$0xff]
        %v4356 = vld [vmem:[%s3896 + $0x6a] sm:$0xff]
        %v4357 = vld [vmem:[%s3896 + $0x7a] sm:$0xff]
        %v4358 = vld [vmem:[%s3896 + $0x82] sm:$0xff]
        %v4359 = vld [vmem:[%s3896 + $0x92] sm:$0xff]
        %v4360 = vld [vmem:[%s3896 + $0x9a] sm:$0xff]
        %v4361 = vld [vmem:[%s3896 + $0xaa] sm:$0xff]
        %v4362 = vld [vmem:[%s3896 + $0xb2] sm:$0xff]
        %v4363 = vld [vmem:[%s3896 + $0xc2] sm:$0xff]
        %v4364 = vld [vmem:[%s3896 + $0xca] sm:$0xff]
        %v4365 = vld [vmem:[%s3896 + $0xda] sm:$0xff]
        %v4366 = vld [vmem:[%s3896 + $0xe2] sm:$0xff]
        %v4367 = vld [vmem:[%s3896 + $0xf2] sm:$0xff]
        %v4368 = vld [vmem:[%s3896 + $0xfa] sm:$0xff]
        %v4369 = vld [vmem:[%s3896 + $0x10a] sm:$0xff]
        %v4370 = vld [vmem:[%s3896 + $0x112] sm:$0xff]
        %v4371 = vld [vmem:[%s3896 + $0x122] sm:$0xff]
        %v4372 = vld [vmem:[%s3896 + $0x12a] sm:$0xff]
        %v4373 = vld [vmem:[%s3896 + $0x13a] sm:$0xff]
        %v4374 = vld [vmem:[%s3896 + $0x142] sm:$0xff]
        %v4375 = vld [vmem:[%s3896 + $0x152] sm:$0xff]
        %v4376 = vld [vmem:[%s3896 + $0x15a] sm:$0xff]
        %v4377 = vld [vmem:[%s3896 + $0x16a] sm:$0xff]
        %v4378 = vld [vmem:[%s3896 + $0x172] sm:$0xff]
        %v4379 = vpack.c.bf16 %v4347, %v4347
        %v4380 = vpack.c.bf16 %v4348, %v4348
        %v4381 = vpack.c.bf16 %v4349, %v4349
        %v4382 = vpack.c.bf16 %v4350, %v4350
        %v4383 = vpack.c.bf16 %v4351, %v4351
        %v4384 = vpack.c.bf16 %v4352, %v4352
        %v4385 = vpack.c.bf16 %v4353, %v4353
        %v4386 = vpack.c.bf16 %v4354, %v4354
        %v4387 = vpack.c.bf16 %v4355, %v4355
        %v4388 = vpack.c.bf16 %v4356, %v4356
        %v4389 = vpack.c.bf16 %v4357, %v4357
        %v4390 = vpack.c.bf16 %v4358, %v4358
        %v4391 = vpack.c.bf16 %v4359, %v4359
        %v4392 = vpack.c.bf16 %v4360, %v4360
        %v4393 = vpack.c.bf16 %v4361, %v4361
        %v4394 = vpack.c.bf16 %v4362, %v4362
        %v4395 = vpack.c.bf16 %v4363, %v4363
        %v4396 = vpack.c.bf16 %v4364, %v4364
        %v4397 = vpack.c.bf16 %v4365, %v4365
        %v4398 = vpack.c.bf16 %v4366, %v4366
        %v4399 = vpack.c.bf16 %v4367, %v4367
        %v4400 = vpack.c.bf16 %v4368, %v4368
        %v4401 = vpack.c.bf16 %v4369, %v4369
        %v4402 = vpack.c.bf16 %v4370, %v4370
        %v4403 = vpack.c.bf16 %v4371, %v4371
        %v4404 = vpack.c.bf16 %v4372, %v4372
        %v4405 = vpack.c.bf16 %v4373, %v4373
        %v4406 = vpack.c.bf16 %v4374, %v4374
        %v4407 = vpack.c.bf16 %v4375, %v4375
        %v4408 = vpack.c.bf16 %v4376, %v4376
        %v4409 = vpack.c.bf16 %v4377, %v4377
        %v4410 = vpack.c.bf16 %v4378, %v4378
        %4443 = vrot.lane.b32.xlu0 %v4379, 64
        %v4444 = vpop.permute.xlu0 %4443
        %4445 = vrot.lane.b32.xlu0 %v4380, 64
        %v4446 = vpop.permute.xlu0 %4445
        %4447 = vrot.lane.b32.xlu0 %v4381, 64
        %v4448 = vpop.permute.xlu0 %4447
        %4449 = vrot.lane.b32.xlu0 %v4382, 64
        %v4450 = vpop.permute.xlu0 %4449
        %4451 = vrot.lane.b32.xlu0 %v4383, 64
        %v4452 = vpop.permute.xlu0 %4451
        %4453 = vrot.lane.b32.xlu0 %v4384, 64
        %v4454 = vpop.permute.xlu0 %4453
        %4455 = vrot.lane.b32.xlu0 %v4385, 64
        %v4456 = vpop.permute.xlu0 %4455
        %4457 = vrot.lane.b32.xlu0 %v4386, 64
        %v4458 = vpop.permute.xlu0 %4457
        %4459 = vrot.lane.b32.xlu0 %v4387, 64
        %v4460 = vpop.permute.xlu0 %4459
        %4461 = vrot.lane.b32.xlu0 %v4388, 64
        %v4462 = vpop.permute.xlu0 %4461
        %4463 = vrot.lane.b32.xlu0 %v4389, 64
        %v4464 = vpop.permute.xlu0 %4463
        %4465 = vrot.lane.b32.xlu0 %v4390, 64
        %v4466 = vpop.permute.xlu0 %4465
        %4467 = vrot.lane.b32.xlu0 %v4391, 64
        %v4468 = vpop.permute.xlu0 %4467
        %4469 = vrot.lane.b32.xlu0 %v4392, 64
        %v4470 = vpop.permute.xlu0 %4469
        %4471 = vrot.lane.b32.xlu0 %v4393, 64
        %v4472 = vpop.permute.xlu0 %4471
        %4473 = vrot.lane.b32.xlu0 %v4394, 64
        %v4474 = vpop.permute.xlu0 %4473
        %4475 = vrot.lane.b32.xlu0 %v4395, 64
        %v4476 = vpop.permute.xlu0 %4475
        %4477 = vrot.lane.b32.xlu0 %v4396, 64
        %v4478 = vpop.permute.xlu0 %4477
        %4479 = vrot.lane.b32.xlu0 %v4397, 64
        %v4480 = vpop.permute.xlu0 %4479
        %4481 = vrot.lane.b32.xlu0 %v4398, 64
        %v4482 = vpop.permute.xlu0 %4481
        %4483 = vrot.lane.b32.xlu0 %v4399, 64
        %v4484 = vpop.permute.xlu0 %4483
        %4485 = vrot.lane.b32.xlu0 %v4400, 64
        %v4486 = vpop.permute.xlu0 %4485
        %4487 = vrot.lane.b32.xlu0 %v4401, 64
        %v4488 = vpop.permute.xlu0 %4487
        %4489 = vrot.lane.b32.xlu0 %v4402, 64
        %v4490 = vpop.permute.xlu0 %4489
        %4491 = vrot.lane.b32.xlu0 %v4403, 64
        %v4492 = vpop.permute.xlu0 %4491
        %4493 = vrot.lane.b32.xlu0 %v4404, 64
        %v4494 = vpop.permute.xlu0 %4493
        %4495 = vrot.lane.b32.xlu0 %v4405, 64
        %v4496 = vpop.permute.xlu0 %4495
        %4497 = vrot.lane.b32.xlu0 %v4406, 64
        %v4498 = vpop.permute.xlu0 %4497
        %4499 = vrot.lane.b32.xlu0 %v4407, 64
        %v4500 = vpop.permute.xlu0 %4499
        %4501 = vrot.lane.b32.xlu0 %v4408, 64
        %v4502 = vpop.permute.xlu0 %4501
        %4503 = vrot.lane.b32.xlu0 %v4409, 64
        %v4504 = vpop.permute.xlu0 %4503
        %4505 = vrot.lane.b32.xlu0 %v4410, 64
        %v4506 = vpop.permute.xlu0 %4505
        %vm4539 = vcmask 585216
        %4540 = vst.msk [vmem:[#allocation5] sm:$0xf] %vm4539, %v4444
        %4541 = vst.msk [vmem:[#allocation5 + $0x4] sm:$0xf] %vm4539, %v4446
        %4542 = vst.msk [vmem:[#allocation5 + $0x8] sm:$0xf] %vm4539, %v4448
        %4543 = vst.msk [vmem:[#allocation5 + $0xc] sm:$0xf] %vm4539, %v4450
        %4544 = vst.msk [vmem:[#allocation5 + $0x10] sm:$0xf] %vm4539, %v4452
        %4545 = vst.msk [vmem:[#allocation5 + $0x14] sm:$0xf] %vm4539, %v4454
        %4546 = vst.msk [vmem:[#allocation5 + $0x18] sm:$0xf] %vm4539, %v4456
        %4547 = vst.msk [vmem:[#allocation5 + $0x1c] sm:$0xf] %vm4539, %v4458
        %4548 = vst.msk [vmem:[#allocation5 + $0x20] sm:$0xf] %vm4539, %v4460
        %4549 = vst.msk [vmem:[#allocation5 + $0x24] sm:$0xf] %vm4539, %v4462
        %4550 = vst.msk [vmem:[#allocation5 + $0x28] sm:$0xf] %vm4539, %v4464
        %4551 = vst.msk [vmem:[#allocation5 + $0x2c] sm:$0xf] %vm4539, %v4466
        %4552 = vst.msk [vmem:[#allocation5 + $0x30] sm:$0xf] %vm4539, %v4468
        %4553 = vst.msk [vmem:[#allocation5 + $0x34] sm:$0xf] %vm4539, %v4470
        %4554 = vst.msk [vmem:[#allocation5 + $0x38] sm:$0xf] %vm4539, %v4472
        %4555 = vst.msk [vmem:[#allocation5 + $0x3c] sm:$0xf] %vm4539, %v4474
        %4556 = vst.msk [vmem:[#allocation5 + $0x40] sm:$0xf] %vm4539, %v4476
        %4557 = vst.msk [vmem:[#allocation5 + $0x44] sm:$0xf] %vm4539, %v4478
        %4558 = vst.msk [vmem:[#allocation5 + $0x48] sm:$0xf] %vm4539, %v4480
        %4559 = vst.msk [vmem:[#allocation5 + $0x4c] sm:$0xf] %vm4539, %v4482
        %4560 = vst.msk [vmem:[#allocation5 + $0x50] sm:$0xf] %vm4539, %v4484
        %4561 = vst.msk [vmem:[#allocation5 + $0x54] sm:$0xf] %vm4539, %v4486
        %4562 = vst.msk [vmem:[#allocation5 + $0x58] sm:$0xf] %vm4539, %v4488
        %4563 = vst.msk [vmem:[#allocation5 + $0x5c] sm:$0xf] %vm4539, %v4490
        %4564 = vst.msk [vmem:[#allocation5 + $0x60] sm:$0xf] %vm4539, %v4492
        %4565 = vst.msk [vmem:[#allocation5 + $0x64] sm:$0xf] %vm4539, %v4494
        %4566 = vst.msk [vmem:[#allocation5 + $0x68] sm:$0xf] %vm4539, %v4496
        %4567 = vst.msk [vmem:[#allocation5 + $0x6c] sm:$0xf] %vm4539, %v4498
        %4568 = vst.msk [vmem:[#allocation5 + $0x70] sm:$0xf] %vm4539, %v4500
        %4569 = vst.msk [vmem:[#allocation5 + $0x74] sm:$0xf] %vm4539, %v4502
        %4570 = vst.msk [vmem:[#allocation5 + $0x78] sm:$0xf] %vm4539, %v4504
        %4571 = vst.msk [vmem:[#allocation5 + $0x7c] sm:$0xf] %vm4539, %v4506
        %v4572 = vld [vmem:[#allocation5] sm:$0xf]
        %v4573 = vld [vmem:[#allocation5 + $0x4] sm:$0xf]
        %v4574 = vld [vmem:[#allocation5 + $0x8] sm:$0xf]
        %v4575 = vld [vmem:[#allocation5 + $0xc] sm:$0xf]
        %v4576 = vld [vmem:[#allocation5 + $0x10] sm:$0xf]
        %v4577 = vld [vmem:[#allocation5 + $0x14] sm:$0xf]
        %v4578 = vld [vmem:[#allocation5 + $0x18] sm:$0xf]
        %v4579 = vld [vmem:[#allocation5 + $0x1c] sm:$0xf]
        %v4580 = vld [vmem:[#allocation5 + $0x20] sm:$0xf]
        %v4581 = vld [vmem:[#allocation5 + $0x24] sm:$0xf]
        %v4582 = vld [vmem:[#allocation5 + $0x28] sm:$0xf]
        %v4583 = vld [vmem:[#allocation5 + $0x2c] sm:$0xf]
        %v4584 = vld [vmem:[#allocation5 + $0x30] sm:$0xf]
        %v4585 = vld [vmem:[#allocation5 + $0x34] sm:$0xf]
        %v4586 = vld [vmem:[#allocation5 + $0x38] sm:$0xf]
        %v4587 = vld [vmem:[#allocation5 + $0x3c] sm:$0xf]
        %v4588 = vld [vmem:[#allocation5 + $0x40] sm:$0xf]
        %v4589 = vld [vmem:[#allocation5 + $0x44] sm:$0xf]
        %v4590 = vld [vmem:[#allocation5 + $0x48] sm:$0xf]
        %v4591 = vld [vmem:[#allocation5 + $0x4c] sm:$0xf]
        %v4592 = vld [vmem:[#allocation5 + $0x50] sm:$0xf]
        %v4593 = vld [vmem:[#allocation5 + $0x54] sm:$0xf]
        %v4594 = vld [vmem:[#allocation5 + $0x58] sm:$0xf]
        %v4595 = vld [vmem:[#allocation5 + $0x5c] sm:$0xf]
        %v4596 = vld [vmem:[#allocation5 + $0x60] sm:$0xf]
        %v4597 = vld [vmem:[#allocation5 + $0x64] sm:$0xf]
        %v4598 = vld [vmem:[#allocation5 + $0x68] sm:$0xf]
        %v4599 = vld [vmem:[#allocation5 + $0x6c] sm:$0xf]
        %v4600 = vld [vmem:[#allocation5 + $0x70] sm:$0xf]
        %v4601 = vld [vmem:[#allocation5 + $0x74] sm:$0xf]
        %v4602 = vld [vmem:[#allocation5 + $0x78] sm:$0xf]
        %v4603 = vld [vmem:[#allocation5 + $0x7c] sm:$0xf]
        %v4604 = vld [vmem:[%s3] sm:$0xf]
        %v4605 = vld [vmem:[%s3 + $0x4] sm:$0xf]
        %v4606 = vld [vmem:[%s3 + $0x8] sm:$0xf]
        %v4607 = vld [vmem:[%s3 + $0xc] sm:$0xf]
        %v4608 = vld [vmem:[%s3 + $0x10] sm:$0xf]
        %v4609 = vld [vmem:[%s3 + $0x14] sm:$0xf]
        %v4610 = vld [vmem:[%s3 + $0x18] sm:$0xf]
        %v4611 = vld [vmem:[%s3 + $0x1c] sm:$0xf]
        %v4612 = vld [vmem:[%s3 + $0x20] sm:$0xf]
        %v4613 = vld [vmem:[#allocation8] sm:$0x1]
        %v4615 = vperm.slane %v4613, 0
        %v4649 = vunpack.c.l.b16 %v4572
        %v4650 = vunpack.c.l.b16 %v4573
        %v4651 = vunpack.c.l.b16 %v4574
        %v4652 = vunpack.c.l.b16 %v4575
        %v4653 = vunpack.c.l.b16 %v4576
        %v4654 = vunpack.c.l.b16 %v4577
        %v4655 = vunpack.c.l.b16 %v4578
        %v4656 = vunpack.c.l.b16 %v4579
        %v4657 = vunpack.c.l.b16 %v4580
        %v4658 = vunpack.c.l.b16 %v4581
        %v4659 = vunpack.c.l.b16 %v4582
        %v4660 = vunpack.c.l.b16 %v4583
        %v4661 = vunpack.c.l.b16 %v4584
        %v4662 = vunpack.c.l.b16 %v4585
        %v4663 = vunpack.c.l.b16 %v4586
        %v4664 = vunpack.c.l.b16 %v4587
        %v4665 = vunpack.c.l.b16 %v4588
        %v4666 = vunpack.c.l.b16 %v4589
        %v4667 = vunpack.c.l.b16 %v4590
        %v4668 = vunpack.c.l.b16 %v4591
        %v4669 = vunpack.c.l.b16 %v4592
        %v4670 = vunpack.c.l.b16 %v4593
        %v4671 = vunpack.c.l.b16 %v4594
        %v4672 = vunpack.c.l.b16 %v4595
        %v4673 = vunpack.c.l.b16 %v4596
        %v4674 = vunpack.c.l.b16 %v4597
        %v4675 = vunpack.c.l.b16 %v4598
        %v4676 = vunpack.c.l.b16 %v4599
        %v4677 = vunpack.c.l.b16 %v4600
        %v4678 = vunpack.c.l.b16 %v4601
        %v4679 = vunpack.c.l.b16 %v4602
        %v4680 = vunpack.c.l.b16 %v4603
        %v4681 = vpack.c.b16 %v4650, %v4649
        %v4682 = vpack.c.b16 %v4652, %v4651
        %v4683 = vpack.c.b16 %v4654, %v4653
        %v4684 = vpack.c.b16 %v4656, %v4655
        %v4685 = vpack.c.b16 %v4658, %v4657
        %v4686 = vpack.c.b16 %v4660, %v4659
        %v4687 = vpack.c.b16 %v4662, %v4661
        %v4688 = vpack.c.b16 %v4664, %v4663
        %v4689 = vpack.c.b16 %v4666, %v4665
        %v4690 = vpack.c.b16 %v4668, %v4667
        %v4691 = vpack.c.b16 %v4670, %v4669
        %v4692 = vpack.c.b16 %v4672, %v4671
        %v4693 = vpack.c.b16 %v4674, %v4673
        %v4694 = vpack.c.b16 %v4676, %v4675
        %v4695 = vpack.c.b16 %v4678, %v4677
        %v4696 = vpack.c.b16 %v4680, %v4679
        %v4706 = vunpack.c.l.b16 %v4604
        %v4707 = vunpack.c.l.b16 %v4605
        %v4708 = vunpack.c.l.b16 %v4606
        %v4709 = vunpack.c.l.b16 %v4607
        %v4710 = vunpack.c.l.b16 %v4608
        %v4711 = vunpack.c.l.b16 %v4609
        %v4712 = vunpack.c.l.b16 %v4610
        %v4713 = vunpack.c.l.b16 %v4611
        %v4714 = vunpack.c.l.b16 %v4612
        %v4715 = vpack.c.b16 %v4707, %v4706
        %v4716 = vpack.c.b16 %v4709, %v4708
        %v4717 = vpack.c.b16 %v4711, %v4710
        %v4718 = vpack.c.b16 %v4713, %v4712
        %v4719 = vpack.c.b16 %v4714, %v4714
        %vm4724 = vcmask 588800
        %v4726 = vsel %vm4724, %v4681, 0
        %v4729 = vsel %vm4724, %v4682, 0
        %v4732 = vsel %vm4724, %v4683, 0
        %v4735 = vsel %vm4724, %v4684, 0
        %v4738 = vsel %vm4724, %v4685, 0
        %v4741 = vsel %vm4724, %v4686, 0
        %v4744 = vsel %vm4724, %v4687, 0
        %v4747 = vsel %vm4724, %v4688, 0
        %v4750 = vsel %vm4724, %v4689, 0
        %v4753 = vsel %vm4724, %v4690, 0
        %v4756 = vsel %vm4724, %v4691, 0
        %v4759 = vsel %vm4724, %v4692, 0
        %v4762 = vsel %vm4724, %v4693, 0
        %v4765 = vsel %vm4724, %v4694, 0
        %v4768 = vsel %vm4724, %v4695, 0
        %v4771 = vsel %vm4724, %v4696, 0
        %vm4773 = vcmask 1043456
        %v4775 = vsel %vm4773, %v4719, 0
        %4777 = vmatpush.bf16.msra.mxu0 0
        %4778 = vmatpush.bf16.msra.mxu0 0
        %4779 = vmatpush.bf16.msra.mxu0 0
        %4780 = vmatpush.bf16.msra.mxu0 %v4775
        %4781 = vmatpush.bf16.msra.mxu0 %v4718
        %4782 = vmatpush.bf16.msra.mxu0 %v4717
        %4783 = vmatpush.bf16.msra.mxu0 %v4716
        %4784 = vmatpush.bf16.msra.mxu0 %v4715
        %4785 = vmatmul.bf16.gmra.mxu0 %v4726
        %v4786 = vpop.f32.mrf.mxu0
        %v4787 = vadd.f32 %v4615, %v4786
        %v4788 = vpop.f32.mrf.mxu0
        %v4789 = vadd.f32 %v4615, %v4788
        %4790 = vmatmul.bf16.gmra.mxu0 %v4729
        %v4791 = vpop.f32.mrf.mxu0
        %v4792 = vadd.f32 %v4615, %v4791
        %v4793 = vpop.f32.mrf.mxu0
        %v4794 = vadd.f32 %v4615, %v4793
        %4795 = vmatmul.bf16.gmra.mxu0 %v4732
        %v4796 = vpop.f32.mrf.mxu0
        %v4797 = vadd.f32 %v4615, %v4796
        %v4798 = vpop.f32.mrf.mxu0
        %v4799 = vadd.f32 %v4615, %v4798
        %4800 = vmatmul.bf16.gmra.mxu0 %v4735
        %v4801 = vpop.f32.mrf.mxu0
        %v4802 = vadd.f32 %v4615, %v4801
        %v4803 = vpop.f32.mrf.mxu0
        %v4804 = vadd.f32 %v4615, %v4803
        %4805 = vmatmul.bf16.gmra.mxu0 %v4738
        %v4806 = vpop.f32.mrf.mxu0
        %v4807 = vadd.f32 %v4615, %v4806
        %v4808 = vpop.f32.mrf.mxu0
        %v4809 = vadd.f32 %v4615, %v4808
        %4810 = vmatmul.bf16.gmra.mxu0 %v4741
        %v4811 = vpop.f32.mrf.mxu0
        %v4812 = vadd.f32 %v4615, %v4811
        %v4813 = vpop.f32.mrf.mxu0
        %v4814 = vadd.f32 %v4615, %v4813
        %4815 = vmatmul.bf16.gmra.mxu0 %v4744
        %v4816 = vpop.f32.mrf.mxu0
        %v4817 = vadd.f32 %v4615, %v4816
        %v4818 = vpop.f32.mrf.mxu0
        %v4819 = vadd.f32 %v4615, %v4818
        %4820 = vmatmul.bf16.gmra.mxu0 %v4747
        %v4821 = vpop.f32.mrf.mxu0
        %v4822 = vadd.f32 %v4615, %v4821
        %v4823 = vpop.f32.mrf.mxu0
        %v4824 = vadd.f32 %v4615, %v4823
        %4825 = vmatmul.bf16.gmra.mxu0 %v4750
        %v4826 = vpop.f32.mrf.mxu0
        %v4827 = vadd.f32 %v4615, %v4826
        %v4828 = vpop.f32.mrf.mxu0
        %v4829 = vadd.f32 %v4615, %v4828
        %4830 = vmatmul.bf16.gmra.mxu0 %v4753
        %v4831 = vpop.f32.mrf.mxu0
        %v4832 = vadd.f32 %v4615, %v4831
        %v4833 = vpop.f32.mrf.mxu0
        %v4834 = vadd.f32 %v4615, %v4833
        %4835 = vmatmul.bf16.gmra.mxu0 %v4756
        %v4836 = vpop.f32.mrf.mxu0
        %v4837 = vadd.f32 %v4615, %v4836
        %v4838 = vpop.f32.mrf.mxu0
        %v4839 = vadd.f32 %v4615, %v4838
        %4840 = vmatmul.bf16.gmra.mxu0 %v4759
        %v4841 = vpop.f32.mrf.mxu0
        %v4842 = vadd.f32 %v4615, %v4841
        %v4843 = vpop.f32.mrf.mxu0
        %v4844 = vadd.f32 %v4615, %v4843
        %4845 = vmatmul.bf16.gmra.mxu0 %v4762
        %v4846 = vpop.f32.mrf.mxu0
        %v4847 = vadd.f32 %v4615, %v4846
        %v4848 = vpop.f32.mrf.mxu0
        %v4849 = vadd.f32 %v4615, %v4848
        %4850 = vmatmul.bf16.gmra.mxu0 %v4765
        %v4851 = vpop.f32.mrf.mxu0
        %v4852 = vadd.f32 %v4615, %v4851
        %v4853 = vpop.f32.mrf.mxu0
        %v4854 = vadd.f32 %v4615, %v4853
        %4855 = vmatmul.bf16.gmra.mxu0 %v4768
        %v4856 = vpop.f32.mrf.mxu0
        %v4857 = vadd.f32 %v4615, %v4856
        %v4858 = vpop.f32.mrf.mxu0
        %v4859 = vadd.f32 %v4615, %v4858
        %4860 = vmatmul.bf16.gmra.mxu0 %v4771
        %v4861 = vpop.f32.mrf.mxu0
        %v4862 = vadd.f32 %v4615, %v4861
        %v4863 = vpop.f32.mrf.mxu0
        %v4864 = vadd.f32 %v4615, %v4863
        %4865 = vdwg.mxu0
        %v4866 = vmax.f32 %v4787, 0.0
        %v4867 = vmax.f32 %v4789, 0.0
        %v4868 = vmax.f32 %v4792, 0.0
        %v4869 = vmax.f32 %v4794, 0.0
        %v4870 = vmax.f32 %v4797, 0.0
        %v4871 = vmax.f32 %v4799, 0.0
        %v4872 = vmax.f32 %v4802, 0.0
        %v4873 = vmax.f32 %v4804, 0.0
        %v4874 = vmax.f32 %v4807, 0.0
        %v4875 = vmax.f32 %v4809, 0.0
        %v4876 = vmax.f32 %v4812, 0.0
        %v4877 = vmax.f32 %v4814, 0.0
        %v4878 = vmax.f32 %v4817, 0.0
        %v4879 = vmax.f32 %v4819, 0.0
        %v4880 = vmax.f32 %v4822, 0.0
        %v4881 = vmax.f32 %v4824, 0.0
        %v4882 = vmax.f32 %v4827, 0.0
        %v4883 = vmax.f32 %v4829, 0.0
        %v4884 = vmax.f32 %v4832, 0.0
        %v4885 = vmax.f32 %v4834, 0.0
        %v4886 = vmax.f32 %v4837, 0.0
        %v4887 = vmax.f32 %v4839, 0.0
        %v4888 = vmax.f32 %v4842, 0.0
        %v4889 = vmax.f32 %v4844, 0.0
        %v4890 = vmax.f32 %v4847, 0.0
        %v4891 = vmax.f32 %v4849, 0.0
        %v4892 = vmax.f32 %v4852, 0.0
        %v4893 = vmax.f32 %v4854, 0.0
        %v4894 = vmax.f32 %v4857, 0.0
        %v4895 = vmax.f32 %v4859, 0.0
        %v4896 = vmax.f32 %v4862, 0.0
        %v4897 = vmax.f32 %v4864, 0.0
        %vm4898 = vcmask 130048
        %4899 = vst.msk [vmem:[%s254] sm:$0xff] %vm4898, %v4866
        %4900 = vst.msk [vmem:[%s254 + $0x8] sm:$0xff] %vm4898, %v4867
        %4901 = vst.msk [vmem:[%s254 + $0x10] sm:$0xff] %vm4898, %v4868
        %4902 = vst.msk [vmem:[%s254 + $0x18] sm:$0xff] %vm4898, %v4869
        %4903 = vst.msk [vmem:[%s254 + $0x20] sm:$0xff] %vm4898, %v4870
        %4904 = vst.msk [vmem:[%s254 + $0x28] sm:$0xff] %vm4898, %v4871
        %4905 = vst.msk [vmem:[%s254 + $0x30] sm:$0xff] %vm4898, %v4872
        %4906 = vst.msk [vmem:[%s254 + $0x38] sm:$0xff] %vm4898, %v4873
        %4907 = vst.msk [vmem:[%s254 + $0x40] sm:$0xff] %vm4898, %v4874
        %4908 = vst.msk [vmem:[%s254 + $0x48] sm:$0xff] %vm4898, %v4875
        %4909 = vst.msk [vmem:[%s254 + $0x50] sm:$0xff] %vm4898, %v4876
        %4910 = vst.msk [vmem:[%s254 + $0x58] sm:$0xff] %vm4898, %v4877
        %4911 = vst.msk [vmem:[%s254 + $0x60] sm:$0xff] %vm4898, %v4878
        %4912 = vst.msk [vmem:[%s254 + $0x68] sm:$0xff] %vm4898, %v4879
        %4913 = vst.msk [vmem:[%s254 + $0x70] sm:$0xff] %vm4898, %v4880
        %4914 = vst.msk [vmem:[%s254 + $0x78] sm:$0xff] %vm4898, %v4881
        %4915 = vst.msk [vmem:[%s254 + $0x80] sm:$0xff] %vm4898, %v4882
        %4916 = vst.msk [vmem:[%s254 + $0x88] sm:$0xff] %vm4898, %v4883
        %4917 = vst.msk [vmem:[%s254 + $0x90] sm:$0xff] %vm4898, %v4884
        %4918 = vst.msk [vmem:[%s254 + $0x98] sm:$0xff] %vm4898, %v4885
        %4919 = vst.msk [vmem:[%s254 + $0xa0] sm:$0xff] %vm4898, %v4886
        %4920 = vst.msk [vmem:[%s254 + $0xa8] sm:$0xff] %vm4898, %v4887
        %4921 = vst.msk [vmem:[%s254 + $0xb0] sm:$0xff] %vm4898, %v4888
        %4922 = vst.msk [vmem:[%s254 + $0xb8] sm:$0xff] %vm4898, %v4889
        %4923 = vst.msk [vmem:[%s254 + $0xc0] sm:$0xff] %vm4898, %v4890
        %4924 = vst.msk [vmem:[%s254 + $0xc8] sm:$0xff] %vm4898, %v4891
        %4925 = vst.msk [vmem:[%s254 + $0xd0] sm:$0xff] %vm4898, %v4892
        %4926 = vst.msk [vmem:[%s254 + $0xd8] sm:$0xff] %vm4898, %v4893
        %4927 = vst.msk [vmem:[%s254 + $0xe0] sm:$0xff] %vm4898, %v4894
        %4928 = vst.msk [vmem:[%s254 + $0xe8] sm:$0xff] %vm4898, %v4895
        %4929 = vst.msk [vmem:[%s254 + $0xf0] sm:$0xff] %vm4898, %v4896
        %4930 = vst.msk [vmem:[%s254 + $0xf8] sm:$0xff] %vm4898, %v4897
        %p4931 = scmp.lt.s32.totalorder %s18, 1
        %s4932 = scalar_select %p4931, %s18, 1
        %s4933 = smul.addr %s4932, 32
        %s4934 = smul.addr %s4933, 8
        %s4935 = scalar_lea.vmem %s5, %s4934
        // Predicated region
        $region49: #{single_res_cnn_forward.2} parent=39 // pred_check
          %p4936 = pneg %p146
        $region50: #{single_res_cnn_forward.2} parent=39 // pred_check_branch
          %4938 = sbr.rel (%p4936) target = $region52
        $region51: #{single_res_cnn_forward.2} parent=39 // pred_region
          _
        $region52: #{single_res_cnn_forward.2} parent=39 // pred_fallthru
          _
      $region40: #{single_res_cnn_forward.2} parent=5 // pred_fallthru
        _
      %p4939 = scmp.le.s32.totalorder 2, %s13
      // Predicated region
      $region53: #{single_res_cnn_forward.2} parent=5 // pred_check
        %p4940 = pneg %p4939
      $region54: #{single_res_cnn_forward.2} parent=5 // pred_check_branch
        %4942 = sbr.rel (%p4940) target = $region56
      $region55: #{single_res_cnn_forward.2} parent=5 // pred_region
        %s4943 = ssub.s32 %s13, 2
        // Predicated region
        $region57: #{single_res_cnn_forward.2} parent=55 // pred_check
          %p4944 = pneg %p152
        $region58: #{single_res_cnn_forward.2} parent=55 // pred_check_branch
          %4946 = sbr.rel (%p4944) target = $region60
        $region59: #{single_res_cnn_forward.2} parent=55 // pred_region
          %p4947 = scmp.lt.s32.totalorder %s19, 1
          %s4948 = scalar_select %p4947, %s19, 1
          %s4949 = smul.addr %s4948, 32
          %s4950 = smul.addr %s4949, 8
          %s4951 = scalar_lea.vmem %s5, %s4950
        $region60: #{single_res_cnn_forward.2} parent=55 // pred_fallthru
          _
      $region56: #{single_res_cnn_forward.2} parent=5 // pred_fallthru
        _
    $region6: #{single_res_cnn_forward.2} parent=1 // loop_footer
      %s17 = sadd.s32 1, %s13
    $region7: #{single_res_cnn_forward.2} parent=1 // loop_footer_branch
      %12 = sbr.rel target = $region3
    $region8: #{single_res_cnn_forward.2} parent=1 // loop_exit
      _
    %4952 = vsyncpa [#allocation7], 1
    %s4953 = scalar_lea.sflag [#allocation7], 1
    %4954 = vsyncpa %s4953, 1
    %4955 = vsyncpa [#allocation9], 1

</llo_original>
